<compile_context>
chip_gen: v7x
topology: tpu7x:2x2x1
jax: 0.10.0
libtpu: 0.0.40
codegen_flags: <defaults>
</compile_context>

<pallas_src>
import jax
import jax.numpy as jnp
from jax.experimental import pallas as pl
from jax.experimental.pallas import tpu as pltpu


def _round_up(x, m):
    return (x + m - 1) // m * m


# ----------------------------------------------------------------------------
# Fused kernel: hoisted layer-0 input projection + L-layer GRU recurrence
# ----------------------------------------------------------------------------
def _gru_stack_kernel(x_ref, len_ref, h0_ref, wih_ref, whh_ref, bih_ref,
                      bhh_ref, out_ref, hu_ref, gx_scr):
    # Shapes (all static at trace time; D already padded to 128, B to 8):
    #   x_ref   : [T*B, D]    bf16 pooled basket embeddings, time-major flat
    #   len_ref : [B, 1]      int32 sequence lengths
    #   h0_ref  : [L, B, D]   f32 initial hidden state
    #   wih_ref : [L, D, 3D]  bf16 fused input->gate weights   (r|z|n)
    #   whh_ref : [L, D, 3D]  bf16 fused hidden->gate weights  (r|z|n)
    #   bih_ref : [L, 1, 3D]  f32 / bhh_ref : [L, 1, 3D] f32
    #   out_ref : [T, B, D]   f32 time-major output (permuted in the wrapper)
    #   hu_ref  : [L, B, D]   f32 final hidden
    #   gx_scr  : VMEM [T*B, 3D] f32 hoisted layer-0 gate projections
    L, B, D = h0_ref.shape
    T = out_ref.shape[0]
    G = 3 * D

    # Hoisted layer-0 input projection: ONE big bf16 MXU matmul over all steps,
    # f32 accumulation; layer-0 input bias folded in here (outside the loop).
    gx_scr[...] = (jnp.dot(x_ref[...], wih_ref[0],
                           preferred_element_type=jnp.float32)
                   + bih_ref[0])

    len_vec = len_ref[...]                                  # [B, 1] int32

    # Hoist bias broadcasts out of the time loop (JAX does not CSE them).
    b_hh = [jnp.broadcast_to(bhh_ref[l], (B, G)) for l in range(L)]
    b_ih = [None] + [jnp.broadcast_to(bih_ref[l], (B, G)) for l in range(1, L)]

    h_init = tuple(h0_ref[l] for l in range(L))

    def step(t, hs):
        valid = t < len_vec                                 # [B, 1] bool
        base = pl.multiple_of(t * B, 8)                     # B is a multiple of 8
        gx = gx_scr[pl.ds(base, B), :]                      # [B, 3D] f32

        new_hs = []
        layer_out = None
        for l in range(L):
            h = hs[l]
            if l > 0:
                # layer-l input projection (depends on layer l-1 output)
                gx = (jnp.dot(layer_out.astype(jnp.bfloat16), wih_ref[l],
                              preferred_element_type=jnp.float32) + b_ih[l])
            gh = (jnp.dot(h.astype(jnp.bfloat16), whh_ref[l],
                          preferred_element_type=jnp.float32) + b_hh[l])
            # Gate slices fall on 128-lane boundaries (D is a multiple of 128).
            r = jax.nn.sigmoid(gx[:, 0:D] + gh[:, 0:D])
            z = jax.nn.sigmoid(gx[:, D:2 * D] + gh[:, D:2 * D])
            n = jnp.tanh(gx[:, 2 * D:G] + r * gh[:, 2 * D:G])
            h_new = (1.0 - z) * n + z * h
            h_new = jnp.where(valid, h_new, h)              # freeze past length
            layer_out = jnp.where(valid, h_new, 0.0)        # pad_packed zero-pads
            new_hs.append(h_new)

        out_ref[t] = layer_out                              # lane-dense [B, D] store
        return tuple(new_hs)

    h_fin = jax.lax.fori_loop(0, T, step, h_init,
                              unroll=True if T <= 16 else 4)

    for l in range(L):
        hu_ref[l] = h_fin[l]


def gru_stack(x_flat, lengths2d, hidden, w_ih, w_hh, b_ih, b_hh, T):
    L, B, D = hidden.shape
    G = 3 * D
    TB = x_flat.shape[0]
    out_tm, h_u = pl.pallas_call(
        _gru_stack_kernel,
        out_shape=(jax.ShapeDtypeStruct((T, B, D), jnp.float32),
                   jax.ShapeDtypeStruct((L, B, D), jnp.float32)),
        grid=(1,),
        in_specs=[
            pl.BlockSpec((TB, D), lambda i: (0, 0)),
            pl.BlockSpec((B, 1), lambda i: (0, 0)),
            pl.BlockSpec((L, B, D), lambda i: (0, 0, 0)),
            pl.BlockSpec((L, D, G), lambda i: (0, 0, 0)),
            pl.BlockSpec((L, D, G), lambda i: (0, 0, 0)),
            pl.BlockSpec((L, 1, G), lambda i: (0, 0, 0)),
            pl.BlockSpec((L, 1, G), lambda i: (0, 0, 0)),
        ],
        out_specs=(pl.BlockSpec((T, B, D), lambda i: (0, 0, 0)),
                   pl.BlockSpec((L, B, D), lambda i: (0, 0, 0))),
        scratch_shapes=[pltpu.VMEM((TB, G), jnp.float32)],
        compiler_params=pltpu.CompilerParams(
            dimension_semantics=("arbitrary",),
            vmem_limit_bytes=64 * 1024 * 1024),
    )(x_flat, lengths2d, hidden, w_ih, w_hh, b_ih, b_hh)
    return out_tm, h_u


# ----------------------------------------------------------------------------
# Padding helpers (zero-padded rows/cols are provably inert in the GRU math)
# ----------------------------------------------------------------------------
def _pad_fused_gates(w, D, D_pad, row_pad):
    # w: [L, R, 3*D] with (r|z|n) column blocks of width D.
    # -> [L, R + row_pad, 3*D_pad]; each gate block is zero-padded to width
    #    D_pad so the padded r|z|n blocks stay 128-lane aligned.
    gates = [w[:, :, i * D:(i + 1) * D] for i in range(3)]
    gates = [jnp.pad(g, ((0, 0), (0, row_pad), (0, D_pad - D))) for g in gates]
    return jnp.concatenate(gates, axis=-1)


# ----------------------------------------------------------------------------
# DRModel.forward equivalent
# ----------------------------------------------------------------------------
def dr_model_forward(params, basket_idx, basket_mask, lengths, hidden):
    encode = params["encode"]                       # [n_items, D] f32
    B, T, K = basket_idx.shape
    _, D = encode.shape
    L = hidden.shape[0]

    D_pad = _round_up(D, 128)
    B_pad = _round_up(B, 8)

    # dh.pool_avg as a masked gather-sum in TIME-MAJOR order.
    # TODO(synk): fuse this gather into the kernel (SMEM basket indices + DMA
    # row gather) to avoid materializing [T*B, K, D] in HBM at production sizes.
    idx_tm = jnp.transpose(basket_idx, (1, 0, 2)).reshape(T * B, K)
    msk_tm = jnp.transpose(basket_mask, (1, 0, 2)).reshape(T * B, K)
    emb = jnp.take(encode, idx_tm, axis=0)                            # [T*B, K, D]
    cnt = jnp.maximum(jnp.sum(msk_tm, axis=-1, keepdims=True), 1.0)   # [T*B, 1]
    x_tm = jnp.sum(emb * (msk_tm / cnt)[..., None], axis=1)           # [T*B, D]

    # Pad batch to 8 sublanes and features to 128 lanes; bf16 matmul operands.
    x_tm = x_tm.reshape(T, B, D)
    x_tm = jnp.pad(x_tm, ((0, 0), (0, B_pad - B), (0, D_pad - D)))
    x_flat = x_tm.reshape(T * B_pad, D_pad).astype(jnp.bfloat16)

    lengths2d = jnp.pad(lengths.astype(jnp.int32),
                        (0, B_pad - B)).reshape(B_pad, 1)
    hidden_p = jnp.pad(hidden, ((0, 0), (0, B_pad - B), (0, D_pad - D)))

    w_ih = _pad_fused_gates(params["w_ih"], D, D_pad, D_pad - D).astype(jnp.bfloat16)
    w_hh = _pad_fused_gates(params["w_hh"], D, D_pad, D_pad - D).astype(jnp.bfloat16)
    b_ih = _pad_fused_gates(params["b_ih"], D, D_pad, 0)   # stays f32
    b_hh = _pad_fused_gates(params["b_hh"], D, D_pad, 0)

    out_tm, h_u = gru_stack(x_flat, lengths2d, hidden_p,
                            w_ih, w_hh, b_ih, b_hh, T)

    # Batch-first permute + un-padding in the wrapper (outside the kernel).
    dynamic_user = jnp.transpose(out_tm, (1, 0, 2))[:B, :, :D]
    h_u = h_u[:, :B, :D]
    return dynamic_user, h_u


# ----------------------------------------------------------------------------
# Pure-JAX (no Pallas) reference with the same bf16-operand / f32-accumulate
# matmul contract as the kernel.
# ----------------------------------------------------------------------------
def reference_forward(params, basket_idx, basket_mask, lengths, hidden):
    encode = params["encode"]
    w_ih, w_hh = params["w_ih"], params["w_hh"]
    b_ih, b_hh = params["b_ih"], params["b_hh"]
    L, B, D = hidden.shape
    T = basket_idx.shape[1]

    emb = jnp.take(encode, basket_idx, axis=0)                 # [B, T, K, D]
    cnt = jnp.maximum(basket_mask.sum(-1, keepdims=True), 1.0)
    x = (emb * (basket_mask / cnt)[..., None]).sum(2)          # [B, T, D]

    def mm(a, w):
        return jnp.dot(a.astype(jnp.bfloat16), w.astype(jnp.bfloat16),
                       preferred_element_type=jnp.float32)

    layer_in = x
    h_fin = []
    for l in range(L):
        h = hidden[l]
        outs = []
        for t in range(T):
            gx = mm(layer_in[:, t], w_ih[l]) + b_ih[l]
            gh = mm(h, w_hh[l]) + b_hh[l]
            r = jax.nn.sigmoid(gx[:, :D] + gh[:, :D])
            z = jax.nn.sigmoid(gx[:, D:2 * D] + gh[:, D:2 * D])
            n = jnp.tanh(gx[:, 2 * D:] + r * gh[:, 2 * D:])
            h_new = (1.0 - z) * n + z * h
            valid = (t < lengths)[:, None]
            outs.append(jnp.where(valid, h_new, 0.0))
            h = jnp.where(valid, h_new, h)
        h_fin.append(h)
        layer_in = jnp.stack(outs, axis=1)
    return layer_in, jnp.stack(h_fin, axis=0)


# ----------------------------------------------------------------------------
if __name__ == "__main__":
    B, T, D = 2, 8, 32          # batch_size, seq_len, embedding_dim
    n_items, K = 64, 5          # catalog size, max basket size
    L = 2                       # n_rnn_lays

    key = jax.random.PRNGKey(0)
    k_enc, k_idx, k_msk, k1, k2, k3, k4 = jax.random.split(key, 7)

    # encode parameter: uniform(-0.1, 0.1), matching init_weight()
    encode = jax.random.uniform(k_enc, (n_items, D), jnp.float32, -0.1, 0.1)

    # GRU parameters, fused gate layout [D, 3D] with (r|z|n) column blocks
    stdv = 1.0 / float(D) ** 0.5
    w_ih = jax.random.uniform(k1, (L, D, 3 * D), jnp.float32, -stdv, stdv)
    w_hh = jax.random.uniform(k2, (L, D, 3 * D), jnp.float32, -stdv, stdv)
    b_ih = jax.random.uniform(k3, (L, 1, 3 * D), jnp.float32, -stdv, stdv)
    b_hh = jax.random.uniform(k4, (L, 1, 3 * D), jnp.float32, -stdv, stdv)
    params = {"encode": encode, "w_ih": w_ih, "w_hh": w_hh,
              "b_ih": b_ih, "b_hh": b_hh}

    # synthetic input x: baskets of item ids + validity mask, sorted lengths
    basket_idx = jax.random.randint(k_idx, (B, T, K), 0, n_items,
                                    dtype=jnp.int32)
    basket_mask = (jax.random.uniform(k_msk, (B, T, K)) < 0.7
                   ).astype(jnp.float32)
    basket_mask = basket_mask.at[..., 0].set(1.0)       # >=1 item per basket
    lengths = jnp.array([T, T - 3], dtype=jnp.int32)    # sorted (pack_padded req)

    # init_hidden(batch_size) for GRU: zeros [n_layers, B, D]
    hidden = jnp.zeros((L, B, D), jnp.float32)

    fwd = jax.jit(dr_model_forward)
    dynamic_user, h_u = fwd(params, basket_idx, basket_mask, lengths, hidden)
    jax.block_until_ready((dynamic_user, h_u))

    ref_out, ref_h = reference_forward(params, basket_idx, basket_mask,
                                       lengths, hidden)
    assert dynamic_user.shape == (B, T, D) and h_u.shape == (L, B, D)
    err_o = float(jnp.max(jnp.abs(dynamic_user - ref_out)))
    err_h = float(jnp.max(jnp.abs(h_u - ref_h)))
    assert err_o < 2e-3 and err_h < 2e-3, (err_o, err_h)

    print("KERNEL_OK")
</pallas_src>

<mosaic_0001>
module attributes {stable_mosaic.version = 11 : i64} {
  func.func @_gru_stack_kernel(%arg0: i32, %arg1: memref<64x128xbf16, #tpu.memory_space<vmem>>, %arg2: memref<8x1xi32, #tpu.memory_space<vmem>>, %arg3: memref<2x8x128xf32, #tpu.memory_space<vmem>>, %arg4: memref<2x128x384xbf16, #tpu.memory_space<vmem>>, %arg5: memref<2x128x384xbf16, #tpu.memory_space<vmem>>, %arg6: memref<2x1x384xf32, #tpu.memory_space<vmem>>, %arg7: memref<2x1x384xf32, #tpu.memory_space<vmem>>, %arg8: memref<8x8x128xf32, #tpu.memory_space<vmem>>, %arg9: memref<2x8x128xf32, #tpu.memory_space<vmem>>, %arg10: memref<64x384xf32, #tpu.memory_space<vmem>>) attributes {dimension_semantics = [#tpu.dimension_semantics<arbitrary>], iteration_bounds = array<i64: 1>, scalar_prefetch = 0 : i64, scratch_operands = 1 : i64, tpu.core_type = #tpu.core_type<tc>, window_params = [{pipeline_mode = #tpu.pipeline_mode<synchronous>, transform_indices = @transform_0, window_bounds = array<i64: 64, 128>}, {pipeline_mode = #tpu.pipeline_mode<synchronous>, transform_indices = @transform_1, window_bounds = array<i64: 8, 1>}, {pipeline_mode = #tpu.pipeline_mode<synchronous>, transform_indices = @transform_2, window_bounds = array<i64: 2, 8, 128>}, {pipeline_mode = #tpu.pipeline_mode<synchronous>, transform_indices = @transform_3, window_bounds = array<i64: 2, 128, 384>}, {pipeline_mode = #tpu.pipeline_mode<synchronous>, transform_indices = @transform_4, window_bounds = array<i64: 2, 128, 384>}, {pipeline_mode = #tpu.pipeline_mode<synchronous>, transform_indices = @transform_5, window_bounds = array<i64: 2, 1, 384>}, {pipeline_mode = #tpu.pipeline_mode<synchronous>, transform_indices = @transform_6, window_bounds = array<i64: 2, 1, 384>}, {pipeline_mode = #tpu.pipeline_mode<synchronous>, transform_indices = @transform_7, window_bounds = array<i64: 8, 8, 128>}, {pipeline_mode = #tpu.pipeline_mode<synchronous>, transform_indices = @transform_8, window_bounds = array<i64: 2, 8, 128>}]} {
    %c0 = arith.constant 0 : index
    %c0_0 = arith.constant 0 : index
    %0 = vector.load %arg1[%c0, %c0_0] : memref<64x128xbf16, #tpu.memory_space<vmem>>, vector<64x128xbf16>
    %c0_1 = arith.constant 0 : index
    %c0_2 = arith.constant 0 : index
    %c0_3 = arith.constant 0 : index
    %1 = vector.load %arg4[%c0_1, %c0_2, %c0_3] : memref<2x128x384xbf16, #tpu.memory_space<vmem>>, vector<1x128x384xbf16>
    %2 = vector.shape_cast %1 : vector<1x128x384xbf16> to vector<128x384xbf16>
    %cst = arith.constant dense<0.000000e+00> : vector<64x384xf32>
    %3 = tpu.matmul %0, %2, %cst {dimension_numbers = #tpu.dot_dimension_numbers<[1], [0], [0], [1], [0, 0, 1, 1], [], []>} : vector<64x128xbf16>, vector<128x384xbf16>, vector<64x384xf32> -> vector<64x384xf32>
    %c0_4 = arith.constant 0 : index
    %c0_5 = arith.constant 0 : index
    %c0_6 = arith.constant 0 : index
    %4 = vector.load %arg6[%c0_4, %c0_5, %c0_6] : memref<2x1x384xf32, #tpu.memory_space<vmem>>, vector<1x1x384xf32>
    %5 = vector.shape_cast %4 : vector<1x1x384xf32> to vector<1x384xf32>
    %6 = vector.broadcast %5 : vector<1x384xf32> to vector<64x384xf32>
    %7 = arith.addf %3, %6 : vector<64x384xf32>
    %c0_7 = arith.constant 0 : index
    %c0_8 = arith.constant 0 : index
    %8 = vector.load %arg10[%c0_7, %c0_8] : memref<64x384xf32, #tpu.memory_space<vmem>>, vector<64x384xf32>
    tpu.vector_store %arg10[%c0_7, %c0_8], %7 {strides = array<i32>} : memref<64x384xf32, #tpu.memory_space<vmem>>, vector<64x384xf32>,
    %c0_9 = arith.constant 0 : index
    %c0_10 = arith.constant 0 : index
    %9 = vector.load %arg2[%c0_9, %c0_10] : memref<8x1xi32, #tpu.memory_space<vmem>>, vector<8x1xi32>
    %c0_11 = arith.constant 0 : index
    %c0_12 = arith.constant 0 : index
    %c0_13 = arith.constant 0 : index
    %10 = vector.load %arg7[%c0_11, %c0_12, %c0_13] : memref<2x1x384xf32, #tpu.memory_space<vmem>>, vector<1x1x384xf32>
    %11 = vector.shape_cast %10 : vector<1x1x384xf32> to vector<1x384xf32>
    %12 = vector.shape_cast %11 : vector<1x384xf32> to vector<1x384xf32>
    %13 = vector.broadcast %12 : vector<1x384xf32> to vector<8x384xf32>
    %c1 = arith.constant 1 : index
    %c0_14 = arith.constant 0 : index
    %c0_15 = arith.constant 0 : index
    %14 = vector.load %arg7[%c1, %c0_14, %c0_15] : memref<2x1x384xf32, #tpu.memory_space<vmem>>, vector<1x1x384xf32>
    %15 = vector.shape_cast %14 : vector<1x1x384xf32> to vector<1x384xf32>
    %16 = vector.shape_cast %15 : vector<1x384xf32> to vector<1x384xf32>
    %17 = vector.broadcast %16 : vector<1x384xf32> to vector<8x384xf32>
    %c1_16 = arith.constant 1 : index
    %c0_17 = arith.constant 0 : index
    %c0_18 = arith.constant 0 : index
    %18 = vector.load %arg6[%c1_16, %c0_17, %c0_18] : memref<2x1x384xf32, #tpu.memory_space<vmem>>, vector<1x1x384xf32>
    %19 = vector.shape_cast %18 : vector<1x1x384xf32> to vector<1x384xf32>
    %20 = vector.shape_cast %19 : vector<1x384xf32> to vector<1x384xf32>
    %21 = vector.broadcast %20 : vector<1x384xf32> to vector<8x384xf32>
    %c0_19 = arith.constant 0 : index
    %c0_20 = arith.constant 0 : index
    %c0_21 = arith.constant 0 : index
    %22 = vector.load %arg3[%c0_19, %c0_20, %c0_21] : memref<2x8x128xf32, #tpu.memory_space<vmem>>, vector<1x8x128xf32>
    %23 = vector.shape_cast %22 : vector<1x8x128xf32> to vector<8x128xf32>
    %c1_22 = arith.constant 1 : index
    %c0_23 = arith.constant 0 : index
    %c0_24 = arith.constant 0 : index
    %24 = vector.load %arg3[%c1_22, %c0_23, %c0_24] : memref<2x8x128xf32, #tpu.memory_space<vmem>>, vector<1x8x128xf32>
    %25 = vector.shape_cast %24 : vector<1x8x128xf32> to vector<8x128xf32>
    %c0_i32 = arith.constant 0 : i32
    %26 = vector.broadcast %c0_i32 : i32 to vector<8x1xi32>
    %27 = arith.cmpi slt, %26, %9 : vector<8x1xi32>
    %c8_i32 = arith.constant 8 : i32
    %28 = arith.muli %c0_i32, %c8_i32 : i32
    %29 = tpu.assume_multiple %28, 8 : i32
    %30 = arith.index_cast %29 : i32 to index
    %c0_25 = arith.constant 0 : index
    %31 = vector.load %arg10[%30, %c0_25] : memref<64x384xf32, #tpu.memory_space<vmem>>, vector<8x384xf32>
    %32 = arith.truncf %23 : vector<8x128xf32> to vector<8x128xbf16>
    %c0_26 = arith.constant 0 : index
    %c0_27 = arith.constant 0 : index
    %c0_28 = arith.constant 0 : index
    %33 = vector.load %arg5[%c0_26, %c0_27, %c0_28] : memref<2x128x384xbf16, #tpu.memory_space<vmem>>, vector<1x128x384xbf16>
    %34 = vector.shape_cast %33 : vector<1x128x384xbf16> to vector<128x384xbf16>
    %cst_29 = arith.constant dense<0.000000e+00> : vector<8x384xf32>
    %35 = tpu.matmul %32, %34, %cst_29 {dimension_numbers = #tpu.dot_dimension_numbers<[1], [0], [0], [1], [0, 0, 1, 1], [], []>} : vector<8x128xbf16>, vector<128x384xbf16>, vector<8x384xf32> -> vector<8x384xf32>
    %36 = arith.addf %35, %13 : vector<8x384xf32>
    %37 = vector.extract_strided_slice %31 {offsets = [0, 0], sizes = [8, 128], strides = [1, 1]} : vector<8x384xf32> to vector<8x128xf32>
    %38 = vector.extract_strided_slice %36 {offsets = [0, 0], sizes = [8, 128], strides = [1, 1]} : vector<8x384xf32> to vector<8x128xf32>
    %39 = arith.addf %37, %38 : vector<8x128xf32>
    %40 = arith.negf %39 : vector<8x128xf32>
    %41 = math.exp %40 : vector<8x128xf32>
    %cst_30 = arith.constant 1.000000e+00 : f32
    %42 = vector.broadcast %cst_30 : f32 to vector<8x128xf32>
    %43 = arith.addf %42, %41 : vector<8x128xf32>
    %44 = arith.divf %42, %43 : vector<8x128xf32>
    %45 = vector.extract_strided_slice %31 {offsets = [0, 128], sizes = [8, 128], strides = [1, 1]} : vector<8x384xf32> to vector<8x128xf32>
    %46 = vector.extract_strided_slice %36 {offsets = [0, 128], sizes = [8, 128], strides = [1, 1]} : vector<8x384xf32> to vector<8x128xf32>
    %47 = arith.addf %45, %46 : vector<8x128xf32>
    %48 = arith.negf %47 : vector<8x128xf32>
    %49 = math.exp %48 : vector<8x128xf32>
    %cst_31 = arith.constant 1.000000e+00 : f32
    %50 = vector.broadcast %cst_31 : f32 to vector<8x128xf32>
    %51 = arith.addf %50, %49 : vector<8x128xf32>
    %52 = arith.divf %50, %51 : vector<8x128xf32>
    %53 = vector.extract_strided_slice %31 {offsets = [0, 256], sizes = [8, 128], strides = [1, 1]} : vector<8x384xf32> to vector<8x128xf32>
    %54 = vector.extract_strided_slice %36 {offsets = [0, 256], sizes = [8, 128], strides = [1, 1]} : vector<8x384xf32> to vector<8x128xf32>
    %55 = arith.mulf %44, %54 : vector<8x128xf32>
    %56 = arith.addf %53, %55 : vector<8x128xf32>
    %57 = math.tanh %56 : vector<8x128xf32>
    %cst_32 = arith.constant 1.000000e+00 : f32
    %58 = vector.broadcast %cst_32 : f32 to vector<8x128xf32>
    %59 = arith.subf %58, %52 : vector<8x128xf32>
    %60 = arith.mulf %59, %57 : vector<8x128xf32>
    %61 = arith.mulf %52, %23 : vector<8x128xf32>
    %62 = arith.addf %60, %61 : vector<8x128xf32>
    %63 = vector.shape_cast %27 : vector<8x1xi1> to vector<8x1xi1>
    %64 = vector.broadcast %63 : vector<8x1xi1> to vector<8x128xi1>
    %65 = arith.select %64, %62, %23 : vector<8x128xi1>, vector<8x128xf32>
    %cst_33 = arith.constant 0.000000e+00 : f32
    %66 = vector.shape_cast %27 : vector<8x1xi1> to vector<8x1xi1>
    %67 = vector.broadcast %66 : vector<8x1xi1> to vector<8x128xi1>
    %68 = vector.broadcast %cst_33 : f32 to vector<8x128xf32>
    %69 = arith.select %67, %65, %68 : vector<8x128xi1>, vector<8x128xf32>
    %70 = arith.truncf %69 : vector<8x128xf32> to vector<8x128xbf16>
    %c1_34 = arith.constant 1 : index
    %c0_35 = arith.constant 0 : index
    %c0_36 = arith.constant 0 : index
    %71 = vector.load %arg4[%c1_34, %c0_35, %c0_36] : memref<2x128x384xbf16, #tpu.memory_space<vmem>>, vector<1x128x384xbf16>
    %72 = vector.shape_cast %71 : vector<1x128x384xbf16> to vector<128x384xbf16>
    %cst_37 = arith.constant dense<0.000000e+00> : vector<8x384xf32>
    %73 = tpu.matmul %70, %72, %cst_37 {dimension_numbers = #tpu.dot_dimension_numbers<[1], [0], [0], [1], [0, 0, 1, 1], [], []>} : vector<8x128xbf16>, vector<128x384xbf16>, vector<8x384xf32> -> vector<8x384xf32>
    %74 = arith.addf %73, %21 : vector<8x384xf32>
    %75 = arith.truncf %25 : vector<8x128xf32> to vector<8x128xbf16>
    %c1_38 = arith.constant 1 : index
    %c0_39 = arith.constant 0 : index
    %c0_40 = arith.constant 0 : index
    %76 = vector.load %arg5[%c1_38, %c0_39, %c0_40] : memref<2x128x384xbf16, #tpu.memory_space<vmem>>, vector<1x128x384xbf16>
    %77 = vector.shape_cast %76 : vector<1x128x384xbf16> to vector<128x384xbf16>
    %cst_41 = arith.constant dense<0.000000e+00> : vector<8x384xf32>
    %78 = tpu.matmul %75, %77, %cst_41 {dimension_numbers = #tpu.dot_dimension_numbers<[1], [0], [0], [1], [0, 0, 1, 1], [], []>} : vector<8x128xbf16>, vector<128x384xbf16>, vector<8x384xf32> -> vector<8x384xf32>
    %79 = arith.addf %78, %17 : vector<8x384xf32>
    %80 = vector.extract_strided_slice %74 {offsets = [0, 0], sizes = [8, 128], strides = [1, 1]} : vector<8x384xf32> to vector<8x128xf32>
    %81 = vector.extract_strided_slice %79 {offsets = [0, 0], sizes = [8, 128], strides = [1, 1]} : vector<8x384xf32> to vector<8x128xf32>
    %82 = arith.addf %80, %81 : vector<8x128xf32>
    %83 = arith.negf %82 : vector<8x128xf32>
    %84 = math.exp %83 : vector<8x128xf32>
    %cst_42 = arith.constant 1.000000e+00 : f32
    %85 = vector.broadcast %cst_42 : f32 to vector<8x128xf32>
    %86 = arith.addf %85, %84 : vector<8x128xf32>
    %87 = arith.divf %85, %86 : vector<8x128xf32>
    %88 = vector.extract_strided_slice %74 {offsets = [0, 128], sizes = [8, 128], strides = [1, 1]} : vector<8x384xf32> to vector<8x128xf32>
    %89 = vector.extract_strided_slice %79 {offsets = [0, 128], sizes = [8, 128], strides = [1, 1]} : vector<8x384xf32> to vector<8x128xf32>
    %90 = arith.addf %88, %89 : vector<8x128xf32>
    %91 = arith.negf %90 : vector<8x128xf32>
    %92 = math.exp %91 : vector<8x128xf32>
    %cst_43 = arith.constant 1.000000e+00 : f32
    %93 = vector.broadcast %cst_43 : f32 to vector<8x128xf32>
    %94 = arith.addf %93, %92 : vector<8x128xf32>
    %95 = arith.divf %93, %94 : vector<8x128xf32>
    %96 = vector.extract_strided_slice %74 {offsets = [0, 256], sizes = [8, 128], strides = [1, 1]} : vector<8x384xf32> to vector<8x128xf32>
    %97 = vector.extract_strided_slice %79 {offsets = [0, 256], sizes = [8, 128], strides = [1, 1]} : vector<8x384xf32> to vector<8x128xf32>
    %98 = arith.mulf %87, %97 : vector<8x128xf32>
    %99 = arith.addf %96, %98 : vector<8x128xf32>
    %100 = math.tanh %99 : vector<8x128xf32>
    %cst_44 = arith.constant 1.000000e+00 : f32
    %101 = vector.broadcast %cst_44 : f32 to vector<8x128xf32>
    %102 = arith.subf %101, %95 : vector<8x128xf32>
    %103 = arith.mulf %102, %100 : vector<8x128xf32>
    %104 = arith.mulf %95, %25 : vector<8x128xf32>
    %105 = arith.addf %103, %104 : vector<8x128xf32>
    %106 = vector.shape_cast %27 : vector<8x1xi1> to vector<8x1xi1>
    %107 = vector.broadcast %106 : vector<8x1xi1> to vector<8x128xi1>
    %108 = arith.select %107, %105, %25 : vector<8x128xi1>, vector<8x128xf32>
    %cst_45 = arith.constant 0.000000e+00 : f32
    %109 = vector.shape_cast %27 : vector<8x1xi1> to vector<8x1xi1>
    %110 = vector.broadcast %109 : vector<8x1xi1> to vector<8x128xi1>
    %111 = vector.broadcast %cst_45 : f32 to vector<8x128xf32>
    %112 = arith.select %110, %108, %111 : vector<8x128xi1>, vector<8x128xf32>
    %113 = arith.index_cast %c0_i32 : i32 to index
    %c0_46 = arith.constant 0 : index
    %c0_47 = arith.constant 0 : index
    %114 = vector.load %arg8[%113, %c0_46, %c0_47] : memref<8x8x128xf32, #tpu.memory_space<vmem>>, vector<1x8x128xf32>
    %115 = vector.shape_cast %114 : vector<1x8x128xf32> to vector<8x128xf32>
    %116 = vector.shape_cast %112 : vector<8x128xf32> to vector<1x8x128xf32>
    tpu.vector_store %arg8[%113, %c0_46, %c0_47], %116 {strides = array<i32>} : memref<8x8x128xf32, #tpu.memory_space<vmem>>, vector<1x8x128xf32>,
    %c1_i32 = arith.constant 1 : i32
    %117 = vector.broadcast %c1_i32 : i32 to vector<8x1xi32>
    %118 = arith.cmpi slt, %117, %9 : vector<8x1xi32>
    %c8_i32_48 = arith.constant 8 : i32
    %119 = arith.muli %c1_i32, %c8_i32_48 : i32
    %120 = tpu.assume_multiple %119, 8 : i32
    %121 = arith.index_cast %120 : i32 to index
    %c0_49 = arith.constant 0 : index
    %122 = vector.load %arg10[%121, %c0_49] : memref<64x384xf32, #tpu.memory_space<vmem>>, vector<8x384xf32>
    %123 = arith.truncf %65 : vector<8x128xf32> to vector<8x128xbf16>
    %c0_50 = arith.constant 0 : index
    %c0_51 = arith.constant 0 : index
    %c0_52 = arith.constant 0 : index
    %124 = vector.load %arg5[%c0_50, %c0_51, %c0_52] : memref<2x128x384xbf16, #tpu.memory_space<vmem>>, vector<1x128x384xbf16>
    %125 = vector.shape_cast %124 : vector<1x128x384xbf16> to vector<128x384xbf16>
    %cst_53 = arith.constant dense<0.000000e+00> : vector<8x384xf32>
    %126 = tpu.matmul %123, %125, %cst_53 {dimension_numbers = #tpu.dot_dimension_numbers<[1], [0], [0], [1], [0, 0, 1, 1], [], []>} : vector<8x128xbf16>, vector<128x384xbf16>, vector<8x384xf32> -> vector<8x384xf32>
    %127 = arith.addf %126, %13 : vector<8x384xf32>
    %128 = vector.extract_strided_slice %122 {offsets = [0, 0], sizes = [8, 128], strides = [1, 1]} : vector<8x384xf32> to vector<8x128xf32>
    %129 = vector.extract_strided_slice %127 {offsets = [0, 0], sizes = [8, 128], strides = [1, 1]} : vector<8x384xf32> to vector<8x128xf32>
    %130 = arith.addf %128, %129 : vector<8x128xf32>
    %131 = arith.negf %130 : vector<8x128xf32>
    %132 = math.exp %131 : vector<8x128xf32>
    %cst_54 = arith.constant 1.000000e+00 : f32
    %133 = vector.broadcast %cst_54 : f32 to vector<8x128xf32>
    %134 = arith.addf %133, %132 : vector<8x128xf32>
    %135 = arith.divf %133, %134 : vector<8x128xf32>
    %136 = vector.extract_strided_slice %122 {offsets = [0, 128], sizes = [8, 128], strides = [1, 1]} : vector<8x384xf32> to vector<8x128xf32>
    %137 = vector.extract_strided_slice %127 {offsets = [0, 128], sizes = [8, 128], strides = [1, 1]} : vector<8x384xf32> to vector<8x128xf32>
    %138 = arith.addf %136, %137 : vector<8x128xf32>
    %139 = arith.negf %138 : vector<8x128xf32>
    %140 = math.exp %139 : vector<8x128xf32>
    %cst_55 = arith.constant 1.000000e+00 : f32
    %141 = vector.broadcast %cst_55 : f32 to vector<8x128xf32>
    %142 = arith.addf %141, %140 : vector<8x128xf32>
    %143 = arith.divf %141, %142 : vector<8x128xf32>
    %144 = vector.extract_strided_slice %122 {offsets = [0, 256], sizes = [8, 128], strides = [1, 1]} : vector<8x384xf32> to vector<8x128xf32>
    %145 = vector.extract_strided_slice %127 {offsets = [0, 256], sizes = [8, 128], strides = [1, 1]} : vector<8x384xf32> to vector<8x128xf32>
    %146 = arith.mulf %135, %145 : vector<8x128xf32>
    %147 = arith.addf %144, %146 : vector<8x128xf32>
    %148 = math.tanh %147 : vector<8x128xf32>
    %cst_56 = arith.constant 1.000000e+00 : f32
    %149 = vector.broadcast %cst_56 : f32 to vector<8x128xf32>
    %150 = arith.subf %149, %143 : vector<8x128xf32>
    %151 = arith.mulf %150, %148 : vector<8x128xf32>
    %152 = arith.mulf %143, %65 : vector<8x128xf32>
    %153 = arith.addf %151, %152 : vector<8x128xf32>
    %154 = vector.shape_cast %118 : vector<8x1xi1> to vector<8x1xi1>
    %155 = vector.broadcast %154 : vector<8x1xi1> to vector<8x128xi1>
    %156 = arith.select %155, %153, %65 : vector<8x128xi1>, vector<8x128xf32>
    %cst_57 = arith.constant 0.000000e+00 : f32
    %157 = vector.shape_cast %118 : vector<8x1xi1> to vector<8x1xi1>
    %158 = vector.broadcast %157 : vector<8x1xi1> to vector<8x128xi1>
    %159 = vector.broadcast %cst_57 : f32 to vector<8x128xf32>
    %160 = arith.select %158, %156, %159 : vector<8x128xi1>, vector<8x128xf32>
    %161 = arith.truncf %160 : vector<8x128xf32> to vector<8x128xbf16>
    %c1_58 = arith.constant 1 : index
    %c0_59 = arith.constant 0 : index
    %c0_60 = arith.constant 0 : index
    %162 = vector.load %arg4[%c1_58, %c0_59, %c0_60] : memref<2x128x384xbf16, #tpu.memory_space<vmem>>, vector<1x128x384xbf16>
    %163 = vector.shape_cast %162 : vector<1x128x384xbf16> to vector<128x384xbf16>
    %cst_61 = arith.constant dense<0.000000e+00> : vector<8x384xf32>
    %164 = tpu.matmul %161, %163, %cst_61 {dimension_numbers = #tpu.dot_dimension_numbers<[1], [0], [0], [1], [0, 0, 1, 1], [], []>} : vector<8x128xbf16>, vector<128x384xbf16>, vector<8x384xf32> -> vector<8x384xf32>
    %165 = arith.addf %164, %21 : vector<8x384xf32>
    %166 = arith.truncf %108 : vector<8x128xf32> to vector<8x128xbf16>
    %c1_62 = arith.constant 1 : index
    %c0_63 = arith.constant 0 : index
    %c0_64 = arith.constant 0 : index
    %167 = vector.load %arg5[%c1_62, %c0_63, %c0_64] : memref<2x128x384xbf16, #tpu.memory_space<vmem>>, vector<1x128x384xbf16>
    %168 = vector.shape_cast %167 : vector<1x128x384xbf16> to vector<128x384xbf16>
    %cst_65 = arith.constant dense<0.000000e+00> : vector<8x384xf32>
    %169 = tpu.matmul %166, %168, %cst_65 {dimension_numbers = #tpu.dot_dimension_numbers<[1], [0], [0], [1], [0, 0, 1, 1], [], []>} : vector<8x128xbf16>, vector<128x384xbf16>, vector<8x384xf32> -> vector<8x384xf32>
    %170 = arith.addf %169, %17 : vector<8x384xf32>
    %171 = vector.extract_strided_slice %165 {offsets = [0, 0], sizes = [8, 128], strides = [1, 1]} : vector<8x384xf32> to vector<8x128xf32>
    %172 = vector.extract_strided_slice %170 {offsets = [0, 0], sizes = [8, 128], strides = [1, 1]} : vector<8x384xf32> to vector<8x128xf32>
    %173 = arith.addf %171, %172 : vector<8x128xf32>
    %174 = arith.negf %173 : vector<8x128xf32>
    %175 = math.exp %174 : vector<8x128xf32>
    %cst_66 = arith.constant 1.000000e+00 : f32
    %176 = vector.broadcast %cst_66 : f32 to vector<8x128xf32>
    %177 = arith.addf %176, %175 : vector<8x128xf32>
    %178 = arith.divf %176, %177 : vector<8x128xf32>
    %179 = vector.extract_strided_slice %165 {offsets = [0, 128], sizes = [8, 128], strides = [1, 1]} : vector<8x384xf32> to vector<8x128xf32>
    %180 = vector.extract_strided_slice %170 {offsets = [0, 128], sizes = [8, 128], strides = [1, 1]} : vector<8x384xf32> to vector<8x128xf32>
    %181 = arith.addf %179, %180 : vector<8x128xf32>
    %182 = arith.negf %181 : vector<8x128xf32>
    %183 = math.exp %182 : vector<8x128xf32>
    %cst_67 = arith.constant 1.000000e+00 : f32
    %184 = vector.broadcast %cst_67 : f32 to vector<8x128xf32>
    %185 = arith.addf %184, %183 : vector<8x128xf32>
    %186 = arith.divf %184, %185 : vector<8x128xf32>
    %187 = vector.extract_strided_slice %165 {offsets = [0, 256], sizes = [8, 128], strides = [1, 1]} : vector<8x384xf32> to vector<8x128xf32>
    %188 = vector.extract_strided_slice %170 {offsets = [0, 256], sizes = [8, 128], strides = [1, 1]} : vector<8x384xf32> to vector<8x128xf32>
    %189 = arith.mulf %178, %188 : vector<8x128xf32>
    %190 = arith.addf %187, %189 : vector<8x128xf32>
    %191 = math.tanh %190 : vector<8x128xf32>
    %cst_68 = arith.constant 1.000000e+00 : f32
    %192 = vector.broadcast %cst_68 : f32 to vector<8x128xf32>
    %193 = arith.subf %192, %186 : vector<8x128xf32>
    %194 = arith.mulf %193, %191 : vector<8x128xf32>
    %195 = arith.mulf %186, %108 : vector<8x128xf32>
    %196 = arith.addf %194, %195 : vector<8x128xf32>
    %197 = vector.shape_cast %118 : vector<8x1xi1> to vector<8x1xi1>
    %198 = vector.broadcast %197 : vector<8x1xi1> to vector<8x128xi1>
    %199 = arith.select %198, %196, %108 : vector<8x128xi1>, vector<8x128xf32>
    %cst_69 = arith.constant 0.000000e+00 : f32
    %200 = vector.shape_cast %118 : vector<8x1xi1> to vector<8x1xi1>
    %201 = vector.broadcast %200 : vector<8x1xi1> to vector<8x128xi1>
    %202 = vector.broadcast %cst_69 : f32 to vector<8x128xf32>
    %203 = arith.select %201, %199, %202 : vector<8x128xi1>, vector<8x128xf32>
    %204 = arith.index_cast %c1_i32 : i32 to index
    %c0_70 = arith.constant 0 : index
    %c0_71 = arith.constant 0 : index
    %205 = vector.load %arg8[%204, %c0_70, %c0_71] : memref<8x8x128xf32, #tpu.memory_space<vmem>>, vector<1x8x128xf32>
    %206 = vector.shape_cast %205 : vector<1x8x128xf32> to vector<8x128xf32>
    %207 = vector.shape_cast %203 : vector<8x128xf32> to vector<1x8x128xf32>
    tpu.vector_store %arg8[%204, %c0_70, %c0_71], %207 {strides = array<i32>} : memref<8x8x128xf32, #tpu.memory_space<vmem>>, vector<1x8x128xf32>,
    %c2_i32 = arith.constant 2 : i32
    %208 = vector.broadcast %c2_i32 : i32 to vector<8x1xi32>
    %209 = arith.cmpi slt, %208, %9 : vector<8x1xi32>
    %c8_i32_72 = arith.constant 8 : i32
    %210 = arith.muli %c2_i32, %c8_i32_72 : i32
    %211 = tpu.assume_multiple %210, 8 : i32
    %212 = arith.index_cast %211 : i32 to index
    %c0_73 = arith.constant 0 : index
    %213 = vector.load %arg10[%212, %c0_73] : memref<64x384xf32, #tpu.memory_space<vmem>>, vector<8x384xf32>
    %214 = arith.truncf %156 : vector<8x128xf32> to vector<8x128xbf16>
    %c0_74 = arith.constant 0 : index
    %c0_75 = arith.constant 0 : index
    %c0_76 = arith.constant 0 : index
    %215 = vector.load %arg5[%c0_74, %c0_75, %c0_76] : memref<2x128x384xbf16, #tpu.memory_space<vmem>>, vector<1x128x384xbf16>
    %216 = vector.shape_cast %215 : vector<1x128x384xbf16> to vector<128x384xbf16>
    %cst_77 = arith.constant dense<0.000000e+00> : vector<8x384xf32>
    %217 = tpu.matmul %214, %216, %cst_77 {dimension_numbers = #tpu.dot_dimension_numbers<[1], [0], [0], [1], [0, 0, 1, 1], [], []>} : vector<8x128xbf16>, vector<128x384xbf16>, vector<8x384xf32> -> vector<8x384xf32>
    %218 = arith.addf %217, %13 : vector<8x384xf32>
    %219 = vector.extract_strided_slice %213 {offsets = [0, 0], sizes = [8, 128], strides = [1, 1]} : vector<8x384xf32> to vector<8x128xf32>
    %220 = vector.extract_strided_slice %218 {offsets = [0, 0], sizes = [8, 128], strides = [1, 1]} : vector<8x384xf32> to vector<8x128xf32>
    %221 = arith.addf %219, %220 : vector<8x128xf32>
    %222 = arith.negf %221 : vector<8x128xf32>
    %223 = math.exp %222 : vector<8x128xf32>
    %cst_78 = arith.constant 1.000000e+00 : f32
    %224 = vector.broadcast %cst_78 : f32 to vector<8x128xf32>
    %225 = arith.addf %224, %223 : vector<8x128xf32>
    %226 = arith.divf %224, %225 : vector<8x128xf32>
    %227 = vector.extract_strided_slice %213 {offsets = [0, 128], sizes = [8, 128], strides = [1, 1]} : vector<8x384xf32> to vector<8x128xf32>
    %228 = vector.extract_strided_slice %218 {offsets = [0, 128], sizes = [8, 128], strides = [1, 1]} : vector<8x384xf32> to vector<8x128xf32>
    %229 = arith.addf %227, %228 : vector<8x128xf32>
    %230 = arith.negf %229 : vector<8x128xf32>
    %231 = math.exp %230 : vector<8x128xf32>
    %cst_79 = arith.constant 1.000000e+00 : f32
    %232 = vector.broadcast %cst_79 : f32 to vector<8x128xf32>
    %233 = arith.addf %232, %231 : vector<8x128xf32>
    %234 = arith.divf %232, %233 : vector<8x128xf32>
    %235 = vector.extract_strided_slice %213 {offsets = [0, 256], sizes = [8, 128], strides = [1, 1]} : vector<8x384xf32> to vector<8x128xf32>
    %236 = vector.extract_strided_slice %218 {offsets = [0, 256], sizes = [8, 128], strides = [1, 1]} : vector<8x384xf32> to vector<8x128xf32>
    %237 = arith.mulf %226, %236 : vector<8x128xf32>
    %238 = arith.addf %235, %237 : vector<8x128xf32>
    %239 = math.tanh %238 : vector<8x128xf32>
    %cst_80 = arith.constant 1.000000e+00 : f32
    %240 = vector.broadcast %cst_80 : f32 to vector<8x128xf32>
    %241 = arith.subf %240, %234 : vector<8x128xf32>
    %242 = arith.mulf %241, %239 : vector<8x128xf32>
    %243 = arith.mulf %234, %156 : vector<8x128xf32>
    %244 = arith.addf %242, %243 : vector<8x128xf32>
    %245 = vector.shape_cast %209 : vector<8x1xi1> to vector<8x1xi1>
    %246 = vector.broadcast %245 : vector<8x1xi1> to vector<8x128xi1>
    %247 = arith.select %246, %244, %156 : vector<8x128xi1>, vector<8x128xf32>
    %cst_81 = arith.constant 0.000000e+00 : f32
    %248 = vector.shape_cast %209 : vector<8x1xi1> to vector<8x1xi1>
    %249 = vector.broadcast %248 : vector<8x1xi1> to vector<8x128xi1>
    %250 = vector.broadcast %cst_81 : f32 to vector<8x128xf32>
    %251 = arith.select %249, %247, %250 : vector<8x128xi1>, vector<8x128xf32>
    %252 = arith.truncf %251 : vector<8x128xf32> to vector<8x128xbf16>
    %c1_82 = arith.constant 1 : index
    %c0_83 = arith.constant 0 : index
    %c0_84 = arith.constant 0 : index
    %253 = vector.load %arg4[%c1_82, %c0_83, %c0_84] : memref<2x128x384xbf16, #tpu.memory_space<vmem>>, vector<1x128x384xbf16>
    %254 = vector.shape_cast %253 : vector<1x128x384xbf16> to vector<128x384xbf16>
    %cst_85 = arith.constant dense<0.000000e+00> : vector<8x384xf32>
    %255 = tpu.matmul %252, %254, %cst_85 {dimension_numbers = #tpu.dot_dimension_numbers<[1], [0], [0], [1], [0, 0, 1, 1], [], []>} : vector<8x128xbf16>, vector<128x384xbf16>, vector<8x384xf32> -> vector<8x384xf32>
    %256 = arith.addf %255, %21 : vector<8x384xf32>
    %257 = arith.truncf %199 : vector<8x128xf32> to vector<8x128xbf16>
    %c1_86 = arith.constant 1 : index
    %c0_87 = arith.constant 0 : index
    %c0_88 = arith.constant 0 : index
    %258 = vector.load %arg5[%c1_86, %c0_87, %c0_88] : memref<2x128x384xbf16, #tpu.memory_space<vmem>>, vector<1x128x384xbf16>
    %259 = vector.shape_cast %258 : vector<1x128x384xbf16> to vector<128x384xbf16>
    %cst_89 = arith.constant dense<0.000000e+00> : vector<8x384xf32>
    %260 = tpu.matmul %257, %259, %cst_89 {dimension_numbers = #tpu.dot_dimension_numbers<[1], [0], [0], [1], [0, 0, 1, 1], [], []>} : vector<8x128xbf16>, vector<128x384xbf16>, vector<8x384xf32> -> vector<8x384xf32>
    %261 = arith.addf %260, %17 : vector<8x384xf32>
    %262 = vector.extract_strided_slice %256 {offsets = [0, 0], sizes = [8, 128], strides = [1, 1]} : vector<8x384xf32> to vector<8x128xf32>
    %263 = vector.extract_strided_slice %261 {offsets = [0, 0], sizes = [8, 128], strides = [1, 1]} : vector<8x384xf32> to vector<8x128xf32>
    %264 = arith.addf %262, %263 : vector<8x128xf32>
    %265 = arith.negf %264 : vector<8x128xf32>
    %266 = math.exp %265 : vector<8x128xf32>
    %cst_90 = arith.constant 1.000000e+00 : f32
    %267 = vector.broadcast %cst_90 : f32 to vector<8x128xf32>
    %268 = arith.addf %267, %266 : vector<8x128xf32>
    %269 = arith.divf %267, %268 : vector<8x128xf32>
    %270 = vector.extract_strided_slice %256 {offsets = [0, 128], sizes = [8, 128], strides = [1, 1]} : vector<8x384xf32> to vector<8x128xf32>
    %271 = vector.extract_strided_slice %261 {offsets = [0, 128], sizes = [8, 128], strides = [1, 1]} : vector<8x384xf32> to vector<8x128xf32>
    %272 = arith.addf %270, %271 : vector<8x128xf32>
    %273 = arith.negf %272 : vector<8x128xf32>
    %274 = math.exp %273 : vector<8x128xf32>
    %cst_91 = arith.constant 1.000000e+00 : f32
    %275 = vector.broadcast %cst_91 : f32 to vector<8x128xf32>
    %276 = arith.addf %275, %274 : vector<8x128xf32>
    %277 = arith.divf %275, %276 : vector<8x128xf32>
    %278 = vector.extract_strided_slice %256 {offsets = [0, 256], sizes = [8, 128], strides = [1, 1]} : vector<8x384xf32> to vector<8x128xf32>
    %279 = vector.extract_strided_slice %261 {offsets = [0, 256], sizes = [8, 128], strides = [1, 1]} : vector<8x384xf32> to vector<8x128xf32>
    %280 = arith.mulf %269, %279 : vector<8x128xf32>
    %281 = arith.addf %278, %280 : vector<8x128xf32>
    %282 = math.tanh %281 : vector<8x128xf32>
    %cst_92 = arith.constant 1.000000e+00 : f32
    %283 = vector.broadcast %cst_92 : f32 to vector<8x128xf32>
    %284 = arith.subf %283, %277 : vector<8x128xf32>
    %285 = arith.mulf %284, %282 : vector<8x128xf32>
    %286 = arith.mulf %277, %199 : vector<8x128xf32>
    %287 = arith.addf %285, %286 : vector<8x128xf32>
    %288 = vector.shape_cast %209 : vector<8x1xi1> to vector<8x1xi1>
    %289 = vector.broadcast %288 : vector<8x1xi1> to vector<8x128xi1>
    %290 = arith.select %289, %287, %199 : vector<8x128xi1>, vector<8x128xf32>
    %cst_93 = arith.constant 0.000000e+00 : f32
    %291 = vector.shape_cast %209 : vector<8x1xi1> to vector<8x1xi1>
    %292 = vector.broadcast %291 : vector<8x1xi1> to vector<8x128xi1>
    %293 = vector.broadcast %cst_93 : f32 to vector<8x128xf32>
    %294 = arith.select %292, %290, %293 : vector<8x128xi1>, vector<8x128xf32>
    %295 = arith.index_cast %c2_i32 : i32 to index
    %c0_94 = arith.constant 0 : index
    %c0_95 = arith.constant 0 : index
    %296 = vector.load %arg8[%295, %c0_94, %c0_95] : memref<8x8x128xf32, #tpu.memory_space<vmem>>, vector<1x8x128xf32>
    %297 = vector.shape_cast %296 : vector<1x8x128xf32> to vector<8x128xf32>
    %298 = vector.shape_cast %294 : vector<8x128xf32> to vector<1x8x128xf32>
    tpu.vector_store %arg8[%295, %c0_94, %c0_95], %298 {strides = array<i32>} : memref<8x8x128xf32, #tpu.memory_space<vmem>>, vector<1x8x128xf32>,
    %c3_i32 = arith.constant 3 : i32
    %299 = vector.broadcast %c3_i32 : i32 to vector<8x1xi32>
    %300 = arith.cmpi slt, %299, %9 : vector<8x1xi32>
    %c8_i32_96 = arith.constant 8 : i32
    %301 = arith.muli %c3_i32, %c8_i32_96 : i32
    %302 = tpu.assume_multiple %301, 8 : i32
    %303 = arith.index_cast %302 : i32 to index
    %c0_97 = arith.constant 0 : index
    %304 = vector.load %arg10[%303, %c0_97] : memref<64x384xf32, #tpu.memory_space<vmem>>, vector<8x384xf32>
    %305 = arith.truncf %247 : vector<8x128xf32> to vector<8x128xbf16>
    %c0_98 = arith.constant 0 : index
    %c0_99 = arith.constant 0 : index
    %c0_100 = arith.constant 0 : index
    %306 = vector.load %arg5[%c0_98, %c0_99, %c0_100] : memref<2x128x384xbf16, #tpu.memory_space<vmem>>, vector<1x128x384xbf16>
    %307 = vector.shape_cast %306 : vector<1x128x384xbf16> to vector<128x384xbf16>
    %cst_101 = arith.constant dense<0.000000e+00> : vector<8x384xf32>
    %308 = tpu.matmul %305, %307, %cst_101 {dimension_numbers = #tpu.dot_dimension_numbers<[1], [0], [0], [1], [0, 0, 1, 1], [], []>} : vector<8x128xbf16>, vector<128x384xbf16>, vector<8x384xf32> -> vector<8x384xf32>
    %309 = arith.addf %308, %13 : vector<8x384xf32>
    %310 = vector.extract_strided_slice %304 {offsets = [0, 0], sizes = [8, 128], strides = [1, 1]} : vector<8x384xf32> to vector<8x128xf32>
    %311 = vector.extract_strided_slice %309 {offsets = [0, 0], sizes = [8, 128], strides = [1, 1]} : vector<8x384xf32> to vector<8x128xf32>
    %312 = arith.addf %310, %311 : vector<8x128xf32>
    %313 = arith.negf %312 : vector<8x128xf32>
    %314 = math.exp %313 : vector<8x128xf32>
    %cst_102 = arith.constant 1.000000e+00 : f32
    %315 = vector.broadcast %cst_102 : f32 to vector<8x128xf32>
    %316 = arith.addf %315, %314 : vector<8x128xf32>
    %317 = arith.divf %315, %316 : vector<8x128xf32>
    %318 = vector.extract_strided_slice %304 {offsets = [0, 128], sizes = [8, 128], strides = [1, 1]} : vector<8x384xf32> to vector<8x128xf32>
    %319 = vector.extract_strided_slice %309 {offsets = [0, 128], sizes = [8, 128], strides = [1, 1]} : vector<8x384xf32> to vector<8x128xf32>
    %320 = arith.addf %318, %319 : vector<8x128xf32>
    %321 = arith.negf %320 : vector<8x128xf32>
    %322 = math.exp %321 : vector<8x128xf32>
    %cst_103 = arith.constant 1.000000e+00 : f32
    %323 = vector.broadcast %cst_103 : f32 to vector<8x128xf32>
    %324 = arith.addf %323, %322 : vector<8x128xf32>
    %325 = arith.divf %323, %324 : vector<8x128xf32>
    %326 = vector.extract_strided_slice %304 {offsets = [0, 256], sizes = [8, 128], strides = [1, 1]} : vector<8x384xf32> to vector<8x128xf32>
    %327 = vector.extract_strided_slice %309 {offsets = [0, 256], sizes = [8, 128], strides = [1, 1]} : vector<8x384xf32> to vector<8x128xf32>
    %328 = arith.mulf %317, %327 : vector<8x128xf32>
    %329 = arith.addf %326, %328 : vector<8x128xf32>
    %330 = math.tanh %329 : vector<8x128xf32>
    %cst_104 = arith.constant 1.000000e+00 : f32
    %331 = vector.broadcast %cst_104 : f32 to vector<8x128xf32>
    %332 = arith.subf %331, %325 : vector<8x128xf32>
    %333 = arith.mulf %332, %330 : vector<8x128xf32>
    %334 = arith.mulf %325, %247 : vector<8x128xf32>
    %335 = arith.addf %333, %334 : vector<8x128xf32>
    %336 = vector.shape_cast %300 : vector<8x1xi1> to vector<8x1xi1>
    %337 = vector.broadcast %336 : vector<8x1xi1> to vector<8x128xi1>
    %338 = arith.select %337, %335, %247 : vector<8x128xi1>, vector<8x128xf32>
    %cst_105 = arith.constant 0.000000e+00 : f32
    %339 = vector.shape_cast %300 : vector<8x1xi1> to vector<8x1xi1>
    %340 = vector.broadcast %339 : vector<8x1xi1> to vector<8x128xi1>
    %341 = vector.broadcast %cst_105 : f32 to vector<8x128xf32>
    %342 = arith.select %340, %338, %341 : vector<8x128xi1>, vector<8x128xf32>
    %343 = arith.truncf %342 : vector<8x128xf32> to vector<8x128xbf16>
    %c1_106 = arith.constant 1 : index
    %c0_107 = arith.constant 0 : index
    %c0_108 = arith.constant 0 : index
    %344 = vector.load %arg4[%c1_106, %c0_107, %c0_108] : memref<2x128x384xbf16, #tpu.memory_space<vmem>>, vector<1x128x384xbf16>
    %345 = vector.shape_cast %344 : vector<1x128x384xbf16> to vector<128x384xbf16>
    %cst_109 = arith.constant dense<0.000000e+00> : vector<8x384xf32>
    %346 = tpu.matmul %343, %345, %cst_109 {dimension_numbers = #tpu.dot_dimension_numbers<[1], [0], [0], [1], [0, 0, 1, 1], [], []>} : vector<8x128xbf16>, vector<128x384xbf16>, vector<8x384xf32> -> vector<8x384xf32>
    %347 = arith.addf %346, %21 : vector<8x384xf32>
    %348 = arith.truncf %290 : vector<8x128xf32> to vector<8x128xbf16>
    %c1_110 = arith.constant 1 : index
    %c0_111 = arith.constant 0 : index
    %c0_112 = arith.constant 0 : index
    %349 = vector.load %arg5[%c1_110, %c0_111, %c0_112] : memref<2x128x384xbf16, #tpu.memory_space<vmem>>, vector<1x128x384xbf16>
    %350 = vector.shape_cast %349 : vector<1x128x384xbf16> to vector<128x384xbf16>
    %cst_113 = arith.constant dense<0.000000e+00> : vector<8x384xf32>
    %351 = tpu.matmul %348, %350, %cst_113 {dimension_numbers = #tpu.dot_dimension_numbers<[1], [0], [0], [1], [0, 0, 1, 1], [], []>} : vector<8x128xbf16>, vector<128x384xbf16>, vector<8x384xf32> -> vector<8x384xf32>
    %352 = arith.addf %351, %17 : vector<8x384xf32>
    %353 = vector.extract_strided_slice %347 {offsets = [0, 0], sizes = [8, 128], strides = [1, 1]} : vector<8x384xf32> to vector<8x128xf32>
    %354 = vector.extract_strided_slice %352 {offsets = [0, 0], sizes = [8, 128], strides = [1, 1]} : vector<8x384xf32> to vector<8x128xf32>
    %355 = arith.addf %353, %354 : vector<8x128xf32>
    %356 = arith.negf %355 : vector<8x128xf32>
    %357 = math.exp %356 : vector<8x128xf32>
    %cst_114 = arith.constant 1.000000e+00 : f32
    %358 = vector.broadcast %cst_114 : f32 to vector<8x128xf32>
    %359 = arith.addf %358, %357 : vector<8x128xf32>
    %360 = arith.divf %358, %359 : vector<8x128xf32>
    %361 = vector.extract_strided_slice %347 {offsets = [0, 128], sizes = [8, 128], strides = [1, 1]} : vector<8x384xf32> to vector<8x128xf32>
    %362 = vector.extract_strided_slice %352 {offsets = [0, 128], sizes = [8, 128], strides = [1, 1]} : vector<8x384xf32> to vector<8x128xf32>
    %363 = arith.addf %361, %362 : vector<8x128xf32>
    %364 = arith.negf %363 : vector<8x128xf32>
    %365 = math.exp %364 : vector<8x128xf32>
    %cst_115 = arith.constant 1.000000e+00 : f32
    %366 = vector.broadcast %cst_115 : f32 to vector<8x128xf32>
    %367 = arith.addf %366, %365 : vector<8x128xf32>
    %368 = arith.divf %366, %367 : vector<8x128xf32>
    %369 = vector.extract_strided_slice %347 {offsets = [0, 256], sizes = [8, 128], strides = [1, 1]} : vector<8x384xf32> to vector<8x128xf32>
    %370 = vector.extract_strided_slice %352 {offsets = [0, 256], sizes = [8, 128], strides = [1, 1]} : vector<8x384xf32> to vector<8x128xf32>
    %371 = arith.mulf %360, %370 : vector<8x128xf32>
    %372 = arith.addf %369, %371 : vector<8x128xf32>
    %373 = math.tanh %372 : vector<8x128xf32>
    %cst_116 = arith.constant 1.000000e+00 : f32
    %374 = vector.broadcast %cst_116 : f32 to vector<8x128xf32>
    %375 = arith.subf %374, %368 : vector<8x128xf32>
    %376 = arith.mulf %375, %373 : vector<8x128xf32>
    %377 = arith.mulf %368, %290 : vector<8x128xf32>
    %378 = arith.addf %376, %377 : vector<8x128xf32>
    %379 = vector.shape_cast %300 : vector<8x1xi1> to vector<8x1xi1>
    %380 = vector.broadcast %379 : vector<8x1xi1> to vector<8x128xi1>
    %381 = arith.select %380, %378, %290 : vector<8x128xi1>, vector<8x128xf32>
    %cst_117 = arith.constant 0.000000e+00 : f32
    %382 = vector.shape_cast %300 : vector<8x1xi1> to vector<8x1xi1>
    %383 = vector.broadcast %382 : vector<8x1xi1> to vector<8x128xi1>
    %384 = vector.broadcast %cst_117 : f32 to vector<8x128xf32>
    %385 = arith.select %383, %381, %384 : vector<8x128xi1>, vector<8x128xf32>
    %386 = arith.index_cast %c3_i32 : i32 to index
    %c0_118 = arith.constant 0 : index
    %c0_119 = arith.constant 0 : index
    %387 = vector.load %arg8[%386, %c0_118, %c0_119] : memref<8x8x128xf32, #tpu.memory_space<vmem>>, vector<1x8x128xf32>
    %388 = vector.shape_cast %387 : vector<1x8x128xf32> to vector<8x128xf32>
    %389 = vector.shape_cast %385 : vector<8x128xf32> to vector<1x8x128xf32>
    tpu.vector_store %arg8[%386, %c0_118, %c0_119], %389 {strides = array<i32>} : memref<8x8x128xf32, #tpu.memory_space<vmem>>, vector<1x8x128xf32>,
    %c4_i32 = arith.constant 4 : i32
    %390 = vector.broadcast %c4_i32 : i32 to vector<8x1xi32>
    %391 = arith.cmpi slt, %390, %9 : vector<8x1xi32>
    %c8_i32_120 = arith.constant 8 : i32
    %392 = arith.muli %c4_i32, %c8_i32_120 : i32
    %393 = tpu.assume_multiple %392, 8 : i32
    %394 = arith.index_cast %393 : i32 to index
    %c0_121 = arith.constant 0 : index
    %395 = vector.load %arg10[%394, %c0_121] : memref<64x384xf32, #tpu.memory_space<vmem>>, vector<8x384xf32>
    %396 = arith.truncf %338 : vector<8x128xf32> to vector<8x128xbf16>
    %c0_122 = arith.constant 0 : index
    %c0_123 = arith.constant 0 : index
    %c0_124 = arith.constant 0 : index
    %397 = vector.load %arg5[%c0_122, %c0_123, %c0_124] : memref<2x128x384xbf16, #tpu.memory_space<vmem>>, vector<1x128x384xbf16>
    %398 = vector.shape_cast %397 : vector<1x128x384xbf16> to vector<128x384xbf16>
    %cst_125 = arith.constant dense<0.000000e+00> : vector<8x384xf32>
    %399 = tpu.matmul %396, %398, %cst_125 {dimension_numbers = #tpu.dot_dimension_numbers<[1], [0], [0], [1], [0, 0, 1, 1], [], []>} : vector<8x128xbf16>, vector<128x384xbf16>, vector<8x384xf32> -> vector<8x384xf32>
    %400 = arith.addf %399, %13 : vector<8x384xf32>
    %401 = vector.extract_strided_slice %395 {offsets = [0, 0], sizes = [8, 128], strides = [1, 1]} : vector<8x384xf32> to vector<8x128xf32>
    %402 = vector.extract_strided_slice %400 {offsets = [0, 0], sizes = [8, 128], strides = [1, 1]} : vector<8x384xf32> to vector<8x128xf32>
    %403 = arith.addf %401, %402 : vector<8x128xf32>
    %404 = arith.negf %403 : vector<8x128xf32>
    %405 = math.exp %404 : vector<8x128xf32>
    %cst_126 = arith.constant 1.000000e+00 : f32
    %406 = vector.broadcast %cst_126 : f32 to vector<8x128xf32>
    %407 = arith.addf %406, %405 : vector<8x128xf32>
    %408 = arith.divf %406, %407 : vector<8x128xf32>
    %409 = vector.extract_strided_slice %395 {offsets = [0, 128], sizes = [8, 128], strides = [1, 1]} : vector<8x384xf32> to vector<8x128xf32>
    %410 = vector.extract_strided_slice %400 {offsets = [0, 128], sizes = [8, 128], strides = [1, 1]} : vector<8x384xf32> to vector<8x128xf32>
    %411 = arith.addf %409, %410 : vector<8x128xf32>
    %412 = arith.negf %411 : vector<8x128xf32>
    %413 = math.exp %412 : vector<8x128xf32>
    %cst_127 = arith.constant 1.000000e+00 : f32
    %414 = vector.broadcast %cst_127 : f32 to vector<8x128xf32>
    %415 = arith.addf %414, %413 : vector<8x128xf32>
    %416 = arith.divf %414, %415 : vector<8x128xf32>
    %417 = vector.extract_strided_slice %395 {offsets = [0, 256], sizes = [8, 128], strides = [1, 1]} : vector<8x384xf32> to vector<8x128xf32>
    %418 = vector.extract_strided_slice %400 {offsets = [0, 256], sizes = [8, 128], strides = [1, 1]} : vector<8x384xf32> to vector<8x128xf32>
    %419 = arith.mulf %408, %418 : vector<8x128xf32>
    %420 = arith.addf %417, %419 : vector<8x128xf32>
    %421 = math.tanh %420 : vector<8x128xf32>
    %cst_128 = arith.constant 1.000000e+00 : f32
    %422 = vector.broadcast %cst_128 : f32 to vector<8x128xf32>
    %423 = arith.subf %422, %416 : vector<8x128xf32>
    %424 = arith.mulf %423, %421 : vector<8x128xf32>
    %425 = arith.mulf %416, %338 : vector<8x128xf32>
    %426 = arith.addf %424, %425 : vector<8x128xf32>
    %427 = vector.shape_cast %391 : vector<8x1xi1> to vector<8x1xi1>
    %428 = vector.broadcast %427 : vector<8x1xi1> to vector<8x128xi1>
    %429 = arith.select %428, %426, %338 : vector<8x128xi1>, vector<8x128xf32>
    %cst_129 = arith.constant 0.000000e+00 : f32
    %430 = vector.shape_cast %391 : vector<8x1xi1> to vector<8x1xi1>
    %431 = vector.broadcast %430 : vector<8x1xi1> to vector<8x128xi1>
    %432 = vector.broadcast %cst_129 : f32 to vector<8x128xf32>
    %433 = arith.select %431, %429, %432 : vector<8x128xi1>, vector<8x128xf32>
    %434 = arith.truncf %433 : vector<8x128xf32> to vector<8x128xbf16>
    %c1_130 = arith.constant 1 : index
    %c0_131 = arith.constant 0 : index
    %c0_132 = arith.constant 0 : index
    %435 = vector.load %arg4[%c1_130, %c0_131, %c0_132] : memref<2x128x384xbf16, #tpu.memory_space<vmem>>, vector<1x128x384xbf16>
    %436 = vector.shape_cast %435 : vector<1x128x384xbf16> to vector<128x384xbf16>
    %cst_133 = arith.constant dense<0.000000e+00> : vector<8x384xf32>
    %437 = tpu.matmul %434, %436, %cst_133 {dimension_numbers = #tpu.dot_dimension_numbers<[1], [0], [0], [1], [0, 0, 1, 1], [], []>} : vector<8x128xbf16>, vector<128x384xbf16>, vector<8x384xf32> -> vector<8x384xf32>
    %438 = arith.addf %437, %21 : vector<8x384xf32>
    %439 = arith.truncf %381 : vector<8x128xf32> to vector<8x128xbf16>
    %c1_134 = arith.constant 1 : index
    %c0_135 = arith.constant 0 : index
    %c0_136 = arith.constant 0 : index
    %440 = vector.load %arg5[%c1_134, %c0_135, %c0_136] : memref<2x128x384xbf16, #tpu.memory_space<vmem>>, vector<1x128x384xbf16>
    %441 = vector.shape_cast %440 : vector<1x128x384xbf16> to vector<128x384xbf16>
    %cst_137 = arith.constant dense<0.000000e+00> : vector<8x384xf32>
    %442 = tpu.matmul %439, %441, %cst_137 {dimension_numbers = #tpu.dot_dimension_numbers<[1], [0], [0], [1], [0, 0, 1, 1], [], []>} : vector<8x128xbf16>, vector<128x384xbf16>, vector<8x384xf32> -> vector<8x384xf32>
    %443 = arith.addf %442, %17 : vector<8x384xf32>
    %444 = vector.extract_strided_slice %438 {offsets = [0, 0], sizes = [8, 128], strides = [1, 1]} : vector<8x384xf32> to vector<8x128xf32>
    %445 = vector.extract_strided_slice %443 {offsets = [0, 0], sizes = [8, 128], strides = [1, 1]} : vector<8x384xf32> to vector<8x128xf32>
    %446 = arith.addf %444, %445 : vector<8x128xf32>
    %447 = arith.negf %446 : vector<8x128xf32>
    %448 = math.exp %447 : vector<8x128xf32>
    %cst_138 = arith.constant 1.000000e+00 : f32
    %449 = vector.broadcast %cst_138 : f32 to vector<8x128xf32>
    %450 = arith.addf %449, %448 : vector<8x128xf32>
    %451 = arith.divf %449, %450 : vector<8x128xf32>
    %452 = vector.extract_strided_slice %438 {offsets = [0, 128], sizes = [8, 128], strides = [1, 1]} : vector<8x384xf32> to vector<8x128xf32>
    %453 = vector.extract_strided_slice %443 {offsets = [0, 128], sizes = [8, 128], strides = [1, 1]} : vector<8x384xf32> to vector<8x128xf32>
    %454 = arith.addf %452, %453 : vector<8x128xf32>
    %455 = arith.negf %454 : vector<8x128xf32>
    %456 = math.exp %455 : vector<8x128xf32>
    %cst_139 = arith.constant 1.000000e+00 : f32
    %457 = vector.broadcast %cst_139 : f32 to vector<8x128xf32>
    %458 = arith.addf %457, %456 : vector<8x128xf32>
    %459 = arith.divf %457, %458 : vector<8x128xf32>
    %460 = vector.extract_strided_slice %438 {offsets = [0, 256], sizes = [8, 128], strides = [1, 1]} : vector<8x384xf32> to vector<8x128xf32>
    %461 = vector.extract_strided_slice %443 {offsets = [0, 256], sizes = [8, 128], strides = [1, 1]} : vector<8x384xf32> to vector<8x128xf32>
    %462 = arith.mulf %451, %461 : vector<8x128xf32>
    %463 = arith.addf %460, %462 : vector<8x128xf32>
    %464 = math.tanh %463 : vector<8x128xf32>
    %cst_140 = arith.constant 1.000000e+00 : f32
    %465 = vector.broadcast %cst_140 : f32 to vector<8x128xf32>
    %466 = arith.subf %465, %459 : vector<8x128xf32>
    %467 = arith.mulf %466, %464 : vector<8x128xf32>
    %468 = arith.mulf %459, %381 : vector<8x128xf32>
    %469 = arith.addf %467, %468 : vector<8x128xf32>
    %470 = vector.shape_cast %391 : vector<8x1xi1> to vector<8x1xi1>
    %471 = vector.broadcast %470 : vector<8x1xi1> to vector<8x128xi1>
    %472 = arith.select %471, %469, %381 : vector<8x128xi1>, vector<8x128xf32>
    %cst_141 = arith.constant 0.000000e+00 : f32
    %473 = vector.shape_cast %391 : vector<8x1xi1> to vector<8x1xi1>
    %474 = vector.broadcast %473 : vector<8x1xi1> to vector<8x128xi1>
    %475 = vector.broadcast %cst_141 : f32 to vector<8x128xf32>
    %476 = arith.select %474, %472, %475 : vector<8x128xi1>, vector<8x128xf32>
    %477 = arith.index_cast %c4_i32 : i32 to index
    %c0_142 = arith.constant 0 : index
    %c0_143 = arith.constant 0 : index
    %478 = vector.load %arg8[%477, %c0_142, %c0_143] : memref<8x8x128xf32, #tpu.memory_space<vmem>>, vector<1x8x128xf32>
    %479 = vector.shape_cast %478 : vector<1x8x128xf32> to vector<8x128xf32>
    %480 = vector.shape_cast %476 : vector<8x128xf32> to vector<1x8x128xf32>
    tpu.vector_store %arg8[%477, %c0_142, %c0_143], %480 {strides = array<i32>} : memref<8x8x128xf32, #tpu.memory_space<vmem>>, vector<1x8x128xf32>,
    %c5_i32 = arith.constant 5 : i32
    %481 = vector.broadcast %c5_i32 : i32 to vector<8x1xi32>
    %482 = arith.cmpi slt, %481, %9 : vector<8x1xi32>
    %c8_i32_144 = arith.constant 8 : i32
    %483 = arith.muli %c5_i32, %c8_i32_144 : i32
    %484 = tpu.assume_multiple %483, 8 : i32
    %485 = arith.index_cast %484 : i32 to index
    %c0_145 = arith.constant 0 : index
    %486 = vector.load %arg10[%485, %c0_145] : memref<64x384xf32, #tpu.memory_space<vmem>>, vector<8x384xf32>
    %487 = arith.truncf %429 : vector<8x128xf32> to vector<8x128xbf16>
    %c0_146 = arith.constant 0 : index
    %c0_147 = arith.constant 0 : index
    %c0_148 = arith.constant 0 : index
    %488 = vector.load %arg5[%c0_146, %c0_147, %c0_148] : memref<2x128x384xbf16, #tpu.memory_space<vmem>>, vector<1x128x384xbf16>
    %489 = vector.shape_cast %488 : vector<1x128x384xbf16> to vector<128x384xbf16>
    %cst_149 = arith.constant dense<0.000000e+00> : vector<8x384xf32>
    %490 = tpu.matmul %487, %489, %cst_149 {dimension_numbers = #tpu.dot_dimension_numbers<[1], [0], [0], [1], [0, 0, 1, 1], [], []>} : vector<8x128xbf16>, vector<128x384xbf16>, vector<8x384xf32> -> vector<8x384xf32>
    %491 = arith.addf %490, %13 : vector<8x384xf32>
    %492 = vector.extract_strided_slice %486 {offsets = [0, 0], sizes = [8, 128], strides = [1, 1]} : vector<8x384xf32> to vector<8x128xf32>
    %493 = vector.extract_strided_slice %491 {offsets = [0, 0], sizes = [8, 128], strides = [1, 1]} : vector<8x384xf32> to vector<8x128xf32>
    %494 = arith.addf %492, %493 : vector<8x128xf32>
    %495 = arith.negf %494 : vector<8x128xf32>
    %496 = math.exp %495 : vector<8x128xf32>
    %cst_150 = arith.constant 1.000000e+00 : f32
    %497 = vector.broadcast %cst_150 : f32 to vector<8x128xf32>
    %498 = arith.addf %497, %496 : vector<8x128xf32>
    %499 = arith.divf %497, %498 : vector<8x128xf32>
    %500 = vector.extract_strided_slice %486 {offsets = [0, 128], sizes = [8, 128], strides = [1, 1]} : vector<8x384xf32> to vector<8x128xf32>
    %501 = vector.extract_strided_slice %491 {offsets = [0, 128], sizes = [8, 128], strides = [1, 1]} : vector<8x384xf32> to vector<8x128xf32>
    %502 = arith.addf %500, %501 : vector<8x128xf32>
    %503 = arith.negf %502 : vector<8x128xf32>
    %504 = math.exp %503 : vector<8x128xf32>
    %cst_151 = arith.constant 1.000000e+00 : f32
    %505 = vector.broadcast %cst_151 : f32 to vector<8x128xf32>
    %506 = arith.addf %505, %504 : vector<8x128xf32>
    %507 = arith.divf %505, %506 : vector<8x128xf32>
    %508 = vector.extract_strided_slice %486 {offsets = [0, 256], sizes = [8, 128], strides = [1, 1]} : vector<8x384xf32> to vector<8x128xf32>
    %509 = vector.extract_strided_slice %491 {offsets = [0, 256], sizes = [8, 128], strides = [1, 1]} : vector<8x384xf32> to vector<8x128xf32>
    %510 = arith.mulf %499, %509 : vector<8x128xf32>
    %511 = arith.addf %508, %510 : vector<8x128xf32>
    %512 = math.tanh %511 : vector<8x128xf32>
    %cst_152 = arith.constant 1.000000e+00 : f32
    %513 = vector.broadcast %cst_152 : f32 to vector<8x128xf32>
    %514 = arith.subf %513, %507 : vector<8x128xf32>
    %515 = arith.mulf %514, %512 : vector<8x128xf32>
    %516 = arith.mulf %507, %429 : vector<8x128xf32>
    %517 = arith.addf %515, %516 : vector<8x128xf32>
    %518 = vector.shape_cast %482 : vector<8x1xi1> to vector<8x1xi1>
    %519 = vector.broadcast %518 : vector<8x1xi1> to vector<8x128xi1>
    %520 = arith.select %519, %517, %429 : vector<8x128xi1>, vector<8x128xf32>
    %cst_153 = arith.constant 0.000000e+00 : f32
    %521 = vector.shape_cast %482 : vector<8x1xi1> to vector<8x1xi1>
    %522 = vector.broadcast %521 : vector<8x1xi1> to vector<8x128xi1>
    %523 = vector.broadcast %cst_153 : f32 to vector<8x128xf32>
    %524 = arith.select %522, %520, %523 : vector<8x128xi1>, vector<8x128xf32>
    %525 = arith.truncf %524 : vector<8x128xf32> to vector<8x128xbf16>
    %c1_154 = arith.constant 1 : index
    %c0_155 = arith.constant 0 : index
    %c0_156 = arith.constant 0 : index
    %526 = vector.load %arg4[%c1_154, %c0_155, %c0_156] : memref<2x128x384xbf16, #tpu.memory_space<vmem>>, vector<1x128x384xbf16>
    %527 = vector.shape_cast %526 : vector<1x128x384xbf16> to vector<128x384xbf16>
    %cst_157 = arith.constant dense<0.000000e+00> : vector<8x384xf32>
    %528 = tpu.matmul %525, %527, %cst_157 {dimension_numbers = #tpu.dot_dimension_numbers<[1], [0], [0], [1], [0, 0, 1, 1], [], []>} : vector<8x128xbf16>, vector<128x384xbf16>, vector<8x384xf32> -> vector<8x384xf32>
    %529 = arith.addf %528, %21 : vector<8x384xf32>
    %530 = arith.truncf %472 : vector<8x128xf32> to vector<8x128xbf16>
    %c1_158 = arith.constant 1 : index
    %c0_159 = arith.constant 0 : index
    %c0_160 = arith.constant 0 : index
    %531 = vector.load %arg5[%c1_158, %c0_159, %c0_160] : memref<2x128x384xbf16, #tpu.memory_space<vmem>>, vector<1x128x384xbf16>
    %532 = vector.shape_cast %531 : vector<1x128x384xbf16> to vector<128x384xbf16>
    %cst_161 = arith.constant dense<0.000000e+00> : vector<8x384xf32>
    %533 = tpu.matmul %530, %532, %cst_161 {dimension_numbers = #tpu.dot_dimension_numbers<[1], [0], [0], [1], [0, 0, 1, 1], [], []>} : vector<8x128xbf16>, vector<128x384xbf16>, vector<8x384xf32> -> vector<8x384xf32>
    %534 = arith.addf %533, %17 : vector<8x384xf32>
    %535 = vector.extract_strided_slice %529 {offsets = [0, 0], sizes = [8, 128], strides = [1, 1]} : vector<8x384xf32> to vector<8x128xf32>
    %536 = vector.extract_strided_slice %534 {offsets = [0, 0], sizes = [8, 128], strides = [1, 1]} : vector<8x384xf32> to vector<8x128xf32>
    %537 = arith.addf %535, %536 : vector<8x128xf32>
    %538 = arith.negf %537 : vector<8x128xf32>
    %539 = math.exp %538 : vector<8x128xf32>
    %cst_162 = arith.constant 1.000000e+00 : f32
    %540 = vector.broadcast %cst_162 : f32 to vector<8x128xf32>
    %541 = arith.addf %540, %539 : vector<8x128xf32>
    %542 = arith.divf %540, %541 : vector<8x128xf32>
    %543 = vector.extract_strided_slice %529 {offsets = [0, 128], sizes = [8, 128], strides = [1, 1]} : vector<8x384xf32> to vector<8x128xf32>
    %544 = vector.extract_strided_slice %534 {offsets = [0, 128], sizes = [8, 128], strides = [1, 1]} : vector<8x384xf32> to vector<8x128xf32>
    %545 = arith.addf %543, %544 : vector<8x128xf32>
    %546 = arith.negf %545 : vector<8x128xf32>
    %547 = math.exp %546 : vector<8x128xf32>
    %cst_163 = arith.constant 1.000000e+00 : f32
    %548 = vector.broadcast %cst_163 : f32 to vector<8x128xf32>
    %549 = arith.addf %548, %547 : vector<8x128xf32>
    %550 = arith.divf %548, %549 : vector<8x128xf32>
    %551 = vector.extract_strided_slice %529 {offsets = [0, 256], sizes = [8, 128], strides = [1, 1]} : vector<8x384xf32> to vector<8x128xf32>
    %552 = vector.extract_strided_slice %534 {offsets = [0, 256], sizes = [8, 128], strides = [1, 1]} : vector<8x384xf32> to vector<8x128xf32>
    %553 = arith.mulf %542, %552 : vector<8x128xf32>
    %554 = arith.addf %551, %553 : vector<8x128xf32>
    %555 = math.tanh %554 : vector<8x128xf32>
    %cst_164 = arith.constant 1.000000e+00 : f32
    %556 = vector.broadcast %cst_164 : f32 to vector<8x128xf32>
    %557 = arith.subf %556, %550 : vector<8x128xf32>
    %558 = arith.mulf %557, %555 : vector<8x128xf32>
    %559 = arith.mulf %550, %472 : vector<8x128xf32>
    %560 = arith.addf %558, %559 : vector<8x128xf32>
    %561 = vector.shape_cast %482 : vector<8x1xi1> to vector<8x1xi1>
    %562 = vector.broadcast %561 : vector<8x1xi1> to vector<8x128xi1>
    %563 = arith.select %562, %560, %472 : vector<8x128xi1>, vector<8x128xf32>
    %cst_165 = arith.constant 0.000000e+00 : f32
    %564 = vector.shape_cast %482 : vector<8x1xi1> to vector<8x1xi1>
    %565 = vector.broadcast %564 : vector<8x1xi1> to vector<8x128xi1>
    %566 = vector.broadcast %cst_165 : f32 to vector<8x128xf32>
    %567 = arith.select %565, %563, %566 : vector<8x128xi1>, vector<8x128xf32>
    %568 = arith.index_cast %c5_i32 : i32 to index
    %c0_166 = arith.constant 0 : index
    %c0_167 = arith.constant 0 : index
    %569 = vector.load %arg8[%568, %c0_166, %c0_167] : memref<8x8x128xf32, #tpu.memory_space<vmem>>, vector<1x8x128xf32>
    %570 = vector.shape_cast %569 : vector<1x8x128xf32> to vector<8x128xf32>
    %571 = vector.shape_cast %567 : vector<8x128xf32> to vector<1x8x128xf32>
    tpu.vector_store %arg8[%568, %c0_166, %c0_167], %571 {strides = array<i32>} : memref<8x8x128xf32, #tpu.memory_space<vmem>>, vector<1x8x128xf32>,
    %c6_i32 = arith.constant 6 : i32
    %572 = vector.broadcast %c6_i32 : i32 to vector<8x1xi32>
    %573 = arith.cmpi slt, %572, %9 : vector<8x1xi32>
    %c8_i32_168 = arith.constant 8 : i32
    %574 = arith.muli %c6_i32, %c8_i32_168 : i32
    %575 = tpu.assume_multiple %574, 8 : i32
    %576 = arith.index_cast %575 : i32 to index
    %c0_169 = arith.constant 0 : index
    %577 = vector.load %arg10[%576, %c0_169] : memref<64x384xf32, #tpu.memory_space<vmem>>, vector<8x384xf32>
    %578 = arith.truncf %520 : vector<8x128xf32> to vector<8x128xbf16>
    %c0_170 = arith.constant 0 : index
    %c0_171 = arith.constant 0 : index
    %c0_172 = arith.constant 0 : index
    %579 = vector.load %arg5[%c0_170, %c0_171, %c0_172] : memref<2x128x384xbf16, #tpu.memory_space<vmem>>, vector<1x128x384xbf16>
    %580 = vector.shape_cast %579 : vector<1x128x384xbf16> to vector<128x384xbf16>
    %cst_173 = arith.constant dense<0.000000e+00> : vector<8x384xf32>
    %581 = tpu.matmul %578, %580, %cst_173 {dimension_numbers = #tpu.dot_dimension_numbers<[1], [0], [0], [1], [0, 0, 1, 1], [], []>} : vector<8x128xbf16>, vector<128x384xbf16>, vector<8x384xf32> -> vector<8x384xf32>
    %582 = arith.addf %581, %13 : vector<8x384xf32>
    %583 = vector.extract_strided_slice %577 {offsets = [0, 0], sizes = [8, 128], strides = [1, 1]} : vector<8x384xf32> to vector<8x128xf32>
    %584 = vector.extract_strided_slice %582 {offsets = [0, 0], sizes = [8, 128], strides = [1, 1]} : vector<8x384xf32> to vector<8x128xf32>
    %585 = arith.addf %583, %584 : vector<8x128xf32>
    %586 = arith.negf %585 : vector<8x128xf32>
    %587 = math.exp %586 : vector<8x128xf32>
    %cst_174 = arith.constant 1.000000e+00 : f32
    %588 = vector.broadcast %cst_174 : f32 to vector<8x128xf32>
    %589 = arith.addf %588, %587 : vector<8x128xf32>
    %590 = arith.divf %588, %589 : vector<8x128xf32>
    %591 = vector.extract_strided_slice %577 {offsets = [0, 128], sizes = [8, 128], strides = [1, 1]} : vector<8x384xf32> to vector<8x128xf32>
    %592 = vector.extract_strided_slice %582 {offsets = [0, 128], sizes = [8, 128], strides = [1, 1]} : vector<8x384xf32> to vector<8x128xf32>
    %593 = arith.addf %591, %592 : vector<8x128xf32>
    %594 = arith.negf %593 : vector<8x128xf32>
    %595 = math.exp %594 : vector<8x128xf32>
    %cst_175 = arith.constant 1.000000e+00 : f32
    %596 = vector.broadcast %cst_175 : f32 to vector<8x128xf32>
    %597 = arith.addf %596, %595 : vector<8x128xf32>
    %598 = arith.divf %596, %597 : vector<8x128xf32>
    %599 = vector.extract_strided_slice %577 {offsets = [0, 256], sizes = [8, 128], strides = [1, 1]} : vector<8x384xf32> to vector<8x128xf32>
    %600 = vector.extract_strided_slice %582 {offsets = [0, 256], sizes = [8, 128], strides = [1, 1]} : vector<8x384xf32> to vector<8x128xf32>
    %601 = arith.mulf %590, %600 : vector<8x128xf32>
    %602 = arith.addf %599, %601 : vector<8x128xf32>
    %603 = math.tanh %602 : vector<8x128xf32>
    %cst_176 = arith.constant 1.000000e+00 : f32
    %604 = vector.broadcast %cst_176 : f32 to vector<8x128xf32>
    %605 = arith.subf %604, %598 : vector<8x128xf32>
    %606 = arith.mulf %605, %603 : vector<8x128xf32>
    %607 = arith.mulf %598, %520 : vector<8x128xf32>
    %608 = arith.addf %606, %607 : vector<8x128xf32>
    %609 = vector.shape_cast %573 : vector<8x1xi1> to vector<8x1xi1>
    %610 = vector.broadcast %609 : vector<8x1xi1> to vector<8x128xi1>
    %611 = arith.select %610, %608, %520 : vector<8x128xi1>, vector<8x128xf32>
    %cst_177 = arith.constant 0.000000e+00 : f32
    %612 = vector.shape_cast %573 : vector<8x1xi1> to vector<8x1xi1>
    %613 = vector.broadcast %612 : vector<8x1xi1> to vector<8x128xi1>
    %614 = vector.broadcast %cst_177 : f32 to vector<8x128xf32>
    %615 = arith.select %613, %611, %614 : vector<8x128xi1>, vector<8x128xf32>
    %616 = arith.truncf %615 : vector<8x128xf32> to vector<8x128xbf16>
    %c1_178 = arith.constant 1 : index
    %c0_179 = arith.constant 0 : index
    %c0_180 = arith.constant 0 : index
    %617 = vector.load %arg4[%c1_178, %c0_179, %c0_180] : memref<2x128x384xbf16, #tpu.memory_space<vmem>>, vector<1x128x384xbf16>
    %618 = vector.shape_cast %617 : vector<1x128x384xbf16> to vector<128x384xbf16>
    %cst_181 = arith.constant dense<0.000000e+00> : vector<8x384xf32>
    %619 = tpu.matmul %616, %618, %cst_181 {dimension_numbers = #tpu.dot_dimension_numbers<[1], [0], [0], [1], [0, 0, 1, 1], [], []>} : vector<8x128xbf16>, vector<128x384xbf16>, vector<8x384xf32> -> vector<8x384xf32>
    %620 = arith.addf %619, %21 : vector<8x384xf32>
    %621 = arith.truncf %563 : vector<8x128xf32> to vector<8x128xbf16>
    %c1_182 = arith.constant 1 : index
    %c0_183 = arith.constant 0 : index
    %c0_184 = arith.constant 0 : index
    %622 = vector.load %arg5[%c1_182, %c0_183, %c0_184] : memref<2x128x384xbf16, #tpu.memory_space<vmem>>, vector<1x128x384xbf16>
    %623 = vector.shape_cast %622 : vector<1x128x384xbf16> to vector<128x384xbf16>
    %cst_185 = arith.constant dense<0.000000e+00> : vector<8x384xf32>
    %624 = tpu.matmul %621, %623, %cst_185 {dimension_numbers = #tpu.dot_dimension_numbers<[1], [0], [0], [1], [0, 0, 1, 1], [], []>} : vector<8x128xbf16>, vector<128x384xbf16>, vector<8x384xf32> -> vector<8x384xf32>
    %625 = arith.addf %624, %17 : vector<8x384xf32>
    %626 = vector.extract_strided_slice %620 {offsets = [0, 0], sizes = [8, 128], strides = [1, 1]} : vector<8x384xf32> to vector<8x128xf32>
    %627 = vector.extract_strided_slice %625 {offsets = [0, 0], sizes = [8, 128], strides = [1, 1]} : vector<8x384xf32> to vector<8x128xf32>
    %628 = arith.addf %626, %627 : vector<8x128xf32>
    %629 = arith.negf %628 : vector<8x128xf32>
    %630 = math.exp %629 : vector<8x128xf32>
    %cst_186 = arith.constant 1.000000e+00 : f32
    %631 = vector.broadcast %cst_186 : f32 to vector<8x128xf32>
    %632 = arith.addf %631, %630 : vector<8x128xf32>
    %633 = arith.divf %631, %632 : vector<8x128xf32>
    %634 = vector.extract_strided_slice %620 {offsets = [0, 128], sizes = [8, 128], strides = [1, 1]} : vector<8x384xf32> to vector<8x128xf32>
    %635 = vector.extract_strided_slice %625 {offsets = [0, 128], sizes = [8, 128], strides = [1, 1]} : vector<8x384xf32> to vector<8x128xf32>
    %636 = arith.addf %634, %635 : vector<8x128xf32>
    %637 = arith.negf %636 : vector<8x128xf32>
    %638 = math.exp %637 : vector<8x128xf32>
    %cst_187 = arith.constant 1.000000e+00 : f32
    %639 = vector.broadcast %cst_187 : f32 to vector<8x128xf32>
    %640 = arith.addf %639, %638 : vector<8x128xf32>
    %641 = arith.divf %639, %640 : vector<8x128xf32>
    %642 = vector.extract_strided_slice %620 {offsets = [0, 256], sizes = [8, 128], strides = [1, 1]} : vector<8x384xf32> to vector<8x128xf32>
    %643 = vector.extract_strided_slice %625 {offsets = [0, 256], sizes = [8, 128], strides = [1, 1]} : vector<8x384xf32> to vector<8x128xf32>
    %644 = arith.mulf %633, %643 : vector<8x128xf32>
    %645 = arith.addf %642, %644 : vector<8x128xf32>
    %646 = math.tanh %645 : vector<8x128xf32>
    %cst_188 = arith.constant 1.000000e+00 : f32
    %647 = vector.broadcast %cst_188 : f32 to vector<8x128xf32>
    %648 = arith.subf %647, %641 : vector<8x128xf32>
    %649 = arith.mulf %648, %646 : vector<8x128xf32>
    %650 = arith.mulf %641, %563 : vector<8x128xf32>
    %651 = arith.addf %649, %650 : vector<8x128xf32>
    %652 = vector.shape_cast %573 : vector<8x1xi1> to vector<8x1xi1>
    %653 = vector.broadcast %652 : vector<8x1xi1> to vector<8x128xi1>
    %654 = arith.select %653, %651, %563 : vector<8x128xi1>, vector<8x128xf32>
    %cst_189 = arith.constant 0.000000e+00 : f32
    %655 = vector.shape_cast %573 : vector<8x1xi1> to vector<8x1xi1>
    %656 = vector.broadcast %655 : vector<8x1xi1> to vector<8x128xi1>
    %657 = vector.broadcast %cst_189 : f32 to vector<8x128xf32>
    %658 = arith.select %656, %654, %657 : vector<8x128xi1>, vector<8x128xf32>
    %659 = arith.index_cast %c6_i32 : i32 to index
    %c0_190 = arith.constant 0 : index
    %c0_191 = arith.constant 0 : index
    %660 = vector.load %arg8[%659, %c0_190, %c0_191] : memref<8x8x128xf32, #tpu.memory_space<vmem>>, vector<1x8x128xf32>
    %661 = vector.shape_cast %660 : vector<1x8x128xf32> to vector<8x128xf32>
    %662 = vector.shape_cast %658 : vector<8x128xf32> to vector<1x8x128xf32>
    tpu.vector_store %arg8[%659, %c0_190, %c0_191], %662 {strides = array<i32>} : memref<8x8x128xf32, #tpu.memory_space<vmem>>, vector<1x8x128xf32>,
    %c7_i32 = arith.constant 7 : i32
    %663 = vector.broadcast %c7_i32 : i32 to vector<8x1xi32>
    %664 = arith.cmpi slt, %663, %9 : vector<8x1xi32>
    %c8_i32_192 = arith.constant 8 : i32
    %665 = arith.muli %c7_i32, %c8_i32_192 : i32
    %666 = tpu.assume_multiple %665, 8 : i32
    %667 = arith.index_cast %666 : i32 to index
    %c0_193 = arith.constant 0 : index
    %668 = vector.load %arg10[%667, %c0_193] : memref<64x384xf32, #tpu.memory_space<vmem>>, vector<8x384xf32>
    %669 = arith.truncf %611 : vector<8x128xf32> to vector<8x128xbf16>
    %c0_194 = arith.constant 0 : index
    %c0_195 = arith.constant 0 : index
    %c0_196 = arith.constant 0 : index
    %670 = vector.load %arg5[%c0_194, %c0_195, %c0_196] : memref<2x128x384xbf16, #tpu.memory_space<vmem>>, vector<1x128x384xbf16>
    %671 = vector.shape_cast %670 : vector<1x128x384xbf16> to vector<128x384xbf16>
    %cst_197 = arith.constant dense<0.000000e+00> : vector<8x384xf32>
    %672 = tpu.matmul %669, %671, %cst_197 {dimension_numbers = #tpu.dot_dimension_numbers<[1], [0], [0], [1], [0, 0, 1, 1], [], []>} : vector<8x128xbf16>, vector<128x384xbf16>, vector<8x384xf32> -> vector<8x384xf32>
    %673 = arith.addf %672, %13 : vector<8x384xf32>
    %674 = vector.extract_strided_slice %668 {offsets = [0, 0], sizes = [8, 128], strides = [1, 1]} : vector<8x384xf32> to vector<8x128xf32>
    %675 = vector.extract_strided_slice %673 {offsets = [0, 0], sizes = [8, 128], strides = [1, 1]} : vector<8x384xf32> to vector<8x128xf32>
    %676 = arith.addf %674, %675 : vector<8x128xf32>
    %677 = arith.negf %676 : vector<8x128xf32>
    %678 = math.exp %677 : vector<8x128xf32>
    %cst_198 = arith.constant 1.000000e+00 : f32
    %679 = vector.broadcast %cst_198 : f32 to vector<8x128xf32>
    %680 = arith.addf %679, %678 : vector<8x128xf32>
    %681 = arith.divf %679, %680 : vector<8x128xf32>
    %682 = vector.extract_strided_slice %668 {offsets = [0, 128], sizes = [8, 128], strides = [1, 1]} : vector<8x384xf32> to vector<8x128xf32>
    %683 = vector.extract_strided_slice %673 {offsets = [0, 128], sizes = [8, 128], strides = [1, 1]} : vector<8x384xf32> to vector<8x128xf32>
    %684 = arith.addf %682, %683 : vector<8x128xf32>
    %685 = arith.negf %684 : vector<8x128xf32>
    %686 = math.exp %685 : vector<8x128xf32>
    %cst_199 = arith.constant 1.000000e+00 : f32
    %687 = vector.broadcast %cst_199 : f32 to vector<8x128xf32>
    %688 = arith.addf %687, %686 : vector<8x128xf32>
    %689 = arith.divf %687, %688 : vector<8x128xf32>
    %690 = vector.extract_strided_slice %668 {offsets = [0, 256], sizes = [8, 128], strides = [1, 1]} : vector<8x384xf32> to vector<8x128xf32>
    %691 = vector.extract_strided_slice %673 {offsets = [0, 256], sizes = [8, 128], strides = [1, 1]} : vector<8x384xf32> to vector<8x128xf32>
    %692 = arith.mulf %681, %691 : vector<8x128xf32>
    %693 = arith.addf %690, %692 : vector<8x128xf32>
    %694 = math.tanh %693 : vector<8x128xf32>
    %cst_200 = arith.constant 1.000000e+00 : f32
    %695 = vector.broadcast %cst_200 : f32 to vector<8x128xf32>
    %696 = arith.subf %695, %689 : vector<8x128xf32>
    %697 = arith.mulf %696, %694 : vector<8x128xf32>
    %698 = arith.mulf %689, %611 : vector<8x128xf32>
    %699 = arith.addf %697, %698 : vector<8x128xf32>
    %700 = vector.shape_cast %664 : vector<8x1xi1> to vector<8x1xi1>
    %701 = vector.broadcast %700 : vector<8x1xi1> to vector<8x128xi1>
    %702 = arith.select %701, %699, %611 : vector<8x128xi1>, vector<8x128xf32>
    %cst_201 = arith.constant 0.000000e+00 : f32
    %703 = vector.shape_cast %664 : vector<8x1xi1> to vector<8x1xi1>
    %704 = vector.broadcast %703 : vector<8x1xi1> to vector<8x128xi1>
    %705 = vector.broadcast %cst_201 : f32 to vector<8x128xf32>
    %706 = arith.select %704, %702, %705 : vector<8x128xi1>, vector<8x128xf32>
    %707 = arith.truncf %706 : vector<8x128xf32> to vector<8x128xbf16>
    %c1_202 = arith.constant 1 : index
    %c0_203 = arith.constant 0 : index
    %c0_204 = arith.constant 0 : index
    %708 = vector.load %arg4[%c1_202, %c0_203, %c0_204] : memref<2x128x384xbf16, #tpu.memory_space<vmem>>, vector<1x128x384xbf16>
    %709 = vector.shape_cast %708 : vector<1x128x384xbf16> to vector<128x384xbf16>
    %cst_205 = arith.constant dense<0.000000e+00> : vector<8x384xf32>
    %710 = tpu.matmul %707, %709, %cst_205 {dimension_numbers = #tpu.dot_dimension_numbers<[1], [0], [0], [1], [0, 0, 1, 1], [], []>} : vector<8x128xbf16>, vector<128x384xbf16>, vector<8x384xf32> -> vector<8x384xf32>
    %711 = arith.addf %710, %21 : vector<8x384xf32>
    %712 = arith.truncf %654 : vector<8x128xf32> to vector<8x128xbf16>
    %c1_206 = arith.constant 1 : index
    %c0_207 = arith.constant 0 : index
    %c0_208 = arith.constant 0 : index
    %713 = vector.load %arg5[%c1_206, %c0_207, %c0_208] : memref<2x128x384xbf16, #tpu.memory_space<vmem>>, vector<1x128x384xbf16>
    %714 = vector.shape_cast %713 : vector<1x128x384xbf16> to vector<128x384xbf16>
    %cst_209 = arith.constant dense<0.000000e+00> : vector<8x384xf32>
    %715 = tpu.matmul %712, %714, %cst_209 {dimension_numbers = #tpu.dot_dimension_numbers<[1], [0], [0], [1], [0, 0, 1, 1], [], []>} : vector<8x128xbf16>, vector<128x384xbf16>, vector<8x384xf32> -> vector<8x384xf32>
    %716 = arith.addf %715, %17 : vector<8x384xf32>
    %717 = vector.extract_strided_slice %711 {offsets = [0, 0], sizes = [8, 128], strides = [1, 1]} : vector<8x384xf32> to vector<8x128xf32>
    %718 = vector.extract_strided_slice %716 {offsets = [0, 0], sizes = [8, 128], strides = [1, 1]} : vector<8x384xf32> to vector<8x128xf32>
    %719 = arith.addf %717, %718 : vector<8x128xf32>
    %720 = arith.negf %719 : vector<8x128xf32>
    %721 = math.exp %720 : vector<8x128xf32>
    %cst_210 = arith.constant 1.000000e+00 : f32
    %722 = vector.broadcast %cst_210 : f32 to vector<8x128xf32>
    %723 = arith.addf %722, %721 : vector<8x128xf32>
    %724 = arith.divf %722, %723 : vector<8x128xf32>
    %725 = vector.extract_strided_slice %711 {offsets = [0, 128], sizes = [8, 128], strides = [1, 1]} : vector<8x384xf32> to vector<8x128xf32>
    %726 = vector.extract_strided_slice %716 {offsets = [0, 128], sizes = [8, 128], strides = [1, 1]} : vector<8x384xf32> to vector<8x128xf32>
    %727 = arith.addf %725, %726 : vector<8x128xf32>
    %728 = arith.negf %727 : vector<8x128xf32>
    %729 = math.exp %728 : vector<8x128xf32>
    %cst_211 = arith.constant 1.000000e+00 : f32
    %730 = vector.broadcast %cst_211 : f32 to vector<8x128xf32>
    %731 = arith.addf %730, %729 : vector<8x128xf32>
    %732 = arith.divf %730, %731 : vector<8x128xf32>
    %733 = vector.extract_strided_slice %711 {offsets = [0, 256], sizes = [8, 128], strides = [1, 1]} : vector<8x384xf32> to vector<8x128xf32>
    %734 = vector.extract_strided_slice %716 {offsets = [0, 256], sizes = [8, 128], strides = [1, 1]} : vector<8x384xf32> to vector<8x128xf32>
    %735 = arith.mulf %724, %734 : vector<8x128xf32>
    %736 = arith.addf %733, %735 : vector<8x128xf32>
    %737 = math.tanh %736 : vector<8x128xf32>
    %cst_212 = arith.constant 1.000000e+00 : f32
    %738 = vector.broadcast %cst_212 : f32 to vector<8x128xf32>
    %739 = arith.subf %738, %732 : vector<8x128xf32>
    %740 = arith.mulf %739, %737 : vector<8x128xf32>
    %741 = arith.mulf %732, %654 : vector<8x128xf32>
    %742 = arith.addf %740, %741 : vector<8x128xf32>
    %743 = vector.shape_cast %664 : vector<8x1xi1> to vector<8x1xi1>
    %744 = vector.broadcast %743 : vector<8x1xi1> to vector<8x128xi1>
    %745 = arith.select %744, %742, %654 : vector<8x128xi1>, vector<8x128xf32>
    %cst_213 = arith.constant 0.000000e+00 : f32
    %746 = vector.shape_cast %664 : vector<8x1xi1> to vector<8x1xi1>
    %747 = vector.broadcast %746 : vector<8x1xi1> to vector<8x128xi1>
    %748 = vector.broadcast %cst_213 : f32 to vector<8x128xf32>
    %749 = arith.select %747, %745, %748 : vector<8x128xi1>, vector<8x128xf32>
    %750 = arith.index_cast %c7_i32 : i32 to index
    %c0_214 = arith.constant 0 : index
    %c0_215 = arith.constant 0 : index
    %751 = vector.load %arg8[%750, %c0_214, %c0_215] : memref<8x8x128xf32, #tpu.memory_space<vmem>>, vector<1x8x128xf32>
    %752 = vector.shape_cast %751 : vector<1x8x128xf32> to vector<8x128xf32>
    %753 = vector.shape_cast %749 : vector<8x128xf32> to vector<1x8x128xf32>
    tpu.vector_store %arg8[%750, %c0_214, %c0_215], %753 {strides = array<i32>} : memref<8x8x128xf32, #tpu.memory_space<vmem>>, vector<1x8x128xf32>,
    %c8_i32_216 = arith.constant 8 : i32
    %c0_217 = arith.constant 0 : index
    %c0_218 = arith.constant 0 : index
    %c0_219 = arith.constant 0 : index
    %754 = vector.load %arg9[%c0_217, %c0_218, %c0_219] : memref<2x8x128xf32, #tpu.memory_space<vmem>>, vector<1x8x128xf32>
    %755 = vector.shape_cast %754 : vector<1x8x128xf32> to vector<8x128xf32>
    %756 = vector.shape_cast %702 : vector<8x128xf32> to vector<1x8x128xf32>
    tpu.vector_store %arg9[%c0_217, %c0_218, %c0_219], %756 {strides = array<i32>} : memref<2x8x128xf32, #tpu.memory_space<vmem>>, vector<1x8x128xf32>,
    %c1_220 = arith.constant 1 : index
    %c0_221 = arith.constant 0 : index
    %c0_222 = arith.constant 0 : index
    %757 = vector.load %arg9[%c1_220, %c0_221, %c0_222] : memref<2x8x128xf32, #tpu.memory_space<vmem>>, vector<1x8x128xf32>
    %758 = vector.shape_cast %757 : vector<1x8x128xf32> to vector<8x128xf32>
    %759 = vector.shape_cast %745 : vector<8x128xf32> to vector<1x8x128xf32>
    tpu.vector_store %arg9[%c1_220, %c0_221, %c0_222], %759 {strides = array<i32>} : memref<2x8x128xf32, #tpu.memory_space<vmem>>, vector<1x8x128xf32>,
    return
  }
  func.func @transform_0(%arg0: i32) -> (i32, i32) {
    %c0_i32 = arith.constant 0 : i32
    %c0_i32_0 = arith.constant 0 : i32
    %c0_i32_1 = arith.constant 0 : i32
    return %c0_i32, %c0_i32_0 : i32, i32
  }
  func.func @transform_1(%arg0: i32) -> (i32, i32) {
    %c0_i32 = arith.constant 0 : i32
    %c0_i32_0 = arith.constant 0 : i32
    %c0_i32_1 = arith.constant 0 : i32
    return %c0_i32, %c0_i32_0 : i32, i32
  }
  func.func @transform_2(%arg0: i32) -> (i32, i32, i32) {
    %c0_i32 = arith.constant 0 : i32
    %c0_i32_0 = arith.constant 0 : i32
    %c0_i32_1 = arith.constant 0 : i32
    %c0_i32_2 = arith.constant 0 : i32
    return %c0_i32, %c0_i32_0, %c0_i32_1 : i32, i32, i32
  }
  func.func @transform_3(%arg0: i32) -> (i32, i32, i32) {
    %c0_i32 = arith.constant 0 : i32
    %c0_i32_0 = arith.constant 0 : i32
    %c0_i32_1 = arith.constant 0 : i32
    %c0_i32_2 = arith.constant 0 : i32
    return %c0_i32, %c0_i32_0, %c0_i32_1 : i32, i32, i32
  }
  func.func @transform_4(%arg0: i32) -> (i32, i32, i32) {
    %c0_i32 = arith.constant 0 : i32
    %c0_i32_0 = arith.constant 0 : i32
    %c0_i32_1 = arith.constant 0 : i32
    %c0_i32_2 = arith.constant 0 : i32
    return %c0_i32, %c0_i32_0, %c0_i32_1 : i32, i32, i32
  }
  func.func @transform_5(%arg0: i32) -> (i32, i32, i32) {
    %c0_i32 = arith.constant 0 : i32
    %c0_i32_0 = arith.constant 0 : i32
    %c0_i32_1 = arith.constant 0 : i32
    %c0_i32_2 = arith.constant 0 : i32
    return %c0_i32, %c0_i32_0, %c0_i32_1 : i32, i32, i32
  }
  func.func @transform_6(%arg0: i32) -> (i32, i32, i32) {
    %c0_i32 = arith.constant 0 : i32
    %c0_i32_0 = arith.constant 0 : i32
    %c0_i32_1 = arith.constant 0 : i32
    %c0_i32_2 = arith.constant 0 : i32
    return %c0_i32, %c0_i32_0, %c0_i32_1 : i32, i32, i32
  }
  func.func @transform_7(%arg0: i32) -> (i32, i32, i32) {
    %c0_i32 = arith.constant 0 : i32
    %c0_i32_0 = arith.constant 0 : i32
    %c0_i32_1 = arith.constant 0 : i32
    %c0_i32_2 = arith.constant 0 : i32
    return %c0_i32, %c0_i32_0, %c0_i32_1 : i32, i32, i32
  }
  func.func @transform_8(%arg0: i32) -> (i32, i32, i32) {
    %c0_i32 = arith.constant 0 : i32
    %c0_i32_0 = arith.constant 0 : i32
    %c0_i32_1 = arith.constant 0 : i32
    %c0_i32_2 = arith.constant 0 : i32
    return %c0_i32, %c0_i32_0, %c0_i32_1 : i32, i32, i32
  }
}

</mosaic_0001>

<llo_original>
// kernel: dr_model_forward.1
$region0: #{dr_model_forward.1}
  #allocation0 [shape = 'u32[]', space=smem, size = 0x4, offset = 0x4, fixed_abs, tag = 'smem constant byte address 0x4 - core index']
  #allocation1 [shape = 'u32[144,128]{1,0:T(1,128)}', space=vmem, size = 0x12000, scoped, tag = 'internal scratch']
  #allocation2 [shape = 'f32[64,384]{1,0:T(8,128)}', space=vmem, size = 0x18000, scoped, tag = 'scratch operand']
  %s0 = inlined_call_operand.hbm [shape: bf16[64,128], index: 0, kind: input, shape index: {}]
  %s1 = inlined_call_operand.hbm [shape: s32[8,1], index: 1, kind: input, shape index: {}]
  %s2 = inlined_call_operand.hbm [shape: f32[2,8,128], index: 2, kind: input, shape index: {}]
  %s3 = inlined_call_operand.hbm [shape: bf16[2,128,384], index: 3, kind: input, shape index: {}]
  %s4 = inlined_call_operand.hbm [shape: bf16[2,128,384], index: 4, kind: input, shape index: {}]
  %s5 = inlined_call_operand.hbm [shape: f32[2,1,384], index: 5, kind: input, shape index: {}]
  %s6 = inlined_call_operand.hbm [shape: f32[2,1,384], index: 6, kind: input, shape index: {}]
  %s7 = inlined_call_operand.hbm [shape: f32[8,8,128], index: 7, kind: output, shape index: {0}]
  %s8 = inlined_call_operand.hbm [shape: f32[2,8,128], index: 8, kind: output, shape index: {1}]
  %9 = xla_tuple %s7, %s8
  %s10 = sld [smem:[#allocation0]]
  $region74: #{dr_model_forward.1} parent=0
    _
  %s12 = ssub.s32 1, %s10
  %s13 = scalar_select 0, %s12, %s10
  $region1: #{dr_model_forward.1} parent=0
    #allocation3 [shape = 'u8[16384]{0}', space=vmem, size = 0x4000, scoped, tag = 'input window, operand 0, single buffered']
    #allocation4 [shape = 's32[1]{0}', space=sflag, size = 0x4, scoped, tag = 'scoped memory for dr_model_forward.1']
    #allocation5 [shape = 's32[1]{0}', space=sflag, size = 0x4, scoped, tag = 'scoped memory for dr_model_forward.1']
    #allocation6 [shape = 'u8[4096]{0}', space=vmem, size = 0x1000, scoped, tag = 'input window, operand 1, single buffered']
    #allocation7 [shape = 's32[1]{0}', space=sflag, size = 0x4, scoped, tag = 'scoped memory for dr_model_forward.1']
    #allocation8 [shape = 'u8[8192]{0}', space=vmem, size = 0x2000, scoped, tag = 'input window, operand 2, single buffered']
    #allocation9 [shape = 'u8[196608]{0}', space=vmem, size = 0x30000, scoped, tag = 'input window, operand 3, single buffered']
    #allocation10 [shape = 's32[1]{0}', space=sflag, size = 0x4, scoped, tag = 'scoped memory for dr_model_forward.1']
    #allocation11 [shape = 'u8[196608]{0}', space=vmem, size = 0x30000, scoped, tag = 'input window, operand 4, single buffered']
    #allocation12 [shape = 'u8[3072]{0}', space=vmem, size = 0xc00, scoped, tag = 'input window, operand 5, single buffered']
    #allocation13 [shape = 's32[1]{0}', space=sflag, size = 0x4, scoped, tag = 'scoped memory for dr_model_forward.1']
    #allocation14 [shape = 'u8[3072]{0}', space=vmem, size = 0xc00, scoped, tag = 'input window, operand 6, single buffered']
    #allocation15 [shape = 'u8[32768]{0}', space=vmem, size = 0x8000, scoped, tag = 'output window, operand 0, single buffered']
    #allocation16 [shape = 'u8[8192]{0}', space=vmem, size = 0x2000, scoped, tag = 'output window, operand 1, single buffered']
    #allocation17 [shape = 's32[1]{0}', space=sflag, size = 0x4, scoped, tag = 'scoped memory for dr_model_forward.1']
    %14 = vsyncpa [#allocation4], 0
    %15 = vsyncpa [#allocation7], 0
    %16 = vsyncpa [#allocation10], 0
    %17 = vsyncpa [#allocation13], 0
    %18 = vsyncpa [#allocation5], 0
    %19 = vsyncpa [#allocation17], 0
    // Predicated region
    $region2: #{dr_model_forward.1} parent=1 // pred_check
      _
    $region3: #{dr_model_forward.1} parent=1 // pred_check_branch
      %21 = sbr.rel (0) target = $region5
    $region4: #{dr_model_forward.1} parent=1 // pred_region
      %s23 = ssub.s32 512, 512
      %24 = vsyncadd [#allocation4], %s23
      %s25 = sshll.u32 [#allocation3], 4
      %s26 = int_to_ptr.vmem [resolvable:$true] %s25
      %31 = dma.hbm_to_vmem [thread:$0]  %s0, 512, %s26, [#allocation4], 64, 64, 4
    $region5: #{dr_model_forward.1} parent=1 // pred_fallthru
      _
    // Predicated region
    $region6: #{dr_model_forward.1} parent=1 // pred_check
      _
    $region7: #{dr_model_forward.1} parent=1 // pred_check_branch
      %33 = sbr.rel (0) target = $region9
    $region8: #{dr_model_forward.1} parent=1 // pred_region
      %s35 = ssub.s32 128, 128
      %36 = vsyncadd [#allocation7], %s35
      %s38 = sshll.u32 [#allocation6], 4
      %s39 = int_to_ptr.vmem [resolvable:$true] %s38
      %41 = dma.hbm_to_vmem [thread:$0]  %s1, 128, %s39, [#allocation7]
    $region9: #{dr_model_forward.1} parent=1 // pred_fallthru
      _
    // Predicated region
    $region10: #{dr_model_forward.1} parent=1 // pred_check
      _
    $region11: #{dr_model_forward.1} parent=1 // pred_check_branch
      %43 = sbr.rel (0) target = $region13
    $region12: #{dr_model_forward.1} parent=1 // pred_region
      %s45 = ssub.s32 256, 256
      %46 = vsyncadd [#allocation7], %s45
      %s47 = sshll.u32 [#allocation8], 4
      %s48 = int_to_ptr.vmem [resolvable:$true] %s47
      %53 = dma.hbm_to_vmem [thread:$0]  %s2, 256, %s48, [#allocation7], 128, 128, 8
    $region13: #{dr_model_forward.1} parent=1 // pred_fallthru
      _
    // Predicated region
    $region14: #{dr_model_forward.1} parent=1 // pred_check
      _
    $region15: #{dr_model_forward.1} parent=1 // pred_check_branch
      %55 = sbr.rel (0) target = $region17
    $region16: #{dr_model_forward.1} parent=1 // pred_region
      %s57 = ssub.s32 6144, 6144
      %58 = vsyncadd [#allocation10], %s57
      %s59 = sshll.u32 [#allocation9], 4
      %s60 = int_to_ptr.vmem [resolvable:$true] %s59
      %65 = dma.hbm_to_vmem [thread:$0]  %s3, 6144, %s60, [#allocation10], 192, 192, 12
    $region17: #{dr_model_forward.1} parent=1 // pred_fallthru
      _
    // Predicated region
    $region18: #{dr_model_forward.1} parent=1 // pred_check
      _
    $region19: #{dr_model_forward.1} parent=1 // pred_check_branch
      %67 = sbr.rel (0) target = $region21
    $region20: #{dr_model_forward.1} parent=1 // pred_region
      %s69 = ssub.s32 6144, 6144
      %70 = vsyncadd [#allocation10], %s69
      %s71 = sshll.u32 [#allocation11], 4
      %s72 = int_to_ptr.vmem [resolvable:$true] %s71
      %77 = dma.hbm_to_vmem [thread:$0]  %s4, 6144, %s72, [#allocation10], 192, 192, 12
    $region21: #{dr_model_forward.1} parent=1 // pred_fallthru
      _
    // Predicated region
    $region22: #{dr_model_forward.1} parent=1 // pred_check
      _
    $region23: #{dr_model_forward.1} parent=1 // pred_check_branch
      %79 = sbr.rel (0) target = $region25
    $region24: #{dr_model_forward.1} parent=1 // pred_region
      %s81 = ssub.s32 96, 96
      %82 = vsyncadd [#allocation13], %s81
      %s83 = sshll.u32 [#allocation12], 4
      %s84 = int_to_ptr.vmem [resolvable:$true] %s83
      %89 = dma.hbm_to_vmem [thread:$0]  %s5, 96, %s84, [#allocation13], 48, 48, 3
    $region25: #{dr_model_forward.1} parent=1 // pred_fallthru
      _
    // Predicated region
    $region26: #{dr_model_forward.1} parent=1 // pred_check
      _
    $region27: #{dr_model_forward.1} parent=1 // pred_check_branch
      %91 = sbr.rel (0) target = $region29
    $region28: #{dr_model_forward.1} parent=1 // pred_region
      %s93 = ssub.s32 96, 96
      %94 = vsyncadd [#allocation13], %s93
      %s95 = sshll.u32 [#allocation14], 4
      %s96 = int_to_ptr.vmem [resolvable:$true] %s95
      %101 = dma.hbm_to_vmem [thread:$0]  %s6, 96, %s96, [#allocation13], 48, 48, 3
    $region29: #{dr_model_forward.1} parent=1 // pred_fallthru
      _
    // Predicated region
    $region30: #{dr_model_forward.1} parent=1 // pred_check
      _
    $region31: #{dr_model_forward.1} parent=1 // pred_check_branch
      %103 = sbr.rel (0) target = $region33
    $region32: #{dr_model_forward.1} parent=1 // pred_region
      %104 = dma.done [#allocation4], 512
    $region33: #{dr_model_forward.1} parent=1 // pred_fallthru
      _
    // Predicated region
    $region34: #{dr_model_forward.1} parent=1 // pred_check
      _
    $region35: #{dr_model_forward.1} parent=1 // pred_check_branch
      %106 = sbr.rel (0) target = $region37
    $region36: #{dr_model_forward.1} parent=1 // pred_region
      %107 = dma.done [#allocation7], 128
    $region37: #{dr_model_forward.1} parent=1 // pred_fallthru
      _
    // Predicated region
    $region38: #{dr_model_forward.1} parent=1 // pred_check
      _
    $region39: #{dr_model_forward.1} parent=1 // pred_check_branch
      %109 = sbr.rel (0) target = $region41
    $region40: #{dr_model_forward.1} parent=1 // pred_region
      %110 = dma.done [#allocation7], 256
    $region41: #{dr_model_forward.1} parent=1 // pred_fallthru
      _
    // Predicated region
    $region42: #{dr_model_forward.1} parent=1 // pred_check
      _
    $region43: #{dr_model_forward.1} parent=1 // pred_check_branch
      %112 = sbr.rel (0) target = $region45
    $region44: #{dr_model_forward.1} parent=1 // pred_region
      %113 = dma.done [#allocation10], 6144
    $region45: #{dr_model_forward.1} parent=1 // pred_fallthru
      _
    // Predicated region
    $region46: #{dr_model_forward.1} parent=1 // pred_check
      _
    $region47: #{dr_model_forward.1} parent=1 // pred_check_branch
      %115 = sbr.rel (0) target = $region49
    $region48: #{dr_model_forward.1} parent=1 // pred_region
      %116 = dma.done [#allocation10], 6144
    $region49: #{dr_model_forward.1} parent=1 // pred_fallthru
      _
    // Predicated region
    $region50: #{dr_model_forward.1} parent=1 // pred_check
      _
    $region51: #{dr_model_forward.1} parent=1 // pred_check_branch
      %118 = sbr.rel (0) target = $region53
    $region52: #{dr_model_forward.1} parent=1 // pred_region
      %119 = dma.done [#allocation13], 96
    $region53: #{dr_model_forward.1} parent=1 // pred_fallthru
      _
    // Predicated region
    $region54: #{dr_model_forward.1} parent=1 // pred_check
      _
    $region55: #{dr_model_forward.1} parent=1 // pred_check_branch
      %121 = sbr.rel (0) target = $region57
    $region56: #{dr_model_forward.1} parent=1 // pred_region
      %122 = dma.done [#allocation13], 96
    $region57: #{dr_model_forward.1} parent=1 // pred_fallthru
      _
    %v124 = vld [vmem:[#allocation3] sm:$0xf]
    %v125 = vld [vmem:[#allocation3 + $0x4] sm:$0xf]
    %v126 = vld [vmem:[#allocation3 + $0x8] sm:$0xf]
    %v127 = vld [vmem:[#allocation3 + $0xc] sm:$0xf]
    %v128 = vld [vmem:[#allocation3 + $0x10] sm:$0xf]
    %v129 = vld [vmem:[#allocation3 + $0x14] sm:$0xf]
    %v130 = vld [vmem:[#allocation3 + $0x18] sm:$0xf]
    %v131 = vld [vmem:[#allocation3 + $0x1c] sm:$0xf]
    %v132 = vld [vmem:[#allocation9] sm:$0xff]
    %v133 = vld [vmem:[#allocation9 + $0x8] sm:$0xf]
    %v134 = vld [vmem:[#allocation9 + $0xc] sm:$0xff]
    %v135 = vld [vmem:[#allocation9 + $0x14] sm:$0xf]
    %v136 = vld [vmem:[#allocation9 + $0x18] sm:$0xff]
    %v137 = vld [vmem:[#allocation9 + $0x20] sm:$0xf]
    %v138 = vld [vmem:[#allocation9 + $0x24] sm:$0xff]
    %v139 = vld [vmem:[#allocation9 + $0x2c] sm:$0xf]
    %v140 = vld [vmem:[#allocation9 + $0x30] sm:$0xff]
    %v141 = vld [vmem:[#allocation9 + $0x38] sm:$0xf]
    %v142 = vld [vmem:[#allocation9 + $0x3c] sm:$0xff]
    %v143 = vld [vmem:[#allocation9 + $0x44] sm:$0xf]
    %v144 = vld [vmem:[#allocation9 + $0x48] sm:$0xff]
    %v145 = vld [vmem:[#allocation9 + $0x50] sm:$0xf]
    %v146 = vld [vmem:[#allocation9 + $0x54] sm:$0xff]
    %v147 = vld [vmem:[#allocation9 + $0x5c] sm:$0xf]
    %v148 = vld [vmem:[#allocation9 + $0x60] sm:$0xff]
    %v149 = vld [vmem:[#allocation9 + $0x68] sm:$0xf]
    %v150 = vld [vmem:[#allocation9 + $0x6c] sm:$0xff]
    %v151 = vld [vmem:[#allocation9 + $0x74] sm:$0xf]
    %v152 = vld [vmem:[#allocation9 + $0x78] sm:$0xff]
    %v153 = vld [vmem:[#allocation9 + $0x80] sm:$0xf]
    %v154 = vld [vmem:[#allocation9 + $0x84] sm:$0xff]
    %v155 = vld [vmem:[#allocation9 + $0x8c] sm:$0xf]
    %v156 = vld [vmem:[#allocation9 + $0x90] sm:$0xff]
    %v157 = vld [vmem:[#allocation9 + $0x98] sm:$0xf]
    %v158 = vld [vmem:[#allocation9 + $0x9c] sm:$0xff]
    %v159 = vld [vmem:[#allocation9 + $0xa4] sm:$0xf]
    %v160 = vld [vmem:[#allocation9 + $0xa8] sm:$0xff]
    %v161 = vld [vmem:[#allocation9 + $0xb0] sm:$0xf]
    %v162 = vld [vmem:[#allocation9 + $0xb4] sm:$0xff]
    %v163 = vld [vmem:[#allocation9 + $0xbc] sm:$0xf]
    %v164 = vld [vmem:[#allocation12] sm:$0x7]
    %v166 = vlaneseq
    %v167 = vshrl.u32 %v166, 7
    %v168 = vsub.s32 0, %v167
    %v169 = vrot.slane %v164, %v168
    %v170 = vlaneseq
    %v171 = vshrl.u32 %v170, 7
    %v172 = vsub.s32 1, %v171
    %v173 = vrot.slane %v164, %v172
    %v174 = vlaneseq
    %v175 = vshrl.u32 %v174, 7
    %v176 = vsub.s32 2, %v175
    %v177 = vrot.slane %v164, %v176
    %v189 = vunpack.c.l.b16 %v124
    %v190 = vunpack.c.l.b16 %v125
    %v191 = vunpack.c.l.b16 %v126
    %v192 = vunpack.c.l.b16 %v127
    %v193 = vunpack.c.l.b16 %v128
    %v194 = vunpack.c.l.b16 %v129
    %v195 = vunpack.c.l.b16 %v130
    %v196 = vunpack.c.l.b16 %v131
    %v197 = vpack.c.b16 %v190, %v189
    %v198 = vpack.c.b16 %v192, %v191
    %v199 = vpack.c.b16 %v194, %v193
    %v200 = vpack.c.b16 %v196, %v195
    %v237 = vunpack.c.l.b16 %v132
    %v238 = vunpack.c.h.b16 %v132
    %v239 = vunpack.c.l.b16 %v133
    %v240 = vunpack.c.l.b16 %v134
    %v241 = vunpack.c.h.b16 %v134
    %v242 = vunpack.c.l.b16 %v135
    %v243 = vunpack.c.l.b16 %v136
    %v244 = vunpack.c.h.b16 %v136
    %v245 = vunpack.c.l.b16 %v137
    %v246 = vunpack.c.l.b16 %v138
    %v247 = vunpack.c.h.b16 %v138
    %v248 = vunpack.c.l.b16 %v139
    %v249 = vunpack.c.l.b16 %v140
    %v250 = vunpack.c.h.b16 %v140
    %v251 = vunpack.c.l.b16 %v141
    %v252 = vunpack.c.l.b16 %v142
    %v253 = vunpack.c.h.b16 %v142
    %v254 = vunpack.c.l.b16 %v143
    %v255 = vunpack.c.l.b16 %v144
    %v256 = vunpack.c.h.b16 %v144
    %v257 = vunpack.c.l.b16 %v145
    %v258 = vunpack.c.l.b16 %v146
    %v259 = vunpack.c.h.b16 %v146
    %v260 = vunpack.c.l.b16 %v147
    %v261 = vunpack.c.l.b16 %v148
    %v262 = vunpack.c.h.b16 %v148
    %v263 = vunpack.c.l.b16 %v149
    %v264 = vunpack.c.l.b16 %v150
    %v265 = vunpack.c.h.b16 %v150
    %v266 = vunpack.c.l.b16 %v151
    %v267 = vunpack.c.l.b16 %v152
    %v268 = vunpack.c.h.b16 %v152
    %v269 = vunpack.c.l.b16 %v153
    %v270 = vunpack.c.l.b16 %v154
    %v271 = vunpack.c.h.b16 %v154
    %v272 = vunpack.c.l.b16 %v155
    %v273 = vunpack.c.l.b16 %v156
    %v274 = vunpack.c.h.b16 %v156
    %v275 = vunpack.c.l.b16 %v157
    %v276 = vunpack.c.l.b16 %v158
    %v277 = vunpack.c.h.b16 %v158
    %v278 = vunpack.c.l.b16 %v159
    %v279 = vunpack.c.l.b16 %v160
    %v280 = vunpack.c.h.b16 %v160
    %v281 = vunpack.c.l.b16 %v161
    %v282 = vunpack.c.l.b16 %v162
    %v283 = vunpack.c.h.b16 %v162
    %v284 = vunpack.c.l.b16 %v163
    %v285 = vpack.c.b16 %v240, %v237
    %v286 = vpack.c.b16 %v241, %v238
    %v287 = vpack.c.b16 %v242, %v239
    %v288 = vpack.c.b16 %v246, %v243
    %v289 = vpack.c.b16 %v247, %v244
    %v290 = vpack.c.b16 %v248, %v245
    %v291 = vpack.c.b16 %v252, %v249
    %v292 = vpack.c.b16 %v253, %v250
    %v293 = vpack.c.b16 %v254, %v251
    %v294 = vpack.c.b16 %v258, %v255
    %v295 = vpack.c.b16 %v259, %v256
    %v296 = vpack.c.b16 %v260, %v257
    %v297 = vpack.c.b16 %v264, %v261
    %v298 = vpack.c.b16 %v265, %v262
    %v299 = vpack.c.b16 %v266, %v263
    %v300 = vpack.c.b16 %v270, %v267
    %v301 = vpack.c.b16 %v271, %v268
    %v302 = vpack.c.b16 %v272, %v269
    %v303 = vpack.c.b16 %v276, %v273
    %v304 = vpack.c.b16 %v277, %v274
    %v305 = vpack.c.b16 %v278, %v275
    %v306 = vpack.c.b16 %v282, %v279
    %v307 = vpack.c.b16 %v283, %v280
    %v308 = vpack.c.b16 %v284, %v281
    %333 = vmatprep.subr.bf16.mxu0 %v286
    %334 = vmatpush1.bf16.msra.mxu0 %v285
    %335 = vmatprep.subr.bf16.mxu0 %v289
    %336 = vmatpush1.bf16.msra.mxu0 %v288
    %337 = vmatprep.subr.bf16.mxu0 %v292
    %338 = vmatpush1.bf16.msra.mxu0 %v291
    %339 = vmatprep.subr.bf16.mxu0 %v295
    %340 = vmatpush1.bf16.msra.mxu0 %v294
    %341 = vmatprep.subr.bf16.mxu0 %v298
    %342 = vmatpush1.bf16.msra.mxu0 %v297
    %343 = vmatprep.subr.bf16.mxu0 %v301
    %344 = vmatpush1.bf16.msra.mxu0 %v300
    %345 = vmatprep.subr.bf16.mxu0 %v304
    %346 = vmatpush1.bf16.msra.mxu0 %v303
    %347 = vmatprep.subr.bf16.mxu0 %v307
    %348 = vmatpush1.bf16.msra.mxu0 %v306
    %349 = vmatprep.subr.bf16.mxu0 0
    %350 = vmatpush1.bf16.msra.mxu0 0
    %351 = vmatprep.subr.bf16.mxu0 0
    %352 = vmatpush1.bf16.msra.mxu0 0
    %353 = vmatprep.subr.bf16.mxu0 0
    %354 = vmatpush1.bf16.msra.mxu0 0
    %355 = vmatprep.subr.bf16.mxu0 0
    %356 = vmatpush1.bf16.msra.mxu0 0
    %357 = vmatprep.subr.bf16.mxu0 0
    %358 = vmatpush1.bf16.msra.mxu0 0
    %359 = vmatprep.subr.bf16.mxu0 0
    %360 = vmatpush1.bf16.msra.mxu0 0
    %361 = vmatprep.subr.bf16.mxu0 0
    %362 = vmatpush1.bf16.msra.mxu0 0
    %363 = vmatprep.subr.bf16.mxu0 0
    %364 = vmatpush1.bf16.msra.mxu0 0
    %365 = vmatprep.mubr.bf16.mxu0 0
    %366 = vmatmul.mubr.bf16.gmra.mrb[0].mxu0 %v197
    %v367 = vpop.f32.mrb[0].mxu0
    %v368 = vadd.f32 %v169, %v367
    %v369 = vpop.f32.mrb[0].mxu0
    %v370 = vadd.f32 %v173, %v369
    %v371 = vpop.f32.mrb[0].mxu0
    %v372 = vadd.f32 %v169, %v371
    %v373 = vpop.f32.mrb[0].mxu0
    %v374 = vadd.f32 %v173, %v373
    %375 = vmatprep.mubr.bf16.mxu0 0
    %376 = vmatmul.mubr.bf16.gmra.mrb[0].mxu0 %v198
    %v377 = vpop.f32.mrb[0].mxu0
    %v378 = vadd.f32 %v169, %v377
    %v379 = vpop.f32.mrb[0].mxu0
    %v380 = vadd.f32 %v173, %v379
    %v381 = vpop.f32.mrb[0].mxu0
    %v382 = vadd.f32 %v169, %v381
    %v383 = vpop.f32.mrb[0].mxu0
    %v384 = vadd.f32 %v173, %v383
    %385 = vmatprep.mubr.bf16.mxu0 0
    %386 = vmatmul.mubr.bf16.gmra.mrb[0].mxu0 %v199
    %v387 = vpop.f32.mrb[0].mxu0
    %v388 = vadd.f32 %v169, %v387
    %v389 = vpop.f32.mrb[0].mxu0
    %v390 = vadd.f32 %v173, %v389
    %v391 = vpop.f32.mrb[0].mxu0
    %v392 = vadd.f32 %v169, %v391
    %v393 = vpop.f32.mrb[0].mxu0
    %v394 = vadd.f32 %v173, %v393
    %395 = vmatprep.mubr.bf16.mxu0 0
    %396 = vmatmul.mubr.bf16.gmra.mrb[0].mxu0 %v200
    %v397 = vpop.f32.mrb[0].mxu0
    %v398 = vadd.f32 %v169, %v397
    %v399 = vpop.f32.mrb[0].mxu0
    %v400 = vadd.f32 %v173, %v399
    %v401 = vpop.f32.mrb[0].mxu0
    %v402 = vadd.f32 %v169, %v401
    %v403 = vpop.f32.mrb[0].mxu0
    %v404 = vadd.f32 %v173, %v403
    %405 = vdwg.mxu0
    %406 = vmatprep.subr.bf16.mxu0 0
    %407 = vmatpush1.bf16.msra.mxu0 %v287
    %408 = vmatprep.subr.bf16.mxu0 0
    %409 = vmatpush1.bf16.msra.mxu0 %v290
    %410 = vmatprep.subr.bf16.mxu0 0
    %411 = vmatpush1.bf16.msra.mxu0 %v293
    %412 = vmatprep.subr.bf16.mxu0 0
    %413 = vmatpush1.bf16.msra.mxu0 %v296
    %414 = vmatprep.subr.bf16.mxu0 0
    %415 = vmatpush1.bf16.msra.mxu0 %v299
    %416 = vmatprep.subr.bf16.mxu0 0
    %417 = vmatpush1.bf16.msra.mxu0 %v302
    %418 = vmatprep.subr.bf16.mxu0 0
    %419 = vmatpush1.bf16.msra.mxu0 %v305
    %420 = vmatprep.subr.bf16.mxu0 0
    %421 = vmatpush1.bf16.msra.mxu0 %v308
    %422 = vmatprep.subr.bf16.mxu0 0
    %423 = vmatpush1.bf16.msra.mxu0 0
    %424 = vmatprep.subr.bf16.mxu0 0
    %425 = vmatpush1.bf16.msra.mxu0 0
    %426 = vmatprep.subr.bf16.mxu0 0
    %427 = vmatpush1.bf16.msra.mxu0 0
    %428 = vmatprep.subr.bf16.mxu0 0
    %429 = vmatpush1.bf16.msra.mxu0 0
    %430 = vmatprep.subr.bf16.mxu0 0
    %431 = vmatpush1.bf16.msra.mxu0 0
    %432 = vmatprep.subr.bf16.mxu0 0
    %433 = vmatpush1.bf16.msra.mxu0 0
    %434 = vmatprep.subr.bf16.mxu0 0
    %435 = vmatpush1.bf16.msra.mxu0 0
    %436 = vmatprep.subr.bf16.mxu0 0
    %437 = vmatpush1.bf16.msra.mxu0 0
    %438 = vmatprep.mubr.bf16.mxu0 0
    %439 = vmatmul.mubr.bf16.gmra.mrb[0].mxu0 %v197
    %v440 = vpop.f32.mrb[0].mxu0
    %v441 = vadd.f32 %v177, %v440
    %v442 = vpop.f32.mrb[0].mxu0
    %v443 = vpop.f32.mrb[0].mxu0
    %v444 = vadd.f32 %v177, %v443
    %v445 = vpop.f32.mrb[0].mxu0
    %446 = vmatprep.mubr.bf16.mxu0 0
    %447 = vmatmul.mubr.bf16.gmra.mrb[0].mxu0 %v198
    %v448 = vpop.f32.mrb[0].mxu0
    %v449 = vadd.f32 %v177, %v448
    %v450 = vpop.f32.mrb[0].mxu0
    %v451 = vpop.f32.mrb[0].mxu0
    %v452 = vadd.f32 %v177, %v451
    %v453 = vpop.f32.mrb[0].mxu0
    %454 = vmatprep.mubr.bf16.mxu0 0
    %455 = vmatmul.mubr.bf16.gmra.mrb[0].mxu0 %v199
    %v456 = vpop.f32.mrb[0].mxu0
    %v457 = vadd.f32 %v177, %v456
    %v458 = vpop.f32.mrb[0].mxu0
    %v459 = vpop.f32.mrb[0].mxu0
    %v460 = vadd.f32 %v177, %v459
    %v461 = vpop.f32.mrb[0].mxu0
    %462 = vmatprep.mubr.bf16.mxu0 0
    %463 = vmatmul.mubr.bf16.gmra.mrb[0].mxu0 %v200
    %v464 = vpop.f32.mrb[0].mxu0
    %v465 = vadd.f32 %v177, %v464
    %v466 = vpop.f32.mrb[0].mxu0
    %v467 = vpop.f32.mrb[0].mxu0
    %v468 = vadd.f32 %v177, %v467
    %v469 = vpop.f32.mrb[0].mxu0
    %470 = vdwg.mxu0
    %471 = vst [vmem:[#allocation2] sm:$0xff] %v368
    %472 = vst [vmem:[#allocation2 + $0x8] sm:$0xff] %v370
    %473 = vst [vmem:[#allocation2 + $0x10] sm:$0xff] %v441
    %474 = vst [vmem:[#allocation2 + $0x18] sm:$0xff] %v372
    %475 = vst [vmem:[#allocation2 + $0x20] sm:$0xff] %v374
    %476 = vst [vmem:[#allocation2 + $0x28] sm:$0xff] %v444
    %477 = vst [vmem:[#allocation2 + $0x30] sm:$0xff] %v378
    %478 = vst [vmem:[#allocation2 + $0x38] sm:$0xff] %v380
    %479 = vst [vmem:[#allocation2 + $0x40] sm:$0xff] %v449
    %480 = vst [vmem:[#allocation2 + $0x48] sm:$0xff] %v382
    %481 = vst [vmem:[#allocation2 + $0x50] sm:$0xff] %v384
    %482 = vst [vmem:[#allocation2 + $0x58] sm:$0xff] %v452
    %483 = vst [vmem:[#allocation2 + $0x60] sm:$0xff] %v388
    %484 = vst [vmem:[#allocation2 + $0x68] sm:$0xff] %v390
    %485 = vst [vmem:[#allocation2 + $0x70] sm:$0xff] %v457
    %486 = vst [vmem:[#allocation2 + $0x78] sm:$0xff] %v392
    %487 = vst [vmem:[#allocation2 + $0x80] sm:$0xff] %v394
    %488 = vst [vmem:[#allocation2 + $0x88] sm:$0xff] %v460
    %489 = vst [vmem:[#allocation2 + $0x90] sm:$0xff] %v398
    %490 = vst [vmem:[#allocation2 + $0x98] sm:$0xff] %v400
    %491 = vst [vmem:[#allocation2 + $0xa0] sm:$0xff] %v465
    %492 = vst [vmem:[#allocation2 + $0xa8] sm:$0xff] %v402
    %493 = vst [vmem:[#allocation2 + $0xb0] sm:$0xff] %v404
    %494 = vst [vmem:[#allocation2 + $0xb8] sm:$0xff] %v468
    %v495 = vld [vmem:[#allocation6] sm:$0xff]
    %v496 = vld [vmem:[#allocation14] sm:$0x7]
    %v498 = vlaneseq
    %v499 = vshrl.u32 %v498, 7
    %v500 = vsub.s32 0, %v499
    %v501 = vrot.slane %v496, %v500
    %v502 = vlaneseq
    %v503 = vshrl.u32 %v502, 7
    %v504 = vsub.s32 1, %v503
    %v505 = vrot.slane %v496, %v504
    %v506 = vlaneseq
    %v507 = vshrl.u32 %v506, 7
    %v508 = vsub.s32 2, %v507
    %v509 = vrot.slane %v496, %v508
    %s513 = scalar_lea.vmem [#allocation14], 3
    %v514 = vld [vmem:[%s513] sm:$0x7]
    %v516 = vlaneseq
    %v517 = vshrl.u32 %v516, 7
    %v518 = vsub.s32 0, %v517
    %v519 = vrot.slane %v514, %v518
    %v520 = vlaneseq
    %v521 = vshrl.u32 %v520, 7
    %v522 = vsub.s32 1, %v521
    %v523 = vrot.slane %v514, %v522
    %v524 = vlaneseq
    %v525 = vshrl.u32 %v524, 7
    %v526 = vsub.s32 2, %v525
    %v527 = vrot.slane %v514, %v526
    %s531 = scalar_lea.vmem [#allocation12], 3
    %v532 = vld [vmem:[%s531] sm:$0x7]
    %v534 = vlaneseq
    %v535 = vshrl.u32 %v534, 7
    %v536 = vsub.s32 0, %v535
    %v537 = vrot.slane %v532, %v536
    %v538 = vlaneseq
    %v539 = vshrl.u32 %v538, 7
    %v540 = vsub.s32 1, %v539
    %v541 = vrot.slane %v532, %v540
    %v542 = vlaneseq
    %v543 = vshrl.u32 %v542, 7
    %v544 = vsub.s32 2, %v543
    %v545 = vrot.slane %v532, %v544
    %v549 = vld [vmem:[#allocation8] sm:$0xff]
    %s550 = scalar_lea.vmem [#allocation8], 8
    %v551 = vld [vmem:[%s550] sm:$0xff]
    %vm552 = vcmp.gt.s32.totalorder %v495, 0
    %s553 = smul.u32 0, 3
    %s554 = smul.addr %s553, 8
    %s555 = scalar_lea.vmem [#allocation2], %s554
    %v556 = vld [vmem:[%s555] sm:$0xff]
    %v557 = vld [vmem:[%s555 + $0x8] sm:$0xff]
    %v558 = vld [vmem:[%s555 + $0x10] sm:$0xff]
    %v559 = vpack.c.bf16 %v549, %v549
    %v560 = vld [vmem:[#allocation11] sm:$0xff]
    %v561 = vld [vmem:[#allocation11 + $0x8] sm:$0xf]
    %v562 = vld [vmem:[#allocation11 + $0xc] sm:$0xff]
    %v563 = vld [vmem:[#allocation11 + $0x14] sm:$0xf]
    %v564 = vld [vmem:[#allocation11 + $0x18] sm:$0xff]
    %v565 = vld [vmem:[#allocation11 + $0x20] sm:$0xf]
    %v566 = vld [vmem:[#allocation11 + $0x24] sm:$0xff]
    %v567 = vld [vmem:[#allocation11 + $0x2c] sm:$0xf]
    %v568 = vld [vmem:[#allocation11 + $0x30] sm:$0xff]
    %v569 = vld [vmem:[#allocation11 + $0x38] sm:$0xf]
    %v570 = vld [vmem:[#allocation11 + $0x3c] sm:$0xff]
    %v571 = vld [vmem:[#allocation11 + $0x44] sm:$0xf]
    %v572 = vld [vmem:[#allocation11 + $0x48] sm:$0xff]
    %v573 = vld [vmem:[#allocation11 + $0x50] sm:$0xf]
    %v574 = vld [vmem:[#allocation11 + $0x54] sm:$0xff]
    %v575 = vld [vmem:[#allocation11 + $0x5c] sm:$0xf]
    %v576 = vld [vmem:[#allocation11 + $0x60] sm:$0xff]
    %v577 = vld [vmem:[#allocation11 + $0x68] sm:$0xf]
    %v578 = vld [vmem:[#allocation11 + $0x6c] sm:$0xff]
    %v579 = vld [vmem:[#allocation11 + $0x74] sm:$0xf]
    %v580 = vld [vmem:[#allocation11 + $0x78] sm:$0xff]
    %v581 = vld [vmem:[#allocation11 + $0x80] sm:$0xf]
    %v582 = vld [vmem:[#allocation11 + $0x84] sm:$0xff]
    %v583 = vld [vmem:[#allocation11 + $0x8c] sm:$0xf]
    %v584 = vld [vmem:[#allocation11 + $0x90] sm:$0xff]
    %v585 = vld [vmem:[#allocation11 + $0x98] sm:$0xf]
    %v586 = vld [vmem:[#allocation11 + $0x9c] sm:$0xff]
    %v587 = vld [vmem:[#allocation11 + $0xa4] sm:$0xf]
    %v588 = vld [vmem:[#allocation11 + $0xa8] sm:$0xff]
    %v589 = vld [vmem:[#allocation11 + $0xb0] sm:$0xf]
    %v590 = vld [vmem:[#allocation11 + $0xb4] sm:$0xff]
    %v591 = vld [vmem:[#allocation11 + $0xbc] sm:$0xf]
    %v624 = vunpack.c.l.b16 %v560
    %v625 = vunpack.c.h.b16 %v560
    %v626 = vunpack.c.l.b16 %v561
    %v627 = vunpack.c.l.b16 %v562
    %v628 = vunpack.c.h.b16 %v562
    %v629 = vunpack.c.l.b16 %v563
    %v630 = vunpack.c.l.b16 %v564
    %v631 = vunpack.c.h.b16 %v564
    %v632 = vunpack.c.l.b16 %v565
    %v633 = vunpack.c.l.b16 %v566
    %v634 = vunpack.c.h.b16 %v566
    %v635 = vunpack.c.l.b16 %v567
    %v636 = vunpack.c.l.b16 %v568
    %v637 = vunpack.c.h.b16 %v568
    %v638 = vunpack.c.l.b16 %v569
    %v639 = vunpack.c.l.b16 %v570
    %v640 = vunpack.c.h.b16 %v570
    %v641 = vunpack.c.l.b16 %v571
    %v642 = vunpack.c.l.b16 %v572
    %v643 = vunpack.c.h.b16 %v572
    %v644 = vunpack.c.l.b16 %v573
    %v645 = vunpack.c.l.b16 %v574
    %v646 = vunpack.c.h.b16 %v574
    %v647 = vunpack.c.l.b16 %v575
    %v648 = vunpack.c.l.b16 %v576
    %v649 = vunpack.c.h.b16 %v576
    %v650 = vunpack.c.l.b16 %v577
    %v651 = vunpack.c.l.b16 %v578
    %v652 = vunpack.c.h.b16 %v578
    %v653 = vunpack.c.l.b16 %v579
    %v654 = vunpack.c.l.b16 %v580
    %v655 = vunpack.c.h.b16 %v580
    %v656 = vunpack.c.l.b16 %v581
    %v657 = vunpack.c.l.b16 %v582
    %v658 = vunpack.c.h.b16 %v582
    %v659 = vunpack.c.l.b16 %v583
    %v660 = vunpack.c.l.b16 %v584
    %v661 = vunpack.c.h.b16 %v584
    %v662 = vunpack.c.l.b16 %v585
    %v663 = vunpack.c.l.b16 %v586
    %v664 = vunpack.c.h.b16 %v586
    %v665 = vunpack.c.l.b16 %v587
    %v666 = vunpack.c.l.b16 %v588
    %v667 = vunpack.c.h.b16 %v588
    %v668 = vunpack.c.l.b16 %v589
    %v669 = vunpack.c.l.b16 %v590
    %v670 = vunpack.c.h.b16 %v590
    %v671 = vunpack.c.l.b16 %v591
    %v672 = vpack.c.b16 %v627, %v624
    %v673 = vpack.c.b16 %v628, %v625
    %v674 = vpack.c.b16 %v629, %v626
    %v675 = vpack.c.b16 %v633, %v630
    %v676 = vpack.c.b16 %v634, %v631
    %v677 = vpack.c.b16 %v635, %v632
    %v678 = vpack.c.b16 %v639, %v636
    %v679 = vpack.c.b16 %v640, %v637
    %v680 = vpack.c.b16 %v641, %v638
    %v681 = vpack.c.b16 %v645, %v642
    %v682 = vpack.c.b16 %v646, %v643
    %v683 = vpack.c.b16 %v647, %v644
    %v684 = vpack.c.b16 %v651, %v648
    %v685 = vpack.c.b16 %v652, %v649
    %v686 = vpack.c.b16 %v653, %v650
    %v687 = vpack.c.b16 %v657, %v654
    %v688 = vpack.c.b16 %v658, %v655
    %v689 = vpack.c.b16 %v659, %v656
    %v690 = vpack.c.b16 %v663, %v660
    %v691 = vpack.c.b16 %v664, %v661
    %v692 = vpack.c.b16 %v665, %v662
    %v693 = vpack.c.b16 %v669, %v666
    %v694 = vpack.c.b16 %v670, %v667
    %v695 = vpack.c.b16 %v671, %v668
    %720 = vmatprep.subr.bf16.mxu0 %v673
    %721 = vmatpush1.bf16.msra.mxu0 %v672
    %722 = vmatprep.subr.bf16.mxu0 %v676
    %723 = vmatpush1.bf16.msra.mxu0 %v675
    %724 = vmatprep.subr.bf16.mxu0 %v679
    %725 = vmatpush1.bf16.msra.mxu0 %v678
    %726 = vmatprep.subr.bf16.mxu0 %v682
    %727 = vmatpush1.bf16.msra.mxu0 %v681
    %728 = vmatprep.subr.bf16.mxu0 %v685
    %729 = vmatpush1.bf16.msra.mxu0 %v684
    %730 = vmatprep.subr.bf16.mxu0 %v688
    %731 = vmatpush1.bf16.msra.mxu0 %v687
    %732 = vmatprep.subr.bf16.mxu0 %v691
    %733 = vmatpush1.bf16.msra.mxu0 %v690
    %734 = vmatprep.subr.bf16.mxu0 %v694
    %735 = vmatpush1.bf16.msra.mxu0 %v693
    %736 = vmatprep.subr.bf16.mxu0 0
    %737 = vmatpush1.bf16.msra.mxu0 0
    %738 = vmatprep.subr.bf16.mxu0 0
    %739 = vmatpush1.bf16.msra.mxu0 0
    %740 = vmatprep.subr.bf16.mxu0 0
    %741 = vmatpush1.bf16.msra.mxu0 0
    %742 = vmatprep.subr.bf16.mxu0 0
    %743 = vmatpush1.bf16.msra.mxu0 0
    %744 = vmatprep.subr.bf16.mxu0 0
    %745 = vmatpush1.bf16.msra.mxu0 0
    %746 = vmatprep.subr.bf16.mxu0 0
    %747 = vmatpush1.bf16.msra.mxu0 0
    %748 = vmatprep.subr.bf16.mxu0 0
    %749 = vmatpush1.bf16.msra.mxu0 0
    %750 = vmatprep.subr.bf16.mxu0 0
    %751 = vmatpush1.bf16.msra.mxu0 0
    %752 = vmatprep.mubr.bf16.mxu0 0
    %753 = vmatmul.mubr.bf16.gmra.mrb[0].mxu0 %v559
    %v754 = vpop.f32.mrb[0].mxu0
    %v755 = vadd.f32 %v501, %v754
    %v756 = vpop.f32.mrb[0].mxu0
    %v757 = vadd.f32 %v505, %v756
    %v758 = vpop.f32.mrb[0].mxu0
    %v759 = vpop.f32.mrb[0].mxu0
    %760 = vdwg.mxu0
    %761 = vmatprep.subr.bf16.mxu0 0
    %762 = vmatpush1.bf16.msra.mxu0 %v674
    %763 = vmatprep.subr.bf16.mxu0 0
    %764 = vmatpush1.bf16.msra.mxu0 %v677
    %765 = vmatprep.subr.bf16.mxu0 0
    %766 = vmatpush1.bf16.msra.mxu0 %v680
    %767 = vmatprep.subr.bf16.mxu0 0
    %768 = vmatpush1.bf16.msra.mxu0 %v683
    %769 = vmatprep.subr.bf16.mxu0 0
    %770 = vmatpush1.bf16.msra.mxu0 %v686
    %771 = vmatprep.subr.bf16.mxu0 0
    %772 = vmatpush1.bf16.msra.mxu0 %v689
    %773 = vmatprep.subr.bf16.mxu0 0
    %774 = vmatpush1.bf16.msra.mxu0 %v692
    %775 = vmatprep.subr.bf16.mxu0 0
    %776 = vmatpush1.bf16.msra.mxu0 %v695
    %777 = vmatprep.subr.bf16.mxu0 0
    %778 = vmatpush1.bf16.msra.mxu0 0
    %779 = vmatprep.subr.bf16.mxu0 0
    %780 = vmatpush1.bf16.msra.mxu0 0
    %781 = vmatprep.subr.bf16.mxu0 0
    %782 = vmatpush1.bf16.msra.mxu0 0
    %783 = vmatprep.subr.bf16.mxu0 0
    %784 = vmatpush1.bf16.msra.mxu0 0
    %785 = vmatprep.subr.bf16.mxu0 0
    %786 = vmatpush1.bf16.msra.mxu0 0
    %787 = vmatprep.subr.bf16.mxu0 0
    %788 = vmatpush1.bf16.msra.mxu0 0
    %789 = vmatprep.subr.bf16.mxu0 0
    %790 = vmatpush1.bf16.msra.mxu0 0
    %791 = vmatprep.subr.bf16.mxu0 0
    %792 = vmatpush1.bf16.msra.mxu0 0
    %793 = vmatprep.mubr.bf16.mxu0 0
    %794 = vmatmul.mubr.bf16.gmra.mrb[0].mxu0 %v559
    %v795 = vpop.f32.mrb[0].mxu0
    %v796 = vadd.f32 %v509, %v795
    %v797 = vpop.f32.mrb[0].mxu0
    %v798 = vpop.f32.mrb[0].mxu0
    %v799 = vpop.f32.mrb[0].mxu0
    %800 = vdwg.mxu0
    %v801 = vadd.f32 %v556, %v755
    %v802 = vxor.u32 %v801, 2147483648
    %v803 = vmul.f32 %v802, 1.442695
    %v804 = vpow.pop %v803
    %v805 = vadd.f32 %v804, 1.0
    %v806 = vrcp.pop %v805
    %v807 = vmul.f32 1.0, %v806
    %v808 = vadd.f32 %v557, %v757
    %v809 = vxor.u32 %v808, 2147483648
    %v810 = vmul.f32 %v809, 1.442695
    %v811 = vpow.pop %v810
    %v812 = vadd.f32 %v811, 1.0
    %v813 = vrcp.pop %v812
    %v814 = vmul.f32 1.0, %v813
    %v815 = vmul.f32 %v807, %v796
    %v816 = vadd.f32 %v558, %v815
    %v817 = vtanh.pop %v816
    %v818 = vsub.f32 1.0, %v814
    %v819 = vmul.f32 %v818, %v817
    %v820 = vmul.f32 %v814, %v549
    %v821 = vadd.f32 %v819, %v820
    %v822 = vsel %vm552, 1, 0
    %823 = vset.pattern.permute.xlu0 0
    %824 = vperm.xlu0 %823, %v822
    %v825 = vpop.permute.xlu0 %824
    %vm826 = vcmp.eq.s32.totalorder %v825, 1
    %v827 = vsel %vm826, %v821, %v549
    %v828 = vsel %vm826, %v821, 0.0
    %v829 = vpack.c.bf16 %v828, %v828
    %s830 = scalar_lea.vmem [#allocation9], 192
    %v831 = vld [vmem:[%s830] sm:$0xff]
    %v832 = vld [vmem:[%s830 + $0x8] sm:$0xf]
    %v833 = vld [vmem:[%s830 + $0xc] sm:$0xff]
    %v834 = vld [vmem:[%s830 + $0x14] sm:$0xf]
    %v835 = vld [vmem:[%s830 + $0x18] sm:$0xff]
    %v836 = vld [vmem:[%s830 + $0x20] sm:$0xf]
    %v837 = vld [vmem:[%s830 + $0x24] sm:$0xff]
    %v838 = vld [vmem:[%s830 + $0x2c] sm:$0xf]
    %v839 = vld [vmem:[%s830 + $0x30] sm:$0xff]
    %v840 = vld [vmem:[%s830 + $0x38] sm:$0xf]
    %v841 = vld [vmem:[%s830 + $0x3c] sm:$0xff]
    %v842 = vld [vmem:[%s830 + $0x44] sm:$0xf]
    %v843 = vld [vmem:[%s830 + $0x48] sm:$0xff]
    %v844 = vld [vmem:[%s830 + $0x50] sm:$0xf]
    %v845 = vld [vmem:[%s830 + $0x54] sm:$0xff]
    %v846 = vld [vmem:[%s830 + $0x5c] sm:$0xf]
    %v847 = vld [vmem:[%s830 + $0x60] sm:$0xff]
    %v848 = vld [vmem:[%s830 + $0x68] sm:$0xf]
    %v849 = vld [vmem:[%s830 + $0x6c] sm:$0xff]
    %v850 = vld [vmem:[%s830 + $0x74] sm:$0xf]
    %v851 = vld [vmem:[%s830 + $0x78] sm:$0xff]
    %v852 = vld [vmem:[%s830 + $0x80] sm:$0xf]
    %v853 = vld [vmem:[%s830 + $0x84] sm:$0xff]
    %v854 = vld [vmem:[%s830 + $0x8c] sm:$0xf]
    %v855 = vld [vmem:[%s830 + $0x90] sm:$0xff]
    %v856 = vld [vmem:[%s830 + $0x98] sm:$0xf]
    %v857 = vld [vmem:[%s830 + $0x9c] sm:$0xff]
    %v858 = vld [vmem:[%s830 + $0xa4] sm:$0xf]
    %v859 = vld [vmem:[%s830 + $0xa8] sm:$0xff]
    %v860 = vld [vmem:[%s830 + $0xb0] sm:$0xf]
    %v861 = vld [vmem:[%s830 + $0xb4] sm:$0xff]
    %v862 = vld [vmem:[%s830 + $0xbc] sm:$0xf]
    %v895 = vunpack.c.l.b16 %v831
    %v896 = vunpack.c.h.b16 %v831
    %v897 = vunpack.c.l.b16 %v832
    %v898 = vunpack.c.l.b16 %v833
    %v899 = vunpack.c.h.b16 %v833
    %v900 = vunpack.c.l.b16 %v834
    %v901 = vunpack.c.l.b16 %v835
    %v902 = vunpack.c.h.b16 %v835
    %v903 = vunpack.c.l.b16 %v836
    %v904 = vunpack.c.l.b16 %v837
    %v905 = vunpack.c.h.b16 %v837
    %v906 = vunpack.c.l.b16 %v838
    %v907 = vunpack.c.l.b16 %v839
    %v908 = vunpack.c.h.b16 %v839
    %v909 = vunpack.c.l.b16 %v840
    %v910 = vunpack.c.l.b16 %v841
    %v911 = vunpack.c.h.b16 %v841
    %v912 = vunpack.c.l.b16 %v842
    %v913 = vunpack.c.l.b16 %v843
    %v914 = vunpack.c.h.b16 %v843
    %v915 = vunpack.c.l.b16 %v844
    %v916 = vunpack.c.l.b16 %v845
    %v917 = vunpack.c.h.b16 %v845
    %v918 = vunpack.c.l.b16 %v846
    %v919 = vunpack.c.l.b16 %v847
    %v920 = vunpack.c.h.b16 %v847
    %v921 = vunpack.c.l.b16 %v848
    %v922 = vunpack.c.l.b16 %v849
    %v923 = vunpack.c.h.b16 %v849
    %v924 = vunpack.c.l.b16 %v850
    %v925 = vunpack.c.l.b16 %v851
    %v926 = vunpack.c.h.b16 %v851
    %v927 = vunpack.c.l.b16 %v852
    %v928 = vunpack.c.l.b16 %v853
    %v929 = vunpack.c.h.b16 %v853
    %v930 = vunpack.c.l.b16 %v854
    %v931 = vunpack.c.l.b16 %v855
    %v932 = vunpack.c.h.b16 %v855
    %v933 = vunpack.c.l.b16 %v856
    %v934 = vunpack.c.l.b16 %v857
    %v935 = vunpack.c.h.b16 %v857
    %v936 = vunpack.c.l.b16 %v858
    %v937 = vunpack.c.l.b16 %v859
    %v938 = vunpack.c.h.b16 %v859
    %v939 = vunpack.c.l.b16 %v860
    %v940 = vunpack.c.l.b16 %v861
    %v941 = vunpack.c.h.b16 %v861
    %v942 = vunpack.c.l.b16 %v862
    %v943 = vpack.c.b16 %v898, %v895
    %v944 = vpack.c.b16 %v899, %v896
    %v945 = vpack.c.b16 %v900, %v897
    %v946 = vpack.c.b16 %v904, %v901
    %v947 = vpack.c.b16 %v905, %v902
    %v948 = vpack.c.b16 %v906, %v903
    %v949 = vpack.c.b16 %v910, %v907
    %v950 = vpack.c.b16 %v911, %v908
    %v951 = vpack.c.b16 %v912, %v909
    %v952 = vpack.c.b16 %v916, %v913
    %v953 = vpack.c.b16 %v917, %v914
    %v954 = vpack.c.b16 %v918, %v915
    %v955 = vpack.c.b16 %v922, %v919
    %v956 = vpack.c.b16 %v923, %v920
    %v957 = vpack.c.b16 %v924, %v921
    %v958 = vpack.c.b16 %v928, %v925
    %v959 = vpack.c.b16 %v929, %v926
    %v960 = vpack.c.b16 %v930, %v927
    %v961 = vpack.c.b16 %v934, %v931
    %v962 = vpack.c.b16 %v935, %v932
    %v963 = vpack.c.b16 %v936, %v933
    %v964 = vpack.c.b16 %v940, %v937
    %v965 = vpack.c.b16 %v941, %v938
    %v966 = vpack.c.b16 %v942, %v939
    %991 = vmatprep.subr.bf16.mxu0 %v944
    %992 = vmatpush1.bf16.msra.mxu0 %v943
    %993 = vmatprep.subr.bf16.mxu0 %v947
    %994 = vmatpush1.bf16.msra.mxu0 %v946
    %995 = vmatprep.subr.bf16.mxu0 %v950
    %996 = vmatpush1.bf16.msra.mxu0 %v949
    %997 = vmatprep.subr.bf16.mxu0 %v953
    %998 = vmatpush1.bf16.msra.mxu0 %v952
    %999 = vmatprep.subr.bf16.mxu0 %v956
    %1000 = vmatpush1.bf16.msra.mxu0 %v955
    %1001 = vmatprep.subr.bf16.mxu0 %v959
    %1002 = vmatpush1.bf16.msra.mxu0 %v958
    %1003 = vmatprep.subr.bf16.mxu0 %v962
    %1004 = vmatpush1.bf16.msra.mxu0 %v961
    %1005 = vmatprep.subr.bf16.mxu0 %v965
    %1006 = vmatpush1.bf16.msra.mxu0 %v964
    %1007 = vmatprep.subr.bf16.mxu0 0
    %1008 = vmatpush1.bf16.msra.mxu0 0
    %1009 = vmatprep.subr.bf16.mxu0 0
    %1010 = vmatpush1.bf16.msra.mxu0 0
    %1011 = vmatprep.subr.bf16.mxu0 0
    %1012 = vmatpush1.bf16.msra.mxu0 0
    %1013 = vmatprep.subr.bf16.mxu0 0
    %1014 = vmatpush1.bf16.msra.mxu0 0
    %1015 = vmatprep.subr.bf16.mxu0 0
    %1016 = vmatpush1.bf16.msra.mxu0 0
    %1017 = vmatprep.subr.bf16.mxu0 0
    %1018 = vmatpush1.bf16.msra.mxu0 0
    %1019 = vmatprep.subr.bf16.mxu0 0
    %1020 = vmatpush1.bf16.msra.mxu0 0
    %1021 = vmatprep.subr.bf16.mxu0 0
    %1022 = vmatpush1.bf16.msra.mxu0 0
    %1023 = vmatprep.mubr.bf16.mxu0 0
    %1024 = vmatmul.mubr.bf16.gmra.mrb[0].mxu0 %v829
    %v1025 = vpop.f32.mrb[0].mxu0
    %v1026 = vadd.f32 %v537, %v1025
    %v1027 = vpop.f32.mrb[0].mxu0
    %v1028 = vadd.f32 %v541, %v1027
    %v1029 = vpop.f32.mrb[0].mxu0
    %v1030 = vpop.f32.mrb[0].mxu0
    %1031 = vdwg.mxu0
    %1032 = vmatprep.subr.bf16.mxu0 0
    %1033 = vmatpush1.bf16.msra.mxu0 %v945
    %1034 = vmatprep.subr.bf16.mxu0 0
    %1035 = vmatpush1.bf16.msra.mxu0 %v948
    %1036 = vmatprep.subr.bf16.mxu0 0
    %1037 = vmatpush1.bf16.msra.mxu0 %v951
    %1038 = vmatprep.subr.bf16.mxu0 0
    %1039 = vmatpush1.bf16.msra.mxu0 %v954
    %1040 = vmatprep.subr.bf16.mxu0 0
    %1041 = vmatpush1.bf16.msra.mxu0 %v957
    %1042 = vmatprep.subr.bf16.mxu0 0
    %1043 = vmatpush1.bf16.msra.mxu0 %v960
    %1044 = vmatprep.subr.bf16.mxu0 0
    %1045 = vmatpush1.bf16.msra.mxu0 %v963
    %1046 = vmatprep.subr.bf16.mxu0 0
    %1047 = vmatpush1.bf16.msra.mxu0 %v966
    %1048 = vmatprep.subr.bf16.mxu0 0
    %1049 = vmatpush1.bf16.msra.mxu0 0
    %1050 = vmatprep.subr.bf16.mxu0 0
    %1051 = vmatpush1.bf16.msra.mxu0 0
    %1052 = vmatprep.subr.bf16.mxu0 0
    %1053 = vmatpush1.bf16.msra.mxu0 0
    %1054 = vmatprep.subr.bf16.mxu0 0
    %1055 = vmatpush1.bf16.msra.mxu0 0
    %1056 = vmatprep.subr.bf16.mxu0 0
    %1057 = vmatpush1.bf16.msra.mxu0 0
    %1058 = vmatprep.subr.bf16.mxu0 0
    %1059 = vmatpush1.bf16.msra.mxu0 0
    %1060 = vmatprep.subr.bf16.mxu0 0
    %1061 = vmatpush1.bf16.msra.mxu0 0
    %1062 = vmatprep.subr.bf16.mxu0 0
    %1063 = vmatpush1.bf16.msra.mxu0 0
    %1064 = vmatprep.mubr.bf16.mxu0 0
    %1065 = vmatmul.mubr.bf16.gmra.mrb[0].mxu0 %v829
    %v1066 = vpop.f32.mrb[0].mxu0
    %v1067 = vadd.f32 %v545, %v1066
    %v1068 = vpop.f32.mrb[0].mxu0
    %v1069 = vpop.f32.mrb[0].mxu0
    %v1070 = vpop.f32.mrb[0].mxu0
    %1071 = vdwg.mxu0
    %v1072 = vpack.c.bf16 %v551, %v551
    %s1073 = scalar_lea.vmem [#allocation11], 192
    %v1074 = vld [vmem:[%s1073] sm:$0xff]
    %v1075 = vld [vmem:[%s1073 + $0x8] sm:$0xf]
    %v1076 = vld [vmem:[%s1073 + $0xc] sm:$0xff]
    %v1077 = vld [vmem:[%s1073 + $0x14] sm:$0xf]
    %v1078 = vld [vmem:[%s1073 + $0x18] sm:$0xff]
    %v1079 = vld [vmem:[%s1073 + $0x20] sm:$0xf]
    %v1080 = vld [vmem:[%s1073 + $0x24] sm:$0xff]
    %v1081 = vld [vmem:[%s1073 + $0x2c] sm:$0xf]
    %v1082 = vld [vmem:[%s1073 + $0x30] sm:$0xff]
    %v1083 = vld [vmem:[%s1073 + $0x38] sm:$0xf]
    %v1084 = vld [vmem:[%s1073 + $0x3c] sm:$0xff]
    %v1085 = vld [vmem:[%s1073 + $0x44] sm:$0xf]
    %v1086 = vld [vmem:[%s1073 + $0x48] sm:$0xff]
    %v1087 = vld [vmem:[%s1073 + $0x50] sm:$0xf]
    %v1088 = vld [vmem:[%s1073 + $0x54] sm:$0xff]
    %v1089 = vld [vmem:[%s1073 + $0x5c] sm:$0xf]
    %v1090 = vld [vmem:[%s1073 + $0x60] sm:$0xff]
    %v1091 = vld [vmem:[%s1073 + $0x68] sm:$0xf]
    %v1092 = vld [vmem:[%s1073 + $0x6c] sm:$0xff]
    %v1093 = vld [vmem:[%s1073 + $0x74] sm:$0xf]
    %v1094 = vld [vmem:[%s1073 + $0x78] sm:$0xff]
    %v1095 = vld [vmem:[%s1073 + $0x80] sm:$0xf]
    %v1096 = vld [vmem:[%s1073 + $0x84] sm:$0xff]
    %v1097 = vld [vmem:[%s1073 + $0x8c] sm:$0xf]
    %v1098 = vld [vmem:[%s1073 + $0x90] sm:$0xff]
    %v1099 = vld [vmem:[%s1073 + $0x98] sm:$0xf]
    %v1100 = vld [vmem:[%s1073 + $0x9c] sm:$0xff]
    %v1101 = vld [vmem:[%s1073 + $0xa4] sm:$0xf]
    %v1102 = vld [vmem:[%s1073 + $0xa8] sm:$0xff]
    %v1103 = vld [vmem:[%s1073 + $0xb0] sm:$0xf]
    %v1104 = vld [vmem:[%s1073 + $0xb4] sm:$0xff]
    %v1105 = vld [vmem:[%s1073 + $0xbc] sm:$0xf]
    %v1138 = vunpack.c.l.b16 %v1074
    %v1139 = vunpack.c.h.b16 %v1074
    %v1140 = vunpack.c.l.b16 %v1075
    %v1141 = vunpack.c.l.b16 %v1076
    %v1142 = vunpack.c.h.b16 %v1076
    %v1143 = vunpack.c.l.b16 %v1077
    %v1144 = vunpack.c.l.b16 %v1078
    %v1145 = vunpack.c.h.b16 %v1078
    %v1146 = vunpack.c.l.b16 %v1079
    %v1147 = vunpack.c.l.b16 %v1080
    %v1148 = vunpack.c.h.b16 %v1080
    %v1149 = vunpack.c.l.b16 %v1081
    %v1150 = vunpack.c.l.b16 %v1082
    %v1151 = vunpack.c.h.b16 %v1082
    %v1152 = vunpack.c.l.b16 %v1083
    %v1153 = vunpack.c.l.b16 %v1084
    %v1154 = vunpack.c.h.b16 %v1084
    %v1155 = vunpack.c.l.b16 %v1085
    %v1156 = vunpack.c.l.b16 %v1086
    %v1157 = vunpack.c.h.b16 %v1086
    %v1158 = vunpack.c.l.b16 %v1087
    %v1159 = vunpack.c.l.b16 %v1088
    %v1160 = vunpack.c.h.b16 %v1088
    %v1161 = vunpack.c.l.b16 %v1089
    %v1162 = vunpack.c.l.b16 %v1090
    %v1163 = vunpack.c.h.b16 %v1090
    %v1164 = vunpack.c.l.b16 %v1091
    %v1165 = vunpack.c.l.b16 %v1092
    %v1166 = vunpack.c.h.b16 %v1092
    %v1167 = vunpack.c.l.b16 %v1093
    %v1168 = vunpack.c.l.b16 %v1094
    %v1169 = vunpack.c.h.b16 %v1094
    %v1170 = vunpack.c.l.b16 %v1095
    %v1171 = vunpack.c.l.b16 %v1096
    %v1172 = vunpack.c.h.b16 %v1096
    %v1173 = vunpack.c.l.b16 %v1097
    %v1174 = vunpack.c.l.b16 %v1098
    %v1175 = vunpack.c.h.b16 %v1098
    %v1176 = vunpack.c.l.b16 %v1099
    %v1177 = vunpack.c.l.b16 %v1100
    %v1178 = vunpack.c.h.b16 %v1100
    %v1179 = vunpack.c.l.b16 %v1101
    %v1180 = vunpack.c.l.b16 %v1102
    %v1181 = vunpack.c.h.b16 %v1102
    %v1182 = vunpack.c.l.b16 %v1103
    %v1183 = vunpack.c.l.b16 %v1104
    %v1184 = vunpack.c.h.b16 %v1104
    %v1185 = vunpack.c.l.b16 %v1105
    %v1186 = vpack.c.b16 %v1141, %v1138
    %v1187 = vpack.c.b16 %v1142, %v1139
    %v1188 = vpack.c.b16 %v1143, %v1140
    %v1189 = vpack.c.b16 %v1147, %v1144
    %v1190 = vpack.c.b16 %v1148, %v1145
    %v1191 = vpack.c.b16 %v1149, %v1146
    %v1192 = vpack.c.b16 %v1153, %v1150
    %v1193 = vpack.c.b16 %v1154, %v1151
    %v1194 = vpack.c.b16 %v1155, %v1152
    %v1195 = vpack.c.b16 %v1159, %v1156
    %v1196 = vpack.c.b16 %v1160, %v1157
    %v1197 = vpack.c.b16 %v1161, %v1158
    %v1198 = vpack.c.b16 %v1165, %v1162
    %v1199 = vpack.c.b16 %v1166, %v1163
    %v1200 = vpack.c.b16 %v1167, %v1164
    %v1201 = vpack.c.b16 %v1171, %v1168
    %v1202 = vpack.c.b16 %v1172, %v1169
    %v1203 = vpack.c.b16 %v1173, %v1170
    %v1204 = vpack.c.b16 %v1177, %v1174
    %v1205 = vpack.c.b16 %v1178, %v1175
    %v1206 = vpack.c.b16 %v1179, %v1176
    %v1207 = vpack.c.b16 %v1183, %v1180
    %v1208 = vpack.c.b16 %v1184, %v1181
    %v1209 = vpack.c.b16 %v1185, %v1182
    %1234 = vmatprep.subr.bf16.mxu0 %v1187
    %1235 = vmatpush1.bf16.msra.mxu0 %v1186
    %1236 = vmatprep.subr.bf16.mxu0 %v1190
    %1237 = vmatpush1.bf16.msra.mxu0 %v1189
    %1238 = vmatprep.subr.bf16.mxu0 %v1193
    %1239 = vmatpush1.bf16.msra.mxu0 %v1192
    %1240 = vmatprep.subr.bf16.mxu0 %v1196
    %1241 = vmatpush1.bf16.msra.mxu0 %v1195
    %1242 = vmatprep.subr.bf16.mxu0 %v1199
    %1243 = vmatpush1.bf16.msra.mxu0 %v1198
    %1244 = vmatprep.subr.bf16.mxu0 %v1202
    %1245 = vmatpush1.bf16.msra.mxu0 %v1201
    %1246 = vmatprep.subr.bf16.mxu0 %v1205
    %1247 = vmatpush1.bf16.msra.mxu0 %v1204
    %1248 = vmatprep.subr.bf16.mxu0 %v1208
    %1249 = vmatpush1.bf16.msra.mxu0 %v1207
    %1250 = vmatprep.subr.bf16.mxu0 0
    %1251 = vmatpush1.bf16.msra.mxu0 0
    %1252 = vmatprep.subr.bf16.mxu0 0
    %1253 = vmatpush1.bf16.msra.mxu0 0
    %1254 = vmatprep.subr.bf16.mxu0 0
    %1255 = vmatpush1.bf16.msra.mxu0 0
    %1256 = vmatprep.subr.bf16.mxu0 0
    %1257 = vmatpush1.bf16.msra.mxu0 0
    %1258 = vmatprep.subr.bf16.mxu0 0
    %1259 = vmatpush1.bf16.msra.mxu0 0
    %1260 = vmatprep.subr.bf16.mxu0 0
    %1261 = vmatpush1.bf16.msra.mxu0 0
    %1262 = vmatprep.subr.bf16.mxu0 0
    %1263 = vmatpush1.bf16.msra.mxu0 0
    %1264 = vmatprep.subr.bf16.mxu0 0
    %1265 = vmatpush1.bf16.msra.mxu0 0
    %1266 = vmatprep.mubr.bf16.mxu0 0
    %1267 = vmatmul.mubr.bf16.gmra.mrb[0].mxu0 %v1072
    %v1268 = vpop.f32.mrb[0].mxu0
    %v1269 = vadd.f32 %v519, %v1268
    %v1270 = vpop.f32.mrb[0].mxu0
    %v1271 = vadd.f32 %v523, %v1270
    %v1272 = vpop.f32.mrb[0].mxu0
    %v1273 = vpop.f32.mrb[0].mxu0
    %1274 = vdwg.mxu0
    %1275 = vmatprep.subr.bf16.mxu0 0
    %1276 = vmatpush1.bf16.msra.mxu0 %v1188
    %1277 = vmatprep.subr.bf16.mxu0 0
    %1278 = vmatpush1.bf16.msra.mxu0 %v1191
    %1279 = vmatprep.subr.bf16.mxu0 0
    %1280 = vmatpush1.bf16.msra.mxu0 %v1194
    %1281 = vmatprep.subr.bf16.mxu0 0
    %1282 = vmatpush1.bf16.msra.mxu0 %v1197
    %1283 = vmatprep.subr.bf16.mxu0 0
    %1284 = vmatpush1.bf16.msra.mxu0 %v1200
    %1285 = vmatprep.subr.bf16.mxu0 0
    %1286 = vmatpush1.bf16.msra.mxu0 %v1203
    %1287 = vmatprep.subr.bf16.mxu0 0
    %1288 = vmatpush1.bf16.msra.mxu0 %v1206
    %1289 = vmatprep.subr.bf16.mxu0 0
    %1290 = vmatpush1.bf16.msra.mxu0 %v1209
    %1291 = vmatprep.subr.bf16.mxu0 0
    %1292 = vmatpush1.bf16.msra.mxu0 0
    %1293 = vmatprep.subr.bf16.mxu0 0
    %1294 = vmatpush1.bf16.msra.mxu0 0
    %1295 = vmatprep.subr.bf16.mxu0 0
    %1296 = vmatpush1.bf16.msra.mxu0 0
    %1297 = vmatprep.subr.bf16.mxu0 0
    %1298 = vmatpush1.bf16.msra.mxu0 0
    %1299 = vmatprep.subr.bf16.mxu0 0
    %1300 = vmatpush1.bf16.msra.mxu0 0
    %1301 = vmatprep.subr.bf16.mxu0 0
    %1302 = vmatpush1.bf16.msra.mxu0 0
    %1303 = vmatprep.subr.bf16.mxu0 0
    %1304 = vmatpush1.bf16.msra.mxu0 0
    %1305 = vmatprep.subr.bf16.mxu0 0
    %1306 = vmatpush1.bf16.msra.mxu0 0
    %1307 = vmatprep.mubr.bf16.mxu0 0
    %1308 = vmatmul.mubr.bf16.gmra.mrb[0].mxu0 %v1072
    %v1309 = vpop.f32.mrb[0].mxu0
    %v1310 = vadd.f32 %v527, %v1309
    %v1311 = vpop.f32.mrb[0].mxu0
    %v1312 = vpop.f32.mrb[0].mxu0
    %v1313 = vpop.f32.mrb[0].mxu0
    %1314 = vdwg.mxu0
    %v1315 = vadd.f32 %v1026, %v1269
    %v1316 = vxor.u32 %v1315, 2147483648
    %v1317 = vmul.f32 %v1316, 1.442695
    %v1318 = vpow.pop %v1317
    %v1319 = vadd.f32 %v1318, 1.0
    %v1320 = vrcp.pop %v1319
    %v1321 = vmul.f32 1.0, %v1320
    %v1322 = vadd.f32 %v1028, %v1271
    %v1323 = vxor.u32 %v1322, 2147483648
    %v1324 = vmul.f32 %v1323, 1.442695
    %v1325 = vpow.pop %v1324
    %v1326 = vadd.f32 %v1325, 1.0
    %v1327 = vrcp.pop %v1326
    %v1328 = vmul.f32 1.0, %v1327
    %v1329 = vmul.f32 %v1321, %v1310
    %v1330 = vadd.f32 %v1067, %v1329
    %v1331 = vtanh.pop %v1330
    %v1332 = vsub.f32 1.0, %v1328
    %v1333 = vmul.f32 %v1332, %v1331
    %v1334 = vmul.f32 %v1328, %v551
    %v1335 = vadd.f32 %v1333, %v1334
    %v1336 = vsel %vm826, %v1335, %v551
    %v1337 = vsel %vm826, %v1335, 0.0
    %1338 = vst [vmem:[#allocation15] sm:$0xff] %v1337
    %vm1339 = vcmp.gt.s32.totalorder %v495, 1
    %s1340 = smul.u32 1, 3
    %s1341 = smul.addr %s1340, 8
    %s1342 = scalar_lea.vmem [#allocation2], %s1341
    %v1343 = vld [vmem:[%s1342] sm:$0xff]
    %v1344 = vld [vmem:[%s1342 + $0x8] sm:$0xff]
    %v1345 = vld [vmem:[%s1342 + $0x10] sm:$0xff]
    %v1346 = vpack.c.bf16 %v827, %v827
    %v1347 = vld [vmem:[#allocation11] sm:$0xff]
    %v1348 = vld [vmem:[#allocation11 + $0x8] sm:$0xf]
    %v1349 = vld [vmem:[#allocation11 + $0xc] sm:$0xff]
    %v1350 = vld [vmem:[#allocation11 + $0x14] sm:$0xf]
    %v1351 = vld [vmem:[#allocation11 + $0x18] sm:$0xff]
    %v1352 = vld [vmem:[#allocation11 + $0x20] sm:$0xf]
    %v1353 = vld [vmem:[#allocation11 + $0x24] sm:$0xff]
    %v1354 = vld [vmem:[#allocation11 + $0x2c] sm:$0xf]
    %v1355 = vld [vmem:[#allocation11 + $0x30] sm:$0xff]
    %v1356 = vld [vmem:[#allocation11 + $0x38] sm:$0xf]
    %v1357 = vld [vmem:[#allocation11 + $0x3c] sm:$0xff]
    %v1358 = vld [vmem:[#allocation11 + $0x44] sm:$0xf]
    %v1359 = vld [vmem:[#allocation11 + $0x48] sm:$0xff]
    %v1360 = vld [vmem:[#allocation11 + $0x50] sm:$0xf]
    %v1361 = vld [vmem:[#allocation11 + $0x54] sm:$0xff]
    %v1362 = vld [vmem:[#allocation11 + $0x5c] sm:$0xf]
    %v1363 = vld [vmem:[#allocation11 + $0x60] sm:$0xff]
    %v1364 = vld [vmem:[#allocation11 + $0x68] sm:$0xf]
    %v1365 = vld [vmem:[#allocation11 + $0x6c] sm:$0xff]
    %v1366 = vld [vmem:[#allocation11 + $0x74] sm:$0xf]
    %v1367 = vld [vmem:[#allocation11 + $0x78] sm:$0xff]
    %v1368 = vld [vmem:[#allocation11 + $0x80] sm:$0xf]
    %v1369 = vld [vmem:[#allocation11 + $0x84] sm:$0xff]
    %v1370 = vld [vmem:[#allocation11 + $0x8c] sm:$0xf]
    %v1371 = vld [vmem:[#allocation11 + $0x90] sm:$0xff]
    %v1372 = vld [vmem:[#allocation11 + $0x98] sm:$0xf]
    %v1373 = vld [vmem:[#allocation11 + $0x9c] sm:$0xff]
    %v1374 = vld [vmem:[#allocation11 + $0xa4] sm:$0xf]
    %v1375 = vld [vmem:[#allocation11 + $0xa8] sm:$0xff]
    %v1376 = vld [vmem:[#allocation11 + $0xb0] sm:$0xf]
    %v1377 = vld [vmem:[#allocation11 + $0xb4] sm:$0xff]
    %v1378 = vld [vmem:[#allocation11 + $0xbc] sm:$0xf]
    %v1411 = vunpack.c.l.b16 %v1347
    %v1412 = vunpack.c.h.b16 %v1347
    %v1413 = vunpack.c.l.b16 %v1348
    %v1414 = vunpack.c.l.b16 %v1349
    %v1415 = vunpack.c.h.b16 %v1349
    %v1416 = vunpack.c.l.b16 %v1350
    %v1417 = vunpack.c.l.b16 %v1351
    %v1418 = vunpack.c.h.b16 %v1351
    %v1419 = vunpack.c.l.b16 %v1352
    %v1420 = vunpack.c.l.b16 %v1353
    %v1421 = vunpack.c.h.b16 %v1353
    %v1422 = vunpack.c.l.b16 %v1354
    %v1423 = vunpack.c.l.b16 %v1355
    %v1424 = vunpack.c.h.b16 %v1355
    %v1425 = vunpack.c.l.b16 %v1356
    %v1426 = vunpack.c.l.b16 %v1357
    %v1427 = vunpack.c.h.b16 %v1357
    %v1428 = vunpack.c.l.b16 %v1358
    %v1429 = vunpack.c.l.b16 %v1359
    %v1430 = vunpack.c.h.b16 %v1359
    %v1431 = vunpack.c.l.b16 %v1360
    %v1432 = vunpack.c.l.b16 %v1361
    %v1433 = vunpack.c.h.b16 %v1361
    %v1434 = vunpack.c.l.b16 %v1362
    %v1435 = vunpack.c.l.b16 %v1363
    %v1436 = vunpack.c.h.b16 %v1363
    %v1437 = vunpack.c.l.b16 %v1364
    %v1438 = vunpack.c.l.b16 %v1365
    %v1439 = vunpack.c.h.b16 %v1365
    %v1440 = vunpack.c.l.b16 %v1366
    %v1441 = vunpack.c.l.b16 %v1367
    %v1442 = vunpack.c.h.b16 %v1367
    %v1443 = vunpack.c.l.b16 %v1368
    %v1444 = vunpack.c.l.b16 %v1369
    %v1445 = vunpack.c.h.b16 %v1369
    %v1446 = vunpack.c.l.b16 %v1370
    %v1447 = vunpack.c.l.b16 %v1371
    %v1448 = vunpack.c.h.b16 %v1371
    %v1449 = vunpack.c.l.b16 %v1372
    %v1450 = vunpack.c.l.b16 %v1373
    %v1451 = vunpack.c.h.b16 %v1373
    %v1452 = vunpack.c.l.b16 %v1374
    %v1453 = vunpack.c.l.b16 %v1375
    %v1454 = vunpack.c.h.b16 %v1375
    %v1455 = vunpack.c.l.b16 %v1376
    %v1456 = vunpack.c.l.b16 %v1377
    %v1457 = vunpack.c.h.b16 %v1377
    %v1458 = vunpack.c.l.b16 %v1378
    %v1459 = vpack.c.b16 %v1414, %v1411
    %v1460 = vpack.c.b16 %v1415, %v1412
    %v1461 = vpack.c.b16 %v1416, %v1413
    %v1462 = vpack.c.b16 %v1420, %v1417
    %v1463 = vpack.c.b16 %v1421, %v1418
    %v1464 = vpack.c.b16 %v1422, %v1419
    %v1465 = vpack.c.b16 %v1426, %v1423
    %v1466 = vpack.c.b16 %v1427, %v1424
    %v1467 = vpack.c.b16 %v1428, %v1425
    %v1468 = vpack.c.b16 %v1432, %v1429
    %v1469 = vpack.c.b16 %v1433, %v1430
    %v1470 = vpack.c.b16 %v1434, %v1431
    %v1471 = vpack.c.b16 %v1438, %v1435
    %v1472 = vpack.c.b16 %v1439, %v1436
    %v1473 = vpack.c.b16 %v1440, %v1437
    %v1474 = vpack.c.b16 %v1444, %v1441
    %v1475 = vpack.c.b16 %v1445, %v1442
    %v1476 = vpack.c.b16 %v1446, %v1443
    %v1477 = vpack.c.b16 %v1450, %v1447
    %v1478 = vpack.c.b16 %v1451, %v1448
    %v1479 = vpack.c.b16 %v1452, %v1449
    %v1480 = vpack.c.b16 %v1456, %v1453
    %v1481 = vpack.c.b16 %v1457, %v1454
    %v1482 = vpack.c.b16 %v1458, %v1455
    %1507 = vmatprep.subr.bf16.mxu0 %v1460
    %1508 = vmatpush1.bf16.msra.mxu0 %v1459
    %1509 = vmatprep.subr.bf16.mxu0 %v1463
    %1510 = vmatpush1.bf16.msra.mxu0 %v1462
    %1511 = vmatprep.subr.bf16.mxu0 %v1466
    %1512 = vmatpush1.bf16.msra.mxu0 %v1465
    %1513 = vmatprep.subr.bf16.mxu0 %v1469
    %1514 = vmatpush1.bf16.msra.mxu0 %v1468
    %1515 = vmatprep.subr.bf16.mxu0 %v1472
    %1516 = vmatpush1.bf16.msra.mxu0 %v1471
    %1517 = vmatprep.subr.bf16.mxu0 %v1475
    %1518 = vmatpush1.bf16.msra.mxu0 %v1474
    %1519 = vmatprep.subr.bf16.mxu0 %v1478
    %1520 = vmatpush1.bf16.msra.mxu0 %v1477
    %1521 = vmatprep.subr.bf16.mxu0 %v1481
    %1522 = vmatpush1.bf16.msra.mxu0 %v1480
    %1523 = vmatprep.subr.bf16.mxu0 0
    %1524 = vmatpush1.bf16.msra.mxu0 0
    %1525 = vmatprep.subr.bf16.mxu0 0
    %1526 = vmatpush1.bf16.msra.mxu0 0
    %1527 = vmatprep.subr.bf16.mxu0 0
    %1528 = vmatpush1.bf16.msra.mxu0 0
    %1529 = vmatprep.subr.bf16.mxu0 0
    %1530 = vmatpush1.bf16.msra.mxu0 0
    %1531 = vmatprep.subr.bf16.mxu0 0
    %1532 = vmatpush1.bf16.msra.mxu0 0
    %1533 = vmatprep.subr.bf16.mxu0 0
    %1534 = vmatpush1.bf16.msra.mxu0 0
    %1535 = vmatprep.subr.bf16.mxu0 0
    %1536 = vmatpush1.bf16.msra.mxu0 0
    %1537 = vmatprep.subr.bf16.mxu0 0
    %1538 = vmatpush1.bf16.msra.mxu0 0
    %1539 = vmatprep.mubr.bf16.mxu0 0
    %1540 = vmatmul.mubr.bf16.gmra.mrb[0].mxu0 %v1346
    %v1541 = vpop.f32.mrb[0].mxu0
    %v1542 = vadd.f32 %v501, %v1541
    %v1543 = vpop.f32.mrb[0].mxu0
    %v1544 = vadd.f32 %v505, %v1543
    %v1545 = vpop.f32.mrb[0].mxu0
    %v1546 = vpop.f32.mrb[0].mxu0
    %1547 = vdwg.mxu0
    %1548 = vmatprep.subr.bf16.mxu0 0
    %1549 = vmatpush1.bf16.msra.mxu0 %v1461
    %1550 = vmatprep.subr.bf16.mxu0 0
    %1551 = vmatpush1.bf16.msra.mxu0 %v1464
    %1552 = vmatprep.subr.bf16.mxu0 0
    %1553 = vmatpush1.bf16.msra.mxu0 %v1467
    %1554 = vmatprep.subr.bf16.mxu0 0
    %1555 = vmatpush1.bf16.msra.mxu0 %v1470
    %1556 = vmatprep.subr.bf16.mxu0 0
    %1557 = vmatpush1.bf16.msra.mxu0 %v1473
    %1558 = vmatprep.subr.bf16.mxu0 0
    %1559 = vmatpush1.bf16.msra.mxu0 %v1476
    %1560 = vmatprep.subr.bf16.mxu0 0
    %1561 = vmatpush1.bf16.msra.mxu0 %v1479
    %1562 = vmatprep.subr.bf16.mxu0 0
    %1563 = vmatpush1.bf16.msra.mxu0 %v1482
    %1564 = vmatprep.subr.bf16.mxu0 0
    %1565 = vmatpush1.bf16.msra.mxu0 0
    %1566 = vmatprep.subr.bf16.mxu0 0
    %1567 = vmatpush1.bf16.msra.mxu0 0
    %1568 = vmatprep.subr.bf16.mxu0 0
    %1569 = vmatpush1.bf16.msra.mxu0 0
    %1570 = vmatprep.subr.bf16.mxu0 0
    %1571 = vmatpush1.bf16.msra.mxu0 0
    %1572 = vmatprep.subr.bf16.mxu0 0
    %1573 = vmatpush1.bf16.msra.mxu0 0
    %1574 = vmatprep.subr.bf16.mxu0 0
    %1575 = vmatpush1.bf16.msra.mxu0 0
    %1576 = vmatprep.subr.bf16.mxu0 0
    %1577 = vmatpush1.bf16.msra.mxu0 0
    %1578 = vmatprep.subr.bf16.mxu0 0
    %1579 = vmatpush1.bf16.msra.mxu0 0
    %1580 = vmatprep.mubr.bf16.mxu0 0
    %1581 = vmatmul.mubr.bf16.gmra.mrb[0].mxu0 %v1346
    %v1582 = vpop.f32.mrb[0].mxu0
    %v1583 = vadd.f32 %v509, %v1582
    %v1584 = vpop.f32.mrb[0].mxu0
    %v1585 = vpop.f32.mrb[0].mxu0
    %v1586 = vpop.f32.mrb[0].mxu0
    %1587 = vdwg.mxu0
    %v1588 = vadd.f32 %v1343, %v1542
    %v1589 = vxor.u32 %v1588, 2147483648
    %v1590 = vmul.f32 %v1589, 1.442695
    %v1591 = vpow.pop %v1590
    %v1592 = vadd.f32 %v1591, 1.0
    %v1593 = vrcp.pop %v1592
    %v1594 = vmul.f32 1.0, %v1593
    %v1595 = vadd.f32 %v1344, %v1544
    %v1596 = vxor.u32 %v1595, 2147483648
    %v1597 = vmul.f32 %v1596, 1.442695
    %v1598 = vpow.pop %v1597
    %v1599 = vadd.f32 %v1598, 1.0
    %v1600 = vrcp.pop %v1599
    %v1601 = vmul.f32 1.0, %v1600
    %v1602 = vmul.f32 %v1594, %v1583
    %v1603 = vadd.f32 %v1345, %v1602
    %v1604 = vtanh.pop %v1603
    %v1605 = vsub.f32 1.0, %v1601
    %v1606 = vmul.f32 %v1605, %v1604
    %v1607 = vmul.f32 %v1601, %v827
    %v1608 = vadd.f32 %v1606, %v1607
    %v1609 = vsel %vm1339, 1, 0
    %1610 = vset.pattern.permute.xlu0 0
    %1611 = vperm.xlu0 %1610, %v1609
    %v1612 = vpop.permute.xlu0 %1611
    %vm1613 = vcmp.eq.s32.totalorder %v1612, 1
    %v1614 = vsel %vm1613, %v1608, %v827
    %v1615 = vsel %vm1613, %v1608, 0.0
    %v1616 = vpack.c.bf16 %v1615, %v1615
    %v1617 = vld [vmem:[%s830] sm:$0xff]
    %v1618 = vld [vmem:[%s830 + $0x8] sm:$0xf]
    %v1619 = vld [vmem:[%s830 + $0xc] sm:$0xff]
    %v1620 = vld [vmem:[%s830 + $0x14] sm:$0xf]
    %v1621 = vld [vmem:[%s830 + $0x18] sm:$0xff]
    %v1622 = vld [vmem:[%s830 + $0x20] sm:$0xf]
    %v1623 = vld [vmem:[%s830 + $0x24] sm:$0xff]
    %v1624 = vld [vmem:[%s830 + $0x2c] sm:$0xf]
    %v1625 = vld [vmem:[%s830 + $0x30] sm:$0xff]
    %v1626 = vld [vmem:[%s830 + $0x38] sm:$0xf]
    %v1627 = vld [vmem:[%s830 + $0x3c] sm:$0xff]
    %v1628 = vld [vmem:[%s830 + $0x44] sm:$0xf]
    %v1629 = vld [vmem:[%s830 + $0x48] sm:$0xff]
    %v1630 = vld [vmem:[%s830 + $0x50] sm:$0xf]
    %v1631 = vld [vmem:[%s830 + $0x54] sm:$0xff]
    %v1632 = vld [vmem:[%s830 + $0x5c] sm:$0xf]
    %v1633 = vld [vmem:[%s830 + $0x60] sm:$0xff]
    %v1634 = vld [vmem:[%s830 + $0x68] sm:$0xf]
    %v1635 = vld [vmem:[%s830 + $0x6c] sm:$0xff]
    %v1636 = vld [vmem:[%s830 + $0x74] sm:$0xf]
    %v1637 = vld [vmem:[%s830 + $0x78] sm:$0xff]
    %v1638 = vld [vmem:[%s830 + $0x80] sm:$0xf]
    %v1639 = vld [vmem:[%s830 + $0x84] sm:$0xff]
    %v1640 = vld [vmem:[%s830 + $0x8c] sm:$0xf]
    %v1641 = vld [vmem:[%s830 + $0x90] sm:$0xff]
    %v1642 = vld [vmem:[%s830 + $0x98] sm:$0xf]
    %v1643 = vld [vmem:[%s830 + $0x9c] sm:$0xff]
    %v1644 = vld [vmem:[%s830 + $0xa4] sm:$0xf]
    %v1645 = vld [vmem:[%s830 + $0xa8] sm:$0xff]
    %v1646 = vld [vmem:[%s830 + $0xb0] sm:$0xf]
    %v1647 = vld [vmem:[%s830 + $0xb4] sm:$0xff]
    %v1648 = vld [vmem:[%s830 + $0xbc] sm:$0xf]
    %v1681 = vunpack.c.l.b16 %v1617
    %v1682 = vunpack.c.h.b16 %v1617
    %v1683 = vunpack.c.l.b16 %v1618
    %v1684 = vunpack.c.l.b16 %v1619
    %v1685 = vunpack.c.h.b16 %v1619
    %v1686 = vunpack.c.l.b16 %v1620
    %v1687 = vunpack.c.l.b16 %v1621
    %v1688 = vunpack.c.h.b16 %v1621
    %v1689 = vunpack.c.l.b16 %v1622
    %v1690 = vunpack.c.l.b16 %v1623
    %v1691 = vunpack.c.h.b16 %v1623
    %v1692 = vunpack.c.l.b16 %v1624
    %v1693 = vunpack.c.l.b16 %v1625
    %v1694 = vunpack.c.h.b16 %v1625
    %v1695 = vunpack.c.l.b16 %v1626
    %v1696 = vunpack.c.l.b16 %v1627
    %v1697 = vunpack.c.h.b16 %v1627
    %v1698 = vunpack.c.l.b16 %v1628
    %v1699 = vunpack.c.l.b16 %v1629
    %v1700 = vunpack.c.h.b16 %v1629
    %v1701 = vunpack.c.l.b16 %v1630
    %v1702 = vunpack.c.l.b16 %v1631
    %v1703 = vunpack.c.h.b16 %v1631
    %v1704 = vunpack.c.l.b16 %v1632
    %v1705 = vunpack.c.l.b16 %v1633
    %v1706 = vunpack.c.h.b16 %v1633
    %v1707 = vunpack.c.l.b16 %v1634
    %v1708 = vunpack.c.l.b16 %v1635
    %v1709 = vunpack.c.h.b16 %v1635
    %v1710 = vunpack.c.l.b16 %v1636
    %v1711 = vunpack.c.l.b16 %v1637
    %v1712 = vunpack.c.h.b16 %v1637
    %v1713 = vunpack.c.l.b16 %v1638
    %v1714 = vunpack.c.l.b16 %v1639
    %v1715 = vunpack.c.h.b16 %v1639
    %v1716 = vunpack.c.l.b16 %v1640
    %v1717 = vunpack.c.l.b16 %v1641
    %v1718 = vunpack.c.h.b16 %v1641
    %v1719 = vunpack.c.l.b16 %v1642
    %v1720 = vunpack.c.l.b16 %v1643
    %v1721 = vunpack.c.h.b16 %v1643
    %v1722 = vunpack.c.l.b16 %v1644
    %v1723 = vunpack.c.l.b16 %v1645
    %v1724 = vunpack.c.h.b16 %v1645
    %v1725 = vunpack.c.l.b16 %v1646
    %v1726 = vunpack.c.l.b16 %v1647
    %v1727 = vunpack.c.h.b16 %v1647
    %v1728 = vunpack.c.l.b16 %v1648
    %v1729 = vpack.c.b16 %v1684, %v1681
    %v1730 = vpack.c.b16 %v1685, %v1682
    %v1731 = vpack.c.b16 %v1686, %v1683
    %v1732 = vpack.c.b16 %v1690, %v1687
    %v1733 = vpack.c.b16 %v1691, %v1688
    %v1734 = vpack.c.b16 %v1692, %v1689
    %v1735 = vpack.c.b16 %v1696, %v1693
    %v1736 = vpack.c.b16 %v1697, %v1694
    %v1737 = vpack.c.b16 %v1698, %v1695
    %v1738 = vpack.c.b16 %v1702, %v1699
    %v1739 = vpack.c.b16 %v1703, %v1700
    %v1740 = vpack.c.b16 %v1704, %v1701
    %v1741 = vpack.c.b16 %v1708, %v1705
    %v1742 = vpack.c.b16 %v1709, %v1706
    %v1743 = vpack.c.b16 %v1710, %v1707
    %v1744 = vpack.c.b16 %v1714, %v1711
    %v1745 = vpack.c.b16 %v1715, %v1712
    %v1746 = vpack.c.b16 %v1716, %v1713
    %v1747 = vpack.c.b16 %v1720, %v1717
    %v1748 = vpack.c.b16 %v1721, %v1718
    %v1749 = vpack.c.b16 %v1722, %v1719
    %v1750 = vpack.c.b16 %v1726, %v1723
    %v1751 = vpack.c.b16 %v1727, %v1724
    %v1752 = vpack.c.b16 %v1728, %v1725
    %1777 = vmatprep.subr.bf16.mxu0 %v1730
    %1778 = vmatpush1.bf16.msra.mxu0 %v1729
    %1779 = vmatprep.subr.bf16.mxu0 %v1733
    %1780 = vmatpush1.bf16.msra.mxu0 %v1732
    %1781 = vmatprep.subr.bf16.mxu0 %v1736
    %1782 = vmatpush1.bf16.msra.mxu0 %v1735
    %1783 = vmatprep.subr.bf16.mxu0 %v1739
    %1784 = vmatpush1.bf16.msra.mxu0 %v1738
    %1785 = vmatprep.subr.bf16.mxu0 %v1742
    %1786 = vmatpush1.bf16.msra.mxu0 %v1741
    %1787 = vmatprep.subr.bf16.mxu0 %v1745
    %1788 = vmatpush1.bf16.msra.mxu0 %v1744
    %1789 = vmatprep.subr.bf16.mxu0 %v1748
    %1790 = vmatpush1.bf16.msra.mxu0 %v1747
    %1791 = vmatprep.subr.bf16.mxu0 %v1751
    %1792 = vmatpush1.bf16.msra.mxu0 %v1750
    %1793 = vmatprep.subr.bf16.mxu0 0
    %1794 = vmatpush1.bf16.msra.mxu0 0
    %1795 = vmatprep.subr.bf16.mxu0 0
    %1796 = vmatpush1.bf16.msra.mxu0 0
    %1797 = vmatprep.subr.bf16.mxu0 0
    %1798 = vmatpush1.bf16.msra.mxu0 0
    %1799 = vmatprep.subr.bf16.mxu0 0
    %1800 = vmatpush1.bf16.msra.mxu0 0
    %1801 = vmatprep.subr.bf16.mxu0 0
    %1802 = vmatpush1.bf16.msra.mxu0 0
    %1803 = vmatprep.subr.bf16.mxu0 0
    %1804 = vmatpush1.bf16.msra.mxu0 0
    %1805 = vmatprep.subr.bf16.mxu0 0
    %1806 = vmatpush1.bf16.msra.mxu0 0
    %1807 = vmatprep.subr.bf16.mxu0 0
    %1808 = vmatpush1.bf16.msra.mxu0 0
    %1809 = vmatprep.mubr.bf16.mxu0 0
    %1810 = vmatmul.mubr.bf16.gmra.mrb[0].mxu0 %v1616
    %v1811 = vpop.f32.mrb[0].mxu0
    %v1812 = vadd.f32 %v537, %v1811
    %v1813 = vpop.f32.mrb[0].mxu0
    %v1814 = vadd.f32 %v541, %v1813
    %v1815 = vpop.f32.mrb[0].mxu0
    %v1816 = vpop.f32.mrb[0].mxu0
    %1817 = vdwg.mxu0
    %1818 = vmatprep.subr.bf16.mxu0 0
    %1819 = vmatpush1.bf16.msra.mxu0 %v1731
    %1820 = vmatprep.subr.bf16.mxu0 0
    %1821 = vmatpush1.bf16.msra.mxu0 %v1734
    %1822 = vmatprep.subr.bf16.mxu0 0
    %1823 = vmatpush1.bf16.msra.mxu0 %v1737
    %1824 = vmatprep.subr.bf16.mxu0 0
    %1825 = vmatpush1.bf16.msra.mxu0 %v1740
    %1826 = vmatprep.subr.bf16.mxu0 0
    %1827 = vmatpush1.bf16.msra.mxu0 %v1743
    %1828 = vmatprep.subr.bf16.mxu0 0
    %1829 = vmatpush1.bf16.msra.mxu0 %v1746
    %1830 = vmatprep.subr.bf16.mxu0 0
    %1831 = vmatpush1.bf16.msra.mxu0 %v1749
    %1832 = vmatprep.subr.bf16.mxu0 0
    %1833 = vmatpush1.bf16.msra.mxu0 %v1752
    %1834 = vmatprep.subr.bf16.mxu0 0
    %1835 = vmatpush1.bf16.msra.mxu0 0
    %1836 = vmatprep.subr.bf16.mxu0 0
    %1837 = vmatpush1.bf16.msra.mxu0 0
    %1838 = vmatprep.subr.bf16.mxu0 0
    %1839 = vmatpush1.bf16.msra.mxu0 0
    %1840 = vmatprep.subr.bf16.mxu0 0
    %1841 = vmatpush1.bf16.msra.mxu0 0
    %1842 = vmatprep.subr.bf16.mxu0 0
    %1843 = vmatpush1.bf16.msra.mxu0 0
    %1844 = vmatprep.subr.bf16.mxu0 0
    %1845 = vmatpush1.bf16.msra.mxu0 0
    %1846 = vmatprep.subr.bf16.mxu0 0
    %1847 = vmatpush1.bf16.msra.mxu0 0
    %1848 = vmatprep.subr.bf16.mxu0 0
    %1849 = vmatpush1.bf16.msra.mxu0 0
    %1850 = vmatprep.mubr.bf16.mxu0 0
    %1851 = vmatmul.mubr.bf16.gmra.mrb[0].mxu0 %v1616
    %v1852 = vpop.f32.mrb[0].mxu0
    %v1853 = vadd.f32 %v545, %v1852
    %v1854 = vpop.f32.mrb[0].mxu0
    %v1855 = vpop.f32.mrb[0].mxu0
    %v1856 = vpop.f32.mrb[0].mxu0
    %1857 = vdwg.mxu0
    %v1858 = vpack.c.bf16 %v1336, %v1336
    %v1859 = vld [vmem:[%s1073] sm:$0xff]
    %v1860 = vld [vmem:[%s1073 + $0x8] sm:$0xf]
    %v1861 = vld [vmem:[%s1073 + $0xc] sm:$0xff]
    %v1862 = vld [vmem:[%s1073 + $0x14] sm:$0xf]
    %v1863 = vld [vmem:[%s1073 + $0x18] sm:$0xff]
    %v1864 = vld [vmem:[%s1073 + $0x20] sm:$0xf]
    %v1865 = vld [vmem:[%s1073 + $0x24] sm:$0xff]
    %v1866 = vld [vmem:[%s1073 + $0x2c] sm:$0xf]
    %v1867 = vld [vmem:[%s1073 + $0x30] sm:$0xff]
    %v1868 = vld [vmem:[%s1073 + $0x38] sm:$0xf]
    %v1869 = vld [vmem:[%s1073 + $0x3c] sm:$0xff]
    %v1870 = vld [vmem:[%s1073 + $0x44] sm:$0xf]
    %v1871 = vld [vmem:[%s1073 + $0x48] sm:$0xff]
    %v1872 = vld [vmem:[%s1073 + $0x50] sm:$0xf]
    %v1873 = vld [vmem:[%s1073 + $0x54] sm:$0xff]
    %v1874 = vld [vmem:[%s1073 + $0x5c] sm:$0xf]
    %v1875 = vld [vmem:[%s1073 + $0x60] sm:$0xff]
    %v1876 = vld [vmem:[%s1073 + $0x68] sm:$0xf]
    %v1877 = vld [vmem:[%s1073 + $0x6c] sm:$0xff]
    %v1878 = vld [vmem:[%s1073 + $0x74] sm:$0xf]
    %v1879 = vld [vmem:[%s1073 + $0x78] sm:$0xff]
    %v1880 = vld [vmem:[%s1073 + $0x80] sm:$0xf]
    %v1881 = vld [vmem:[%s1073 + $0x84] sm:$0xff]
    %v1882 = vld [vmem:[%s1073 + $0x8c] sm:$0xf]
    %v1883 = vld [vmem:[%s1073 + $0x90] sm:$0xff]
    %v1884 = vld [vmem:[%s1073 + $0x98] sm:$0xf]
    %v1885 = vld [vmem:[%s1073 + $0x9c] sm:$0xff]
    %v1886 = vld [vmem:[%s1073 + $0xa4] sm:$0xf]
    %v1887 = vld [vmem:[%s1073 + $0xa8] sm:$0xff]
    %v1888 = vld [vmem:[%s1073 + $0xb0] sm:$0xf]
    %v1889 = vld [vmem:[%s1073 + $0xb4] sm:$0xff]
    %v1890 = vld [vmem:[%s1073 + $0xbc] sm:$0xf]
    %v1923 = vunpack.c.l.b16 %v1859
    %v1924 = vunpack.c.h.b16 %v1859
    %v1925 = vunpack.c.l.b16 %v1860
    %v1926 = vunpack.c.l.b16 %v1861
    %v1927 = vunpack.c.h.b16 %v1861
    %v1928 = vunpack.c.l.b16 %v1862
    %v1929 = vunpack.c.l.b16 %v1863
    %v1930 = vunpack.c.h.b16 %v1863
    %v1931 = vunpack.c.l.b16 %v1864
    %v1932 = vunpack.c.l.b16 %v1865
    %v1933 = vunpack.c.h.b16 %v1865
    %v1934 = vunpack.c.l.b16 %v1866
    %v1935 = vunpack.c.l.b16 %v1867
    %v1936 = vunpack.c.h.b16 %v1867
    %v1937 = vunpack.c.l.b16 %v1868
    %v1938 = vunpack.c.l.b16 %v1869
    %v1939 = vunpack.c.h.b16 %v1869
    %v1940 = vunpack.c.l.b16 %v1870
    %v1941 = vunpack.c.l.b16 %v1871
    %v1942 = vunpack.c.h.b16 %v1871
    %v1943 = vunpack.c.l.b16 %v1872
    %v1944 = vunpack.c.l.b16 %v1873
    %v1945 = vunpack.c.h.b16 %v1873
    %v1946 = vunpack.c.l.b16 %v1874
    %v1947 = vunpack.c.l.b16 %v1875
    %v1948 = vunpack.c.h.b16 %v1875
    %v1949 = vunpack.c.l.b16 %v1876
    %v1950 = vunpack.c.l.b16 %v1877
    %v1951 = vunpack.c.h.b16 %v1877
    %v1952 = vunpack.c.l.b16 %v1878
    %v1953 = vunpack.c.l.b16 %v1879
    %v1954 = vunpack.c.h.b16 %v1879
    %v1955 = vunpack.c.l.b16 %v1880
    %v1956 = vunpack.c.l.b16 %v1881
    %v1957 = vunpack.c.h.b16 %v1881
    %v1958 = vunpack.c.l.b16 %v1882
    %v1959 = vunpack.c.l.b16 %v1883
    %v1960 = vunpack.c.h.b16 %v1883
    %v1961 = vunpack.c.l.b16 %v1884
    %v1962 = vunpack.c.l.b16 %v1885
    %v1963 = vunpack.c.h.b16 %v1885
    %v1964 = vunpack.c.l.b16 %v1886
    %v1965 = vunpack.c.l.b16 %v1887
    %v1966 = vunpack.c.h.b16 %v1887
    %v1967 = vunpack.c.l.b16 %v1888
    %v1968 = vunpack.c.l.b16 %v1889
    %v1969 = vunpack.c.h.b16 %v1889
    %v1970 = vunpack.c.l.b16 %v1890
    %v1971 = vpack.c.b16 %v1926, %v1923
    %v1972 = vpack.c.b16 %v1927, %v1924
    %v1973 = vpack.c.b16 %v1928, %v1925
    %v1974 = vpack.c.b16 %v1932, %v1929
    %v1975 = vpack.c.b16 %v1933, %v1930
    %v1976 = vpack.c.b16 %v1934, %v1931
    %v1977 = vpack.c.b16 %v1938, %v1935
    %v1978 = vpack.c.b16 %v1939, %v1936
    %v1979 = vpack.c.b16 %v1940, %v1937
    %v1980 = vpack.c.b16 %v1944, %v1941
    %v1981 = vpack.c.b16 %v1945, %v1942
    %v1982 = vpack.c.b16 %v1946, %v1943
    %v1983 = vpack.c.b16 %v1950, %v1947
    %v1984 = vpack.c.b16 %v1951, %v1948
    %v1985 = vpack.c.b16 %v1952, %v1949
    %v1986 = vpack.c.b16 %v1956, %v1953
    %v1987 = vpack.c.b16 %v1957, %v1954
    %v1988 = vpack.c.b16 %v1958, %v1955
    %v1989 = vpack.c.b16 %v1962, %v1959
    %v1990 = vpack.c.b16 %v1963, %v1960
    %v1991 = vpack.c.b16 %v1964, %v1961
    %v1992 = vpack.c.b16 %v1968, %v1965
    %v1993 = vpack.c.b16 %v1969, %v1966
    %v1994 = vpack.c.b16 %v1970, %v1967
    %2019 = vmatprep.subr.bf16.mxu0 %v1972
    %2020 = vmatpush1.bf16.msra.mxu0 %v1971
    %2021 = vmatprep.subr.bf16.mxu0 %v1975
    %2022 = vmatpush1.bf16.msra.mxu0 %v1974
    %2023 = vmatprep.subr.bf16.mxu0 %v1978
    %2024 = vmatpush1.bf16.msra.mxu0 %v1977
    %2025 = vmatprep.subr.bf16.mxu0 %v1981
    %2026 = vmatpush1.bf16.msra.mxu0 %v1980
    %2027 = vmatprep.subr.bf16.mxu0 %v1984
    %2028 = vmatpush1.bf16.msra.mxu0 %v1983
    %2029 = vmatprep.subr.bf16.mxu0 %v1987
    %2030 = vmatpush1.bf16.msra.mxu0 %v1986
    %2031 = vmatprep.subr.bf16.mxu0 %v1990
    %2032 = vmatpush1.bf16.msra.mxu0 %v1989
    %2033 = vmatprep.subr.bf16.mxu0 %v1993
    %2034 = vmatpush1.bf16.msra.mxu0 %v1992
    %2035 = vmatprep.subr.bf16.mxu0 0
    %2036 = vmatpush1.bf16.msra.mxu0 0
    %2037 = vmatprep.subr.bf16.mxu0 0
    %2038 = vmatpush1.bf16.msra.mxu0 0
    %2039 = vmatprep.subr.bf16.mxu0 0
    %2040 = vmatpush1.bf16.msra.mxu0 0
    %2041 = vmatprep.subr.bf16.mxu0 0
    %2042 = vmatpush1.bf16.msra.mxu0 0
    %2043 = vmatprep.subr.bf16.mxu0 0
    %2044 = vmatpush1.bf16.msra.mxu0 0
    %2045 = vmatprep.subr.bf16.mxu0 0
    %2046 = vmatpush1.bf16.msra.mxu0 0
    %2047 = vmatprep.subr.bf16.mxu0 0
    %2048 = vmatpush1.bf16.msra.mxu0 0
    %2049 = vmatprep.subr.bf16.mxu0 0
    %2050 = vmatpush1.bf16.msra.mxu0 0
    %2051 = vmatprep.mubr.bf16.mxu0 0
    %2052 = vmatmul.mubr.bf16.gmra.mrb[0].mxu0 %v1858
    %v2053 = vpop.f32.mrb[0].mxu0
    %v2054 = vadd.f32 %v519, %v2053
    %v2055 = vpop.f32.mrb[0].mxu0
    %v2056 = vadd.f32 %v523, %v2055
    %v2057 = vpop.f32.mrb[0].mxu0
    %v2058 = vpop.f32.mrb[0].mxu0
    %2059 = vdwg.mxu0
    %2060 = vmatprep.subr.bf16.mxu0 0
    %2061 = vmatpush1.bf16.msra.mxu0 %v1973
    %2062 = vmatprep.subr.bf16.mxu0 0
    %2063 = vmatpush1.bf16.msra.mxu0 %v1976
    %2064 = vmatprep.subr.bf16.mxu0 0
    %2065 = vmatpush1.bf16.msra.mxu0 %v1979
    %2066 = vmatprep.subr.bf16.mxu0 0
    %2067 = vmatpush1.bf16.msra.mxu0 %v1982
    %2068 = vmatprep.subr.bf16.mxu0 0
    %2069 = vmatpush1.bf16.msra.mxu0 %v1985
    %2070 = vmatprep.subr.bf16.mxu0 0
    %2071 = vmatpush1.bf16.msra.mxu0 %v1988
    %2072 = vmatprep.subr.bf16.mxu0 0
    %2073 = vmatpush1.bf16.msra.mxu0 %v1991
    %2074 = vmatprep.subr.bf16.mxu0 0
    %2075 = vmatpush1.bf16.msra.mxu0 %v1994
    %2076 = vmatprep.subr.bf16.mxu0 0
    %2077 = vmatpush1.bf16.msra.mxu0 0
    %2078 = vmatprep.subr.bf16.mxu0 0
    %2079 = vmatpush1.bf16.msra.mxu0 0
    %2080 = vmatprep.subr.bf16.mxu0 0
    %2081 = vmatpush1.bf16.msra.mxu0 0
    %2082 = vmatprep.subr.bf16.mxu0 0
    %2083 = vmatpush1.bf16.msra.mxu0 0
    %2084 = vmatprep.subr.bf16.mxu0 0
    %2085 = vmatpush1.bf16.msra.mxu0 0
    %2086 = vmatprep.subr.bf16.mxu0 0
    %2087 = vmatpush1.bf16.msra.mxu0 0
    %2088 = vmatprep.subr.bf16.mxu0 0
    %2089 = vmatpush1.bf16.msra.mxu0 0
    %2090 = vmatprep.subr.bf16.mxu0 0
    %2091 = vmatpush1.bf16.msra.mxu0 0
    %2092 = vmatprep.mubr.bf16.mxu0 0
    %2093 = vmatmul.mubr.bf16.gmra.mrb[0].mxu0 %v1858
    %v2094 = vpop.f32.mrb[0].mxu0
    %v2095 = vadd.f32 %v527, %v2094
    %v2096 = vpop.f32.mrb[0].mxu0
    %v2097 = vpop.f32.mrb[0].mxu0
    %v2098 = vpop.f32.mrb[0].mxu0
    %2099 = vdwg.mxu0
    %v2100 = vadd.f32 %v1812, %v2054
    %v2101 = vxor.u32 %v2100, 2147483648
    %v2102 = vmul.f32 %v2101, 1.442695
    %v2103 = vpow.pop %v2102
    %v2104 = vadd.f32 %v2103, 1.0
    %v2105 = vrcp.pop %v2104
    %v2106 = vmul.f32 1.0, %v2105
    %v2107 = vadd.f32 %v1814, %v2056
    %v2108 = vxor.u32 %v2107, 2147483648
    %v2109 = vmul.f32 %v2108, 1.442695
    %v2110 = vpow.pop %v2109
    %v2111 = vadd.f32 %v2110, 1.0
    %v2112 = vrcp.pop %v2111
    %v2113 = vmul.f32 1.0, %v2112
    %v2114 = vmul.f32 %v2106, %v2095
    %v2115 = vadd.f32 %v1853, %v2114
    %v2116 = vtanh.pop %v2115
    %v2117 = vsub.f32 1.0, %v2113
    %v2118 = vmul.f32 %v2117, %v2116
    %v2119 = vmul.f32 %v2113, %v1336
    %v2120 = vadd.f32 %v2118, %v2119
    %v2121 = vsel %vm1613, %v2120, %v1336
    %v2122 = vsel %vm1613, %v2120, 0.0
    %s2123 = scalar_lea.vmem [#allocation15], 8
    %2124 = vst [vmem:[%s2123] sm:$0xff] %v2122
    %vm2125 = vcmp.gt.s32.totalorder %v495, 2
    %s2126 = smul.u32 2, 3
    %s2127 = smul.addr %s2126, 8
    %s2128 = scalar_lea.vmem [#allocation2], %s2127
    %v2129 = vld [vmem:[%s2128] sm:$0xff]
    %v2130 = vld [vmem:[%s2128 + $0x8] sm:$0xff]
    %v2131 = vld [vmem:[%s2128 + $0x10] sm:$0xff]
    %v2132 = vpack.c.bf16 %v1614, %v1614
    %v2133 = vld [vmem:[#allocation11] sm:$0xff]
    %v2134 = vld [vmem:[#allocation11 + $0x8] sm:$0xf]
    %v2135 = vld [vmem:[#allocation11 + $0xc] sm:$0xff]
    %v2136 = vld [vmem:[#allocation11 + $0x14] sm:$0xf]
    %v2137 = vld [vmem:[#allocation11 + $0x18] sm:$0xff]
    %v2138 = vld [vmem:[#allocation11 + $0x20] sm:$0xf]
    %v2139 = vld [vmem:[#allocation11 + $0x24] sm:$0xff]
    %v2140 = vld [vmem:[#allocation11 + $0x2c] sm:$0xf]
    %v2141 = vld [vmem:[#allocation11 + $0x30] sm:$0xff]
    %v2142 = vld [vmem:[#allocation11 + $0x38] sm:$0xf]
    %v2143 = vld [vmem:[#allocation11 + $0x3c] sm:$0xff]
    %v2144 = vld [vmem:[#allocation11 + $0x44] sm:$0xf]
    %v2145 = vld [vmem:[#allocation11 + $0x48] sm:$0xff]
    %v2146 = vld [vmem:[#allocation11 + $0x50] sm:$0xf]
    %v2147 = vld [vmem:[#allocation11 + $0x54] sm:$0xff]
    %v2148 = vld [vmem:[#allocation11 + $0x5c] sm:$0xf]
    %v2149 = vld [vmem:[#allocation11 + $0x60] sm:$0xff]
    %v2150 = vld [vmem:[#allocation11 + $0x68] sm:$0xf]
    %v2151 = vld [vmem:[#allocation11 + $0x6c] sm:$0xff]
    %v2152 = vld [vmem:[#allocation11 + $0x74] sm:$0xf]
    %v2153 = vld [vmem:[#allocation11 + $0x78] sm:$0xff]
    %v2154 = vld [vmem:[#allocation11 + $0x80] sm:$0xf]
    %v2155 = vld [vmem:[#allocation11 + $0x84] sm:$0xff]
    %v2156 = vld [vmem:[#allocation11 + $0x8c] sm:$0xf]
    %v2157 = vld [vmem:[#allocation11 + $0x90] sm:$0xff]
    %v2158 = vld [vmem:[#allocation11 + $0x98] sm:$0xf]
    %v2159 = vld [vmem:[#allocation11 + $0x9c] sm:$0xff]
    %v2160 = vld [vmem:[#allocation11 + $0xa4] sm:$0xf]
    %v2161 = vld [vmem:[#allocation11 + $0xa8] sm:$0xff]
    %v2162 = vld [vmem:[#allocation11 + $0xb0] sm:$0xf]
    %v2163 = vld [vmem:[#allocation11 + $0xb4] sm:$0xff]
    %v2164 = vld [vmem:[#allocation11 + $0xbc] sm:$0xf]
    %v2197 = vunpack.c.l.b16 %v2133
    %v2198 = vunpack.c.h.b16 %v2133
    %v2199 = vunpack.c.l.b16 %v2134
    %v2200 = vunpack.c.l.b16 %v2135
    %v2201 = vunpack.c.h.b16 %v2135
    %v2202 = vunpack.c.l.b16 %v2136
    %v2203 = vunpack.c.l.b16 %v2137
    %v2204 = vunpack.c.h.b16 %v2137
    %v2205 = vunpack.c.l.b16 %v2138
    %v2206 = vunpack.c.l.b16 %v2139
    %v2207 = vunpack.c.h.b16 %v2139
    %v2208 = vunpack.c.l.b16 %v2140
    %v2209 = vunpack.c.l.b16 %v2141
    %v2210 = vunpack.c.h.b16 %v2141
    %v2211 = vunpack.c.l.b16 %v2142
    %v2212 = vunpack.c.l.b16 %v2143
    %v2213 = vunpack.c.h.b16 %v2143
    %v2214 = vunpack.c.l.b16 %v2144
    %v2215 = vunpack.c.l.b16 %v2145
    %v2216 = vunpack.c.h.b16 %v2145
    %v2217 = vunpack.c.l.b16 %v2146
    %v2218 = vunpack.c.l.b16 %v2147
    %v2219 = vunpack.c.h.b16 %v2147
    %v2220 = vunpack.c.l.b16 %v2148
    %v2221 = vunpack.c.l.b16 %v2149
    %v2222 = vunpack.c.h.b16 %v2149
    %v2223 = vunpack.c.l.b16 %v2150
    %v2224 = vunpack.c.l.b16 %v2151
    %v2225 = vunpack.c.h.b16 %v2151
    %v2226 = vunpack.c.l.b16 %v2152
    %v2227 = vunpack.c.l.b16 %v2153
    %v2228 = vunpack.c.h.b16 %v2153
    %v2229 = vunpack.c.l.b16 %v2154
    %v2230 = vunpack.c.l.b16 %v2155
    %v2231 = vunpack.c.h.b16 %v2155
    %v2232 = vunpack.c.l.b16 %v2156
    %v2233 = vunpack.c.l.b16 %v2157
    %v2234 = vunpack.c.h.b16 %v2157
    %v2235 = vunpack.c.l.b16 %v2158
    %v2236 = vunpack.c.l.b16 %v2159
    %v2237 = vunpack.c.h.b16 %v2159
    %v2238 = vunpack.c.l.b16 %v2160
    %v2239 = vunpack.c.l.b16 %v2161
    %v2240 = vunpack.c.h.b16 %v2161
    %v2241 = vunpack.c.l.b16 %v2162
    %v2242 = vunpack.c.l.b16 %v2163
    %v2243 = vunpack.c.h.b16 %v2163
    %v2244 = vunpack.c.l.b16 %v2164
    %v2245 = vpack.c.b16 %v2200, %v2197
    %v2246 = vpack.c.b16 %v2201, %v2198
    %v2247 = vpack.c.b16 %v2202, %v2199
    %v2248 = vpack.c.b16 %v2206, %v2203
    %v2249 = vpack.c.b16 %v2207, %v2204
    %v2250 = vpack.c.b16 %v2208, %v2205
    %v2251 = vpack.c.b16 %v2212, %v2209
    %v2252 = vpack.c.b16 %v2213, %v2210
    %v2253 = vpack.c.b16 %v2214, %v2211
    %v2254 = vpack.c.b16 %v2218, %v2215
    %v2255 = vpack.c.b16 %v2219, %v2216
    %v2256 = vpack.c.b16 %v2220, %v2217
    %v2257 = vpack.c.b16 %v2224, %v2221
    %v2258 = vpack.c.b16 %v2225, %v2222
    %v2259 = vpack.c.b16 %v2226, %v2223
    %v2260 = vpack.c.b16 %v2230, %v2227
    %v2261 = vpack.c.b16 %v2231, %v2228
    %v2262 = vpack.c.b16 %v2232, %v2229
    %v2263 = vpack.c.b16 %v2236, %v2233
    %v2264 = vpack.c.b16 %v2237, %v2234
    %v2265 = vpack.c.b16 %v2238, %v2235
    %v2266 = vpack.c.b16 %v2242, %v2239
    %v2267 = vpack.c.b16 %v2243, %v2240
    %v2268 = vpack.c.b16 %v2244, %v2241
    %2293 = vmatprep.subr.bf16.mxu0 %v2246
    %2294 = vmatpush1.bf16.msra.mxu0 %v2245
    %2295 = vmatprep.subr.bf16.mxu0 %v2249
    %2296 = vmatpush1.bf16.msra.mxu0 %v2248
    %2297 = vmatprep.subr.bf16.mxu0 %v2252
    %2298 = vmatpush1.bf16.msra.mxu0 %v2251
    %2299 = vmatprep.subr.bf16.mxu0 %v2255
    %2300 = vmatpush1.bf16.msra.mxu0 %v2254
    %2301 = vmatprep.subr.bf16.mxu0 %v2258
    %2302 = vmatpush1.bf16.msra.mxu0 %v2257
    %2303 = vmatprep.subr.bf16.mxu0 %v2261
    %2304 = vmatpush1.bf16.msra.mxu0 %v2260
    %2305 = vmatprep.subr.bf16.mxu0 %v2264
    %2306 = vmatpush1.bf16.msra.mxu0 %v2263
    %2307 = vmatprep.subr.bf16.mxu0 %v2267
    %2308 = vmatpush1.bf16.msra.mxu0 %v2266
    %2309 = vmatprep.subr.bf16.mxu0 0
    %2310 = vmatpush1.bf16.msra.mxu0 0
    %2311 = vmatprep.subr.bf16.mxu0 0
    %2312 = vmatpush1.bf16.msra.mxu0 0
    %2313 = vmatprep.subr.bf16.mxu0 0
    %2314 = vmatpush1.bf16.msra.mxu0 0
    %2315 = vmatprep.subr.bf16.mxu0 0
    %2316 = vmatpush1.bf16.msra.mxu0 0
    %2317 = vmatprep.subr.bf16.mxu0 0
    %2318 = vmatpush1.bf16.msra.mxu0 0
    %2319 = vmatprep.subr.bf16.mxu0 0
    %2320 = vmatpush1.bf16.msra.mxu0 0
    %2321 = vmatprep.subr.bf16.mxu0 0
    %2322 = vmatpush1.bf16.msra.mxu0 0
    %2323 = vmatprep.subr.bf16.mxu0 0
    %2324 = vmatpush1.bf16.msra.mxu0 0
    %2325 = vmatprep.mubr.bf16.mxu0 0
    %2326 = vmatmul.mubr.bf16.gmra.mrb[0].mxu0 %v2132
    %v2327 = vpop.f32.mrb[0].mxu0
    %v2328 = vadd.f32 %v501, %v2327
    %v2329 = vpop.f32.mrb[0].mxu0
    %v2330 = vadd.f32 %v505, %v2329
    %v2331 = vpop.f32.mrb[0].mxu0
    %v2332 = vpop.f32.mrb[0].mxu0
    %2333 = vdwg.mxu0
    %2334 = vmatprep.subr.bf16.mxu0 0
    %2335 = vmatpush1.bf16.msra.mxu0 %v2247
    %2336 = vmatprep.subr.bf16.mxu0 0
    %2337 = vmatpush1.bf16.msra.mxu0 %v2250
    %2338 = vmatprep.subr.bf16.mxu0 0
    %2339 = vmatpush1.bf16.msra.mxu0 %v2253
    %2340 = vmatprep.subr.bf16.mxu0 0
    %2341 = vmatpush1.bf16.msra.mxu0 %v2256
    %2342 = vmatprep.subr.bf16.mxu0 0
    %2343 = vmatpush1.bf16.msra.mxu0 %v2259
    %2344 = vmatprep.subr.bf16.mxu0 0
    %2345 = vmatpush1.bf16.msra.mxu0 %v2262
    %2346 = vmatprep.subr.bf16.mxu0 0
    %2347 = vmatpush1.bf16.msra.mxu0 %v2265
    %2348 = vmatprep.subr.bf16.mxu0 0
    %2349 = vmatpush1.bf16.msra.mxu0 %v2268
    %2350 = vmatprep.subr.bf16.mxu0 0
    %2351 = vmatpush1.bf16.msra.mxu0 0
    %2352 = vmatprep.subr.bf16.mxu0 0
    %2353 = vmatpush1.bf16.msra.mxu0 0
    %2354 = vmatprep.subr.bf16.mxu0 0
    %2355 = vmatpush1.bf16.msra.mxu0 0
    %2356 = vmatprep.subr.bf16.mxu0 0
    %2357 = vmatpush1.bf16.msra.mxu0 0
    %2358 = vmatprep.subr.bf16.mxu0 0
    %2359 = vmatpush1.bf16.msra.mxu0 0
    %2360 = vmatprep.subr.bf16.mxu0 0
    %2361 = vmatpush1.bf16.msra.mxu0 0
    %2362 = vmatprep.subr.bf16.mxu0 0
    %2363 = vmatpush1.bf16.msra.mxu0 0
    %2364 = vmatprep.subr.bf16.mxu0 0
    %2365 = vmatpush1.bf16.msra.mxu0 0
    %2366 = vmatprep.mubr.bf16.mxu0 0
    %2367 = vmatmul.mubr.bf16.gmra.mrb[0].mxu0 %v2132
    %v2368 = vpop.f32.mrb[0].mxu0
    %v2369 = vadd.f32 %v509, %v2368
    %v2370 = vpop.f32.mrb[0].mxu0
    %v2371 = vpop.f32.mrb[0].mxu0
    %v2372 = vpop.f32.mrb[0].mxu0
    %2373 = vdwg.mxu0
    %v2374 = vadd.f32 %v2129, %v2328
    %v2375 = vxor.u32 %v2374, 2147483648
    %v2376 = vmul.f32 %v2375, 1.442695
    %v2377 = vpow.pop %v2376
    %v2378 = vadd.f32 %v2377, 1.0
    %v2379 = vrcp.pop %v2378
    %v2380 = vmul.f32 1.0, %v2379
    %v2381 = vadd.f32 %v2130, %v2330
    %v2382 = vxor.u32 %v2381, 2147483648
    %v2383 = vmul.f32 %v2382, 1.442695
    %v2384 = vpow.pop %v2383
    %v2385 = vadd.f32 %v2384, 1.0
    %v2386 = vrcp.pop %v2385
    %v2387 = vmul.f32 1.0, %v2386
    %v2388 = vmul.f32 %v2380, %v2369
    %v2389 = vadd.f32 %v2131, %v2388
    %v2390 = vtanh.pop %v2389
    %v2391 = vsub.f32 1.0, %v2387
    %v2392 = vmul.f32 %v2391, %v2390
    %v2393 = vmul.f32 %v2387, %v1614
    %v2394 = vadd.f32 %v2392, %v2393
    %v2395 = vsel %vm2125, 1, 0
    %2396 = vset.pattern.permute.xlu0 0
    %2397 = vperm.xlu0 %2396, %v2395
    %v2398 = vpop.permute.xlu0 %2397
    %vm2399 = vcmp.eq.s32.totalorder %v2398, 1
    %v2400 = vsel %vm2399, %v2394, %v1614
    %v2401 = vsel %vm2399, %v2394, 0.0
    %v2402 = vpack.c.bf16 %v2401, %v2401
    %v2403 = vld [vmem:[%s830] sm:$0xff]
    %v2404 = vld [vmem:[%s830 + $0x8] sm:$0xf]
    %v2405 = vld [vmem:[%s830 + $0xc] sm:$0xff]
    %v2406 = vld [vmem:[%s830 + $0x14] sm:$0xf]
    %v2407 = vld [vmem:[%s830 + $0x18] sm:$0xff]
    %v2408 = vld [vmem:[%s830 + $0x20] sm:$0xf]
    %v2409 = vld [vmem:[%s830 + $0x24] sm:$0xff]
    %v2410 = vld [vmem:[%s830 + $0x2c] sm:$0xf]
    %v2411 = vld [vmem:[%s830 + $0x30] sm:$0xff]
    %v2412 = vld [vmem:[%s830 + $0x38] sm:$0xf]
    %v2413 = vld [vmem:[%s830 + $0x3c] sm:$0xff]
    %v2414 = vld [vmem:[%s830 + $0x44] sm:$0xf]
    %v2415 = vld [vmem:[%s830 + $0x48] sm:$0xff]
    %v2416 = vld [vmem:[%s830 + $0x50] sm:$0xf]
    %v2417 = vld [vmem:[%s830 + $0x54] sm:$0xff]
    %v2418 = vld [vmem:[%s830 + $0x5c] sm:$0xf]
    %v2419 = vld [vmem:[%s830 + $0x60] sm:$0xff]
    %v2420 = vld [vmem:[%s830 + $0x68] sm:$0xf]
    %v2421 = vld [vmem:[%s830 + $0x6c] sm:$0xff]
    %v2422 = vld [vmem:[%s830 + $0x74] sm:$0xf]
    %v2423 = vld [vmem:[%s830 + $0x78] sm:$0xff]
    %v2424 = vld [vmem:[%s830 + $0x80] sm:$0xf]
    %v2425 = vld [vmem:[%s830 + $0x84] sm:$0xff]
    %v2426 = vld [vmem:[%s830 + $0x8c] sm:$0xf]
    %v2427 = vld [vmem:[%s830 + $0x90] sm:$0xff]
    %v2428 = vld [vmem:[%s830 + $0x98] sm:$0xf]
    %v2429 = vld [vmem:[%s830 + $0x9c] sm:$0xff]
    %v2430 = vld [vmem:[%s830 + $0xa4] sm:$0xf]
    %v2431 = vld [vmem:[%s830 + $0xa8] sm:$0xff]
    %v2432 = vld [vmem:[%s830 + $0xb0] sm:$0xf]
    %v2433 = vld [vmem:[%s830 + $0xb4] sm:$0xff]
    %v2434 = vld [vmem:[%s830 + $0xbc] sm:$0xf]
    %v2467 = vunpack.c.l.b16 %v2403
    %v2468 = vunpack.c.h.b16 %v2403
    %v2469 = vunpack.c.l.b16 %v2404
    %v2470 = vunpack.c.l.b16 %v2405
    %v2471 = vunpack.c.h.b16 %v2405
    %v2472 = vunpack.c.l.b16 %v2406
    %v2473 = vunpack.c.l.b16 %v2407
    %v2474 = vunpack.c.h.b16 %v2407
    %v2475 = vunpack.c.l.b16 %v2408
    %v2476 = vunpack.c.l.b16 %v2409
    %v2477 = vunpack.c.h.b16 %v2409
    %v2478 = vunpack.c.l.b16 %v2410
    %v2479 = vunpack.c.l.b16 %v2411
    %v2480 = vunpack.c.h.b16 %v2411
    %v2481 = vunpack.c.l.b16 %v2412
    %v2482 = vunpack.c.l.b16 %v2413
    %v2483 = vunpack.c.h.b16 %v2413
    %v2484 = vunpack.c.l.b16 %v2414
    %v2485 = vunpack.c.l.b16 %v2415
    %v2486 = vunpack.c.h.b16 %v2415
    %v2487 = vunpack.c.l.b16 %v2416
    %v2488 = vunpack.c.l.b16 %v2417
    %v2489 = vunpack.c.h.b16 %v2417
    %v2490 = vunpack.c.l.b16 %v2418
    %v2491 = vunpack.c.l.b16 %v2419
    %v2492 = vunpack.c.h.b16 %v2419
    %v2493 = vunpack.c.l.b16 %v2420
    %v2494 = vunpack.c.l.b16 %v2421
    %v2495 = vunpack.c.h.b16 %v2421
    %v2496 = vunpack.c.l.b16 %v2422
    %v2497 = vunpack.c.l.b16 %v2423
    %v2498 = vunpack.c.h.b16 %v2423
    %v2499 = vunpack.c.l.b16 %v2424
    %v2500 = vunpack.c.l.b16 %v2425
    %v2501 = vunpack.c.h.b16 %v2425
    %v2502 = vunpack.c.l.b16 %v2426
    %v2503 = vunpack.c.l.b16 %v2427
    %v2504 = vunpack.c.h.b16 %v2427
    %v2505 = vunpack.c.l.b16 %v2428
    %v2506 = vunpack.c.l.b16 %v2429
    %v2507 = vunpack.c.h.b16 %v2429
    %v2508 = vunpack.c.l.b16 %v2430
    %v2509 = vunpack.c.l.b16 %v2431
    %v2510 = vunpack.c.h.b16 %v2431
    %v2511 = vunpack.c.l.b16 %v2432
    %v2512 = vunpack.c.l.b16 %v2433
    %v2513 = vunpack.c.h.b16 %v2433
    %v2514 = vunpack.c.l.b16 %v2434
    %v2515 = vpack.c.b16 %v2470, %v2467
    %v2516 = vpack.c.b16 %v2471, %v2468
    %v2517 = vpack.c.b16 %v2472, %v2469
    %v2518 = vpack.c.b16 %v2476, %v2473
    %v2519 = vpack.c.b16 %v2477, %v2474
    %v2520 = vpack.c.b16 %v2478, %v2475
    %v2521 = vpack.c.b16 %v2482, %v2479
    %v2522 = vpack.c.b16 %v2483, %v2480
    %v2523 = vpack.c.b16 %v2484, %v2481
    %v2524 = vpack.c.b16 %v2488, %v2485
    %v2525 = vpack.c.b16 %v2489, %v2486
    %v2526 = vpack.c.b16 %v2490, %v2487
    %v2527 = vpack.c.b16 %v2494, %v2491
    %v2528 = vpack.c.b16 %v2495, %v2492
    %v2529 = vpack.c.b16 %v2496, %v2493
    %v2530 = vpack.c.b16 %v2500, %v2497
    %v2531 = vpack.c.b16 %v2501, %v2498
    %v2532 = vpack.c.b16 %v2502, %v2499
    %v2533 = vpack.c.b16 %v2506, %v2503
    %v2534 = vpack.c.b16 %v2507, %v2504
    %v2535 = vpack.c.b16 %v2508, %v2505
    %v2536 = vpack.c.b16 %v2512, %v2509
    %v2537 = vpack.c.b16 %v2513, %v2510
    %v2538 = vpack.c.b16 %v2514, %v2511
    %2563 = vmatprep.subr.bf16.mxu0 %v2516
    %2564 = vmatpush1.bf16.msra.mxu0 %v2515
    %2565 = vmatprep.subr.bf16.mxu0 %v2519
    %2566 = vmatpush1.bf16.msra.mxu0 %v2518
    %2567 = vmatprep.subr.bf16.mxu0 %v2522
    %2568 = vmatpush1.bf16.msra.mxu0 %v2521
    %2569 = vmatprep.subr.bf16.mxu0 %v2525
    %2570 = vmatpush1.bf16.msra.mxu0 %v2524
    %2571 = vmatprep.subr.bf16.mxu0 %v2528
    %2572 = vmatpush1.bf16.msra.mxu0 %v2527
    %2573 = vmatprep.subr.bf16.mxu0 %v2531
    %2574 = vmatpush1.bf16.msra.mxu0 %v2530
    %2575 = vmatprep.subr.bf16.mxu0 %v2534
    %2576 = vmatpush1.bf16.msra.mxu0 %v2533
    %2577 = vmatprep.subr.bf16.mxu0 %v2537
    %2578 = vmatpush1.bf16.msra.mxu0 %v2536
    %2579 = vmatprep.subr.bf16.mxu0 0
    %2580 = vmatpush1.bf16.msra.mxu0 0
    %2581 = vmatprep.subr.bf16.mxu0 0
    %2582 = vmatpush1.bf16.msra.mxu0 0
    %2583 = vmatprep.subr.bf16.mxu0 0
    %2584 = vmatpush1.bf16.msra.mxu0 0
    %2585 = vmatprep.subr.bf16.mxu0 0
    %2586 = vmatpush1.bf16.msra.mxu0 0
    %2587 = vmatprep.subr.bf16.mxu0 0
    %2588 = vmatpush1.bf16.msra.mxu0 0
    %2589 = vmatprep.subr.bf16.mxu0 0
    %2590 = vmatpush1.bf16.msra.mxu0 0
    %2591 = vmatprep.subr.bf16.mxu0 0
    %2592 = vmatpush1.bf16.msra.mxu0 0
    %2593 = vmatprep.subr.bf16.mxu0 0
    %2594 = vmatpush1.bf16.msra.mxu0 0
    %2595 = vmatprep.mubr.bf16.mxu0 0
    %2596 = vmatmul.mubr.bf16.gmra.mrb[0].mxu0 %v2402
    %v2597 = vpop.f32.mrb[0].mxu0
    %v2598 = vadd.f32 %v537, %v2597
    %v2599 = vpop.f32.mrb[0].mxu0
    %v2600 = vadd.f32 %v541, %v2599
    %v2601 = vpop.f32.mrb[0].mxu0
    %v2602 = vpop.f32.mrb[0].mxu0
    %2603 = vdwg.mxu0
    %2604 = vmatprep.subr.bf16.mxu0 0
    %2605 = vmatpush1.bf16.msra.mxu0 %v2517
    %2606 = vmatprep.subr.bf16.mxu0 0
    %2607 = vmatpush1.bf16.msra.mxu0 %v2520
    %2608 = vmatprep.subr.bf16.mxu0 0
    %2609 = vmatpush1.bf16.msra.mxu0 %v2523
    %2610 = vmatprep.subr.bf16.mxu0 0
    %2611 = vmatpush1.bf16.msra.mxu0 %v2526
    %2612 = vmatprep.subr.bf16.mxu0 0
    %2613 = vmatpush1.bf16.msra.mxu0 %v2529
    %2614 = vmatprep.subr.bf16.mxu0 0
    %2615 = vmatpush1.bf16.msra.mxu0 %v2532
    %2616 = vmatprep.subr.bf16.mxu0 0
    %2617 = vmatpush1.bf16.msra.mxu0 %v2535
    %2618 = vmatprep.subr.bf16.mxu0 0
    %2619 = vmatpush1.bf16.msra.mxu0 %v2538
    %2620 = vmatprep.subr.bf16.mxu0 0
    %2621 = vmatpush1.bf16.msra.mxu0 0
    %2622 = vmatprep.subr.bf16.mxu0 0
    %2623 = vmatpush1.bf16.msra.mxu0 0
    %2624 = vmatprep.subr.bf16.mxu0 0
    %2625 = vmatpush1.bf16.msra.mxu0 0
    %2626 = vmatprep.subr.bf16.mxu0 0
    %2627 = vmatpush1.bf16.msra.mxu0 0
    %2628 = vmatprep.subr.bf16.mxu0 0
    %2629 = vmatpush1.bf16.msra.mxu0 0
    %2630 = vmatprep.subr.bf16.mxu0 0
    %2631 = vmatpush1.bf16.msra.mxu0 0
    %2632 = vmatprep.subr.bf16.mxu0 0
    %2633 = vmatpush1.bf16.msra.mxu0 0
    %2634 = vmatprep.subr.bf16.mxu0 0
    %2635 = vmatpush1.bf16.msra.mxu0 0
    %2636 = vmatprep.mubr.bf16.mxu0 0
    %2637 = vmatmul.mubr.bf16.gmra.mrb[0].mxu0 %v2402
    %v2638 = vpop.f32.mrb[0].mxu0
    %v2639 = vadd.f32 %v545, %v2638
    %v2640 = vpop.f32.mrb[0].mxu0
    %v2641 = vpop.f32.mrb[0].mxu0
    %v2642 = vpop.f32.mrb[0].mxu0
    %2643 = vdwg.mxu0
    %v2644 = vpack.c.bf16 %v2121, %v2121
    %v2645 = vld [vmem:[%s1073] sm:$0xff]
    %v2646 = vld [vmem:[%s1073 + $0x8] sm:$0xf]
    %v2647 = vld [vmem:[%s1073 + $0xc] sm:$0xff]
    %v2648 = vld [vmem:[%s1073 + $0x14] sm:$0xf]
    %v2649 = vld [vmem:[%s1073 + $0x18] sm:$0xff]
    %v2650 = vld [vmem:[%s1073 + $0x20] sm:$0xf]
    %v2651 = vld [vmem:[%s1073 + $0x24] sm:$0xff]
    %v2652 = vld [vmem:[%s1073 + $0x2c] sm:$0xf]
    %v2653 = vld [vmem:[%s1073 + $0x30] sm:$0xff]
    %v2654 = vld [vmem:[%s1073 + $0x38] sm:$0xf]
    %v2655 = vld [vmem:[%s1073 + $0x3c] sm:$0xff]
    %v2656 = vld [vmem:[%s1073 + $0x44] sm:$0xf]
    %v2657 = vld [vmem:[%s1073 + $0x48] sm:$0xff]
    %v2658 = vld [vmem:[%s1073 + $0x50] sm:$0xf]
    %v2659 = vld [vmem:[%s1073 + $0x54] sm:$0xff]
    %v2660 = vld [vmem:[%s1073 + $0x5c] sm:$0xf]
    %v2661 = vld [vmem:[%s1073 + $0x60] sm:$0xff]
    %v2662 = vld [vmem:[%s1073 + $0x68] sm:$0xf]
    %v2663 = vld [vmem:[%s1073 + $0x6c] sm:$0xff]
    %v2664 = vld [vmem:[%s1073 + $0x74] sm:$0xf]
    %v2665 = vld [vmem:[%s1073 + $0x78] sm:$0xff]
    %v2666 = vld [vmem:[%s1073 + $0x80] sm:$0xf]
    %v2667 = vld [vmem:[%s1073 + $0x84] sm:$0xff]
    %v2668 = vld [vmem:[%s1073 + $0x8c] sm:$0xf]
    %v2669 = vld [vmem:[%s1073 + $0x90] sm:$0xff]
    %v2670 = vld [vmem:[%s1073 + $0x98] sm:$0xf]
    %v2671 = vld [vmem:[%s1073 + $0x9c] sm:$0xff]
    %v2672 = vld [vmem:[%s1073 + $0xa4] sm:$0xf]
    %v2673 = vld [vmem:[%s1073 + $0xa8] sm:$0xff]
    %v2674 = vld [vmem:[%s1073 + $0xb0] sm:$0xf]
    %v2675 = vld [vmem:[%s1073 + $0xb4] sm:$0xff]
    %v2676 = vld [vmem:[%s1073 + $0xbc] sm:$0xf]
    %v2709 = vunpack.c.l.b16 %v2645
    %v2710 = vunpack.c.h.b16 %v2645
    %v2711 = vunpack.c.l.b16 %v2646
    %v2712 = vunpack.c.l.b16 %v2647
    %v2713 = vunpack.c.h.b16 %v2647
    %v2714 = vunpack.c.l.b16 %v2648
    %v2715 = vunpack.c.l.b16 %v2649
    %v2716 = vunpack.c.h.b16 %v2649
    %v2717 = vunpack.c.l.b16 %v2650
    %v2718 = vunpack.c.l.b16 %v2651
    %v2719 = vunpack.c.h.b16 %v2651
    %v2720 = vunpack.c.l.b16 %v2652
    %v2721 = vunpack.c.l.b16 %v2653
    %v2722 = vunpack.c.h.b16 %v2653
    %v2723 = vunpack.c.l.b16 %v2654
    %v2724 = vunpack.c.l.b16 %v2655
    %v2725 = vunpack.c.h.b16 %v2655
    %v2726 = vunpack.c.l.b16 %v2656
    %v2727 = vunpack.c.l.b16 %v2657
    %v2728 = vunpack.c.h.b16 %v2657
    %v2729 = vunpack.c.l.b16 %v2658
    %v2730 = vunpack.c.l.b16 %v2659
    %v2731 = vunpack.c.h.b16 %v2659
    %v2732 = vunpack.c.l.b16 %v2660
    %v2733 = vunpack.c.l.b16 %v2661
    %v2734 = vunpack.c.h.b16 %v2661
    %v2735 = vunpack.c.l.b16 %v2662
    %v2736 = vunpack.c.l.b16 %v2663
    %v2737 = vunpack.c.h.b16 %v2663
    %v2738 = vunpack.c.l.b16 %v2664
    %v2739 = vunpack.c.l.b16 %v2665
    %v2740 = vunpack.c.h.b16 %v2665
    %v2741 = vunpack.c.l.b16 %v2666
    %v2742 = vunpack.c.l.b16 %v2667
    %v2743 = vunpack.c.h.b16 %v2667
    %v2744 = vunpack.c.l.b16 %v2668
    %v2745 = vunpack.c.l.b16 %v2669
    %v2746 = vunpack.c.h.b16 %v2669
    %v2747 = vunpack.c.l.b16 %v2670
    %v2748 = vunpack.c.l.b16 %v2671
    %v2749 = vunpack.c.h.b16 %v2671
    %v2750 = vunpack.c.l.b16 %v2672
    %v2751 = vunpack.c.l.b16 %v2673
    %v2752 = vunpack.c.h.b16 %v2673
    %v2753 = vunpack.c.l.b16 %v2674
    %v2754 = vunpack.c.l.b16 %v2675
    %v2755 = vunpack.c.h.b16 %v2675
    %v2756 = vunpack.c.l.b16 %v2676
    %v2757 = vpack.c.b16 %v2712, %v2709
    %v2758 = vpack.c.b16 %v2713, %v2710
    %v2759 = vpack.c.b16 %v2714, %v2711
    %v2760 = vpack.c.b16 %v2718, %v2715
    %v2761 = vpack.c.b16 %v2719, %v2716
    %v2762 = vpack.c.b16 %v2720, %v2717
    %v2763 = vpack.c.b16 %v2724, %v2721
    %v2764 = vpack.c.b16 %v2725, %v2722
    %v2765 = vpack.c.b16 %v2726, %v2723
    %v2766 = vpack.c.b16 %v2730, %v2727
    %v2767 = vpack.c.b16 %v2731, %v2728
    %v2768 = vpack.c.b16 %v2732, %v2729
    %v2769 = vpack.c.b16 %v2736, %v2733
    %v2770 = vpack.c.b16 %v2737, %v2734
    %v2771 = vpack.c.b16 %v2738, %v2735
    %v2772 = vpack.c.b16 %v2742, %v2739
    %v2773 = vpack.c.b16 %v2743, %v2740
    %v2774 = vpack.c.b16 %v2744, %v2741
    %v2775 = vpack.c.b16 %v2748, %v2745
    %v2776 = vpack.c.b16 %v2749, %v2746
    %v2777 = vpack.c.b16 %v2750, %v2747
    %v2778 = vpack.c.b16 %v2754, %v2751
    %v2779 = vpack.c.b16 %v2755, %v2752
    %v2780 = vpack.c.b16 %v2756, %v2753
    %2805 = vmatprep.subr.bf16.mxu0 %v2758
    %2806 = vmatpush1.bf16.msra.mxu0 %v2757
    %2807 = vmatprep.subr.bf16.mxu0 %v2761
    %2808 = vmatpush1.bf16.msra.mxu0 %v2760
    %2809 = vmatprep.subr.bf16.mxu0 %v2764
    %2810 = vmatpush1.bf16.msra.mxu0 %v2763
    %2811 = vmatprep.subr.bf16.mxu0 %v2767
    %2812 = vmatpush1.bf16.msra.mxu0 %v2766
    %2813 = vmatprep.subr.bf16.mxu0 %v2770
    %2814 = vmatpush1.bf16.msra.mxu0 %v2769
    %2815 = vmatprep.subr.bf16.mxu0 %v2773
    %2816 = vmatpush1.bf16.msra.mxu0 %v2772
    %2817 = vmatprep.subr.bf16.mxu0 %v2776
    %2818 = vmatpush1.bf16.msra.mxu0 %v2775
    %2819 = vmatprep.subr.bf16.mxu0 %v2779
    %2820 = vmatpush1.bf16.msra.mxu0 %v2778
    %2821 = vmatprep.subr.bf16.mxu0 0
    %2822 = vmatpush1.bf16.msra.mxu0 0
    %2823 = vmatprep.subr.bf16.mxu0 0
    %2824 = vmatpush1.bf16.msra.mxu0 0
    %2825 = vmatprep.subr.bf16.mxu0 0
    %2826 = vmatpush1.bf16.msra.mxu0 0
    %2827 = vmatprep.subr.bf16.mxu0 0
    %2828 = vmatpush1.bf16.msra.mxu0 0
    %2829 = vmatprep.subr.bf16.mxu0 0
    %2830 = vmatpush1.bf16.msra.mxu0 0
    %2831 = vmatprep.subr.bf16.mxu0 0
    %2832 = vmatpush1.bf16.msra.mxu0 0
    %2833 = vmatprep.subr.bf16.mxu0 0
    %2834 = vmatpush1.bf16.msra.mxu0 0
    %2835 = vmatprep.subr.bf16.mxu0 0
    %2836 = vmatpush1.bf16.msra.mxu0 0
    %2837 = vmatprep.mubr.bf16.mxu0 0
    %2838 = vmatmul.mubr.bf16.gmra.mrb[0].mxu0 %v2644
    %v2839 = vpop.f32.mrb[0].mxu0
    %v2840 = vadd.f32 %v519, %v2839
    %v2841 = vpop.f32.mrb[0].mxu0
    %v2842 = vadd.f32 %v523, %v2841
    %v2843 = vpop.f32.mrb[0].mxu0
    %v2844 = vpop.f32.mrb[0].mxu0
    %2845 = vdwg.mxu0
    %2846 = vmatprep.subr.bf16.mxu0 0
    %2847 = vmatpush1.bf16.msra.mxu0 %v2759
    %2848 = vmatprep.subr.bf16.mxu0 0
    %2849 = vmatpush1.bf16.msra.mxu0 %v2762
    %2850 = vmatprep.subr.bf16.mxu0 0
    %2851 = vmatpush1.bf16.msra.mxu0 %v2765
    %2852 = vmatprep.subr.bf16.mxu0 0
    %2853 = vmatpush1.bf16.msra.mxu0 %v2768
    %2854 = vmatprep.subr.bf16.mxu0 0
    %2855 = vmatpush1.bf16.msra.mxu0 %v2771
    %2856 = vmatprep.subr.bf16.mxu0 0
    %2857 = vmatpush1.bf16.msra.mxu0 %v2774
    %2858 = vmatprep.subr.bf16.mxu0 0
    %2859 = vmatpush1.bf16.msra.mxu0 %v2777
    %2860 = vmatprep.subr.bf16.mxu0 0
    %2861 = vmatpush1.bf16.msra.mxu0 %v2780
    %2862 = vmatprep.subr.bf16.mxu0 0
    %2863 = vmatpush1.bf16.msra.mxu0 0
    %2864 = vmatprep.subr.bf16.mxu0 0
    %2865 = vmatpush1.bf16.msra.mxu0 0
    %2866 = vmatprep.subr.bf16.mxu0 0
    %2867 = vmatpush1.bf16.msra.mxu0 0
    %2868 = vmatprep.subr.bf16.mxu0 0
    %2869 = vmatpush1.bf16.msra.mxu0 0
    %2870 = vmatprep.subr.bf16.mxu0 0
    %2871 = vmatpush1.bf16.msra.mxu0 0
    %2872 = vmatprep.subr.bf16.mxu0 0
    %2873 = vmatpush1.bf16.msra.mxu0 0
    %2874 = vmatprep.subr.bf16.mxu0 0
    %2875 = vmatpush1.bf16.msra.mxu0 0
    %2876 = vmatprep.subr.bf16.mxu0 0
    %2877 = vmatpush1.bf16.msra.mxu0 0
    %2878 = vmatprep.mubr.bf16.mxu0 0
    %2879 = vmatmul.mubr.bf16.gmra.mrb[0].mxu0 %v2644
    %v2880 = vpop.f32.mrb[0].mxu0
    %v2881 = vadd.f32 %v527, %v2880
    %v2882 = vpop.f32.mrb[0].mxu0
    %v2883 = vpop.f32.mrb[0].mxu0
    %v2884 = vpop.f32.mrb[0].mxu0
    %2885 = vdwg.mxu0
    %v2886 = vadd.f32 %v2598, %v2840
    %v2887 = vxor.u32 %v2886, 2147483648
    %v2888 = vmul.f32 %v2887, 1.442695
    %v2889 = vpow.pop %v2888
    %v2890 = vadd.f32 %v2889, 1.0
    %v2891 = vrcp.pop %v2890
    %v2892 = vmul.f32 1.0, %v2891
    %v2893 = vadd.f32 %v2600, %v2842
    %v2894 = vxor.u32 %v2893, 2147483648
    %v2895 = vmul.f32 %v2894, 1.442695
    %v2896 = vpow.pop %v2895
    %v2897 = vadd.f32 %v2896, 1.0
    %v2898 = vrcp.pop %v2897
    %v2899 = vmul.f32 1.0, %v2898
    %v2900 = vmul.f32 %v2892, %v2881
    %v2901 = vadd.f32 %v2639, %v2900
    %v2902 = vtanh.pop %v2901
    %v2903 = vsub.f32 1.0, %v2899
    %v2904 = vmul.f32 %v2903, %v2902
    %v2905 = vmul.f32 %v2899, %v2121
    %v2906 = vadd.f32 %v2904, %v2905
    %v2907 = vsel %vm2399, %v2906, %v2121
    %v2908 = vsel %vm2399, %v2906, 0.0
    %s2909 = scalar_lea.vmem [#allocation15], 16
    %2910 = vst [vmem:[%s2909] sm:$0xff] %v2908
    %vm2911 = vcmp.gt.s32.totalorder %v495, 3
    %s2912 = smul.u32 3, 3
    %s2913 = smul.addr %s2912, 8
    %s2914 = scalar_lea.vmem [#allocation2], %s2913
    %v2915 = vld [vmem:[%s2914] sm:$0xff]
    %v2916 = vld [vmem:[%s2914 + $0x8] sm:$0xff]
    %v2917 = vld [vmem:[%s2914 + $0x10] sm:$0xff]
    %v2918 = vpack.c.bf16 %v2400, %v2400
    %v2919 = vld [vmem:[#allocation11] sm:$0xff]
    %v2920 = vld [vmem:[#allocation11 + $0x8] sm:$0xf]
    %v2921 = vld [vmem:[#allocation11 + $0xc] sm:$0xff]
    %v2922 = vld [vmem:[#allocation11 + $0x14] sm:$0xf]
    %v2923 = vld [vmem:[#allocation11 + $0x18] sm:$0xff]
    %v2924 = vld [vmem:[#allocation11 + $0x20] sm:$0xf]
    %v2925 = vld [vmem:[#allocation11 + $0x24] sm:$0xff]
    %v2926 = vld [vmem:[#allocation11 + $0x2c] sm:$0xf]
    %v2927 = vld [vmem:[#allocation11 + $0x30] sm:$0xff]
    %v2928 = vld [vmem:[#allocation11 + $0x38] sm:$0xf]
    %v2929 = vld [vmem:[#allocation11 + $0x3c] sm:$0xff]
    %v2930 = vld [vmem:[#allocation11 + $0x44] sm:$0xf]
    %v2931 = vld [vmem:[#allocation11 + $0x48] sm:$0xff]
    %v2932 = vld [vmem:[#allocation11 + $0x50] sm:$0xf]
    %v2933 = vld [vmem:[#allocation11 + $0x54] sm:$0xff]
    %v2934 = vld [vmem:[#allocation11 + $0x5c] sm:$0xf]
    %v2935 = vld [vmem:[#allocation11 + $0x60] sm:$0xff]
    %v2936 = vld [vmem:[#allocation11 + $0x68] sm:$0xf]
    %v2937 = vld [vmem:[#allocation11 + $0x6c] sm:$0xff]
    %v2938 = vld [vmem:[#allocation11 + $0x74] sm:$0xf]
    %v2939 = vld [vmem:[#allocation11 + $0x78] sm:$0xff]
    %v2940 = vld [vmem:[#allocation11 + $0x80] sm:$0xf]
    %v2941 = vld [vmem:[#allocation11 + $0x84] sm:$0xff]
    %v2942 = vld [vmem:[#allocation11 + $0x8c] sm:$0xf]
    %v2943 = vld [vmem:[#allocation11 + $0x90] sm:$0xff]
    %v2944 = vld [vmem:[#allocation11 + $0x98] sm:$0xf]
    %v2945 = vld [vmem:[#allocation11 + $0x9c] sm:$0xff]
    %v2946 = vld [vmem:[#allocation11 + $0xa4] sm:$0xf]
    %v2947 = vld [vmem:[#allocation11 + $0xa8] sm:$0xff]
    %v2948 = vld [vmem:[#allocation11 + $0xb0] sm:$0xf]
    %v2949 = vld [vmem:[#allocation11 + $0xb4] sm:$0xff]
    %v2950 = vld [vmem:[#allocation11 + $0xbc] sm:$0xf]
    %v2983 = vunpack.c.l.b16 %v2919
    %v2984 = vunpack.c.h.b16 %v2919
    %v2985 = vunpack.c.l.b16 %v2920
    %v2986 = vunpack.c.l.b16 %v2921
    %v2987 = vunpack.c.h.b16 %v2921
    %v2988 = vunpack.c.l.b16 %v2922
    %v2989 = vunpack.c.l.b16 %v2923
    %v2990 = vunpack.c.h.b16 %v2923
    %v2991 = vunpack.c.l.b16 %v2924
    %v2992 = vunpack.c.l.b16 %v2925
    %v2993 = vunpack.c.h.b16 %v2925
    %v2994 = vunpack.c.l.b16 %v2926
    %v2995 = vunpack.c.l.b16 %v2927
    %v2996 = vunpack.c.h.b16 %v2927
    %v2997 = vunpack.c.l.b16 %v2928
    %v2998 = vunpack.c.l.b16 %v2929
    %v2999 = vunpack.c.h.b16 %v2929
    %v3000 = vunpack.c.l.b16 %v2930
    %v3001 = vunpack.c.l.b16 %v2931
    %v3002 = vunpack.c.h.b16 %v2931
    %v3003 = vunpack.c.l.b16 %v2932
    %v3004 = vunpack.c.l.b16 %v2933
    %v3005 = vunpack.c.h.b16 %v2933
    %v3006 = vunpack.c.l.b16 %v2934
    %v3007 = vunpack.c.l.b16 %v2935
    %v3008 = vunpack.c.h.b16 %v2935
    %v3009 = vunpack.c.l.b16 %v2936
    %v3010 = vunpack.c.l.b16 %v2937
    %v3011 = vunpack.c.h.b16 %v2937
    %v3012 = vunpack.c.l.b16 %v2938
    %v3013 = vunpack.c.l.b16 %v2939
    %v3014 = vunpack.c.h.b16 %v2939
    %v3015 = vunpack.c.l.b16 %v2940
    %v3016 = vunpack.c.l.b16 %v2941
    %v3017 = vunpack.c.h.b16 %v2941
    %v3018 = vunpack.c.l.b16 %v2942
    %v3019 = vunpack.c.l.b16 %v2943
    %v3020 = vunpack.c.h.b16 %v2943
    %v3021 = vunpack.c.l.b16 %v2944
    %v3022 = vunpack.c.l.b16 %v2945
    %v3023 = vunpack.c.h.b16 %v2945
    %v3024 = vunpack.c.l.b16 %v2946
    %v3025 = vunpack.c.l.b16 %v2947
    %v3026 = vunpack.c.h.b16 %v2947
    %v3027 = vunpack.c.l.b16 %v2948
    %v3028 = vunpack.c.l.b16 %v2949
    %v3029 = vunpack.c.h.b16 %v2949
    %v3030 = vunpack.c.l.b16 %v2950
    %v3031 = vpack.c.b16 %v2986, %v2983
    %v3032 = vpack.c.b16 %v2987, %v2984
    %v3033 = vpack.c.b16 %v2988, %v2985
    %v3034 = vpack.c.b16 %v2992, %v2989
    %v3035 = vpack.c.b16 %v2993, %v2990
    %v3036 = vpack.c.b16 %v2994, %v2991
    %v3037 = vpack.c.b16 %v2998, %v2995
    %v3038 = vpack.c.b16 %v2999, %v2996
    %v3039 = vpack.c.b16 %v3000, %v2997
    %v3040 = vpack.c.b16 %v3004, %v3001
    %v3041 = vpack.c.b16 %v3005, %v3002
    %v3042 = vpack.c.b16 %v3006, %v3003
    %v3043 = vpack.c.b16 %v3010, %v3007
    %v3044 = vpack.c.b16 %v3011, %v3008
    %v3045 = vpack.c.b16 %v3012, %v3009
    %v3046 = vpack.c.b16 %v3016, %v3013
    %v3047 = vpack.c.b16 %v3017, %v3014
    %v3048 = vpack.c.b16 %v3018, %v3015
    %v3049 = vpack.c.b16 %v3022, %v3019
    %v3050 = vpack.c.b16 %v3023, %v3020
    %v3051 = vpack.c.b16 %v3024, %v3021
    %v3052 = vpack.c.b16 %v3028, %v3025
    %v3053 = vpack.c.b16 %v3029, %v3026
    %v3054 = vpack.c.b16 %v3030, %v3027
    %3079 = vmatprep.subr.bf16.mxu0 %v3032
    %3080 = vmatpush1.bf16.msra.mxu0 %v3031
    %3081 = vmatprep.subr.bf16.mxu0 %v3035
    %3082 = vmatpush1.bf16.msra.mxu0 %v3034
    %3083 = vmatprep.subr.bf16.mxu0 %v3038
    %3084 = vmatpush1.bf16.msra.mxu0 %v3037
    %3085 = vmatprep.subr.bf16.mxu0 %v3041
    %3086 = vmatpush1.bf16.msra.mxu0 %v3040
    %3087 = vmatprep.subr.bf16.mxu0 %v3044
    %3088 = vmatpush1.bf16.msra.mxu0 %v3043
    %3089 = vmatprep.subr.bf16.mxu0 %v3047
    %3090 = vmatpush1.bf16.msra.mxu0 %v3046
    %3091 = vmatprep.subr.bf16.mxu0 %v3050
    %3092 = vmatpush1.bf16.msra.mxu0 %v3049
    %3093 = vmatprep.subr.bf16.mxu0 %v3053
    %3094 = vmatpush1.bf16.msra.mxu0 %v3052
    %3095 = vmatprep.subr.bf16.mxu0 0
    %3096 = vmatpush1.bf16.msra.mxu0 0
    %3097 = vmatprep.subr.bf16.mxu0 0
    %3098 = vmatpush1.bf16.msra.mxu0 0
    %3099 = vmatprep.subr.bf16.mxu0 0
    %3100 = vmatpush1.bf16.msra.mxu0 0
    %3101 = vmatprep.subr.bf16.mxu0 0
    %3102 = vmatpush1.bf16.msra.mxu0 0
    %3103 = vmatprep.subr.bf16.mxu0 0
    %3104 = vmatpush1.bf16.msra.mxu0 0
    %3105 = vmatprep.subr.bf16.mxu0 0
    %3106 = vmatpush1.bf16.msra.mxu0 0
    %3107 = vmatprep.subr.bf16.mxu0 0
    %3108 = vmatpush1.bf16.msra.mxu0 0
    %3109 = vmatprep.subr.bf16.mxu0 0
    %3110 = vmatpush1.bf16.msra.mxu0 0
    %3111 = vmatprep.mubr.bf16.mxu0 0
    %3112 = vmatmul.mubr.bf16.gmra.mrb[0].mxu0 %v2918
    %v3113 = vpop.f32.mrb[0].mxu0
    %v3114 = vadd.f32 %v501, %v3113
    %v3115 = vpop.f32.mrb[0].mxu0
    %v3116 = vadd.f32 %v505, %v3115
    %v3117 = vpop.f32.mrb[0].mxu0
    %v3118 = vpop.f32.mrb[0].mxu0
    %3119 = vdwg.mxu0
    %3120 = vmatprep.subr.bf16.mxu0 0
    %3121 = vmatpush1.bf16.msra.mxu0 %v3033
    %3122 = vmatprep.subr.bf16.mxu0 0
    %3123 = vmatpush1.bf16.msra.mxu0 %v3036
    %3124 = vmatprep.subr.bf16.mxu0 0
    %3125 = vmatpush1.bf16.msra.mxu0 %v3039
    %3126 = vmatprep.subr.bf16.mxu0 0
    %3127 = vmatpush1.bf16.msra.mxu0 %v3042
    %3128 = vmatprep.subr.bf16.mxu0 0
    %3129 = vmatpush1.bf16.msra.mxu0 %v3045
    %3130 = vmatprep.subr.bf16.mxu0 0
    %3131 = vmatpush1.bf16.msra.mxu0 %v3048
    %3132 = vmatprep.subr.bf16.mxu0 0
    %3133 = vmatpush1.bf16.msra.mxu0 %v3051
    %3134 = vmatprep.subr.bf16.mxu0 0
    %3135 = vmatpush1.bf16.msra.mxu0 %v3054
    %3136 = vmatprep.subr.bf16.mxu0 0
    %3137 = vmatpush1.bf16.msra.mxu0 0
    %3138 = vmatprep.subr.bf16.mxu0 0
    %3139 = vmatpush1.bf16.msra.mxu0 0
    %3140 = vmatprep.subr.bf16.mxu0 0
    %3141 = vmatpush1.bf16.msra.mxu0 0
    %3142 = vmatprep.subr.bf16.mxu0 0
    %3143 = vmatpush1.bf16.msra.mxu0 0
    %3144 = vmatprep.subr.bf16.mxu0 0
    %3145 = vmatpush1.bf16.msra.mxu0 0
    %3146 = vmatprep.subr.bf16.mxu0 0
    %3147 = vmatpush1.bf16.msra.mxu0 0
    %3148 = vmatprep.subr.bf16.mxu0 0
    %3149 = vmatpush1.bf16.msra.mxu0 0
    %3150 = vmatprep.subr.bf16.mxu0 0
    %3151 = vmatpush1.bf16.msra.mxu0 0
    %3152 = vmatprep.mubr.bf16.mxu0 0
    %3153 = vmatmul.mubr.bf16.gmra.mrb[0].mxu0 %v2918
    %v3154 = vpop.f32.mrb[0].mxu0
    %v3155 = vadd.f32 %v509, %v3154
    %v3156 = vpop.f32.mrb[0].mxu0
    %v3157 = vpop.f32.mrb[0].mxu0
    %v3158 = vpop.f32.mrb[0].mxu0
    %3159 = vdwg.mxu0
    %v3160 = vadd.f32 %v2915, %v3114
    %v3161 = vxor.u32 %v3160, 2147483648
    %v3162 = vmul.f32 %v3161, 1.442695
    %v3163 = vpow.pop %v3162
    %v3164 = vadd.f32 %v3163, 1.0
    %v3165 = vrcp.pop %v3164
    %v3166 = vmul.f32 1.0, %v3165
    %v3167 = vadd.f32 %v2916, %v3116
    %v3168 = vxor.u32 %v3167, 2147483648
    %v3169 = vmul.f32 %v3168, 1.442695
    %v3170 = vpow.pop %v3169
    %v3171 = vadd.f32 %v3170, 1.0
    %v3172 = vrcp.pop %v3171
    %v3173 = vmul.f32 1.0, %v3172
    %v3174 = vmul.f32 %v3166, %v3155
    %v3175 = vadd.f32 %v2917, %v3174
    %v3176 = vtanh.pop %v3175
    %v3177 = vsub.f32 1.0, %v3173
    %v3178 = vmul.f32 %v3177, %v3176
    %v3179 = vmul.f32 %v3173, %v2400
    %v3180 = vadd.f32 %v3178, %v3179
    %v3181 = vsel %vm2911, 1, 0
    %3182 = vset.pattern.permute.xlu0 0
    %3183 = vperm.xlu0 %3182, %v3181
    %v3184 = vpop.permute.xlu0 %3183
    %vm3185 = vcmp.eq.s32.totalorder %v3184, 1
    %v3186 = vsel %vm3185, %v3180, %v2400
    %v3187 = vsel %vm3185, %v3180, 0.0
    %v3188 = vpack.c.bf16 %v3187, %v3187
    %v3189 = vld [vmem:[%s830] sm:$0xff]
    %v3190 = vld [vmem:[%s830 + $0x8] sm:$0xf]
    %v3191 = vld [vmem:[%s830 + $0xc] sm:$0xff]
    %v3192 = vld [vmem:[%s830 + $0x14] sm:$0xf]
    %v3193 = vld [vmem:[%s830 + $0x18] sm:$0xff]
    %v3194 = vld [vmem:[%s830 + $0x20] sm:$0xf]
    %v3195 = vld [vmem:[%s830 + $0x24] sm:$0xff]
    %v3196 = vld [vmem:[%s830 + $0x2c] sm:$0xf]
    %v3197 = vld [vmem:[%s830 + $0x30] sm:$0xff]
    %v3198 = vld [vmem:[%s830 + $0x38] sm:$0xf]
    %v3199 = vld [vmem:[%s830 + $0x3c] sm:$0xff]
    %v3200 = vld [vmem:[%s830 + $0x44] sm:$0xf]
    %v3201 = vld [vmem:[%s830 + $0x48] sm:$0xff]
    %v3202 = vld [vmem:[%s830 + $0x50] sm:$0xf]
    %v3203 = vld [vmem:[%s830 + $0x54] sm:$0xff]
    %v3204 = vld [vmem:[%s830 + $0x5c] sm:$0xf]
    %v3205 = vld [vmem:[%s830 + $0x60] sm:$0xff]
    %v3206 = vld [vmem:[%s830 + $0x68] sm:$0xf]
    %v3207 = vld [vmem:[%s830 + $0x6c] sm:$0xff]
    %v3208 = vld [vmem:[%s830 + $0x74] sm:$0xf]
    %v3209 = vld [vmem:[%s830 + $0x78] sm:$0xff]
    %v3210 = vld [vmem:[%s830 + $0x80] sm:$0xf]
    %v3211 = vld [vmem:[%s830 + $0x84] sm:$0xff]
    %v3212 = vld [vmem:[%s830 + $0x8c] sm:$0xf]
    %v3213 = vld [vmem:[%s830 + $0x90] sm:$0xff]
    %v3214 = vld [vmem:[%s830 + $0x98] sm:$0xf]
    %v3215 = vld [vmem:[%s830 + $0x9c] sm:$0xff]
    %v3216 = vld [vmem:[%s830 + $0xa4] sm:$0xf]
    %v3217 = vld [vmem:[%s830 + $0xa8] sm:$0xff]
    %v3218 = vld [vmem:[%s830 + $0xb0] sm:$0xf]
    %v3219 = vld [vmem:[%s830 + $0xb4] sm:$0xff]
    %v3220 = vld [vmem:[%s830 + $0xbc] sm:$0xf]
    %v3253 = vunpack.c.l.b16 %v3189
    %v3254 = vunpack.c.h.b16 %v3189
    %v3255 = vunpack.c.l.b16 %v3190
    %v3256 = vunpack.c.l.b16 %v3191
    %v3257 = vunpack.c.h.b16 %v3191
    %v3258 = vunpack.c.l.b16 %v3192
    %v3259 = vunpack.c.l.b16 %v3193
    %v3260 = vunpack.c.h.b16 %v3193
    %v3261 = vunpack.c.l.b16 %v3194
    %v3262 = vunpack.c.l.b16 %v3195
    %v3263 = vunpack.c.h.b16 %v3195
    %v3264 = vunpack.c.l.b16 %v3196
    %v3265 = vunpack.c.l.b16 %v3197
    %v3266 = vunpack.c.h.b16 %v3197
    %v3267 = vunpack.c.l.b16 %v3198
    %v3268 = vunpack.c.l.b16 %v3199
    %v3269 = vunpack.c.h.b16 %v3199
    %v3270 = vunpack.c.l.b16 %v3200
    %v3271 = vunpack.c.l.b16 %v3201
    %v3272 = vunpack.c.h.b16 %v3201
    %v3273 = vunpack.c.l.b16 %v3202
    %v3274 = vunpack.c.l.b16 %v3203
    %v3275 = vunpack.c.h.b16 %v3203
    %v3276 = vunpack.c.l.b16 %v3204
    %v3277 = vunpack.c.l.b16 %v3205
    %v3278 = vunpack.c.h.b16 %v3205
    %v3279 = vunpack.c.l.b16 %v3206
    %v3280 = vunpack.c.l.b16 %v3207
    %v3281 = vunpack.c.h.b16 %v3207
    %v3282 = vunpack.c.l.b16 %v3208
    %v3283 = vunpack.c.l.b16 %v3209
    %v3284 = vunpack.c.h.b16 %v3209
    %v3285 = vunpack.c.l.b16 %v3210
    %v3286 = vunpack.c.l.b16 %v3211
    %v3287 = vunpack.c.h.b16 %v3211
    %v3288 = vunpack.c.l.b16 %v3212
    %v3289 = vunpack.c.l.b16 %v3213
    %v3290 = vunpack.c.h.b16 %v3213
    %v3291 = vunpack.c.l.b16 %v3214
    %v3292 = vunpack.c.l.b16 %v3215
    %v3293 = vunpack.c.h.b16 %v3215
    %v3294 = vunpack.c.l.b16 %v3216
    %v3295 = vunpack.c.l.b16 %v3217
    %v3296 = vunpack.c.h.b16 %v3217
    %v3297 = vunpack.c.l.b16 %v3218
    %v3298 = vunpack.c.l.b16 %v3219
    %v3299 = vunpack.c.h.b16 %v3219
    %v3300 = vunpack.c.l.b16 %v3220
    %v3301 = vpack.c.b16 %v3256, %v3253
    %v3302 = vpack.c.b16 %v3257, %v3254
    %v3303 = vpack.c.b16 %v3258, %v3255
    %v3304 = vpack.c.b16 %v3262, %v3259
    %v3305 = vpack.c.b16 %v3263, %v3260
    %v3306 = vpack.c.b16 %v3264, %v3261
    %v3307 = vpack.c.b16 %v3268, %v3265
    %v3308 = vpack.c.b16 %v3269, %v3266
    %v3309 = vpack.c.b16 %v3270, %v3267
    %v3310 = vpack.c.b16 %v3274, %v3271
    %v3311 = vpack.c.b16 %v3275, %v3272
    %v3312 = vpack.c.b16 %v3276, %v3273
    %v3313 = vpack.c.b16 %v3280, %v3277
    %v3314 = vpack.c.b16 %v3281, %v3278
    %v3315 = vpack.c.b16 %v3282, %v3279
    %v3316 = vpack.c.b16 %v3286, %v3283
    %v3317 = vpack.c.b16 %v3287, %v3284
    %v3318 = vpack.c.b16 %v3288, %v3285
    %v3319 = vpack.c.b16 %v3292, %v3289
    %v3320 = vpack.c.b16 %v3293, %v3290
    %v3321 = vpack.c.b16 %v3294, %v3291
    %v3322 = vpack.c.b16 %v3298, %v3295
    %v3323 = vpack.c.b16 %v3299, %v3296
    %v3324 = vpack.c.b16 %v3300, %v3297
    %3349 = vmatprep.subr.bf16.mxu0 %v3302
    %3350 = vmatpush1.bf16.msra.mxu0 %v3301
    %3351 = vmatprep.subr.bf16.mxu0 %v3305
    %3352 = vmatpush1.bf16.msra.mxu0 %v3304
    %3353 = vmatprep.subr.bf16.mxu0 %v3308
    %3354 = vmatpush1.bf16.msra.mxu0 %v3307
    %3355 = vmatprep.subr.bf16.mxu0 %v3311
    %3356 = vmatpush1.bf16.msra.mxu0 %v3310
    %3357 = vmatprep.subr.bf16.mxu0 %v3314
    %3358 = vmatpush1.bf16.msra.mxu0 %v3313
    %3359 = vmatprep.subr.bf16.mxu0 %v3317
    %3360 = vmatpush1.bf16.msra.mxu0 %v3316
    %3361 = vmatprep.subr.bf16.mxu0 %v3320
    %3362 = vmatpush1.bf16.msra.mxu0 %v3319
    %3363 = vmatprep.subr.bf16.mxu0 %v3323
    %3364 = vmatpush1.bf16.msra.mxu0 %v3322
    %3365 = vmatprep.subr.bf16.mxu0 0
    %3366 = vmatpush1.bf16.msra.mxu0 0
    %3367 = vmatprep.subr.bf16.mxu0 0
    %3368 = vmatpush1.bf16.msra.mxu0 0
    %3369 = vmatprep.subr.bf16.mxu0 0
    %3370 = vmatpush1.bf16.msra.mxu0 0
    %3371 = vmatprep.subr.bf16.mxu0 0
    %3372 = vmatpush1.bf16.msra.mxu0 0
    %3373 = vmatprep.subr.bf16.mxu0 0
    %3374 = vmatpush1.bf16.msra.mxu0 0
    %3375 = vmatprep.subr.bf16.mxu0 0
    %3376 = vmatpush1.bf16.msra.mxu0 0
    %3377 = vmatprep.subr.bf16.mxu0 0
    %3378 = vmatpush1.bf16.msra.mxu0 0
    %3379 = vmatprep.subr.bf16.mxu0 0
    %3380 = vmatpush1.bf16.msra.mxu0 0
    %3381 = vmatprep.mubr.bf16.mxu0 0
    %3382 = vmatmul.mubr.bf16.gmra.mrb[0].mxu0 %v3188
    %v3383 = vpop.f32.mrb[0].mxu0
    %v3384 = vadd.f32 %v537, %v3383
    %v3385 = vpop.f32.mrb[0].mxu0
    %v3386 = vadd.f32 %v541, %v3385
    %v3387 = vpop.f32.mrb[0].mxu0
    %v3388 = vpop.f32.mrb[0].mxu0
    %3389 = vdwg.mxu0
    %3390 = vmatprep.subr.bf16.mxu0 0
    %3391 = vmatpush1.bf16.msra.mxu0 %v3303
    %3392 = vmatprep.subr.bf16.mxu0 0
    %3393 = vmatpush1.bf16.msra.mxu0 %v3306
    %3394 = vmatprep.subr.bf16.mxu0 0
    %3395 = vmatpush1.bf16.msra.mxu0 %v3309
    %3396 = vmatprep.subr.bf16.mxu0 0
    %3397 = vmatpush1.bf16.msra.mxu0 %v3312
    %3398 = vmatprep.subr.bf16.mxu0 0
    %3399 = vmatpush1.bf16.msra.mxu0 %v3315
    %3400 = vmatprep.subr.bf16.mxu0 0
    %3401 = vmatpush1.bf16.msra.mxu0 %v3318
    %3402 = vmatprep.subr.bf16.mxu0 0
    %3403 = vmatpush1.bf16.msra.mxu0 %v3321
    %3404 = vmatprep.subr.bf16.mxu0 0
    %3405 = vmatpush1.bf16.msra.mxu0 %v3324
    %3406 = vmatprep.subr.bf16.mxu0 0
    %3407 = vmatpush1.bf16.msra.mxu0 0
    %3408 = vmatprep.subr.bf16.mxu0 0
    %3409 = vmatpush1.bf16.msra.mxu0 0
    %3410 = vmatprep.subr.bf16.mxu0 0
    %3411 = vmatpush1.bf16.msra.mxu0 0
    %3412 = vmatprep.subr.bf16.mxu0 0
    %3413 = vmatpush1.bf16.msra.mxu0 0
    %3414 = vmatprep.subr.bf16.mxu0 0
    %3415 = vmatpush1.bf16.msra.mxu0 0
    %3416 = vmatprep.subr.bf16.mxu0 0
    %3417 = vmatpush1.bf16.msra.mxu0 0
    %3418 = vmatprep.subr.bf16.mxu0 0
    %3419 = vmatpush1.bf16.msra.mxu0 0
    %3420 = vmatprep.subr.bf16.mxu0 0
    %3421 = vmatpush1.bf16.msra.mxu0 0
    %3422 = vmatprep.mubr.bf16.mxu0 0
    %3423 = vmatmul.mubr.bf16.gmra.mrb[0].mxu0 %v3188
    %v3424 = vpop.f32.mrb[0].mxu0
    %v3425 = vadd.f32 %v545, %v3424
    %v3426 = vpop.f32.mrb[0].mxu0
    %v3427 = vpop.f32.mrb[0].mxu0
    %v3428 = vpop.f32.mrb[0].mxu0
    %3429 = vdwg.mxu0
    %v3430 = vpack.c.bf16 %v2907, %v2907
    %v3431 = vld [vmem:[%s1073] sm:$0xff]
    %v3432 = vld [vmem:[%s1073 + $0x8] sm:$0xf]
    %v3433 = vld [vmem:[%s1073 + $0xc] sm:$0xff]
    %v3434 = vld [vmem:[%s1073 + $0x14] sm:$0xf]
    %v3435 = vld [vmem:[%s1073 + $0x18] sm:$0xff]
    %v3436 = vld [vmem:[%s1073 + $0x20] sm:$0xf]
    %v3437 = vld [vmem:[%s1073 + $0x24] sm:$0xff]
    %v3438 = vld [vmem:[%s1073 + $0x2c] sm:$0xf]
    %v3439 = vld [vmem:[%s1073 + $0x30] sm:$0xff]
    %v3440 = vld [vmem:[%s1073 + $0x38] sm:$0xf]
    %v3441 = vld [vmem:[%s1073 + $0x3c] sm:$0xff]
    %v3442 = vld [vmem:[%s1073 + $0x44] sm:$0xf]
    %v3443 = vld [vmem:[%s1073 + $0x48] sm:$0xff]
    %v3444 = vld [vmem:[%s1073 + $0x50] sm:$0xf]
    %v3445 = vld [vmem:[%s1073 + $0x54] sm:$0xff]
    %v3446 = vld [vmem:[%s1073 + $0x5c] sm:$0xf]
    %v3447 = vld [vmem:[%s1073 + $0x60] sm:$0xff]
    %v3448 = vld [vmem:[%s1073 + $0x68] sm:$0xf]
    %v3449 = vld [vmem:[%s1073 + $0x6c] sm:$0xff]
    %v3450 = vld [vmem:[%s1073 + $0x74] sm:$0xf]
    %v3451 = vld [vmem:[%s1073 + $0x78] sm:$0xff]
    %v3452 = vld [vmem:[%s1073 + $0x80] sm:$0xf]
    %v3453 = vld [vmem:[%s1073 + $0x84] sm:$0xff]
    %v3454 = vld [vmem:[%s1073 + $0x8c] sm:$0xf]
    %v3455 = vld [vmem:[%s1073 + $0x90] sm:$0xff]
    %v3456 = vld [vmem:[%s1073 + $0x98] sm:$0xf]
    %v3457 = vld [vmem:[%s1073 + $0x9c] sm:$0xff]
    %v3458 = vld [vmem:[%s1073 + $0xa4] sm:$0xf]
    %v3459 = vld [vmem:[%s1073 + $0xa8] sm:$0xff]
    %v3460 = vld [vmem:[%s1073 + $0xb0] sm:$0xf]
    %v3461 = vld [vmem:[%s1073 + $0xb4] sm:$0xff]
    %v3462 = vld [vmem:[%s1073 + $0xbc] sm:$0xf]
    %v3495 = vunpack.c.l.b16 %v3431
    %v3496 = vunpack.c.h.b16 %v3431
    %v3497 = vunpack.c.l.b16 %v3432
    %v3498 = vunpack.c.l.b16 %v3433
    %v3499 = vunpack.c.h.b16 %v3433
    %v3500 = vunpack.c.l.b16 %v3434
    %v3501 = vunpack.c.l.b16 %v3435
    %v3502 = vunpack.c.h.b16 %v3435
    %v3503 = vunpack.c.l.b16 %v3436
    %v3504 = vunpack.c.l.b16 %v3437
    %v3505 = vunpack.c.h.b16 %v3437
    %v3506 = vunpack.c.l.b16 %v3438
    %v3507 = vunpack.c.l.b16 %v3439
    %v3508 = vunpack.c.h.b16 %v3439
    %v3509 = vunpack.c.l.b16 %v3440
    %v3510 = vunpack.c.l.b16 %v3441
    %v3511 = vunpack.c.h.b16 %v3441
    %v3512 = vunpack.c.l.b16 %v3442
    %v3513 = vunpack.c.l.b16 %v3443
    %v3514 = vunpack.c.h.b16 %v3443
    %v3515 = vunpack.c.l.b16 %v3444
    %v3516 = vunpack.c.l.b16 %v3445
    %v3517 = vunpack.c.h.b16 %v3445
    %v3518 = vunpack.c.l.b16 %v3446
    %v3519 = vunpack.c.l.b16 %v3447
    %v3520 = vunpack.c.h.b16 %v3447
    %v3521 = vunpack.c.l.b16 %v3448
    %v3522 = vunpack.c.l.b16 %v3449
    %v3523 = vunpack.c.h.b16 %v3449
    %v3524 = vunpack.c.l.b16 %v3450
    %v3525 = vunpack.c.l.b16 %v3451
    %v3526 = vunpack.c.h.b16 %v3451
    %v3527 = vunpack.c.l.b16 %v3452
    %v3528 = vunpack.c.l.b16 %v3453
    %v3529 = vunpack.c.h.b16 %v3453
    %v3530 = vunpack.c.l.b16 %v3454
    %v3531 = vunpack.c.l.b16 %v3455
    %v3532 = vunpack.c.h.b16 %v3455
    %v3533 = vunpack.c.l.b16 %v3456
    %v3534 = vunpack.c.l.b16 %v3457
    %v3535 = vunpack.c.h.b16 %v3457
    %v3536 = vunpack.c.l.b16 %v3458
    %v3537 = vunpack.c.l.b16 %v3459
    %v3538 = vunpack.c.h.b16 %v3459
    %v3539 = vunpack.c.l.b16 %v3460
    %v3540 = vunpack.c.l.b16 %v3461
    %v3541 = vunpack.c.h.b16 %v3461
    %v3542 = vunpack.c.l.b16 %v3462
    %v3543 = vpack.c.b16 %v3498, %v3495
    %v3544 = vpack.c.b16 %v3499, %v3496
    %v3545 = vpack.c.b16 %v3500, %v3497
    %v3546 = vpack.c.b16 %v3504, %v3501
    %v3547 = vpack.c.b16 %v3505, %v3502
    %v3548 = vpack.c.b16 %v3506, %v3503
    %v3549 = vpack.c.b16 %v3510, %v3507
    %v3550 = vpack.c.b16 %v3511, %v3508
    %v3551 = vpack.c.b16 %v3512, %v3509
    %v3552 = vpack.c.b16 %v3516, %v3513
    %v3553 = vpack.c.b16 %v3517, %v3514
    %v3554 = vpack.c.b16 %v3518, %v3515
    %v3555 = vpack.c.b16 %v3522, %v3519
    %v3556 = vpack.c.b16 %v3523, %v3520
    %v3557 = vpack.c.b16 %v3524, %v3521
    %v3558 = vpack.c.b16 %v3528, %v3525
    %v3559 = vpack.c.b16 %v3529, %v3526
    %v3560 = vpack.c.b16 %v3530, %v3527
    %v3561 = vpack.c.b16 %v3534, %v3531
    %v3562 = vpack.c.b16 %v3535, %v3532
    %v3563 = vpack.c.b16 %v3536, %v3533
    %v3564 = vpack.c.b16 %v3540, %v3537
    %v3565 = vpack.c.b16 %v3541, %v3538
    %v3566 = vpack.c.b16 %v3542, %v3539
    %3591 = vmatprep.subr.bf16.mxu0 %v3544
    %3592 = vmatpush1.bf16.msra.mxu0 %v3543
    %3593 = vmatprep.subr.bf16.mxu0 %v3547
    %3594 = vmatpush1.bf16.msra.mxu0 %v3546
    %3595 = vmatprep.subr.bf16.mxu0 %v3550
    %3596 = vmatpush1.bf16.msra.mxu0 %v3549
    %3597 = vmatprep.subr.bf16.mxu0 %v3553
    %3598 = vmatpush1.bf16.msra.mxu0 %v3552
    %3599 = vmatprep.subr.bf16.mxu0 %v3556
    %3600 = vmatpush1.bf16.msra.mxu0 %v3555
    %3601 = vmatprep.subr.bf16.mxu0 %v3559
    %3602 = vmatpush1.bf16.msra.mxu0 %v3558
    %3603 = vmatprep.subr.bf16.mxu0 %v3562
    %3604 = vmatpush1.bf16.msra.mxu0 %v3561
    %3605 = vmatprep.subr.bf16.mxu0 %v3565
    %3606 = vmatpush1.bf16.msra.mxu0 %v3564
    %3607 = vmatprep.subr.bf16.mxu0 0
    %3608 = vmatpush1.bf16.msra.mxu0 0
    %3609 = vmatprep.subr.bf16.mxu0 0
    %3610 = vmatpush1.bf16.msra.mxu0 0
    %3611 = vmatprep.subr.bf16.mxu0 0
    %3612 = vmatpush1.bf16.msra.mxu0 0
    %3613 = vmatprep.subr.bf16.mxu0 0
    %3614 = vmatpush1.bf16.msra.mxu0 0
    %3615 = vmatprep.subr.bf16.mxu0 0
    %3616 = vmatpush1.bf16.msra.mxu0 0
    %3617 = vmatprep.subr.bf16.mxu0 0
    %3618 = vmatpush1.bf16.msra.mxu0 0
    %3619 = vmatprep.subr.bf16.mxu0 0
    %3620 = vmatpush1.bf16.msra.mxu0 0
    %3621 = vmatprep.subr.bf16.mxu0 0
    %3622 = vmatpush1.bf16.msra.mxu0 0
    %3623 = vmatprep.mubr.bf16.mxu0 0
    %3624 = vmatmul.mubr.bf16.gmra.mrb[0].mxu0 %v3430
    %v3625 = vpop.f32.mrb[0].mxu0
    %v3626 = vadd.f32 %v519, %v3625
    %v3627 = vpop.f32.mrb[0].mxu0
    %v3628 = vadd.f32 %v523, %v3627
    %v3629 = vpop.f32.mrb[0].mxu0
    %v3630 = vpop.f32.mrb[0].mxu0
    %3631 = vdwg.mxu0
    %3632 = vmatprep.subr.bf16.mxu0 0
    %3633 = vmatpush1.bf16.msra.mxu0 %v3545
    %3634 = vmatprep.subr.bf16.mxu0 0
    %3635 = vmatpush1.bf16.msra.mxu0 %v3548
    %3636 = vmatprep.subr.bf16.mxu0 0
    %3637 = vmatpush1.bf16.msra.mxu0 %v3551
    %3638 = vmatprep.subr.bf16.mxu0 0
    %3639 = vmatpush1.bf16.msra.mxu0 %v3554
    %3640 = vmatprep.subr.bf16.mxu0 0
    %3641 = vmatpush1.bf16.msra.mxu0 %v3557
    %3642 = vmatprep.subr.bf16.mxu0 0
    %3643 = vmatpush1.bf16.msra.mxu0 %v3560
    %3644 = vmatprep.subr.bf16.mxu0 0
    %3645 = vmatpush1.bf16.msra.mxu0 %v3563
    %3646 = vmatprep.subr.bf16.mxu0 0
    %3647 = vmatpush1.bf16.msra.mxu0 %v3566
    %3648 = vmatprep.subr.bf16.mxu0 0
    %3649 = vmatpush1.bf16.msra.mxu0 0
    %3650 = vmatprep.subr.bf16.mxu0 0
    %3651 = vmatpush1.bf16.msra.mxu0 0
    %3652 = vmatprep.subr.bf16.mxu0 0
    %3653 = vmatpush1.bf16.msra.mxu0 0
    %3654 = vmatprep.subr.bf16.mxu0 0
    %3655 = vmatpush1.bf16.msra.mxu0 0
    %3656 = vmatprep.subr.bf16.mxu0 0
    %3657 = vmatpush1.bf16.msra.mxu0 0
    %3658 = vmatprep.subr.bf16.mxu0 0
    %3659 = vmatpush1.bf16.msra.mxu0 0
    %3660 = vmatprep.subr.bf16.mxu0 0
    %3661 = vmatpush1.bf16.msra.mxu0 0
    %3662 = vmatprep.subr.bf16.mxu0 0
    %3663 = vmatpush1.bf16.msra.mxu0 0
    %3664 = vmatprep.mubr.bf16.mxu0 0
    %3665 = vmatmul.mubr.bf16.gmra.mrb[0].mxu0 %v3430
    %v3666 = vpop.f32.mrb[0].mxu0
    %v3667 = vadd.f32 %v527, %v3666
    %v3668 = vpop.f32.mrb[0].mxu0
    %v3669 = vpop.f32.mrb[0].mxu0
    %v3670 = vpop.f32.mrb[0].mxu0
    %3671 = vdwg.mxu0
    %v3672 = vadd.f32 %v3384, %v3626
    %v3673 = vxor.u32 %v3672, 2147483648
    %v3674 = vmul.f32 %v3673, 1.442695
    %v3675 = vpow.pop %v3674
    %v3676 = vadd.f32 %v3675, 1.0
    %v3677 = vrcp.pop %v3676
    %v3678 = vmul.f32 1.0, %v3677
    %v3679 = vadd.f32 %v3386, %v3628
    %v3680 = vxor.u32 %v3679, 2147483648
    %v3681 = vmul.f32 %v3680, 1.442695
    %v3682 = vpow.pop %v3681
    %v3683 = vadd.f32 %v3682, 1.0
    %v3684 = vrcp.pop %v3683
    %v3685 = vmul.f32 1.0, %v3684
    %v3686 = vmul.f32 %v3678, %v3667
    %v3687 = vadd.f32 %v3425, %v3686
    %v3688 = vtanh.pop %v3687
    %v3689 = vsub.f32 1.0, %v3685
    %v3690 = vmul.f32 %v3689, %v3688
    %v3691 = vmul.f32 %v3685, %v2907
    %v3692 = vadd.f32 %v3690, %v3691
    %v3693 = vsel %vm3185, %v3692, %v2907
    %v3694 = vsel %vm3185, %v3692, 0.0
    %s3695 = scalar_lea.vmem [#allocation15], 24
    %3696 = vst [vmem:[%s3695] sm:$0xff] %v3694
    %vm3697 = vcmp.gt.s32.totalorder %v495, 4
    %s3698 = smul.u32 4, 3
    %s3699 = smul.addr %s3698, 8
    %s3700 = scalar_lea.vmem [#allocation2], %s3699
    %v3701 = vld [vmem:[%s3700] sm:$0xff]
    %v3702 = vld [vmem:[%s3700 + $0x8] sm:$0xff]
    %v3703 = vld [vmem:[%s3700 + $0x10] sm:$0xff]
    %v3704 = vpack.c.bf16 %v3186, %v3186
    %v3705 = vld [vmem:[#allocation11] sm:$0xff]
    %v3706 = vld [vmem:[#allocation11 + $0x8] sm:$0xf]
    %v3707 = vld [vmem:[#allocation11 + $0xc] sm:$0xff]
    %v3708 = vld [vmem:[#allocation11 + $0x14] sm:$0xf]
    %v3709 = vld [vmem:[#allocation11 + $0x18] sm:$0xff]
    %v3710 = vld [vmem:[#allocation11 + $0x20] sm:$0xf]
    %v3711 = vld [vmem:[#allocation11 + $0x24] sm:$0xff]
    %v3712 = vld [vmem:[#allocation11 + $0x2c] sm:$0xf]
    %v3713 = vld [vmem:[#allocation11 + $0x30] sm:$0xff]
    %v3714 = vld [vmem:[#allocation11 + $0x38] sm:$0xf]
    %v3715 = vld [vmem:[#allocation11 + $0x3c] sm:$0xff]
    %v3716 = vld [vmem:[#allocation11 + $0x44] sm:$0xf]
    %v3717 = vld [vmem:[#allocation11 + $0x48] sm:$0xff]
    %v3718 = vld [vmem:[#allocation11 + $0x50] sm:$0xf]
    %v3719 = vld [vmem:[#allocation11 + $0x54] sm:$0xff]
    %v3720 = vld [vmem:[#allocation11 + $0x5c] sm:$0xf]
    %v3721 = vld [vmem:[#allocation11 + $0x60] sm:$0xff]
    %v3722 = vld [vmem:[#allocation11 + $0x68] sm:$0xf]
    %v3723 = vld [vmem:[#allocation11 + $0x6c] sm:$0xff]
    %v3724 = vld [vmem:[#allocation11 + $0x74] sm:$0xf]
    %v3725 = vld [vmem:[#allocation11 + $0x78] sm:$0xff]
    %v3726 = vld [vmem:[#allocation11 + $0x80] sm:$0xf]
    %v3727 = vld [vmem:[#allocation11 + $0x84] sm:$0xff]
    %v3728 = vld [vmem:[#allocation11 + $0x8c] sm:$0xf]
    %v3729 = vld [vmem:[#allocation11 + $0x90] sm:$0xff]
    %v3730 = vld [vmem:[#allocation11 + $0x98] sm:$0xf]
    %v3731 = vld [vmem:[#allocation11 + $0x9c] sm:$0xff]
    %v3732 = vld [vmem:[#allocation11 + $0xa4] sm:$0xf]
    %v3733 = vld [vmem:[#allocation11 + $0xa8] sm:$0xff]
    %v3734 = vld [vmem:[#allocation11 + $0xb0] sm:$0xf]
    %v3735 = vld [vmem:[#allocation11 + $0xb4] sm:$0xff]
    %v3736 = vld [vmem:[#allocation11 + $0xbc] sm:$0xf]
    %v3769 = vunpack.c.l.b16 %v3705
    %v3770 = vunpack.c.h.b16 %v3705
    %v3771 = vunpack.c.l.b16 %v3706
    %v3772 = vunpack.c.l.b16 %v3707
    %v3773 = vunpack.c.h.b16 %v3707
    %v3774 = vunpack.c.l.b16 %v3708
    %v3775 = vunpack.c.l.b16 %v3709
    %v3776 = vunpack.c.h.b16 %v3709
    %v3777 = vunpack.c.l.b16 %v3710
    %v3778 = vunpack.c.l.b16 %v3711
    %v3779 = vunpack.c.h.b16 %v3711
    %v3780 = vunpack.c.l.b16 %v3712
    %v3781 = vunpack.c.l.b16 %v3713
    %v3782 = vunpack.c.h.b16 %v3713
    %v3783 = vunpack.c.l.b16 %v3714
    %v3784 = vunpack.c.l.b16 %v3715
    %v3785 = vunpack.c.h.b16 %v3715
    %v3786 = vunpack.c.l.b16 %v3716
    %v3787 = vunpack.c.l.b16 %v3717
    %v3788 = vunpack.c.h.b16 %v3717
    %v3789 = vunpack.c.l.b16 %v3718
    %v3790 = vunpack.c.l.b16 %v3719
    %v3791 = vunpack.c.h.b16 %v3719
    %v3792 = vunpack.c.l.b16 %v3720
    %v3793 = vunpack.c.l.b16 %v3721
    %v3794 = vunpack.c.h.b16 %v3721
    %v3795 = vunpack.c.l.b16 %v3722
    %v3796 = vunpack.c.l.b16 %v3723
    %v3797 = vunpack.c.h.b16 %v3723
    %v3798 = vunpack.c.l.b16 %v3724
    %v3799 = vunpack.c.l.b16 %v3725
    %v3800 = vunpack.c.h.b16 %v3725
    %v3801 = vunpack.c.l.b16 %v3726
    %v3802 = vunpack.c.l.b16 %v3727
    %v3803 = vunpack.c.h.b16 %v3727
    %v3804 = vunpack.c.l.b16 %v3728
    %v3805 = vunpack.c.l.b16 %v3729
    %v3806 = vunpack.c.h.b16 %v3729
    %v3807 = vunpack.c.l.b16 %v3730
    %v3808 = vunpack.c.l.b16 %v3731
    %v3809 = vunpack.c.h.b16 %v3731
    %v3810 = vunpack.c.l.b16 %v3732
    %v3811 = vunpack.c.l.b16 %v3733
    %v3812 = vunpack.c.h.b16 %v3733
    %v3813 = vunpack.c.l.b16 %v3734
    %v3814 = vunpack.c.l.b16 %v3735
    %v3815 = vunpack.c.h.b16 %v3735
    %v3816 = vunpack.c.l.b16 %v3736
    %v3817 = vpack.c.b16 %v3772, %v3769
    %v3818 = vpack.c.b16 %v3773, %v3770
    %v3819 = vpack.c.b16 %v3774, %v3771
    %v3820 = vpack.c.b16 %v3778, %v3775
    %v3821 = vpack.c.b16 %v3779, %v3776
    %v3822 = vpack.c.b16 %v3780, %v3777
    %v3823 = vpack.c.b16 %v3784, %v3781
    %v3824 = vpack.c.b16 %v3785, %v3782
    %v3825 = vpack.c.b16 %v3786, %v3783
    %v3826 = vpack.c.b16 %v3790, %v3787
    %v3827 = vpack.c.b16 %v3791, %v3788
    %v3828 = vpack.c.b16 %v3792, %v3789
    %v3829 = vpack.c.b16 %v3796, %v3793
    %v3830 = vpack.c.b16 %v3797, %v3794
    %v3831 = vpack.c.b16 %v3798, %v3795
    %v3832 = vpack.c.b16 %v3802, %v3799
    %v3833 = vpack.c.b16 %v3803, %v3800
    %v3834 = vpack.c.b16 %v3804, %v3801
    %v3835 = vpack.c.b16 %v3808, %v3805
    %v3836 = vpack.c.b16 %v3809, %v3806
    %v3837 = vpack.c.b16 %v3810, %v3807
    %v3838 = vpack.c.b16 %v3814, %v3811
    %v3839 = vpack.c.b16 %v3815, %v3812
    %v3840 = vpack.c.b16 %v3816, %v3813
    %3865 = vmatprep.subr.bf16.mxu0 %v3818
    %3866 = vmatpush1.bf16.msra.mxu0 %v3817
    %3867 = vmatprep.subr.bf16.mxu0 %v3821
    %3868 = vmatpush1.bf16.msra.mxu0 %v3820
    %3869 = vmatprep.subr.bf16.mxu0 %v3824
    %3870 = vmatpush1.bf16.msra.mxu0 %v3823
    %3871 = vmatprep.subr.bf16.mxu0 %v3827
    %3872 = vmatpush1.bf16.msra.mxu0 %v3826
    %3873 = vmatprep.subr.bf16.mxu0 %v3830
    %3874 = vmatpush1.bf16.msra.mxu0 %v3829
    %3875 = vmatprep.subr.bf16.mxu0 %v3833
    %3876 = vmatpush1.bf16.msra.mxu0 %v3832
    %3877 = vmatprep.subr.bf16.mxu0 %v3836
    %3878 = vmatpush1.bf16.msra.mxu0 %v3835
    %3879 = vmatprep.subr.bf16.mxu0 %v3839
    %3880 = vmatpush1.bf16.msra.mxu0 %v3838
    %3881 = vmatprep.subr.bf16.mxu0 0
    %3882 = vmatpush1.bf16.msra.mxu0 0
    %3883 = vmatprep.subr.bf16.mxu0 0
    %3884 = vmatpush1.bf16.msra.mxu0 0
    %3885 = vmatprep.subr.bf16.mxu0 0
    %3886 = vmatpush1.bf16.msra.mxu0 0
    %3887 = vmatprep.subr.bf16.mxu0 0
    %3888 = vmatpush1.bf16.msra.mxu0 0
    %3889 = vmatprep.subr.bf16.mxu0 0
    %3890 = vmatpush1.bf16.msra.mxu0 0
    %3891 = vmatprep.subr.bf16.mxu0 0
    %3892 = vmatpush1.bf16.msra.mxu0 0
    %3893 = vmatprep.subr.bf16.mxu0 0
    %3894 = vmatpush1.bf16.msra.mxu0 0
    %3895 = vmatprep.subr.bf16.mxu0 0
    %3896 = vmatpush1.bf16.msra.mxu0 0
    %3897 = vmatprep.mubr.bf16.mxu0 0
    %3898 = vmatmul.mubr.bf16.gmra.mrb[0].mxu0 %v3704
    %v3899 = vpop.f32.mrb[0].mxu0
    %v3900 = vadd.f32 %v501, %v3899
    %v3901 = vpop.f32.mrb[0].mxu0
    %v3902 = vadd.f32 %v505, %v3901
    %v3903 = vpop.f32.mrb[0].mxu0
    %v3904 = vpop.f32.mrb[0].mxu0
    %3905 = vdwg.mxu0
    %3906 = vmatprep.subr.bf16.mxu0 0
    %3907 = vmatpush1.bf16.msra.mxu0 %v3819
    %3908 = vmatprep.subr.bf16.mxu0 0
    %3909 = vmatpush1.bf16.msra.mxu0 %v3822
    %3910 = vmatprep.subr.bf16.mxu0 0
    %3911 = vmatpush1.bf16.msra.mxu0 %v3825
    %3912 = vmatprep.subr.bf16.mxu0 0
    %3913 = vmatpush1.bf16.msra.mxu0 %v3828
    %3914 = vmatprep.subr.bf16.mxu0 0
    %3915 = vmatpush1.bf16.msra.mxu0 %v3831
    %3916 = vmatprep.subr.bf16.mxu0 0
    %3917 = vmatpush1.bf16.msra.mxu0 %v3834
    %3918 = vmatprep.subr.bf16.mxu0 0
    %3919 = vmatpush1.bf16.msra.mxu0 %v3837
    %3920 = vmatprep.subr.bf16.mxu0 0
    %3921 = vmatpush1.bf16.msra.mxu0 %v3840
    %3922 = vmatprep.subr.bf16.mxu0 0
    %3923 = vmatpush1.bf16.msra.mxu0 0
    %3924 = vmatprep.subr.bf16.mxu0 0
    %3925 = vmatpush1.bf16.msra.mxu0 0
    %3926 = vmatprep.subr.bf16.mxu0 0
    %3927 = vmatpush1.bf16.msra.mxu0 0
    %3928 = vmatprep.subr.bf16.mxu0 0
    %3929 = vmatpush1.bf16.msra.mxu0 0
    %3930 = vmatprep.subr.bf16.mxu0 0
    %3931 = vmatpush1.bf16.msra.mxu0 0
    %3932 = vmatprep.subr.bf16.mxu0 0
    %3933 = vmatpush1.bf16.msra.mxu0 0
    %3934 = vmatprep.subr.bf16.mxu0 0
    %3935 = vmatpush1.bf16.msra.mxu0 0
    %3936 = vmatprep.subr.bf16.mxu0 0
    %3937 = vmatpush1.bf16.msra.mxu0 0
    %3938 = vmatprep.mubr.bf16.mxu0 0
    %3939 = vmatmul.mubr.bf16.gmra.mrb[0].mxu0 %v3704
    %v3940 = vpop.f32.mrb[0].mxu0
    %v3941 = vadd.f32 %v509, %v3940
    %v3942 = vpop.f32.mrb[0].mxu0
    %v3943 = vpop.f32.mrb[0].mxu0
    %v3944 = vpop.f32.mrb[0].mxu0
    %3945 = vdwg.mxu0
    %v3946 = vadd.f32 %v3701, %v3900
    %v3947 = vxor.u32 %v3946, 2147483648
    %v3948 = vmul.f32 %v3947, 1.442695
    %v3949 = vpow.pop %v3948
    %v3950 = vadd.f32 %v3949, 1.0
    %v3951 = vrcp.pop %v3950
    %v3952 = vmul.f32 1.0, %v3951
    %v3953 = vadd.f32 %v3702, %v3902
    %v3954 = vxor.u32 %v3953, 2147483648
    %v3955 = vmul.f32 %v3954, 1.442695
    %v3956 = vpow.pop %v3955
    %v3957 = vadd.f32 %v3956, 1.0
    %v3958 = vrcp.pop %v3957
    %v3959 = vmul.f32 1.0, %v3958
    %v3960 = vmul.f32 %v3952, %v3941
    %v3961 = vadd.f32 %v3703, %v3960
    %v3962 = vtanh.pop %v3961
    %v3963 = vsub.f32 1.0, %v3959
    %v3964 = vmul.f32 %v3963, %v3962
    %v3965 = vmul.f32 %v3959, %v3186
    %v3966 = vadd.f32 %v3964, %v3965
    %v3967 = vsel %vm3697, 1, 0
    %3968 = vset.pattern.permute.xlu0 0
    %3969 = vperm.xlu0 %3968, %v3967
    %v3970 = vpop.permute.xlu0 %3969
    %vm3971 = vcmp.eq.s32.totalorder %v3970, 1
    %v3972 = vsel %vm3971, %v3966, %v3186
    %v3973 = vsel %vm3971, %v3966, 0.0
    %v3974 = vpack.c.bf16 %v3973, %v3973
    %v3975 = vld [vmem:[%s830] sm:$0xff]
    %v3976 = vld [vmem:[%s830 + $0x8] sm:$0xf]
    %v3977 = vld [vmem:[%s830 + $0xc] sm:$0xff]
    %v3978 = vld [vmem:[%s830 + $0x14] sm:$0xf]
    %v3979 = vld [vmem:[%s830 + $0x18] sm:$0xff]
    %v3980 = vld [vmem:[%s830 + $0x20] sm:$0xf]
    %v3981 = vld [vmem:[%s830 + $0x24] sm:$0xff]
    %v3982 = vld [vmem:[%s830 + $0x2c] sm:$0xf]
    %v3983 = vld [vmem:[%s830 + $0x30] sm:$0xff]
    %v3984 = vld [vmem:[%s830 + $0x38] sm:$0xf]
    %v3985 = vld [vmem:[%s830 + $0x3c] sm:$0xff]
    %v3986 = vld [vmem:[%s830 + $0x44] sm:$0xf]
    %v3987 = vld [vmem:[%s830 + $0x48] sm:$0xff]
    %v3988 = vld [vmem:[%s830 + $0x50] sm:$0xf]
    %v3989 = vld [vmem:[%s830 + $0x54] sm:$0xff]
    %v3990 = vld [vmem:[%s830 + $0x5c] sm:$0xf]
    %v3991 = vld [vmem:[%s830 + $0x60] sm:$0xff]
    %v3992 = vld [vmem:[%s830 + $0x68] sm:$0xf]
    %v3993 = vld [vmem:[%s830 + $0x6c] sm:$0xff]
    %v3994 = vld [vmem:[%s830 + $0x74] sm:$0xf]
    %v3995 = vld [vmem:[%s830 + $0x78] sm:$0xff]
    %v3996 = vld [vmem:[%s830 + $0x80] sm:$0xf]
    %v3997 = vld [vmem:[%s830 + $0x84] sm:$0xff]
    %v3998 = vld [vmem:[%s830 + $0x8c] sm:$0xf]
    %v3999 = vld [vmem:[%s830 + $0x90] sm:$0xff]
    %v4000 = vld [vmem:[%s830 + $0x98] sm:$0xf]
    %v4001 = vld [vmem:[%s830 + $0x9c] sm:$0xff]
    %v4002 = vld [vmem:[%s830 + $0xa4] sm:$0xf]
    %v4003 = vld [vmem:[%s830 + $0xa8] sm:$0xff]
    %v4004 = vld [vmem:[%s830 + $0xb0] sm:$0xf]
    %v4005 = vld [vmem:[%s830 + $0xb4] sm:$0xff]
    %v4006 = vld [vmem:[%s830 + $0xbc] sm:$0xf]
    %v4039 = vunpack.c.l.b16 %v3975
    %v4040 = vunpack.c.h.b16 %v3975
    %v4041 = vunpack.c.l.b16 %v3976
    %v4042 = vunpack.c.l.b16 %v3977
    %v4043 = vunpack.c.h.b16 %v3977
    %v4044 = vunpack.c.l.b16 %v3978
    %v4045 = vunpack.c.l.b16 %v3979
    %v4046 = vunpack.c.h.b16 %v3979
    %v4047 = vunpack.c.l.b16 %v3980
    %v4048 = vunpack.c.l.b16 %v3981
    %v4049 = vunpack.c.h.b16 %v3981
    %v4050 = vunpack.c.l.b16 %v3982
    %v4051 = vunpack.c.l.b16 %v3983
    %v4052 = vunpack.c.h.b16 %v3983
    %v4053 = vunpack.c.l.b16 %v3984
    %v4054 = vunpack.c.l.b16 %v3985
    %v4055 = vunpack.c.h.b16 %v3985
    %v4056 = vunpack.c.l.b16 %v3986
    %v4057 = vunpack.c.l.b16 %v3987
    %v4058 = vunpack.c.h.b16 %v3987
    %v4059 = vunpack.c.l.b16 %v3988
    %v4060 = vunpack.c.l.b16 %v3989
    %v4061 = vunpack.c.h.b16 %v3989
    %v4062 = vunpack.c.l.b16 %v3990
    %v4063 = vunpack.c.l.b16 %v3991
    %v4064 = vunpack.c.h.b16 %v3991
    %v4065 = vunpack.c.l.b16 %v3992
    %v4066 = vunpack.c.l.b16 %v3993
    %v4067 = vunpack.c.h.b16 %v3993
    %v4068 = vunpack.c.l.b16 %v3994
    %v4069 = vunpack.c.l.b16 %v3995
    %v4070 = vunpack.c.h.b16 %v3995
    %v4071 = vunpack.c.l.b16 %v3996
    %v4072 = vunpack.c.l.b16 %v3997
    %v4073 = vunpack.c.h.b16 %v3997
    %v4074 = vunpack.c.l.b16 %v3998
    %v4075 = vunpack.c.l.b16 %v3999
    %v4076 = vunpack.c.h.b16 %v3999
    %v4077 = vunpack.c.l.b16 %v4000
    %v4078 = vunpack.c.l.b16 %v4001
    %v4079 = vunpack.c.h.b16 %v4001
    %v4080 = vunpack.c.l.b16 %v4002
    %v4081 = vunpack.c.l.b16 %v4003
    %v4082 = vunpack.c.h.b16 %v4003
    %v4083 = vunpack.c.l.b16 %v4004
    %v4084 = vunpack.c.l.b16 %v4005
    %v4085 = vunpack.c.h.b16 %v4005
    %v4086 = vunpack.c.l.b16 %v4006
    %v4087 = vpack.c.b16 %v4042, %v4039
    %v4088 = vpack.c.b16 %v4043, %v4040
    %v4089 = vpack.c.b16 %v4044, %v4041
    %v4090 = vpack.c.b16 %v4048, %v4045
    %v4091 = vpack.c.b16 %v4049, %v4046
    %v4092 = vpack.c.b16 %v4050, %v4047
    %v4093 = vpack.c.b16 %v4054, %v4051
    %v4094 = vpack.c.b16 %v4055, %v4052
    %v4095 = vpack.c.b16 %v4056, %v4053
    %v4096 = vpack.c.b16 %v4060, %v4057
    %v4097 = vpack.c.b16 %v4061, %v4058
    %v4098 = vpack.c.b16 %v4062, %v4059
    %v4099 = vpack.c.b16 %v4066, %v4063
    %v4100 = vpack.c.b16 %v4067, %v4064
    %v4101 = vpack.c.b16 %v4068, %v4065
    %v4102 = vpack.c.b16 %v4072, %v4069
    %v4103 = vpack.c.b16 %v4073, %v4070
    %v4104 = vpack.c.b16 %v4074, %v4071
    %v4105 = vpack.c.b16 %v4078, %v4075
    %v4106 = vpack.c.b16 %v4079, %v4076
    %v4107 = vpack.c.b16 %v4080, %v4077
    %v4108 = vpack.c.b16 %v4084, %v4081
    %v4109 = vpack.c.b16 %v4085, %v4082
    %v4110 = vpack.c.b16 %v4086, %v4083
    %4135 = vmatprep.subr.bf16.mxu0 %v4088
    %4136 = vmatpush1.bf16.msra.mxu0 %v4087
    %4137 = vmatprep.subr.bf16.mxu0 %v4091
    %4138 = vmatpush1.bf16.msra.mxu0 %v4090
    %4139 = vmatprep.subr.bf16.mxu0 %v4094
    %4140 = vmatpush1.bf16.msra.mxu0 %v4093
    %4141 = vmatprep.subr.bf16.mxu0 %v4097
    %4142 = vmatpush1.bf16.msra.mxu0 %v4096
    %4143 = vmatprep.subr.bf16.mxu0 %v4100
    %4144 = vmatpush1.bf16.msra.mxu0 %v4099
    %4145 = vmatprep.subr.bf16.mxu0 %v4103
    %4146 = vmatpush1.bf16.msra.mxu0 %v4102
    %4147 = vmatprep.subr.bf16.mxu0 %v4106
    %4148 = vmatpush1.bf16.msra.mxu0 %v4105
    %4149 = vmatprep.subr.bf16.mxu0 %v4109
    %4150 = vmatpush1.bf16.msra.mxu0 %v4108
    %4151 = vmatprep.subr.bf16.mxu0 0
    %4152 = vmatpush1.bf16.msra.mxu0 0
    %4153 = vmatprep.subr.bf16.mxu0 0
    %4154 = vmatpush1.bf16.msra.mxu0 0
    %4155 = vmatprep.subr.bf16.mxu0 0
    %4156 = vmatpush1.bf16.msra.mxu0 0
    %4157 = vmatprep.subr.bf16.mxu0 0
    %4158 = vmatpush1.bf16.msra.mxu0 0
    %4159 = vmatprep.subr.bf16.mxu0 0
    %4160 = vmatpush1.bf16.msra.mxu0 0
    %4161 = vmatprep.subr.bf16.mxu0 0
    %4162 = vmatpush1.bf16.msra.mxu0 0
    %4163 = vmatprep.subr.bf16.mxu0 0
    %4164 = vmatpush1.bf16.msra.mxu0 0
    %4165 = vmatprep.subr.bf16.mxu0 0
    %4166 = vmatpush1.bf16.msra.mxu0 0
    %4167 = vmatprep.mubr.bf16.mxu0 0
    %4168 = vmatmul.mubr.bf16.gmra.mrb[0].mxu0 %v3974
    %v4169 = vpop.f32.mrb[0].mxu0
    %v4170 = vadd.f32 %v537, %v4169
    %v4171 = vpop.f32.mrb[0].mxu0
    %v4172 = vadd.f32 %v541, %v4171
    %v4173 = vpop.f32.mrb[0].mxu0
    %v4174 = vpop.f32.mrb[0].mxu0
    %4175 = vdwg.mxu0
    %4176 = vmatprep.subr.bf16.mxu0 0
    %4177 = vmatpush1.bf16.msra.mxu0 %v4089
    %4178 = vmatprep.subr.bf16.mxu0 0
    %4179 = vmatpush1.bf16.msra.mxu0 %v4092
    %4180 = vmatprep.subr.bf16.mxu0 0
    %4181 = vmatpush1.bf16.msra.mxu0 %v4095
    %4182 = vmatprep.subr.bf16.mxu0 0
    %4183 = vmatpush1.bf16.msra.mxu0 %v4098
    %4184 = vmatprep.subr.bf16.mxu0 0
    %4185 = vmatpush1.bf16.msra.mxu0 %v4101
    %4186 = vmatprep.subr.bf16.mxu0 0
    %4187 = vmatpush1.bf16.msra.mxu0 %v4104
    %4188 = vmatprep.subr.bf16.mxu0 0
    %4189 = vmatpush1.bf16.msra.mxu0 %v4107
    %4190 = vmatprep.subr.bf16.mxu0 0
    %4191 = vmatpush1.bf16.msra.mxu0 %v4110
    %4192 = vmatprep.subr.bf16.mxu0 0
    %4193 = vmatpush1.bf16.msra.mxu0 0
    %4194 = vmatprep.subr.bf16.mxu0 0
    %4195 = vmatpush1.bf16.msra.mxu0 0
    %4196 = vmatprep.subr.bf16.mxu0 0
    %4197 = vmatpush1.bf16.msra.mxu0 0
    %4198 = vmatprep.subr.bf16.mxu0 0
    %4199 = vmatpush1.bf16.msra.mxu0 0
    %4200 = vmatprep.subr.bf16.mxu0 0
    %4201 = vmatpush1.bf16.msra.mxu0 0
    %4202 = vmatprep.subr.bf16.mxu0 0
    %4203 = vmatpush1.bf16.msra.mxu0 0
    %4204 = vmatprep.subr.bf16.mxu0 0
    %4205 = vmatpush1.bf16.msra.mxu0 0
    %4206 = vmatprep.subr.bf16.mxu0 0
    %4207 = vmatpush1.bf16.msra.mxu0 0
    %4208 = vmatprep.mubr.bf16.mxu0 0
    %4209 = vmatmul.mubr.bf16.gmra.mrb[0].mxu0 %v3974
    %v4210 = vpop.f32.mrb[0].mxu0
    %v4211 = vadd.f32 %v545, %v4210
    %v4212 = vpop.f32.mrb[0].mxu0
    %v4213 = vpop.f32.mrb[0].mxu0
    %v4214 = vpop.f32.mrb[0].mxu0
    %4215 = vdwg.mxu0
    %v4216 = vpack.c.bf16 %v3693, %v3693
    %v4217 = vld [vmem:[%s1073] sm:$0xff]
    %v4218 = vld [vmem:[%s1073 + $0x8] sm:$0xf]
    %v4219 = vld [vmem:[%s1073 + $0xc] sm:$0xff]
    %v4220 = vld [vmem:[%s1073 + $0x14] sm:$0xf]
    %v4221 = vld [vmem:[%s1073 + $0x18] sm:$0xff]
    %v4222 = vld [vmem:[%s1073 + $0x20] sm:$0xf]
    %v4223 = vld [vmem:[%s1073 + $0x24] sm:$0xff]
    %v4224 = vld [vmem:[%s1073 + $0x2c] sm:$0xf]
    %v4225 = vld [vmem:[%s1073 + $0x30] sm:$0xff]
    %v4226 = vld [vmem:[%s1073 + $0x38] sm:$0xf]
    %v4227 = vld [vmem:[%s1073 + $0x3c] sm:$0xff]
    %v4228 = vld [vmem:[%s1073 + $0x44] sm:$0xf]
    %v4229 = vld [vmem:[%s1073 + $0x48] sm:$0xff]
    %v4230 = vld [vmem:[%s1073 + $0x50] sm:$0xf]
    %v4231 = vld [vmem:[%s1073 + $0x54] sm:$0xff]
    %v4232 = vld [vmem:[%s1073 + $0x5c] sm:$0xf]
    %v4233 = vld [vmem:[%s1073 + $0x60] sm:$0xff]
    %v4234 = vld [vmem:[%s1073 + $0x68] sm:$0xf]
    %v4235 = vld [vmem:[%s1073 + $0x6c] sm:$0xff]
    %v4236 = vld [vmem:[%s1073 + $0x74] sm:$0xf]
    %v4237 = vld [vmem:[%s1073 + $0x78] sm:$0xff]
    %v4238 = vld [vmem:[%s1073 + $0x80] sm:$0xf]
    %v4239 = vld [vmem:[%s1073 + $0x84] sm:$0xff]
    %v4240 = vld [vmem:[%s1073 + $0x8c] sm:$0xf]
    %v4241 = vld [vmem:[%s1073 + $0x90] sm:$0xff]
    %v4242 = vld [vmem:[%s1073 + $0x98] sm:$0xf]
    %v4243 = vld [vmem:[%s1073 + $0x9c] sm:$0xff]
    %v4244 = vld [vmem:[%s1073 + $0xa4] sm:$0xf]
    %v4245 = vld [vmem:[%s1073 + $0xa8] sm:$0xff]
    %v4246 = vld [vmem:[%s1073 + $0xb0] sm:$0xf]
    %v4247 = vld [vmem:[%s1073 + $0xb4] sm:$0xff]
    %v4248 = vld [vmem:[%s1073 + $0xbc] sm:$0xf]
    %v4281 = vunpack.c.l.b16 %v4217
    %v4282 = vunpack.c.h.b16 %v4217
    %v4283 = vunpack.c.l.b16 %v4218
    %v4284 = vunpack.c.l.b16 %v4219
    %v4285 = vunpack.c.h.b16 %v4219
    %v4286 = vunpack.c.l.b16 %v4220
    %v4287 = vunpack.c.l.b16 %v4221
    %v4288 = vunpack.c.h.b16 %v4221
    %v4289 = vunpack.c.l.b16 %v4222
    %v4290 = vunpack.c.l.b16 %v4223
    %v4291 = vunpack.c.h.b16 %v4223
    %v4292 = vunpack.c.l.b16 %v4224
    %v4293 = vunpack.c.l.b16 %v4225
    %v4294 = vunpack.c.h.b16 %v4225
    %v4295 = vunpack.c.l.b16 %v4226
    %v4296 = vunpack.c.l.b16 %v4227
    %v4297 = vunpack.c.h.b16 %v4227
    %v4298 = vunpack.c.l.b16 %v4228
    %v4299 = vunpack.c.l.b16 %v4229
    %v4300 = vunpack.c.h.b16 %v4229
    %v4301 = vunpack.c.l.b16 %v4230
    %v4302 = vunpack.c.l.b16 %v4231
    %v4303 = vunpack.c.h.b16 %v4231
    %v4304 = vunpack.c.l.b16 %v4232
    %v4305 = vunpack.c.l.b16 %v4233
    %v4306 = vunpack.c.h.b16 %v4233
    %v4307 = vunpack.c.l.b16 %v4234
    %v4308 = vunpack.c.l.b16 %v4235
    %v4309 = vunpack.c.h.b16 %v4235
    %v4310 = vunpack.c.l.b16 %v4236
    %v4311 = vunpack.c.l.b16 %v4237
    %v4312 = vunpack.c.h.b16 %v4237
    %v4313 = vunpack.c.l.b16 %v4238
    %v4314 = vunpack.c.l.b16 %v4239
    %v4315 = vunpack.c.h.b16 %v4239
    %v4316 = vunpack.c.l.b16 %v4240
    %v4317 = vunpack.c.l.b16 %v4241
    %v4318 = vunpack.c.h.b16 %v4241
    %v4319 = vunpack.c.l.b16 %v4242
    %v4320 = vunpack.c.l.b16 %v4243
    %v4321 = vunpack.c.h.b16 %v4243
    %v4322 = vunpack.c.l.b16 %v4244
    %v4323 = vunpack.c.l.b16 %v4245
    %v4324 = vunpack.c.h.b16 %v4245
    %v4325 = vunpack.c.l.b16 %v4246
    %v4326 = vunpack.c.l.b16 %v4247
    %v4327 = vunpack.c.h.b16 %v4247
    %v4328 = vunpack.c.l.b16 %v4248
    %v4329 = vpack.c.b16 %v4284, %v4281
    %v4330 = vpack.c.b16 %v4285, %v4282
    %v4331 = vpack.c.b16 %v4286, %v4283
    %v4332 = vpack.c.b16 %v4290, %v4287
    %v4333 = vpack.c.b16 %v4291, %v4288
    %v4334 = vpack.c.b16 %v4292, %v4289
    %v4335 = vpack.c.b16 %v4296, %v4293
    %v4336 = vpack.c.b16 %v4297, %v4294
    %v4337 = vpack.c.b16 %v4298, %v4295
    %v4338 = vpack.c.b16 %v4302, %v4299
    %v4339 = vpack.c.b16 %v4303, %v4300
    %v4340 = vpack.c.b16 %v4304, %v4301
    %v4341 = vpack.c.b16 %v4308, %v4305
    %v4342 = vpack.c.b16 %v4309, %v4306
    %v4343 = vpack.c.b16 %v4310, %v4307
    %v4344 = vpack.c.b16 %v4314, %v4311
    %v4345 = vpack.c.b16 %v4315, %v4312
    %v4346 = vpack.c.b16 %v4316, %v4313
    %v4347 = vpack.c.b16 %v4320, %v4317
    %v4348 = vpack.c.b16 %v4321, %v4318
    %v4349 = vpack.c.b16 %v4322, %v4319
    %v4350 = vpack.c.b16 %v4326, %v4323
    %v4351 = vpack.c.b16 %v4327, %v4324
    %v4352 = vpack.c.b16 %v4328, %v4325
    %4377 = vmatprep.subr.bf16.mxu0 %v4330
    %4378 = vmatpush1.bf16.msra.mxu0 %v4329
    %4379 = vmatprep.subr.bf16.mxu0 %v4333
    %4380 = vmatpush1.bf16.msra.mxu0 %v4332
    %4381 = vmatprep.subr.bf16.mxu0 %v4336
    %4382 = vmatpush1.bf16.msra.mxu0 %v4335
    %4383 = vmatprep.subr.bf16.mxu0 %v4339
    %4384 = vmatpush1.bf16.msra.mxu0 %v4338
    %4385 = vmatprep.subr.bf16.mxu0 %v4342
    %4386 = vmatpush1.bf16.msra.mxu0 %v4341
    %4387 = vmatprep.subr.bf16.mxu0 %v4345
    %4388 = vmatpush1.bf16.msra.mxu0 %v4344
    %4389 = vmatprep.subr.bf16.mxu0 %v4348
    %4390 = vmatpush1.bf16.msra.mxu0 %v4347
    %4391 = vmatprep.subr.bf16.mxu0 %v4351
    %4392 = vmatpush1.bf16.msra.mxu0 %v4350
    %4393 = vmatprep.subr.bf16.mxu0 0
    %4394 = vmatpush1.bf16.msra.mxu0 0
    %4395 = vmatprep.subr.bf16.mxu0 0
    %4396 = vmatpush1.bf16.msra.mxu0 0
    %4397 = vmatprep.subr.bf16.mxu0 0
    %4398 = vmatpush1.bf16.msra.mxu0 0
    %4399 = vmatprep.subr.bf16.mxu0 0
    %4400 = vmatpush1.bf16.msra.mxu0 0
    %4401 = vmatprep.subr.bf16.mxu0 0
    %4402 = vmatpush1.bf16.msra.mxu0 0
    %4403 = vmatprep.subr.bf16.mxu0 0
    %4404 = vmatpush1.bf16.msra.mxu0 0
    %4405 = vmatprep.subr.bf16.mxu0 0
    %4406 = vmatpush1.bf16.msra.mxu0 0
    %4407 = vmatprep.subr.bf16.mxu0 0
    %4408 = vmatpush1.bf16.msra.mxu0 0
    %4409 = vmatprep.mubr.bf16.mxu0 0
    %4410 = vmatmul.mubr.bf16.gmra.mrb[0].mxu0 %v4216
    %v4411 = vpop.f32.mrb[0].mxu0
    %v4412 = vadd.f32 %v519, %v4411
    %v4413 = vpop.f32.mrb[0].mxu0
    %v4414 = vadd.f32 %v523, %v4413
    %v4415 = vpop.f32.mrb[0].mxu0
    %v4416 = vpop.f32.mrb[0].mxu0
    %4417 = vdwg.mxu0
    %4418 = vmatprep.subr.bf16.mxu0 0
    %4419 = vmatpush1.bf16.msra.mxu0 %v4331
    %4420 = vmatprep.subr.bf16.mxu0 0
    %4421 = vmatpush1.bf16.msra.mxu0 %v4334
    %4422 = vmatprep.subr.bf16.mxu0 0
    %4423 = vmatpush1.bf16.msra.mxu0 %v4337
    %4424 = vmatprep.subr.bf16.mxu0 0
    %4425 = vmatpush1.bf16.msra.mxu0 %v4340
    %4426 = vmatprep.subr.bf16.mxu0 0
    %4427 = vmatpush1.bf16.msra.mxu0 %v4343
    %4428 = vmatprep.subr.bf16.mxu0 0
    %4429 = vmatpush1.bf16.msra.mxu0 %v4346
    %4430 = vmatprep.subr.bf16.mxu0 0
    %4431 = vmatpush1.bf16.msra.mxu0 %v4349
    %4432 = vmatprep.subr.bf16.mxu0 0
    %4433 = vmatpush1.bf16.msra.mxu0 %v4352
    %4434 = vmatprep.subr.bf16.mxu0 0
    %4435 = vmatpush1.bf16.msra.mxu0 0
    %4436 = vmatprep.subr.bf16.mxu0 0
    %4437 = vmatpush1.bf16.msra.mxu0 0
    %4438 = vmatprep.subr.bf16.mxu0 0
    %4439 = vmatpush1.bf16.msra.mxu0 0
    %4440 = vmatprep.subr.bf16.mxu0 0
    %4441 = vmatpush1.bf16.msra.mxu0 0
    %4442 = vmatprep.subr.bf16.mxu0 0
    %4443 = vmatpush1.bf16.msra.mxu0 0
    %4444 = vmatprep.subr.bf16.mxu0 0
    %4445 = vmatpush1.bf16.msra.mxu0 0
    %4446 = vmatprep.subr.bf16.mxu0 0
    %4447 = vmatpush1.bf16.msra.mxu0 0
    %4448 = vmatprep.subr.bf16.mxu0 0
    %4449 = vmatpush1.bf16.msra.mxu0 0
    %4450 = vmatprep.mubr.bf16.mxu0 0
    %4451 = vmatmul.mubr.bf16.gmra.mrb[0].mxu0 %v4216
    %v4452 = vpop.f32.mrb[0].mxu0
    %v4453 = vadd.f32 %v527, %v4452
    %v4454 = vpop.f32.mrb[0].mxu0
    %v4455 = vpop.f32.mrb[0].mxu0
    %v4456 = vpop.f32.mrb[0].mxu0
    %4457 = vdwg.mxu0
    %v4458 = vadd.f32 %v4170, %v4412
    %v4459 = vxor.u32 %v4458, 2147483648
    %v4460 = vmul.f32 %v4459, 1.442695
    %v4461 = vpow.pop %v4460
    %v4462 = vadd.f32 %v4461, 1.0
    %v4463 = vrcp.pop %v4462
    %v4464 = vmul.f32 1.0, %v4463
    %v4465 = vadd.f32 %v4172, %v4414
    %v4466 = vxor.u32 %v4465, 2147483648
    %v4467 = vmul.f32 %v4466, 1.442695
    %v4468 = vpow.pop %v4467
    %v4469 = vadd.f32 %v4468, 1.0
    %v4470 = vrcp.pop %v4469
    %v4471 = vmul.f32 1.0, %v4470
    %v4472 = vmul.f32 %v4464, %v4453
    %v4473 = vadd.f32 %v4211, %v4472
    %v4474 = vtanh.pop %v4473
    %v4475 = vsub.f32 1.0, %v4471
    %v4476 = vmul.f32 %v4475, %v4474
    %v4477 = vmul.f32 %v4471, %v3693
    %v4478 = vadd.f32 %v4476, %v4477
    %v4479 = vsel %vm3971, %v4478, %v3693
    %v4480 = vsel %vm3971, %v4478, 0.0
    %s4481 = scalar_lea.vmem [#allocation15], 32
    %4482 = vst [vmem:[%s4481] sm:$0xff] %v4480
    %vm4483 = vcmp.gt.s32.totalorder %v495, 5
    %s4484 = smul.u32 5, 3
    %s4485 = smul.addr %s4484, 8
    %s4486 = scalar_lea.vmem [#allocation2], %s4485
    %v4487 = vld [vmem:[%s4486] sm:$0xff]
    %v4488 = vld [vmem:[%s4486 + $0x8] sm:$0xff]
    %v4489 = vld [vmem:[%s4486 + $0x10] sm:$0xff]
    %v4490 = vpack.c.bf16 %v3972, %v3972
    %v4491 = vld [vmem:[#allocation11] sm:$0xff]
    %v4492 = vld [vmem:[#allocation11 + $0x8] sm:$0xf]
    %v4493 = vld [vmem:[#allocation11 + $0xc] sm:$0xff]
    %v4494 = vld [vmem:[#allocation11 + $0x14] sm:$0xf]
    %v4495 = vld [vmem:[#allocation11 + $0x18] sm:$0xff]
    %v4496 = vld [vmem:[#allocation11 + $0x20] sm:$0xf]
    %v4497 = vld [vmem:[#allocation11 + $0x24] sm:$0xff]
    %v4498 = vld [vmem:[#allocation11 + $0x2c] sm:$0xf]
    %v4499 = vld [vmem:[#allocation11 + $0x30] sm:$0xff]
    %v4500 = vld [vmem:[#allocation11 + $0x38] sm:$0xf]
    %v4501 = vld [vmem:[#allocation11 + $0x3c] sm:$0xff]
    %v4502 = vld [vmem:[#allocation11 + $0x44] sm:$0xf]
    %v4503 = vld [vmem:[#allocation11 + $0x48] sm:$0xff]
    %v4504 = vld [vmem:[#allocation11 + $0x50] sm:$0xf]
    %v4505 = vld [vmem:[#allocation11 + $0x54] sm:$0xff]
    %v4506 = vld [vmem:[#allocation11 + $0x5c] sm:$0xf]
    %v4507 = vld [vmem:[#allocation11 + $0x60] sm:$0xff]
    %v4508 = vld [vmem:[#allocation11 + $0x68] sm:$0xf]
    %v4509 = vld [vmem:[#allocation11 + $0x6c] sm:$0xff]
    %v4510 = vld [vmem:[#allocation11 + $0x74] sm:$0xf]
    %v4511 = vld [vmem:[#allocation11 + $0x78] sm:$0xff]
    %v4512 = vld [vmem:[#allocation11 + $0x80] sm:$0xf]
    %v4513 = vld [vmem:[#allocation11 + $0x84] sm:$0xff]
    %v4514 = vld [vmem:[#allocation11 + $0x8c] sm:$0xf]
    %v4515 = vld [vmem:[#allocation11 + $0x90] sm:$0xff]
    %v4516 = vld [vmem:[#allocation11 + $0x98] sm:$0xf]
    %v4517 = vld [vmem:[#allocation11 + $0x9c] sm:$0xff]
    %v4518 = vld [vmem:[#allocation11 + $0xa4] sm:$0xf]
    %v4519 = vld [vmem:[#allocation11 + $0xa8] sm:$0xff]
    %v4520 = vld [vmem:[#allocation11 + $0xb0] sm:$0xf]
    %v4521 = vld [vmem:[#allocation11 + $0xb4] sm:$0xff]
    %v4522 = vld [vmem:[#allocation11 + $0xbc] sm:$0xf]
    %v4555 = vunpack.c.l.b16 %v4491
    %v4556 = vunpack.c.h.b16 %v4491
    %v4557 = vunpack.c.l.b16 %v4492
    %v4558 = vunpack.c.l.b16 %v4493
    %v4559 = vunpack.c.h.b16 %v4493
    %v4560 = vunpack.c.l.b16 %v4494
    %v4561 = vunpack.c.l.b16 %v4495
    %v4562 = vunpack.c.h.b16 %v4495
    %v4563 = vunpack.c.l.b16 %v4496
    %v4564 = vunpack.c.l.b16 %v4497
    %v4565 = vunpack.c.h.b16 %v4497
    %v4566 = vunpack.c.l.b16 %v4498
    %v4567 = vunpack.c.l.b16 %v4499
    %v4568 = vunpack.c.h.b16 %v4499
    %v4569 = vunpack.c.l.b16 %v4500
    %v4570 = vunpack.c.l.b16 %v4501
    %v4571 = vunpack.c.h.b16 %v4501
    %v4572 = vunpack.c.l.b16 %v4502
    %v4573 = vunpack.c.l.b16 %v4503
    %v4574 = vunpack.c.h.b16 %v4503
    %v4575 = vunpack.c.l.b16 %v4504
    %v4576 = vunpack.c.l.b16 %v4505
    %v4577 = vunpack.c.h.b16 %v4505
    %v4578 = vunpack.c.l.b16 %v4506
    %v4579 = vunpack.c.l.b16 %v4507
    %v4580 = vunpack.c.h.b16 %v4507
    %v4581 = vunpack.c.l.b16 %v4508
    %v4582 = vunpack.c.l.b16 %v4509
    %v4583 = vunpack.c.h.b16 %v4509
    %v4584 = vunpack.c.l.b16 %v4510
    %v4585 = vunpack.c.l.b16 %v4511
    %v4586 = vunpack.c.h.b16 %v4511
    %v4587 = vunpack.c.l.b16 %v4512
    %v4588 = vunpack.c.l.b16 %v4513
    %v4589 = vunpack.c.h.b16 %v4513
    %v4590 = vunpack.c.l.b16 %v4514
    %v4591 = vunpack.c.l.b16 %v4515
    %v4592 = vunpack.c.h.b16 %v4515
    %v4593 = vunpack.c.l.b16 %v4516
    %v4594 = vunpack.c.l.b16 %v4517
    %v4595 = vunpack.c.h.b16 %v4517
    %v4596 = vunpack.c.l.b16 %v4518
    %v4597 = vunpack.c.l.b16 %v4519
    %v4598 = vunpack.c.h.b16 %v4519
    %v4599 = vunpack.c.l.b16 %v4520
    %v4600 = vunpack.c.l.b16 %v4521
    %v4601 = vunpack.c.h.b16 %v4521
    %v4602 = vunpack.c.l.b16 %v4522
    %v4603 = vpack.c.b16 %v4558, %v4555
    %v4604 = vpack.c.b16 %v4559, %v4556
    %v4605 = vpack.c.b16 %v4560, %v4557
    %v4606 = vpack.c.b16 %v4564, %v4561
    %v4607 = vpack.c.b16 %v4565, %v4562
    %v4608 = vpack.c.b16 %v4566, %v4563
    %v4609 = vpack.c.b16 %v4570, %v4567
    %v4610 = vpack.c.b16 %v4571, %v4568
    %v4611 = vpack.c.b16 %v4572, %v4569
    %v4612 = vpack.c.b16 %v4576, %v4573
    %v4613 = vpack.c.b16 %v4577, %v4574
    %v4614 = vpack.c.b16 %v4578, %v4575
    %v4615 = vpack.c.b16 %v4582, %v4579
    %v4616 = vpack.c.b16 %v4583, %v4580
    %v4617 = vpack.c.b16 %v4584, %v4581
    %v4618 = vpack.c.b16 %v4588, %v4585
    %v4619 = vpack.c.b16 %v4589, %v4586
    %v4620 = vpack.c.b16 %v4590, %v4587
    %v4621 = vpack.c.b16 %v4594, %v4591
    %v4622 = vpack.c.b16 %v4595, %v4592
    %v4623 = vpack.c.b16 %v4596, %v4593
    %v4624 = vpack.c.b16 %v4600, %v4597
    %v4625 = vpack.c.b16 %v4601, %v4598
    %v4626 = vpack.c.b16 %v4602, %v4599
    %4651 = vmatprep.subr.bf16.mxu0 %v4604
    %4652 = vmatpush1.bf16.msra.mxu0 %v4603
    %4653 = vmatprep.subr.bf16.mxu0 %v4607
    %4654 = vmatpush1.bf16.msra.mxu0 %v4606
    %4655 = vmatprep.subr.bf16.mxu0 %v4610
    %4656 = vmatpush1.bf16.msra.mxu0 %v4609
    %4657 = vmatprep.subr.bf16.mxu0 %v4613
    %4658 = vmatpush1.bf16.msra.mxu0 %v4612
    %4659 = vmatprep.subr.bf16.mxu0 %v4616
    %4660 = vmatpush1.bf16.msra.mxu0 %v4615
    %4661 = vmatprep.subr.bf16.mxu0 %v4619
    %4662 = vmatpush1.bf16.msra.mxu0 %v4618
    %4663 = vmatprep.subr.bf16.mxu0 %v4622
    %4664 = vmatpush1.bf16.msra.mxu0 %v4621
    %4665 = vmatprep.subr.bf16.mxu0 %v4625
    %4666 = vmatpush1.bf16.msra.mxu0 %v4624
    %4667 = vmatprep.subr.bf16.mxu0 0
    %4668 = vmatpush1.bf16.msra.mxu0 0
    %4669 = vmatprep.subr.bf16.mxu0 0
    %4670 = vmatpush1.bf16.msra.mxu0 0
    %4671 = vmatprep.subr.bf16.mxu0 0
    %4672 = vmatpush1.bf16.msra.mxu0 0
    %4673 = vmatprep.subr.bf16.mxu0 0
    %4674 = vmatpush1.bf16.msra.mxu0 0
    %4675 = vmatprep.subr.bf16.mxu0 0
    %4676 = vmatpush1.bf16.msra.mxu0 0
    %4677 = vmatprep.subr.bf16.mxu0 0
    %4678 = vmatpush1.bf16.msra.mxu0 0
    %4679 = vmatprep.subr.bf16.mxu0 0
    %4680 = vmatpush1.bf16.msra.mxu0 0
    %4681 = vmatprep.subr.bf16.mxu0 0
    %4682 = vmatpush1.bf16.msra.mxu0 0
    %4683 = vmatprep.mubr.bf16.mxu0 0
    %4684 = vmatmul.mubr.bf16.gmra.mrb[0].mxu0 %v4490
    %v4685 = vpop.f32.mrb[0].mxu0
    %v4686 = vadd.f32 %v501, %v4685
    %v4687 = vpop.f32.mrb[0].mxu0
    %v4688 = vadd.f32 %v505, %v4687
    %v4689 = vpop.f32.mrb[0].mxu0
    %v4690 = vpop.f32.mrb[0].mxu0
    %4691 = vdwg.mxu0
    %4692 = vmatprep.subr.bf16.mxu0 0
    %4693 = vmatpush1.bf16.msra.mxu0 %v4605
    %4694 = vmatprep.subr.bf16.mxu0 0
    %4695 = vmatpush1.bf16.msra.mxu0 %v4608
    %4696 = vmatprep.subr.bf16.mxu0 0
    %4697 = vmatpush1.bf16.msra.mxu0 %v4611
    %4698 = vmatprep.subr.bf16.mxu0 0
    %4699 = vmatpush1.bf16.msra.mxu0 %v4614
    %4700 = vmatprep.subr.bf16.mxu0 0
    %4701 = vmatpush1.bf16.msra.mxu0 %v4617
    %4702 = vmatprep.subr.bf16.mxu0 0
    %4703 = vmatpush1.bf16.msra.mxu0 %v4620
    %4704 = vmatprep.subr.bf16.mxu0 0
    %4705 = vmatpush1.bf16.msra.mxu0 %v4623
    %4706 = vmatprep.subr.bf16.mxu0 0
    %4707 = vmatpush1.bf16.msra.mxu0 %v4626
    %4708 = vmatprep.subr.bf16.mxu0 0
    %4709 = vmatpush1.bf16.msra.mxu0 0
    %4710 = vmatprep.subr.bf16.mxu0 0
    %4711 = vmatpush1.bf16.msra.mxu0 0
    %4712 = vmatprep.subr.bf16.mxu0 0
    %4713 = vmatpush1.bf16.msra.mxu0 0
    %4714 = vmatprep.subr.bf16.mxu0 0
    %4715 = vmatpush1.bf16.msra.mxu0 0
    %4716 = vmatprep.subr.bf16.mxu0 0
    %4717 = vmatpush1.bf16.msra.mxu0 0
    %4718 = vmatprep.subr.bf16.mxu0 0
    %4719 = vmatpush1.bf16.msra.mxu0 0
    %4720 = vmatprep.subr.bf16.mxu0 0
    %4721 = vmatpush1.bf16.msra.mxu0 0
    %4722 = vmatprep.subr.bf16.mxu0 0
    %4723 = vmatpush1.bf16.msra.mxu0 0
    %4724 = vmatprep.mubr.bf16.mxu0 0
    %4725 = vmatmul.mubr.bf16.gmra.mrb[0].mxu0 %v4490
    %v4726 = vpop.f32.mrb[0].mxu0
    %v4727 = vadd.f32 %v509, %v4726
    %v4728 = vpop.f32.mrb[0].mxu0
    %v4729 = vpop.f32.mrb[0].mxu0
    %v4730 = vpop.f32.mrb[0].mxu0
    %4731 = vdwg.mxu0
    %v4732 = vadd.f32 %v4487, %v4686
    %v4733 = vxor.u32 %v4732, 2147483648
    %v4734 = vmul.f32 %v4733, 1.442695
    %v4735 = vpow.pop %v4734
    %v4736 = vadd.f32 %v4735, 1.0
    %v4737 = vrcp.pop %v4736
    %v4738 = vmul.f32 1.0, %v4737
    %v4739 = vadd.f32 %v4488, %v4688
    %v4740 = vxor.u32 %v4739, 2147483648
    %v4741 = vmul.f32 %v4740, 1.442695
    %v4742 = vpow.pop %v4741
    %v4743 = vadd.f32 %v4742, 1.0
    %v4744 = vrcp.pop %v4743
    %v4745 = vmul.f32 1.0, %v4744
    %v4746 = vmul.f32 %v4738, %v4727
    %v4747 = vadd.f32 %v4489, %v4746
    %v4748 = vtanh.pop %v4747
    %v4749 = vsub.f32 1.0, %v4745
    %v4750 = vmul.f32 %v4749, %v4748
    %v4751 = vmul.f32 %v4745, %v3972
    %v4752 = vadd.f32 %v4750, %v4751
    %v4753 = vsel %vm4483, 1, 0
    %4754 = vset.pattern.permute.xlu0 0
    %4755 = vperm.xlu0 %4754, %v4753
    %v4756 = vpop.permute.xlu0 %4755
    %vm4757 = vcmp.eq.s32.totalorder %v4756, 1
    %v4758 = vsel %vm4757, %v4752, %v3972
    %v4759 = vsel %vm4757, %v4752, 0.0
    %v4760 = vpack.c.bf16 %v4759, %v4759
    %v4761 = vld [vmem:[%s830] sm:$0xff]
    %v4762 = vld [vmem:[%s830 + $0x8] sm:$0xf]
    %v4763 = vld [vmem:[%s830 + $0xc] sm:$0xff]
    %v4764 = vld [vmem:[%s830 + $0x14] sm:$0xf]
    %v4765 = vld [vmem:[%s830 + $0x18] sm:$0xff]
    %v4766 = vld [vmem:[%s830 + $0x20] sm:$0xf]
    %v4767 = vld [vmem:[%s830 + $0x24] sm:$0xff]
    %v4768 = vld [vmem:[%s830 + $0x2c] sm:$0xf]
    %v4769 = vld [vmem:[%s830 + $0x30] sm:$0xff]
    %v4770 = vld [vmem:[%s830 + $0x38] sm:$0xf]
    %v4771 = vld [vmem:[%s830 + $0x3c] sm:$0xff]
    %v4772 = vld [vmem:[%s830 + $0x44] sm:$0xf]
    %v4773 = vld [vmem:[%s830 + $0x48] sm:$0xff]
    %v4774 = vld [vmem:[%s830 + $0x50] sm:$0xf]
    %v4775 = vld [vmem:[%s830 + $0x54] sm:$0xff]
    %v4776 = vld [vmem:[%s830 + $0x5c] sm:$0xf]
    %v4777 = vld [vmem:[%s830 + $0x60] sm:$0xff]
    %v4778 = vld [vmem:[%s830 + $0x68] sm:$0xf]
    %v4779 = vld [vmem:[%s830 + $0x6c] sm:$0xff]
    %v4780 = vld [vmem:[%s830 + $0x74] sm:$0xf]
    %v4781 = vld [vmem:[%s830 + $0x78] sm:$0xff]
    %v4782 = vld [vmem:[%s830 + $0x80] sm:$0xf]
    %v4783 = vld [vmem:[%s830 + $0x84] sm:$0xff]
    %v4784 = vld [vmem:[%s830 + $0x8c] sm:$0xf]
    %v4785 = vld [vmem:[%s830 + $0x90] sm:$0xff]
    %v4786 = vld [vmem:[%s830 + $0x98] sm:$0xf]
    %v4787 = vld [vmem:[%s830 + $0x9c] sm:$0xff]
    %v4788 = vld [vmem:[%s830 + $0xa4] sm:$0xf]
    %v4789 = vld [vmem:[%s830 + $0xa8] sm:$0xff]
    %v4790 = vld [vmem:[%s830 + $0xb0] sm:$0xf]
    %v4791 = vld [vmem:[%s830 + $0xb4] sm:$0xff]
    %v4792 = vld [vmem:[%s830 + $0xbc] sm:$0xf]
    %v4825 = vunpack.c.l.b16 %v4761
    %v4826 = vunpack.c.h.b16 %v4761
    %v4827 = vunpack.c.l.b16 %v4762
    %v4828 = vunpack.c.l.b16 %v4763
    %v4829 = vunpack.c.h.b16 %v4763
    %v4830 = vunpack.c.l.b16 %v4764
    %v4831 = vunpack.c.l.b16 %v4765
    %v4832 = vunpack.c.h.b16 %v4765
    %v4833 = vunpack.c.l.b16 %v4766
    %v4834 = vunpack.c.l.b16 %v4767
    %v4835 = vunpack.c.h.b16 %v4767
    %v4836 = vunpack.c.l.b16 %v4768
    %v4837 = vunpack.c.l.b16 %v4769
    %v4838 = vunpack.c.h.b16 %v4769
    %v4839 = vunpack.c.l.b16 %v4770
    %v4840 = vunpack.c.l.b16 %v4771
    %v4841 = vunpack.c.h.b16 %v4771
    %v4842 = vunpack.c.l.b16 %v4772
    %v4843 = vunpack.c.l.b16 %v4773
    %v4844 = vunpack.c.h.b16 %v4773
    %v4845 = vunpack.c.l.b16 %v4774
    %v4846 = vunpack.c.l.b16 %v4775
    %v4847 = vunpack.c.h.b16 %v4775
    %v4848 = vunpack.c.l.b16 %v4776
    %v4849 = vunpack.c.l.b16 %v4777
    %v4850 = vunpack.c.h.b16 %v4777
    %v4851 = vunpack.c.l.b16 %v4778
    %v4852 = vunpack.c.l.b16 %v4779
    %v4853 = vunpack.c.h.b16 %v4779
    %v4854 = vunpack.c.l.b16 %v4780
    %v4855 = vunpack.c.l.b16 %v4781
    %v4856 = vunpack.c.h.b16 %v4781
    %v4857 = vunpack.c.l.b16 %v4782
    %v4858 = vunpack.c.l.b16 %v4783
    %v4859 = vunpack.c.h.b16 %v4783
    %v4860 = vunpack.c.l.b16 %v4784
    %v4861 = vunpack.c.l.b16 %v4785
    %v4862 = vunpack.c.h.b16 %v4785
    %v4863 = vunpack.c.l.b16 %v4786
    %v4864 = vunpack.c.l.b16 %v4787
    %v4865 = vunpack.c.h.b16 %v4787
    %v4866 = vunpack.c.l.b16 %v4788
    %v4867 = vunpack.c.l.b16 %v4789
    %v4868 = vunpack.c.h.b16 %v4789
    %v4869 = vunpack.c.l.b16 %v4790
    %v4870 = vunpack.c.l.b16 %v4791
    %v4871 = vunpack.c.h.b16 %v4791
    %v4872 = vunpack.c.l.b16 %v4792
    %v4873 = vpack.c.b16 %v4828, %v4825
    %v4874 = vpack.c.b16 %v4829, %v4826
    %v4875 = vpack.c.b16 %v4830, %v4827
    %v4876 = vpack.c.b16 %v4834, %v4831
    %v4877 = vpack.c.b16 %v4835, %v4832
    %v4878 = vpack.c.b16 %v4836, %v4833
    %v4879 = vpack.c.b16 %v4840, %v4837
    %v4880 = vpack.c.b16 %v4841, %v4838
    %v4881 = vpack.c.b16 %v4842, %v4839
    %v4882 = vpack.c.b16 %v4846, %v4843
    %v4883 = vpack.c.b16 %v4847, %v4844
    %v4884 = vpack.c.b16 %v4848, %v4845
    %v4885 = vpack.c.b16 %v4852, %v4849
    %v4886 = vpack.c.b16 %v4853, %v4850
    %v4887 = vpack.c.b16 %v4854, %v4851
    %v4888 = vpack.c.b16 %v4858, %v4855
    %v4889 = vpack.c.b16 %v4859, %v4856
    %v4890 = vpack.c.b16 %v4860, %v4857
    %v4891 = vpack.c.b16 %v4864, %v4861
    %v4892 = vpack.c.b16 %v4865, %v4862
    %v4893 = vpack.c.b16 %v4866, %v4863
    %v4894 = vpack.c.b16 %v4870, %v4867
    %v4895 = vpack.c.b16 %v4871, %v4868
    %v4896 = vpack.c.b16 %v4872, %v4869
    %4921 = vmatprep.subr.bf16.mxu0 %v4874
    %4922 = vmatpush1.bf16.msra.mxu0 %v4873
    %4923 = vmatprep.subr.bf16.mxu0 %v4877
    %4924 = vmatpush1.bf16.msra.mxu0 %v4876
    %4925 = vmatprep.subr.bf16.mxu0 %v4880
    %4926 = vmatpush1.bf16.msra.mxu0 %v4879
    %4927 = vmatprep.subr.bf16.mxu0 %v4883
    %4928 = vmatpush1.bf16.msra.mxu0 %v4882
    %4929 = vmatprep.subr.bf16.mxu0 %v4886
    %4930 = vmatpush1.bf16.msra.mxu0 %v4885
    %4931 = vmatprep.subr.bf16.mxu0 %v4889
    %4932 = vmatpush1.bf16.msra.mxu0 %v4888
    %4933 = vmatprep.subr.bf16.mxu0 %v4892
    %4934 = vmatpush1.bf16.msra.mxu0 %v4891
    %4935 = vmatprep.subr.bf16.mxu0 %v4895
    %4936 = vmatpush1.bf16.msra.mxu0 %v4894
    %4937 = vmatprep.subr.bf16.mxu0 0
    %4938 = vmatpush1.bf16.msra.mxu0 0
    %4939 = vmatprep.subr.bf16.mxu0 0
    %4940 = vmatpush1.bf16.msra.mxu0 0
    %4941 = vmatprep.subr.bf16.mxu0 0
    %4942 = vmatpush1.bf16.msra.mxu0 0
    %4943 = vmatprep.subr.bf16.mxu0 0
    %4944 = vmatpush1.bf16.msra.mxu0 0
    %4945 = vmatprep.subr.bf16.mxu0 0
    %4946 = vmatpush1.bf16.msra.mxu0 0
    %4947 = vmatprep.subr.bf16.mxu0 0
    %4948 = vmatpush1.bf16.msra.mxu0 0
    %4949 = vmatprep.subr.bf16.mxu0 0
    %4950 = vmatpush1.bf16.msra.mxu0 0
    %4951 = vmatprep.subr.bf16.mxu0 0
    %4952 = vmatpush1.bf16.msra.mxu0 0
    %4953 = vmatprep.mubr.bf16.mxu0 0
    %4954 = vmatmul.mubr.bf16.gmra.mrb[0].mxu0 %v4760
    %v4955 = vpop.f32.mrb[0].mxu0
    %v4956 = vadd.f32 %v537, %v4955
    %v4957 = vpop.f32.mrb[0].mxu0
    %v4958 = vadd.f32 %v541, %v4957
    %v4959 = vpop.f32.mrb[0].mxu0
    %v4960 = vpop.f32.mrb[0].mxu0
    %4961 = vdwg.mxu0
    %4962 = vmatprep.subr.bf16.mxu0 0
    %4963 = vmatpush1.bf16.msra.mxu0 %v4875
    %4964 = vmatprep.subr.bf16.mxu0 0
    %4965 = vmatpush1.bf16.msra.mxu0 %v4878
    %4966 = vmatprep.subr.bf16.mxu0 0
    %4967 = vmatpush1.bf16.msra.mxu0 %v4881
    %4968 = vmatprep.subr.bf16.mxu0 0
    %4969 = vmatpush1.bf16.msra.mxu0 %v4884
    %4970 = vmatprep.subr.bf16.mxu0 0
    %4971 = vmatpush1.bf16.msra.mxu0 %v4887
    %4972 = vmatprep.subr.bf16.mxu0 0
    %4973 = vmatpush1.bf16.msra.mxu0 %v4890
    %4974 = vmatprep.subr.bf16.mxu0 0
    %4975 = vmatpush1.bf16.msra.mxu0 %v4893
    %4976 = vmatprep.subr.bf16.mxu0 0
    %4977 = vmatpush1.bf16.msra.mxu0 %v4896
    %4978 = vmatprep.subr.bf16.mxu0 0
    %4979 = vmatpush1.bf16.msra.mxu0 0
    %4980 = vmatprep.subr.bf16.mxu0 0
    %4981 = vmatpush1.bf16.msra.mxu0 0
    %4982 = vmatprep.subr.bf16.mxu0 0
    %4983 = vmatpush1.bf16.msra.mxu0 0
    %4984 = vmatprep.subr.bf16.mxu0 0
    %4985 = vmatpush1.bf16.msra.mxu0 0
    %4986 = vmatprep.subr.bf16.mxu0 0
    %4987 = vmatpush1.bf16.msra.mxu0 0
    %4988 = vmatprep.subr.bf16.mxu0 0
    %4989 = vmatpush1.bf16.msra.mxu0 0
    %4990 = vmatprep.subr.bf16.mxu0 0
    %4991 = vmatpush1.bf16.msra.mxu0 0
    %4992 = vmatprep.subr.bf16.mxu0 0
    %4993 = vmatpush1.bf16.msra.mxu0 0
    %4994 = vmatprep.mubr.bf16.mxu0 0
    %4995 = vmatmul.mubr.bf16.gmra.mrb[0].mxu0 %v4760
    %v4996 = vpop.f32.mrb[0].mxu0
    %v4997 = vadd.f32 %v545, %v4996
    %v4998 = vpop.f32.mrb[0].mxu0
    %v4999 = vpop.f32.mrb[0].mxu0
    %v5000 = vpop.f32.mrb[0].mxu0
    %5001 = vdwg.mxu0
    %v5002 = vpack.c.bf16 %v4479, %v4479
    %v5003 = vld [vmem:[%s1073] sm:$0xff]
    %v5004 = vld [vmem:[%s1073 + $0x8] sm:$0xf]
    %v5005 = vld [vmem:[%s1073 + $0xc] sm:$0xff]
    %v5006 = vld [vmem:[%s1073 + $0x14] sm:$0xf]
    %v5007 = vld [vmem:[%s1073 + $0x18] sm:$0xff]
    %v5008 = vld [vmem:[%s1073 + $0x20] sm:$0xf]
    %v5009 = vld [vmem:[%s1073 + $0x24] sm:$0xff]
    %v5010 = vld [vmem:[%s1073 + $0x2c] sm:$0xf]
    %v5011 = vld [vmem:[%s1073 + $0x30] sm:$0xff]
    %v5012 = vld [vmem:[%s1073 + $0x38] sm:$0xf]
    %v5013 = vld [vmem:[%s1073 + $0x3c] sm:$0xff]
    %v5014 = vld [vmem:[%s1073 + $0x44] sm:$0xf]
    %v5015 = vld [vmem:[%s1073 + $0x48] sm:$0xff]
    %v5016 = vld [vmem:[%s1073 + $0x50] sm:$0xf]
    %v5017 = vld [vmem:[%s1073 + $0x54] sm:$0xff]
    %v5018 = vld [vmem:[%s1073 + $0x5c] sm:$0xf]
    %v5019 = vld [vmem:[%s1073 + $0x60] sm:$0xff]
    %v5020 = vld [vmem:[%s1073 + $0x68] sm:$0xf]
    %v5021 = vld [vmem:[%s1073 + $0x6c] sm:$0xff]
    %v5022 = vld [vmem:[%s1073 + $0x74] sm:$0xf]
    %v5023 = vld [vmem:[%s1073 + $0x78] sm:$0xff]
    %v5024 = vld [vmem:[%s1073 + $0x80] sm:$0xf]
    %v5025 = vld [vmem:[%s1073 + $0x84] sm:$0xff]
    %v5026 = vld [vmem:[%s1073 + $0x8c] sm:$0xf]
    %v5027 = vld [vmem:[%s1073 + $0x90] sm:$0xff]
    %v5028 = vld [vmem:[%s1073 + $0x98] sm:$0xf]
    %v5029 = vld [vmem:[%s1073 + $0x9c] sm:$0xff]
    %v5030 = vld [vmem:[%s1073 + $0xa4] sm:$0xf]
    %v5031 = vld [vmem:[%s1073 + $0xa8] sm:$0xff]
    %v5032 = vld [vmem:[%s1073 + $0xb0] sm:$0xf]
    %v5033 = vld [vmem:[%s1073 + $0xb4] sm:$0xff]
    %v5034 = vld [vmem:[%s1073 + $0xbc] sm:$0xf]
    %v5067 = vunpack.c.l.b16 %v5003
    %v5068 = vunpack.c.h.b16 %v5003
    %v5069 = vunpack.c.l.b16 %v5004
    %v5070 = vunpack.c.l.b16 %v5005
    %v5071 = vunpack.c.h.b16 %v5005
    %v5072 = vunpack.c.l.b16 %v5006
    %v5073 = vunpack.c.l.b16 %v5007
    %v5074 = vunpack.c.h.b16 %v5007
    %v5075 = vunpack.c.l.b16 %v5008
    %v5076 = vunpack.c.l.b16 %v5009
    %v5077 = vunpack.c.h.b16 %v5009
    %v5078 = vunpack.c.l.b16 %v5010
    %v5079 = vunpack.c.l.b16 %v5011
    %v5080 = vunpack.c.h.b16 %v5011
    %v5081 = vunpack.c.l.b16 %v5012
    %v5082 = vunpack.c.l.b16 %v5013
    %v5083 = vunpack.c.h.b16 %v5013
    %v5084 = vunpack.c.l.b16 %v5014
    %v5085 = vunpack.c.l.b16 %v5015
    %v5086 = vunpack.c.h.b16 %v5015
    %v5087 = vunpack.c.l.b16 %v5016
    %v5088 = vunpack.c.l.b16 %v5017
    %v5089 = vunpack.c.h.b16 %v5017
    %v5090 = vunpack.c.l.b16 %v5018
    %v5091 = vunpack.c.l.b16 %v5019
    %v5092 = vunpack.c.h.b16 %v5019
    %v5093 = vunpack.c.l.b16 %v5020
    %v5094 = vunpack.c.l.b16 %v5021
    %v5095 = vunpack.c.h.b16 %v5021
    %v5096 = vunpack.c.l.b16 %v5022
    %v5097 = vunpack.c.l.b16 %v5023
    %v5098 = vunpack.c.h.b16 %v5023
    %v5099 = vunpack.c.l.b16 %v5024
    %v5100 = vunpack.c.l.b16 %v5025
    %v5101 = vunpack.c.h.b16 %v5025
    %v5102 = vunpack.c.l.b16 %v5026
    %v5103 = vunpack.c.l.b16 %v5027
    %v5104 = vunpack.c.h.b16 %v5027
    %v5105 = vunpack.c.l.b16 %v5028
    %v5106 = vunpack.c.l.b16 %v5029
    %v5107 = vunpack.c.h.b16 %v5029
    %v5108 = vunpack.c.l.b16 %v5030
    %v5109 = vunpack.c.l.b16 %v5031
    %v5110 = vunpack.c.h.b16 %v5031
    %v5111 = vunpack.c.l.b16 %v5032
    %v5112 = vunpack.c.l.b16 %v5033
    %v5113 = vunpack.c.h.b16 %v5033
    %v5114 = vunpack.c.l.b16 %v5034
    %v5115 = vpack.c.b16 %v5070, %v5067
    %v5116 = vpack.c.b16 %v5071, %v5068
    %v5117 = vpack.c.b16 %v5072, %v5069
    %v5118 = vpack.c.b16 %v5076, %v5073
    %v5119 = vpack.c.b16 %v5077, %v5074
    %v5120 = vpack.c.b16 %v5078, %v5075
    %v5121 = vpack.c.b16 %v5082, %v5079
    %v5122 = vpack.c.b16 %v5083, %v5080
    %v5123 = vpack.c.b16 %v5084, %v5081
    %v5124 = vpack.c.b16 %v5088, %v5085
    %v5125 = vpack.c.b16 %v5089, %v5086
    %v5126 = vpack.c.b16 %v5090, %v5087
    %v5127 = vpack.c.b16 %v5094, %v5091
    %v5128 = vpack.c.b16 %v5095, %v5092
    %v5129 = vpack.c.b16 %v5096, %v5093
    %v5130 = vpack.c.b16 %v5100, %v5097
    %v5131 = vpack.c.b16 %v5101, %v5098
    %v5132 = vpack.c.b16 %v5102, %v5099
    %v5133 = vpack.c.b16 %v5106, %v5103
    %v5134 = vpack.c.b16 %v5107, %v5104
    %v5135 = vpack.c.b16 %v5108, %v5105
    %v5136 = vpack.c.b16 %v5112, %v5109
    %v5137 = vpack.c.b16 %v5113, %v5110
    %v5138 = vpack.c.b16 %v5114, %v5111
    %5163 = vmatprep.subr.bf16.mxu0 %v5116
    %5164 = vmatpush1.bf16.msra.mxu0 %v5115
    %5165 = vmatprep.subr.bf16.mxu0 %v5119
    %5166 = vmatpush1.bf16.msra.mxu0 %v5118
    %5167 = vmatprep.subr.bf16.mxu0 %v5122
    %5168 = vmatpush1.bf16.msra.mxu0 %v5121
    %5169 = vmatprep.subr.bf16.mxu0 %v5125
    %5170 = vmatpush1.bf16.msra.mxu0 %v5124
    %5171 = vmatprep.subr.bf16.mxu0 %v5128
    %5172 = vmatpush1.bf16.msra.mxu0 %v5127
    %5173 = vmatprep.subr.bf16.mxu0 %v5131
    %5174 = vmatpush1.bf16.msra.mxu0 %v5130
    %5175 = vmatprep.subr.bf16.mxu0 %v5134
    %5176 = vmatpush1.bf16.msra.mxu0 %v5133
    %5177 = vmatprep.subr.bf16.mxu0 %v5137
    %5178 = vmatpush1.bf16.msra.mxu0 %v5136
    %5179 = vmatprep.subr.bf16.mxu0 0
    %5180 = vmatpush1.bf16.msra.mxu0 0
    %5181 = vmatprep.subr.bf16.mxu0 0
    %5182 = vmatpush1.bf16.msra.mxu0 0
    %5183 = vmatprep.subr.bf16.mxu0 0
    %5184 = vmatpush1.bf16.msra.mxu0 0
    %5185 = vmatprep.subr.bf16.mxu0 0
    %5186 = vmatpush1.bf16.msra.mxu0 0
    %5187 = vmatprep.subr.bf16.mxu0 0
    %5188 = vmatpush1.bf16.msra.mxu0 0
    %5189 = vmatprep.subr.bf16.mxu0 0
    %5190 = vmatpush1.bf16.msra.mxu0 0
    %5191 = vmatprep.subr.bf16.mxu0 0
    %5192 = vmatpush1.bf16.msra.mxu0 0
    %5193 = vmatprep.subr.bf16.mxu0 0
    %5194 = vmatpush1.bf16.msra.mxu0 0
    %5195 = vmatprep.mubr.bf16.mxu0 0
    %5196 = vmatmul.mubr.bf16.gmra.mrb[0].mxu0 %v5002
    %v5197 = vpop.f32.mrb[0].mxu0
    %v5198 = vadd.f32 %v519, %v5197
    %v5199 = vpop.f32.mrb[0].mxu0
    %v5200 = vadd.f32 %v523, %v5199
    %v5201 = vpop.f32.mrb[0].mxu0
    %v5202 = vpop.f32.mrb[0].mxu0
    %5203 = vdwg.mxu0
    %5204 = vmatprep.subr.bf16.mxu0 0
    %5205 = vmatpush1.bf16.msra.mxu0 %v5117
    %5206 = vmatprep.subr.bf16.mxu0 0
    %5207 = vmatpush1.bf16.msra.mxu0 %v5120
    %5208 = vmatprep.subr.bf16.mxu0 0
    %5209 = vmatpush1.bf16.msra.mxu0 %v5123
    %5210 = vmatprep.subr.bf16.mxu0 0
    %5211 = vmatpush1.bf16.msra.mxu0 %v5126
    %5212 = vmatprep.subr.bf16.mxu0 0
    %5213 = vmatpush1.bf16.msra.mxu0 %v5129
    %5214 = vmatprep.subr.bf16.mxu0 0
    %5215 = vmatpush1.bf16.msra.mxu0 %v5132
    %5216 = vmatprep.subr.bf16.mxu0 0
    %5217 = vmatpush1.bf16.msra.mxu0 %v5135
    %5218 = vmatprep.subr.bf16.mxu0 0
    %5219 = vmatpush1.bf16.msra.mxu0 %v5138
    %5220 = vmatprep.subr.bf16.mxu0 0
    %5221 = vmatpush1.bf16.msra.mxu0 0
    %5222 = vmatprep.subr.bf16.mxu0 0
    %5223 = vmatpush1.bf16.msra.mxu0 0
    %5224 = vmatprep.subr.bf16.mxu0 0
    %5225 = vmatpush1.bf16.msra.mxu0 0
    %5226 = vmatprep.subr.bf16.mxu0 0
    %5227 = vmatpush1.bf16.msra.mxu0 0
    %5228 = vmatprep.subr.bf16.mxu0 0
    %5229 = vmatpush1.bf16.msra.mxu0 0
    %5230 = vmatprep.subr.bf16.mxu0 0
    %5231 = vmatpush1.bf16.msra.mxu0 0
    %5232 = vmatprep.subr.bf16.mxu0 0
    %5233 = vmatpush1.bf16.msra.mxu0 0
    %5234 = vmatprep.subr.bf16.mxu0 0
    %5235 = vmatpush1.bf16.msra.mxu0 0
    %5236 = vmatprep.mubr.bf16.mxu0 0
    %5237 = vmatmul.mubr.bf16.gmra.mrb[0].mxu0 %v5002
    %v5238 = vpop.f32.mrb[0].mxu0
    %v5239 = vadd.f32 %v527, %v5238
    %v5240 = vpop.f32.mrb[0].mxu0
    %v5241 = vpop.f32.mrb[0].mxu0
    %v5242 = vpop.f32.mrb[0].mxu0
    %5243 = vdwg.mxu0
    %v5244 = vadd.f32 %v4956, %v5198
    %v5245 = vxor.u32 %v5244, 2147483648
    %v5246 = vmul.f32 %v5245, 1.442695
    %v5247 = vpow.pop %v5246
    %v5248 = vadd.f32 %v5247, 1.0
    %v5249 = vrcp.pop %v5248
    %v5250 = vmul.f32 1.0, %v5249
    %v5251 = vadd.f32 %v4958, %v5200
    %v5252 = vxor.u32 %v5251, 2147483648
    %v5253 = vmul.f32 %v5252, 1.442695
    %v5254 = vpow.pop %v5253
    %v5255 = vadd.f32 %v5254, 1.0
    %v5256 = vrcp.pop %v5255
    %v5257 = vmul.f32 1.0, %v5256
    %v5258 = vmul.f32 %v5250, %v5239
    %v5259 = vadd.f32 %v4997, %v5258
    %v5260 = vtanh.pop %v5259
    %v5261 = vsub.f32 1.0, %v5257
    %v5262 = vmul.f32 %v5261, %v5260
    %v5263 = vmul.f32 %v5257, %v4479
    %v5264 = vadd.f32 %v5262, %v5263
    %v5265 = vsel %vm4757, %v5264, %v4479
    %v5266 = vsel %vm4757, %v5264, 0.0
    %s5267 = scalar_lea.vmem [#allocation15], 40
    %5268 = vst [vmem:[%s5267] sm:$0xff] %v5266
    %vm5269 = vcmp.gt.s32.totalorder %v495, 6
    %s5270 = smul.u32 6, 3
    %s5271 = smul.addr %s5270, 8
    %s5272 = scalar_lea.vmem [#allocation2], %s5271
    %v5273 = vld [vmem:[%s5272] sm:$0xff]
    %v5274 = vld [vmem:[%s5272 + $0x8] sm:$0xff]
    %v5275 = vld [vmem:[%s5272 + $0x10] sm:$0xff]
    %v5276 = vpack.c.bf16 %v4758, %v4758
    %v5277 = vld [vmem:[#allocation11] sm:$0xff]
    %v5278 = vld [vmem:[#allocation11 + $0x8] sm:$0xf]
    %v5279 = vld [vmem:[#allocation11 + $0xc] sm:$0xff]
    %v5280 = vld [vmem:[#allocation11 + $0x14] sm:$0xf]
    %v5281 = vld [vmem:[#allocation11 + $0x18] sm:$0xff]
    %v5282 = vld [vmem:[#allocation11 + $0x20] sm:$0xf]
    %v5283 = vld [vmem:[#allocation11 + $0x24] sm:$0xff]
    %v5284 = vld [vmem:[#allocation11 + $0x2c] sm:$0xf]
    %v5285 = vld [vmem:[#allocation11 + $0x30] sm:$0xff]
    %v5286 = vld [vmem:[#allocation11 + $0x38] sm:$0xf]
    %v5287 = vld [vmem:[#allocation11 + $0x3c] sm:$0xff]
    %v5288 = vld [vmem:[#allocation11 + $0x44] sm:$0xf]
    %v5289 = vld [vmem:[#allocation11 + $0x48] sm:$0xff]
    %v5290 = vld [vmem:[#allocation11 + $0x50] sm:$0xf]
    %v5291 = vld [vmem:[#allocation11 + $0x54] sm:$0xff]
    %v5292 = vld [vmem:[#allocation11 + $0x5c] sm:$0xf]
    %v5293 = vld [vmem:[#allocation11 + $0x60] sm:$0xff]
    %v5294 = vld [vmem:[#allocation11 + $0x68] sm:$0xf]
    %v5295 = vld [vmem:[#allocation11 + $0x6c] sm:$0xff]
    %v5296 = vld [vmem:[#allocation11 + $0x74] sm:$0xf]
    %v5297 = vld [vmem:[#allocation11 + $0x78] sm:$0xff]
    %v5298 = vld [vmem:[#allocation11 + $0x80] sm:$0xf]
    %v5299 = vld [vmem:[#allocation11 + $0x84] sm:$0xff]
    %v5300 = vld [vmem:[#allocation11 + $0x8c] sm:$0xf]
    %v5301 = vld [vmem:[#allocation11 + $0x90] sm:$0xff]
    %v5302 = vld [vmem:[#allocation11 + $0x98] sm:$0xf]
    %v5303 = vld [vmem:[#allocation11 + $0x9c] sm:$0xff]
    %v5304 = vld [vmem:[#allocation11 + $0xa4] sm:$0xf]
    %v5305 = vld [vmem:[#allocation11 + $0xa8] sm:$0xff]
    %v5306 = vld [vmem:[#allocation11 + $0xb0] sm:$0xf]
    %v5307 = vld [vmem:[#allocation11 + $0xb4] sm:$0xff]
    %v5308 = vld [vmem:[#allocation11 + $0xbc] sm:$0xf]
    %v5341 = vunpack.c.l.b16 %v5277
    %v5342 = vunpack.c.h.b16 %v5277
    %v5343 = vunpack.c.l.b16 %v5278
    %v5344 = vunpack.c.l.b16 %v5279
    %v5345 = vunpack.c.h.b16 %v5279
    %v5346 = vunpack.c.l.b16 %v5280
    %v5347 = vunpack.c.l.b16 %v5281
    %v5348 = vunpack.c.h.b16 %v5281
    %v5349 = vunpack.c.l.b16 %v5282
    %v5350 = vunpack.c.l.b16 %v5283
    %v5351 = vunpack.c.h.b16 %v5283
    %v5352 = vunpack.c.l.b16 %v5284
    %v5353 = vunpack.c.l.b16 %v5285
    %v5354 = vunpack.c.h.b16 %v5285
    %v5355 = vunpack.c.l.b16 %v5286
    %v5356 = vunpack.c.l.b16 %v5287
    %v5357 = vunpack.c.h.b16 %v5287
    %v5358 = vunpack.c.l.b16 %v5288
    %v5359 = vunpack.c.l.b16 %v5289
    %v5360 = vunpack.c.h.b16 %v5289
    %v5361 = vunpack.c.l.b16 %v5290
    %v5362 = vunpack.c.l.b16 %v5291
    %v5363 = vunpack.c.h.b16 %v5291
    %v5364 = vunpack.c.l.b16 %v5292
    %v5365 = vunpack.c.l.b16 %v5293
    %v5366 = vunpack.c.h.b16 %v5293
    %v5367 = vunpack.c.l.b16 %v5294
    %v5368 = vunpack.c.l.b16 %v5295
    %v5369 = vunpack.c.h.b16 %v5295
    %v5370 = vunpack.c.l.b16 %v5296
    %v5371 = vunpack.c.l.b16 %v5297
    %v5372 = vunpack.c.h.b16 %v5297
    %v5373 = vunpack.c.l.b16 %v5298
    %v5374 = vunpack.c.l.b16 %v5299
    %v5375 = vunpack.c.h.b16 %v5299
    %v5376 = vunpack.c.l.b16 %v5300
    %v5377 = vunpack.c.l.b16 %v5301
    %v5378 = vunpack.c.h.b16 %v5301
    %v5379 = vunpack.c.l.b16 %v5302
    %v5380 = vunpack.c.l.b16 %v5303
    %v5381 = vunpack.c.h.b16 %v5303
    %v5382 = vunpack.c.l.b16 %v5304
    %v5383 = vunpack.c.l.b16 %v5305
    %v5384 = vunpack.c.h.b16 %v5305
    %v5385 = vunpack.c.l.b16 %v5306
    %v5386 = vunpack.c.l.b16 %v5307
    %v5387 = vunpack.c.h.b16 %v5307
    %v5388 = vunpack.c.l.b16 %v5308
    %v5389 = vpack.c.b16 %v5344, %v5341
    %v5390 = vpack.c.b16 %v5345, %v5342
    %v5391 = vpack.c.b16 %v5346, %v5343
    %v5392 = vpack.c.b16 %v5350, %v5347
    %v5393 = vpack.c.b16 %v5351, %v5348
    %v5394 = vpack.c.b16 %v5352, %v5349
    %v5395 = vpack.c.b16 %v5356, %v5353
    %v5396 = vpack.c.b16 %v5357, %v5354
    %v5397 = vpack.c.b16 %v5358, %v5355
    %v5398 = vpack.c.b16 %v5362, %v5359
    %v5399 = vpack.c.b16 %v5363, %v5360
    %v5400 = vpack.c.b16 %v5364, %v5361
    %v5401 = vpack.c.b16 %v5368, %v5365
    %v5402 = vpack.c.b16 %v5369, %v5366
    %v5403 = vpack.c.b16 %v5370, %v5367
    %v5404 = vpack.c.b16 %v5374, %v5371
    %v5405 = vpack.c.b16 %v5375, %v5372
    %v5406 = vpack.c.b16 %v5376, %v5373
    %v5407 = vpack.c.b16 %v5380, %v5377
    %v5408 = vpack.c.b16 %v5381, %v5378
    %v5409 = vpack.c.b16 %v5382, %v5379
    %v5410 = vpack.c.b16 %v5386, %v5383
    %v5411 = vpack.c.b16 %v5387, %v5384
    %v5412 = vpack.c.b16 %v5388, %v5385
    %5437 = vmatprep.subr.bf16.mxu0 %v5390
    %5438 = vmatpush1.bf16.msra.mxu0 %v5389
    %5439 = vmatprep.subr.bf16.mxu0 %v5393
    %5440 = vmatpush1.bf16.msra.mxu0 %v5392
    %5441 = vmatprep.subr.bf16.mxu0 %v5396
    %5442 = vmatpush1.bf16.msra.mxu0 %v5395
    %5443 = vmatprep.subr.bf16.mxu0 %v5399
    %5444 = vmatpush1.bf16.msra.mxu0 %v5398
    %5445 = vmatprep.subr.bf16.mxu0 %v5402
    %5446 = vmatpush1.bf16.msra.mxu0 %v5401
    %5447 = vmatprep.subr.bf16.mxu0 %v5405
    %5448 = vmatpush1.bf16.msra.mxu0 %v5404
    %5449 = vmatprep.subr.bf16.mxu0 %v5408
    %5450 = vmatpush1.bf16.msra.mxu0 %v5407
    %5451 = vmatprep.subr.bf16.mxu0 %v5411
    %5452 = vmatpush1.bf16.msra.mxu0 %v5410
    %5453 = vmatprep.subr.bf16.mxu0 0
    %5454 = vmatpush1.bf16.msra.mxu0 0
    %5455 = vmatprep.subr.bf16.mxu0 0
    %5456 = vmatpush1.bf16.msra.mxu0 0
    %5457 = vmatprep.subr.bf16.mxu0 0
    %5458 = vmatpush1.bf16.msra.mxu0 0
    %5459 = vmatprep.subr.bf16.mxu0 0
    %5460 = vmatpush1.bf16.msra.mxu0 0
    %5461 = vmatprep.subr.bf16.mxu0 0
    %5462 = vmatpush1.bf16.msra.mxu0 0
    %5463 = vmatprep.subr.bf16.mxu0 0
    %5464 = vmatpush1.bf16.msra.mxu0 0
    %5465 = vmatprep.subr.bf16.mxu0 0
    %5466 = vmatpush1.bf16.msra.mxu0 0
    %5467 = vmatprep.subr.bf16.mxu0 0
    %5468 = vmatpush1.bf16.msra.mxu0 0
    %5469 = vmatprep.mubr.bf16.mxu0 0
    %5470 = vmatmul.mubr.bf16.gmra.mrb[0].mxu0 %v5276
    %v5471 = vpop.f32.mrb[0].mxu0
    %v5472 = vadd.f32 %v501, %v5471
    %v5473 = vpop.f32.mrb[0].mxu0
    %v5474 = vadd.f32 %v505, %v5473
    %v5475 = vpop.f32.mrb[0].mxu0
    %v5476 = vpop.f32.mrb[0].mxu0
    %5477 = vdwg.mxu0
    %5478 = vmatprep.subr.bf16.mxu0 0
    %5479 = vmatpush1.bf16.msra.mxu0 %v5391
    %5480 = vmatprep.subr.bf16.mxu0 0
    %5481 = vmatpush1.bf16.msra.mxu0 %v5394
    %5482 = vmatprep.subr.bf16.mxu0 0
    %5483 = vmatpush1.bf16.msra.mxu0 %v5397
    %5484 = vmatprep.subr.bf16.mxu0 0
    %5485 = vmatpush1.bf16.msra.mxu0 %v5400
    %5486 = vmatprep.subr.bf16.mxu0 0
    %5487 = vmatpush1.bf16.msra.mxu0 %v5403
    %5488 = vmatprep.subr.bf16.mxu0 0
    %5489 = vmatpush1.bf16.msra.mxu0 %v5406
    %5490 = vmatprep.subr.bf16.mxu0 0
    %5491 = vmatpush1.bf16.msra.mxu0 %v5409
    %5492 = vmatprep.subr.bf16.mxu0 0
    %5493 = vmatpush1.bf16.msra.mxu0 %v5412
    %5494 = vmatprep.subr.bf16.mxu0 0
    %5495 = vmatpush1.bf16.msra.mxu0 0
    %5496 = vmatprep.subr.bf16.mxu0 0
    %5497 = vmatpush1.bf16.msra.mxu0 0
    %5498 = vmatprep.subr.bf16.mxu0 0
    %5499 = vmatpush1.bf16.msra.mxu0 0
    %5500 = vmatprep.subr.bf16.mxu0 0
    %5501 = vmatpush1.bf16.msra.mxu0 0
    %5502 = vmatprep.subr.bf16.mxu0 0
    %5503 = vmatpush1.bf16.msra.mxu0 0
    %5504 = vmatprep.subr.bf16.mxu0 0
    %5505 = vmatpush1.bf16.msra.mxu0 0
    %5506 = vmatprep.subr.bf16.mxu0 0
    %5507 = vmatpush1.bf16.msra.mxu0 0
    %5508 = vmatprep.subr.bf16.mxu0 0
    %5509 = vmatpush1.bf16.msra.mxu0 0
    %5510 = vmatprep.mubr.bf16.mxu0 0
    %5511 = vmatmul.mubr.bf16.gmra.mrb[0].mxu0 %v5276
    %v5512 = vpop.f32.mrb[0].mxu0
    %v5513 = vadd.f32 %v509, %v5512
    %v5514 = vpop.f32.mrb[0].mxu0
    %v5515 = vpop.f32.mrb[0].mxu0
    %v5516 = vpop.f32.mrb[0].mxu0
    %5517 = vdwg.mxu0
    %v5518 = vadd.f32 %v5273, %v5472
    %v5519 = vxor.u32 %v5518, 2147483648
    %v5520 = vmul.f32 %v5519, 1.442695
    %v5521 = vpow.pop %v5520
    %v5522 = vadd.f32 %v5521, 1.0
    %v5523 = vrcp.pop %v5522
    %v5524 = vmul.f32 1.0, %v5523
    %v5525 = vadd.f32 %v5274, %v5474
    %v5526 = vxor.u32 %v5525, 2147483648
    %v5527 = vmul.f32 %v5526, 1.442695
    %v5528 = vpow.pop %v5527
    %v5529 = vadd.f32 %v5528, 1.0
    %v5530 = vrcp.pop %v5529
    %v5531 = vmul.f32 1.0, %v5530
    %v5532 = vmul.f32 %v5524, %v5513
    %v5533 = vadd.f32 %v5275, %v5532
    %v5534 = vtanh.pop %v5533
    %v5535 = vsub.f32 1.0, %v5531
    %v5536 = vmul.f32 %v5535, %v5534
    %v5537 = vmul.f32 %v5531, %v4758
    %v5538 = vadd.f32 %v5536, %v5537
    %v5539 = vsel %vm5269, 1, 0
    %5540 = vset.pattern.permute.xlu0 0
    %5541 = vperm.xlu0 %5540, %v5539
    %v5542 = vpop.permute.xlu0 %5541
    %vm5543 = vcmp.eq.s32.totalorder %v5542, 1
    %v5544 = vsel %vm5543, %v5538, %v4758
    %v5545 = vsel %vm5543, %v5538, 0.0
    %v5546 = vpack.c.bf16 %v5545, %v5545
    %v5547 = vld [vmem:[%s830] sm:$0xff]
    %v5548 = vld [vmem:[%s830 + $0x8] sm:$0xf]
    %v5549 = vld [vmem:[%s830 + $0xc] sm:$0xff]
    %v5550 = vld [vmem:[%s830 + $0x14] sm:$0xf]
    %v5551 = vld [vmem:[%s830 + $0x18] sm:$0xff]
    %v5552 = vld [vmem:[%s830 + $0x20] sm:$0xf]
    %v5553 = vld [vmem:[%s830 + $0x24] sm:$0xff]
    %v5554 = vld [vmem:[%s830 + $0x2c] sm:$0xf]
    %v5555 = vld [vmem:[%s830 + $0x30] sm:$0xff]
    %v5556 = vld [vmem:[%s830 + $0x38] sm:$0xf]
    %v5557 = vld [vmem:[%s830 + $0x3c] sm:$0xff]
    %v5558 = vld [vmem:[%s830 + $0x44] sm:$0xf]
    %v5559 = vld [vmem:[%s830 + $0x48] sm:$0xff]
    %v5560 = vld [vmem:[%s830 + $0x50] sm:$0xf]
    %v5561 = vld [vmem:[%s830 + $0x54] sm:$0xff]
    %v5562 = vld [vmem:[%s830 + $0x5c] sm:$0xf]
    %v5563 = vld [vmem:[%s830 + $0x60] sm:$0xff]
    %v5564 = vld [vmem:[%s830 + $0x68] sm:$0xf]
    %v5565 = vld [vmem:[%s830 + $0x6c] sm:$0xff]
    %v5566 = vld [vmem:[%s830 + $0x74] sm:$0xf]
    %v5567 = vld [vmem:[%s830 + $0x78] sm:$0xff]
    %v5568 = vld [vmem:[%s830 + $0x80] sm:$0xf]
    %v5569 = vld [vmem:[%s830 + $0x84] sm:$0xff]
    %v5570 = vld [vmem:[%s830 + $0x8c] sm:$0xf]
    %v5571 = vld [vmem:[%s830 + $0x90] sm:$0xff]
    %v5572 = vld [vmem:[%s830 + $0x98] sm:$0xf]
    %v5573 = vld [vmem:[%s830 + $0x9c] sm:$0xff]
    %v5574 = vld [vmem:[%s830 + $0xa4] sm:$0xf]
    %v5575 = vld [vmem:[%s830 + $0xa8] sm:$0xff]
    %v5576 = vld [vmem:[%s830 + $0xb0] sm:$0xf]
    %v5577 = vld [vmem:[%s830 + $0xb4] sm:$0xff]
    %v5578 = vld [vmem:[%s830 + $0xbc] sm:$0xf]
    %v5611 = vunpack.c.l.b16 %v5547
    %v5612 = vunpack.c.h.b16 %v5547
    %v5613 = vunpack.c.l.b16 %v5548
    %v5614 = vunpack.c.l.b16 %v5549
    %v5615 = vunpack.c.h.b16 %v5549
    %v5616 = vunpack.c.l.b16 %v5550
    %v5617 = vunpack.c.l.b16 %v5551
    %v5618 = vunpack.c.h.b16 %v5551
    %v5619 = vunpack.c.l.b16 %v5552
    %v5620 = vunpack.c.l.b16 %v5553
    %v5621 = vunpack.c.h.b16 %v5553
    %v5622 = vunpack.c.l.b16 %v5554
    %v5623 = vunpack.c.l.b16 %v5555
    %v5624 = vunpack.c.h.b16 %v5555
    %v5625 = vunpack.c.l.b16 %v5556
    %v5626 = vunpack.c.l.b16 %v5557
    %v5627 = vunpack.c.h.b16 %v5557
    %v5628 = vunpack.c.l.b16 %v5558
    %v5629 = vunpack.c.l.b16 %v5559
    %v5630 = vunpack.c.h.b16 %v5559
    %v5631 = vunpack.c.l.b16 %v5560
    %v5632 = vunpack.c.l.b16 %v5561
    %v5633 = vunpack.c.h.b16 %v5561
    %v5634 = vunpack.c.l.b16 %v5562
    %v5635 = vunpack.c.l.b16 %v5563
    %v5636 = vunpack.c.h.b16 %v5563
    %v5637 = vunpack.c.l.b16 %v5564
    %v5638 = vunpack.c.l.b16 %v5565
    %v5639 = vunpack.c.h.b16 %v5565
    %v5640 = vunpack.c.l.b16 %v5566
    %v5641 = vunpack.c.l.b16 %v5567
    %v5642 = vunpack.c.h.b16 %v5567
    %v5643 = vunpack.c.l.b16 %v5568
    %v5644 = vunpack.c.l.b16 %v5569
    %v5645 = vunpack.c.h.b16 %v5569
    %v5646 = vunpack.c.l.b16 %v5570
    %v5647 = vunpack.c.l.b16 %v5571
    %v5648 = vunpack.c.h.b16 %v5571
    %v5649 = vunpack.c.l.b16 %v5572
    %v5650 = vunpack.c.l.b16 %v5573
    %v5651 = vunpack.c.h.b16 %v5573
    %v5652 = vunpack.c.l.b16 %v5574
    %v5653 = vunpack.c.l.b16 %v5575
    %v5654 = vunpack.c.h.b16 %v5575
    %v5655 = vunpack.c.l.b16 %v5576
    %v5656 = vunpack.c.l.b16 %v5577
    %v5657 = vunpack.c.h.b16 %v5577
    %v5658 = vunpack.c.l.b16 %v5578
    %v5659 = vpack.c.b16 %v5614, %v5611
    %v5660 = vpack.c.b16 %v5615, %v5612
    %v5661 = vpack.c.b16 %v5616, %v5613
    %v5662 = vpack.c.b16 %v5620, %v5617
    %v5663 = vpack.c.b16 %v5621, %v5618
    %v5664 = vpack.c.b16 %v5622, %v5619
    %v5665 = vpack.c.b16 %v5626, %v5623
    %v5666 = vpack.c.b16 %v5627, %v5624
    %v5667 = vpack.c.b16 %v5628, %v5625
    %v5668 = vpack.c.b16 %v5632, %v5629
    %v5669 = vpack.c.b16 %v5633, %v5630
    %v5670 = vpack.c.b16 %v5634, %v5631
    %v5671 = vpack.c.b16 %v5638, %v5635
    %v5672 = vpack.c.b16 %v5639, %v5636
    %v5673 = vpack.c.b16 %v5640, %v5637
    %v5674 = vpack.c.b16 %v5644, %v5641
    %v5675 = vpack.c.b16 %v5645, %v5642
    %v5676 = vpack.c.b16 %v5646, %v5643
    %v5677 = vpack.c.b16 %v5650, %v5647
    %v5678 = vpack.c.b16 %v5651, %v5648
    %v5679 = vpack.c.b16 %v5652, %v5649
    %v5680 = vpack.c.b16 %v5656, %v5653
    %v5681 = vpack.c.b16 %v5657, %v5654
    %v5682 = vpack.c.b16 %v5658, %v5655
    %5707 = vmatprep.subr.bf16.mxu0 %v5660
    %5708 = vmatpush1.bf16.msra.mxu0 %v5659
    %5709 = vmatprep.subr.bf16.mxu0 %v5663
    %5710 = vmatpush1.bf16.msra.mxu0 %v5662
    %5711 = vmatprep.subr.bf16.mxu0 %v5666
    %5712 = vmatpush1.bf16.msra.mxu0 %v5665
    %5713 = vmatprep.subr.bf16.mxu0 %v5669
    %5714 = vmatpush1.bf16.msra.mxu0 %v5668
    %5715 = vmatprep.subr.bf16.mxu0 %v5672
    %5716 = vmatpush1.bf16.msra.mxu0 %v5671
    %5717 = vmatprep.subr.bf16.mxu0 %v5675
    %5718 = vmatpush1.bf16.msra.mxu0 %v5674
    %5719 = vmatprep.subr.bf16.mxu0 %v5678
    %5720 = vmatpush1.bf16.msra.mxu0 %v5677
    %5721 = vmatprep.subr.bf16.mxu0 %v5681
    %5722 = vmatpush1.bf16.msra.mxu0 %v5680
    %5723 = vmatprep.subr.bf16.mxu0 0
    %5724 = vmatpush1.bf16.msra.mxu0 0
    %5725 = vmatprep.subr.bf16.mxu0 0
    %5726 = vmatpush1.bf16.msra.mxu0 0
    %5727 = vmatprep.subr.bf16.mxu0 0
    %5728 = vmatpush1.bf16.msra.mxu0 0
    %5729 = vmatprep.subr.bf16.mxu0 0
    %5730 = vmatpush1.bf16.msra.mxu0 0
    %5731 = vmatprep.subr.bf16.mxu0 0
    %5732 = vmatpush1.bf16.msra.mxu0 0
    %5733 = vmatprep.subr.bf16.mxu0 0
    %5734 = vmatpush1.bf16.msra.mxu0 0
    %5735 = vmatprep.subr.bf16.mxu0 0
    %5736 = vmatpush1.bf16.msra.mxu0 0
    %5737 = vmatprep.subr.bf16.mxu0 0
    %5738 = vmatpush1.bf16.msra.mxu0 0
    %5739 = vmatprep.mubr.bf16.mxu0 0
    %5740 = vmatmul.mubr.bf16.gmra.mrb[0].mxu0 %v5546
    %v5741 = vpop.f32.mrb[0].mxu0
    %v5742 = vadd.f32 %v537, %v5741
    %v5743 = vpop.f32.mrb[0].mxu0
    %v5744 = vadd.f32 %v541, %v5743
    %v5745 = vpop.f32.mrb[0].mxu0
    %v5746 = vpop.f32.mrb[0].mxu0
    %5747 = vdwg.mxu0
    %5748 = vmatprep.subr.bf16.mxu0 0
    %5749 = vmatpush1.bf16.msra.mxu0 %v5661
    %5750 = vmatprep.subr.bf16.mxu0 0
    %5751 = vmatpush1.bf16.msra.mxu0 %v5664
    %5752 = vmatprep.subr.bf16.mxu0 0
    %5753 = vmatpush1.bf16.msra.mxu0 %v5667
    %5754 = vmatprep.subr.bf16.mxu0 0
    %5755 = vmatpush1.bf16.msra.mxu0 %v5670
    %5756 = vmatprep.subr.bf16.mxu0 0
    %5757 = vmatpush1.bf16.msra.mxu0 %v5673
    %5758 = vmatprep.subr.bf16.mxu0 0
    %5759 = vmatpush1.bf16.msra.mxu0 %v5676
    %5760 = vmatprep.subr.bf16.mxu0 0
    %5761 = vmatpush1.bf16.msra.mxu0 %v5679
    %5762 = vmatprep.subr.bf16.mxu0 0
    %5763 = vmatpush1.bf16.msra.mxu0 %v5682
    %5764 = vmatprep.subr.bf16.mxu0 0
    %5765 = vmatpush1.bf16.msra.mxu0 0
    %5766 = vmatprep.subr.bf16.mxu0 0
    %5767 = vmatpush1.bf16.msra.mxu0 0
    %5768 = vmatprep.subr.bf16.mxu0 0
    %5769 = vmatpush1.bf16.msra.mxu0 0
    %5770 = vmatprep.subr.bf16.mxu0 0
    %5771 = vmatpush1.bf16.msra.mxu0 0
    %5772 = vmatprep.subr.bf16.mxu0 0
    %5773 = vmatpush1.bf16.msra.mxu0 0
    %5774 = vmatprep.subr.bf16.mxu0 0
    %5775 = vmatpush1.bf16.msra.mxu0 0
    %5776 = vmatprep.subr.bf16.mxu0 0
    %5777 = vmatpush1.bf16.msra.mxu0 0
    %5778 = vmatprep.subr.bf16.mxu0 0
    %5779 = vmatpush1.bf16.msra.mxu0 0
    %5780 = vmatprep.mubr.bf16.mxu0 0
    %5781 = vmatmul.mubr.bf16.gmra.mrb[0].mxu0 %v5546
    %v5782 = vpop.f32.mrb[0].mxu0
    %v5783 = vadd.f32 %v545, %v5782
    %v5784 = vpop.f32.mrb[0].mxu0
    %v5785 = vpop.f32.mrb[0].mxu0
    %v5786 = vpop.f32.mrb[0].mxu0
    %5787 = vdwg.mxu0
    %v5788 = vpack.c.bf16 %v5265, %v5265
    %v5789 = vld [vmem:[%s1073] sm:$0xff]
    %v5790 = vld [vmem:[%s1073 + $0x8] sm:$0xf]
    %v5791 = vld [vmem:[%s1073 + $0xc] sm:$0xff]
    %v5792 = vld [vmem:[%s1073 + $0x14] sm:$0xf]
    %v5793 = vld [vmem:[%s1073 + $0x18] sm:$0xff]
    %v5794 = vld [vmem:[%s1073 + $0x20] sm:$0xf]
    %v5795 = vld [vmem:[%s1073 + $0x24] sm:$0xff]
    %v5796 = vld [vmem:[%s1073 + $0x2c] sm:$0xf]
    %v5797 = vld [vmem:[%s1073 + $0x30] sm:$0xff]
    %v5798 = vld [vmem:[%s1073 + $0x38] sm:$0xf]
    %v5799 = vld [vmem:[%s1073 + $0x3c] sm:$0xff]
    %v5800 = vld [vmem:[%s1073 + $0x44] sm:$0xf]
    %v5801 = vld [vmem:[%s1073 + $0x48] sm:$0xff]
    %v5802 = vld [vmem:[%s1073 + $0x50] sm:$0xf]
    %v5803 = vld [vmem:[%s1073 + $0x54] sm:$0xff]
    %v5804 = vld [vmem:[%s1073 + $0x5c] sm:$0xf]
    %v5805 = vld [vmem:[%s1073 + $0x60] sm:$0xff]
    %v5806 = vld [vmem:[%s1073 + $0x68] sm:$0xf]
    %v5807 = vld [vmem:[%s1073 + $0x6c] sm:$0xff]
    %v5808 = vld [vmem:[%s1073 + $0x74] sm:$0xf]
    %v5809 = vld [vmem:[%s1073 + $0x78] sm:$0xff]
    %v5810 = vld [vmem:[%s1073 + $0x80] sm:$0xf]
    %v5811 = vld [vmem:[%s1073 + $0x84] sm:$0xff]
    %v5812 = vld [vmem:[%s1073 + $0x8c] sm:$0xf]
    %v5813 = vld [vmem:[%s1073 + $0x90] sm:$0xff]
    %v5814 = vld [vmem:[%s1073 + $0x98] sm:$0xf]
    %v5815 = vld [vmem:[%s1073 + $0x9c] sm:$0xff]
    %v5816 = vld [vmem:[%s1073 + $0xa4] sm:$0xf]
    %v5817 = vld [vmem:[%s1073 + $0xa8] sm:$0xff]
    %v5818 = vld [vmem:[%s1073 + $0xb0] sm:$0xf]
    %v5819 = vld [vmem:[%s1073 + $0xb4] sm:$0xff]
    %v5820 = vld [vmem:[%s1073 + $0xbc] sm:$0xf]
    %v5853 = vunpack.c.l.b16 %v5789
    %v5854 = vunpack.c.h.b16 %v5789
    %v5855 = vunpack.c.l.b16 %v5790
    %v5856 = vunpack.c.l.b16 %v5791
    %v5857 = vunpack.c.h.b16 %v5791
    %v5858 = vunpack.c.l.b16 %v5792
    %v5859 = vunpack.c.l.b16 %v5793
    %v5860 = vunpack.c.h.b16 %v5793
    %v5861 = vunpack.c.l.b16 %v5794
    %v5862 = vunpack.c.l.b16 %v5795
    %v5863 = vunpack.c.h.b16 %v5795
    %v5864 = vunpack.c.l.b16 %v5796
    %v5865 = vunpack.c.l.b16 %v5797
    %v5866 = vunpack.c.h.b16 %v5797
    %v5867 = vunpack.c.l.b16 %v5798
    %v5868 = vunpack.c.l.b16 %v5799
    %v5869 = vunpack.c.h.b16 %v5799
    %v5870 = vunpack.c.l.b16 %v5800
    %v5871 = vunpack.c.l.b16 %v5801
    %v5872 = vunpack.c.h.b16 %v5801
    %v5873 = vunpack.c.l.b16 %v5802
    %v5874 = vunpack.c.l.b16 %v5803
    %v5875 = vunpack.c.h.b16 %v5803
    %v5876 = vunpack.c.l.b16 %v5804
    %v5877 = vunpack.c.l.b16 %v5805
    %v5878 = vunpack.c.h.b16 %v5805
    %v5879 = vunpack.c.l.b16 %v5806
    %v5880 = vunpack.c.l.b16 %v5807
    %v5881 = vunpack.c.h.b16 %v5807
    %v5882 = vunpack.c.l.b16 %v5808
    %v5883 = vunpack.c.l.b16 %v5809
    %v5884 = vunpack.c.h.b16 %v5809
    %v5885 = vunpack.c.l.b16 %v5810
    %v5886 = vunpack.c.l.b16 %v5811
    %v5887 = vunpack.c.h.b16 %v5811
    %v5888 = vunpack.c.l.b16 %v5812
    %v5889 = vunpack.c.l.b16 %v5813
    %v5890 = vunpack.c.h.b16 %v5813
    %v5891 = vunpack.c.l.b16 %v5814
    %v5892 = vunpack.c.l.b16 %v5815
    %v5893 = vunpack.c.h.b16 %v5815
    %v5894 = vunpack.c.l.b16 %v5816
    %v5895 = vunpack.c.l.b16 %v5817
    %v5896 = vunpack.c.h.b16 %v5817
    %v5897 = vunpack.c.l.b16 %v5818
    %v5898 = vunpack.c.l.b16 %v5819
    %v5899 = vunpack.c.h.b16 %v5819
    %v5900 = vunpack.c.l.b16 %v5820
    %v5901 = vpack.c.b16 %v5856, %v5853
    %v5902 = vpack.c.b16 %v5857, %v5854
    %v5903 = vpack.c.b16 %v5858, %v5855
    %v5904 = vpack.c.b16 %v5862, %v5859
    %v5905 = vpack.c.b16 %v5863, %v5860
    %v5906 = vpack.c.b16 %v5864, %v5861
    %v5907 = vpack.c.b16 %v5868, %v5865
    %v5908 = vpack.c.b16 %v5869, %v5866
    %v5909 = vpack.c.b16 %v5870, %v5867
    %v5910 = vpack.c.b16 %v5874, %v5871
    %v5911 = vpack.c.b16 %v5875, %v5872
    %v5912 = vpack.c.b16 %v5876, %v5873
    %v5913 = vpack.c.b16 %v5880, %v5877
    %v5914 = vpack.c.b16 %v5881, %v5878
    %v5915 = vpack.c.b16 %v5882, %v5879
    %v5916 = vpack.c.b16 %v5886, %v5883
    %v5917 = vpack.c.b16 %v5887, %v5884
    %v5918 = vpack.c.b16 %v5888, %v5885
    %v5919 = vpack.c.b16 %v5892, %v5889
    %v5920 = vpack.c.b16 %v5893, %v5890
    %v5921 = vpack.c.b16 %v5894, %v5891
    %v5922 = vpack.c.b16 %v5898, %v5895
    %v5923 = vpack.c.b16 %v5899, %v5896
    %v5924 = vpack.c.b16 %v5900, %v5897
    %5949 = vmatprep.subr.bf16.mxu0 %v5902
    %5950 = vmatpush1.bf16.msra.mxu0 %v5901
    %5951 = vmatprep.subr.bf16.mxu0 %v5905
    %5952 = vmatpush1.bf16.msra.mxu0 %v5904
    %5953 = vmatprep.subr.bf16.mxu0 %v5908
    %5954 = vmatpush1.bf16.msra.mxu0 %v5907
    %5955 = vmatprep.subr.bf16.mxu0 %v5911
    %5956 = vmatpush1.bf16.msra.mxu0 %v5910
    %5957 = vmatprep.subr.bf16.mxu0 %v5914
    %5958 = vmatpush1.bf16.msra.mxu0 %v5913
    %5959 = vmatprep.subr.bf16.mxu0 %v5917
    %5960 = vmatpush1.bf16.msra.mxu0 %v5916
    %5961 = vmatprep.subr.bf16.mxu0 %v5920
    %5962 = vmatpush1.bf16.msra.mxu0 %v5919
    %5963 = vmatprep.subr.bf16.mxu0 %v5923
    %5964 = vmatpush1.bf16.msra.mxu0 %v5922
    %5965 = vmatprep.subr.bf16.mxu0 0
    %5966 = vmatpush1.bf16.msra.mxu0 0
    %5967 = vmatprep.subr.bf16.mxu0 0
    %5968 = vmatpush1.bf16.msra.mxu0 0
    %5969 = vmatprep.subr.bf16.mxu0 0
    %5970 = vmatpush1.bf16.msra.mxu0 0
    %5971 = vmatprep.subr.bf16.mxu0 0
    %5972 = vmatpush1.bf16.msra.mxu0 0
    %5973 = vmatprep.subr.bf16.mxu0 0
    %5974 = vmatpush1.bf16.msra.mxu0 0
    %5975 = vmatprep.subr.bf16.mxu0 0
    %5976 = vmatpush1.bf16.msra.mxu0 0
    %5977 = vmatprep.subr.bf16.mxu0 0
    %5978 = vmatpush1.bf16.msra.mxu0 0
    %5979 = vmatprep.subr.bf16.mxu0 0
    %5980 = vmatpush1.bf16.msra.mxu0 0
    %5981 = vmatprep.mubr.bf16.mxu0 0
    %5982 = vmatmul.mubr.bf16.gmra.mrb[0].mxu0 %v5788
    %v5983 = vpop.f32.mrb[0].mxu0
    %v5984 = vadd.f32 %v519, %v5983
    %v5985 = vpop.f32.mrb[0].mxu0
    %v5986 = vadd.f32 %v523, %v5985
    %v5987 = vpop.f32.mrb[0].mxu0
    %v5988 = vpop.f32.mrb[0].mxu0
    %5989 = vdwg.mxu0
    %5990 = vmatprep.subr.bf16.mxu0 0
    %5991 = vmatpush1.bf16.msra.mxu0 %v5903
    %5992 = vmatprep.subr.bf16.mxu0 0
    %5993 = vmatpush1.bf16.msra.mxu0 %v5906
    %5994 = vmatprep.subr.bf16.mxu0 0
    %5995 = vmatpush1.bf16.msra.mxu0 %v5909
    %5996 = vmatprep.subr.bf16.mxu0 0
    %5997 = vmatpush1.bf16.msra.mxu0 %v5912
    %5998 = vmatprep.subr.bf16.mxu0 0
    %5999 = vmatpush1.bf16.msra.mxu0 %v5915
    %6000 = vmatprep.subr.bf16.mxu0 0
    %6001 = vmatpush1.bf16.msra.mxu0 %v5918
    %6002 = vmatprep.subr.bf16.mxu0 0
    %6003 = vmatpush1.bf16.msra.mxu0 %v5921
    %6004 = vmatprep.subr.bf16.mxu0 0
    %6005 = vmatpush1.bf16.msra.mxu0 %v5924
    %6006 = vmatprep.subr.bf16.mxu0 0
    %6007 = vmatpush1.bf16.msra.mxu0 0
    %6008 = vmatprep.subr.bf16.mxu0 0
    %6009 = vmatpush1.bf16.msra.mxu0 0
    %6010 = vmatprep.subr.bf16.mxu0 0
    %6011 = vmatpush1.bf16.msra.mxu0 0
    %6012 = vmatprep.subr.bf16.mxu0 0
    %6013 = vmatpush1.bf16.msra.mxu0 0
    %6014 = vmatprep.subr.bf16.mxu0 0
    %6015 = vmatpush1.bf16.msra.mxu0 0
    %6016 = vmatprep.subr.bf16.mxu0 0
    %6017 = vmatpush1.bf16.msra.mxu0 0
    %6018 = vmatprep.subr.bf16.mxu0 0
    %6019 = vmatpush1.bf16.msra.mxu0 0
    %6020 = vmatprep.subr.bf16.mxu0 0
    %6021 = vmatpush1.bf16.msra.mxu0 0
    %6022 = vmatprep.mubr.bf16.mxu0 0
    %6023 = vmatmul.mubr.bf16.gmra.mrb[0].mxu0 %v5788
    %v6024 = vpop.f32.mrb[0].mxu0
    %v6025 = vadd.f32 %v527, %v6024
    %v6026 = vpop.f32.mrb[0].mxu0
    %v6027 = vpop.f32.mrb[0].mxu0
    %v6028 = vpop.f32.mrb[0].mxu0
    %6029 = vdwg.mxu0
    %v6030 = vadd.f32 %v5742, %v5984
    %v6031 = vxor.u32 %v6030, 2147483648
    %v6032 = vmul.f32 %v6031, 1.442695
    %v6033 = vpow.pop %v6032
    %v6034 = vadd.f32 %v6033, 1.0
    %v6035 = vrcp.pop %v6034
    %v6036 = vmul.f32 1.0, %v6035
    %v6037 = vadd.f32 %v5744, %v5986
    %v6038 = vxor.u32 %v6037, 2147483648
    %v6039 = vmul.f32 %v6038, 1.442695
    %v6040 = vpow.pop %v6039
    %v6041 = vadd.f32 %v6040, 1.0
    %v6042 = vrcp.pop %v6041
    %v6043 = vmul.f32 1.0, %v6042
    %v6044 = vmul.f32 %v6036, %v6025
    %v6045 = vadd.f32 %v5783, %v6044
    %v6046 = vtanh.pop %v6045
    %v6047 = vsub.f32 1.0, %v6043
    %v6048 = vmul.f32 %v6047, %v6046
    %v6049 = vmul.f32 %v6043, %v5265
    %v6050 = vadd.f32 %v6048, %v6049
    %v6051 = vsel %vm5543, %v6050, %v5265
    %v6052 = vsel %vm5543, %v6050, 0.0
    %s6053 = scalar_lea.vmem [#allocation15], 48
    %6054 = vst [vmem:[%s6053] sm:$0xff] %v6052
    %vm6055 = vcmp.gt.s32.totalorder %v495, 7
    %s6056 = smul.u32 7, 3
    %s6057 = smul.addr %s6056, 8
    %s6058 = scalar_lea.vmem [#allocation2], %s6057
    %v6059 = vld [vmem:[%s6058] sm:$0xff]
    %v6060 = vld [vmem:[%s6058 + $0x8] sm:$0xff]
    %v6061 = vld [vmem:[%s6058 + $0x10] sm:$0xff]
    %v6062 = vpack.c.bf16 %v5544, %v5544
    %v6063 = vld [vmem:[#allocation11] sm:$0xff]
    %v6064 = vld [vmem:[#allocation11 + $0x8] sm:$0xf]
    %v6065 = vld [vmem:[#allocation11 + $0xc] sm:$0xff]
    %v6066 = vld [vmem:[#allocation11 + $0x14] sm:$0xf]
    %v6067 = vld [vmem:[#allocation11 + $0x18] sm:$0xff]
    %v6068 = vld [vmem:[#allocation11 + $0x20] sm:$0xf]
    %v6069 = vld [vmem:[#allocation11 + $0x24] sm:$0xff]
    %v6070 = vld [vmem:[#allocation11 + $0x2c] sm:$0xf]
    %v6071 = vld [vmem:[#allocation11 + $0x30] sm:$0xff]
    %v6072 = vld [vmem:[#allocation11 + $0x38] sm:$0xf]
    %v6073 = vld [vmem:[#allocation11 + $0x3c] sm:$0xff]
    %v6074 = vld [vmem:[#allocation11 + $0x44] sm:$0xf]
    %v6075 = vld [vmem:[#allocation11 + $0x48] sm:$0xff]
    %v6076 = vld [vmem:[#allocation11 + $0x50] sm:$0xf]
    %v6077 = vld [vmem:[#allocation11 + $0x54] sm:$0xff]
    %v6078 = vld [vmem:[#allocation11 + $0x5c] sm:$0xf]
    %v6079 = vld [vmem:[#allocation11 + $0x60] sm:$0xff]
    %v6080 = vld [vmem:[#allocation11 + $0x68] sm:$0xf]
    %v6081 = vld [vmem:[#allocation11 + $0x6c] sm:$0xff]
    %v6082 = vld [vmem:[#allocation11 + $0x74] sm:$0xf]
    %v6083 = vld [vmem:[#allocation11 + $0x78] sm:$0xff]
    %v6084 = vld [vmem:[#allocation11 + $0x80] sm:$0xf]
    %v6085 = vld [vmem:[#allocation11 + $0x84] sm:$0xff]
    %v6086 = vld [vmem:[#allocation11 + $0x8c] sm:$0xf]
    %v6087 = vld [vmem:[#allocation11 + $0x90] sm:$0xff]
    %v6088 = vld [vmem:[#allocation11 + $0x98] sm:$0xf]
    %v6089 = vld [vmem:[#allocation11 + $0x9c] sm:$0xff]
    %v6090 = vld [vmem:[#allocation11 + $0xa4] sm:$0xf]
    %v6091 = vld [vmem:[#allocation11 + $0xa8] sm:$0xff]
    %v6092 = vld [vmem:[#allocation11 + $0xb0] sm:$0xf]
    %v6093 = vld [vmem:[#allocation11 + $0xb4] sm:$0xff]
    %v6094 = vld [vmem:[#allocation11 + $0xbc] sm:$0xf]
    %v6127 = vunpack.c.l.b16 %v6063
    %v6128 = vunpack.c.h.b16 %v6063
    %v6129 = vunpack.c.l.b16 %v6064
    %v6130 = vunpack.c.l.b16 %v6065
    %v6131 = vunpack.c.h.b16 %v6065
    %v6132 = vunpack.c.l.b16 %v6066
    %v6133 = vunpack.c.l.b16 %v6067
    %v6134 = vunpack.c.h.b16 %v6067
    %v6135 = vunpack.c.l.b16 %v6068
    %v6136 = vunpack.c.l.b16 %v6069
    %v6137 = vunpack.c.h.b16 %v6069
    %v6138 = vunpack.c.l.b16 %v6070
    %v6139 = vunpack.c.l.b16 %v6071
    %v6140 = vunpack.c.h.b16 %v6071
    %v6141 = vunpack.c.l.b16 %v6072
    %v6142 = vunpack.c.l.b16 %v6073
    %v6143 = vunpack.c.h.b16 %v6073
    %v6144 = vunpack.c.l.b16 %v6074
    %v6145 = vunpack.c.l.b16 %v6075
    %v6146 = vunpack.c.h.b16 %v6075
    %v6147 = vunpack.c.l.b16 %v6076
    %v6148 = vunpack.c.l.b16 %v6077
    %v6149 = vunpack.c.h.b16 %v6077
    %v6150 = vunpack.c.l.b16 %v6078
    %v6151 = vunpack.c.l.b16 %v6079
    %v6152 = vunpack.c.h.b16 %v6079
    %v6153 = vunpack.c.l.b16 %v6080
    %v6154 = vunpack.c.l.b16 %v6081
    %v6155 = vunpack.c.h.b16 %v6081
    %v6156 = vunpack.c.l.b16 %v6082
    %v6157 = vunpack.c.l.b16 %v6083
    %v6158 = vunpack.c.h.b16 %v6083
    %v6159 = vunpack.c.l.b16 %v6084
    %v6160 = vunpack.c.l.b16 %v6085
    %v6161 = vunpack.c.h.b16 %v6085
    %v6162 = vunpack.c.l.b16 %v6086
    %v6163 = vunpack.c.l.b16 %v6087
    %v6164 = vunpack.c.h.b16 %v6087
    %v6165 = vunpack.c.l.b16 %v6088
    %v6166 = vunpack.c.l.b16 %v6089
    %v6167 = vunpack.c.h.b16 %v6089
    %v6168 = vunpack.c.l.b16 %v6090
    %v6169 = vunpack.c.l.b16 %v6091
    %v6170 = vunpack.c.h.b16 %v6091
    %v6171 = vunpack.c.l.b16 %v6092
    %v6172 = vunpack.c.l.b16 %v6093
    %v6173 = vunpack.c.h.b16 %v6093
    %v6174 = vunpack.c.l.b16 %v6094
    %v6175 = vpack.c.b16 %v6130, %v6127
    %v6176 = vpack.c.b16 %v6131, %v6128
    %v6177 = vpack.c.b16 %v6132, %v6129
    %v6178 = vpack.c.b16 %v6136, %v6133
    %v6179 = vpack.c.b16 %v6137, %v6134
    %v6180 = vpack.c.b16 %v6138, %v6135
    %v6181 = vpack.c.b16 %v6142, %v6139
    %v6182 = vpack.c.b16 %v6143, %v6140
    %v6183 = vpack.c.b16 %v6144, %v6141
    %v6184 = vpack.c.b16 %v6148, %v6145
    %v6185 = vpack.c.b16 %v6149, %v6146
    %v6186 = vpack.c.b16 %v6150, %v6147
    %v6187 = vpack.c.b16 %v6154, %v6151
    %v6188 = vpack.c.b16 %v6155, %v6152
    %v6189 = vpack.c.b16 %v6156, %v6153
    %v6190 = vpack.c.b16 %v6160, %v6157
    %v6191 = vpack.c.b16 %v6161, %v6158
    %v6192 = vpack.c.b16 %v6162, %v6159
    %v6193 = vpack.c.b16 %v6166, %v6163
    %v6194 = vpack.c.b16 %v6167, %v6164
    %v6195 = vpack.c.b16 %v6168, %v6165
    %v6196 = vpack.c.b16 %v6172, %v6169
    %v6197 = vpack.c.b16 %v6173, %v6170
    %v6198 = vpack.c.b16 %v6174, %v6171
    %6223 = vmatprep.subr.bf16.mxu0 %v6176
    %6224 = vmatpush1.bf16.msra.mxu0 %v6175
    %6225 = vmatprep.subr.bf16.mxu0 %v6179
    %6226 = vmatpush1.bf16.msra.mxu0 %v6178
    %6227 = vmatprep.subr.bf16.mxu0 %v6182
    %6228 = vmatpush1.bf16.msra.mxu0 %v6181
    %6229 = vmatprep.subr.bf16.mxu0 %v6185
    %6230 = vmatpush1.bf16.msra.mxu0 %v6184
    %6231 = vmatprep.subr.bf16.mxu0 %v6188
    %6232 = vmatpush1.bf16.msra.mxu0 %v6187
    %6233 = vmatprep.subr.bf16.mxu0 %v6191
    %6234 = vmatpush1.bf16.msra.mxu0 %v6190
    %6235 = vmatprep.subr.bf16.mxu0 %v6194
    %6236 = vmatpush1.bf16.msra.mxu0 %v6193
    %6237 = vmatprep.subr.bf16.mxu0 %v6197
    %6238 = vmatpush1.bf16.msra.mxu0 %v6196
    %6239 = vmatprep.subr.bf16.mxu0 0
    %6240 = vmatpush1.bf16.msra.mxu0 0
    %6241 = vmatprep.subr.bf16.mxu0 0
    %6242 = vmatpush1.bf16.msra.mxu0 0
    %6243 = vmatprep.subr.bf16.mxu0 0
    %6244 = vmatpush1.bf16.msra.mxu0 0
    %6245 = vmatprep.subr.bf16.mxu0 0
    %6246 = vmatpush1.bf16.msra.mxu0 0
    %6247 = vmatprep.subr.bf16.mxu0 0
    %6248 = vmatpush1.bf16.msra.mxu0 0
    %6249 = vmatprep.subr.bf16.mxu0 0
    %6250 = vmatpush1.bf16.msra.mxu0 0
    %6251 = vmatprep.subr.bf16.mxu0 0
    %6252 = vmatpush1.bf16.msra.mxu0 0
    %6253 = vmatprep.subr.bf16.mxu0 0
    %6254 = vmatpush1.bf16.msra.mxu0 0
    %6255 = vmatprep.mubr.bf16.mxu0 0
    %6256 = vmatmul.mubr.bf16.gmra.mrb[0].mxu0 %v6062
    %v6257 = vpop.f32.mrb[0].mxu0
    %v6258 = vadd.f32 %v501, %v6257
    %v6259 = vpop.f32.mrb[0].mxu0
    %v6260 = vadd.f32 %v505, %v6259
    %v6261 = vpop.f32.mrb[0].mxu0
    %v6262 = vpop.f32.mrb[0].mxu0
    %6263 = vdwg.mxu0
    %6264 = vmatprep.subr.bf16.mxu0 0
    %6265 = vmatpush1.bf16.msra.mxu0 %v6177
    %6266 = vmatprep.subr.bf16.mxu0 0
    %6267 = vmatpush1.bf16.msra.mxu0 %v6180
    %6268 = vmatprep.subr.bf16.mxu0 0
    %6269 = vmatpush1.bf16.msra.mxu0 %v6183
    %6270 = vmatprep.subr.bf16.mxu0 0
    %6271 = vmatpush1.bf16.msra.mxu0 %v6186
    %6272 = vmatprep.subr.bf16.mxu0 0
    %6273 = vmatpush1.bf16.msra.mxu0 %v6189
    %6274 = vmatprep.subr.bf16.mxu0 0
    %6275 = vmatpush1.bf16.msra.mxu0 %v6192
    %6276 = vmatprep.subr.bf16.mxu0 0
    %6277 = vmatpush1.bf16.msra.mxu0 %v6195
    %6278 = vmatprep.subr.bf16.mxu0 0
    %6279 = vmatpush1.bf16.msra.mxu0 %v6198
    %6280 = vmatprep.subr.bf16.mxu0 0
    %6281 = vmatpush1.bf16.msra.mxu0 0
    %6282 = vmatprep.subr.bf16.mxu0 0
    %6283 = vmatpush1.bf16.msra.mxu0 0
    %6284 = vmatprep.subr.bf16.mxu0 0
    %6285 = vmatpush1.bf16.msra.mxu0 0
    %6286 = vmatprep.subr.bf16.mxu0 0
    %6287 = vmatpush1.bf16.msra.mxu0 0
    %6288 = vmatprep.subr.bf16.mxu0 0
    %6289 = vmatpush1.bf16.msra.mxu0 0
    %6290 = vmatprep.subr.bf16.mxu0 0
    %6291 = vmatpush1.bf16.msra.mxu0 0
    %6292 = vmatprep.subr.bf16.mxu0 0
    %6293 = vmatpush1.bf16.msra.mxu0 0
    %6294 = vmatprep.subr.bf16.mxu0 0
    %6295 = vmatpush1.bf16.msra.mxu0 0
    %6296 = vmatprep.mubr.bf16.mxu0 0
    %6297 = vmatmul.mubr.bf16.gmra.mrb[0].mxu0 %v6062
    %v6298 = vpop.f32.mrb[0].mxu0
    %v6299 = vadd.f32 %v509, %v6298
    %v6300 = vpop.f32.mrb[0].mxu0
    %v6301 = vpop.f32.mrb[0].mxu0
    %v6302 = vpop.f32.mrb[0].mxu0
    %6303 = vdwg.mxu0
    %v6304 = vadd.f32 %v6059, %v6258
    %v6305 = vxor.u32 %v6304, 2147483648
    %v6306 = vmul.f32 %v6305, 1.442695
    %v6307 = vpow.pop %v6306
    %v6308 = vadd.f32 %v6307, 1.0
    %v6309 = vrcp.pop %v6308
    %v6310 = vmul.f32 1.0, %v6309
    %v6311 = vadd.f32 %v6060, %v6260
    %v6312 = vxor.u32 %v6311, 2147483648
    %v6313 = vmul.f32 %v6312, 1.442695
    %v6314 = vpow.pop %v6313
    %v6315 = vadd.f32 %v6314, 1.0
    %v6316 = vrcp.pop %v6315
    %v6317 = vmul.f32 1.0, %v6316
    %v6318 = vmul.f32 %v6310, %v6299
    %v6319 = vadd.f32 %v6061, %v6318
    %v6320 = vtanh.pop %v6319
    %v6321 = vsub.f32 1.0, %v6317
    %v6322 = vmul.f32 %v6321, %v6320
    %v6323 = vmul.f32 %v6317, %v5544
    %v6324 = vadd.f32 %v6322, %v6323
    %v6325 = vsel %vm6055, 1, 0
    %6326 = vset.pattern.permute.xlu0 0
    %6327 = vperm.xlu0 %6326, %v6325
    %v6328 = vpop.permute.xlu0 %6327
    %vm6329 = vcmp.eq.s32.totalorder %v6328, 1
    %v6330 = vsel %vm6329, %v6324, %v5544
    %v6331 = vsel %vm6329, %v6324, 0.0
    %v6332 = vpack.c.bf16 %v6331, %v6331
    %v6333 = vld [vmem:[%s830] sm:$0xff]
    %v6334 = vld [vmem:[%s830 + $0x8] sm:$0xf]
    %v6335 = vld [vmem:[%s830 + $0xc] sm:$0xff]
    %v6336 = vld [vmem:[%s830 + $0x14] sm:$0xf]
    %v6337 = vld [vmem:[%s830 + $0x18] sm:$0xff]
    %v6338 = vld [vmem:[%s830 + $0x20] sm:$0xf]
    %v6339 = vld [vmem:[%s830 + $0x24] sm:$0xff]
    %v6340 = vld [vmem:[%s830 + $0x2c] sm:$0xf]
    %v6341 = vld [vmem:[%s830 + $0x30] sm:$0xff]
    %v6342 = vld [vmem:[%s830 + $0x38] sm:$0xf]
    %v6343 = vld [vmem:[%s830 + $0x3c] sm:$0xff]
    %v6344 = vld [vmem:[%s830 + $0x44] sm:$0xf]
    %v6345 = vld [vmem:[%s830 + $0x48] sm:$0xff]
    %v6346 = vld [vmem:[%s830 + $0x50] sm:$0xf]
    %v6347 = vld [vmem:[%s830 + $0x54] sm:$0xff]
    %v6348 = vld [vmem:[%s830 + $0x5c] sm:$0xf]
    %v6349 = vld [vmem:[%s830 + $0x60] sm:$0xff]
    %v6350 = vld [vmem:[%s830 + $0x68] sm:$0xf]
    %v6351 = vld [vmem:[%s830 + $0x6c] sm:$0xff]
    %v6352 = vld [vmem:[%s830 + $0x74] sm:$0xf]
    %v6353 = vld [vmem:[%s830 + $0x78] sm:$0xff]
    %v6354 = vld [vmem:[%s830 + $0x80] sm:$0xf]
    %v6355 = vld [vmem:[%s830 + $0x84] sm:$0xff]
    %v6356 = vld [vmem:[%s830 + $0x8c] sm:$0xf]
    %v6357 = vld [vmem:[%s830 + $0x90] sm:$0xff]
    %v6358 = vld [vmem:[%s830 + $0x98] sm:$0xf]
    %v6359 = vld [vmem:[%s830 + $0x9c] sm:$0xff]
    %v6360 = vld [vmem:[%s830 + $0xa4] sm:$0xf]
    %v6361 = vld [vmem:[%s830 + $0xa8] sm:$0xff]
    %v6362 = vld [vmem:[%s830 + $0xb0] sm:$0xf]
    %v6363 = vld [vmem:[%s830 + $0xb4] sm:$0xff]
    %v6364 = vld [vmem:[%s830 + $0xbc] sm:$0xf]
    %v6397 = vunpack.c.l.b16 %v6333
    %v6398 = vunpack.c.h.b16 %v6333
    %v6399 = vunpack.c.l.b16 %v6334
    %v6400 = vunpack.c.l.b16 %v6335
    %v6401 = vunpack.c.h.b16 %v6335
    %v6402 = vunpack.c.l.b16 %v6336
    %v6403 = vunpack.c.l.b16 %v6337
    %v6404 = vunpack.c.h.b16 %v6337
    %v6405 = vunpack.c.l.b16 %v6338
    %v6406 = vunpack.c.l.b16 %v6339
    %v6407 = vunpack.c.h.b16 %v6339
    %v6408 = vunpack.c.l.b16 %v6340
    %v6409 = vunpack.c.l.b16 %v6341
    %v6410 = vunpack.c.h.b16 %v6341
    %v6411 = vunpack.c.l.b16 %v6342
    %v6412 = vunpack.c.l.b16 %v6343
    %v6413 = vunpack.c.h.b16 %v6343
    %v6414 = vunpack.c.l.b16 %v6344
    %v6415 = vunpack.c.l.b16 %v6345
    %v6416 = vunpack.c.h.b16 %v6345
    %v6417 = vunpack.c.l.b16 %v6346
    %v6418 = vunpack.c.l.b16 %v6347
    %v6419 = vunpack.c.h.b16 %v6347
    %v6420 = vunpack.c.l.b16 %v6348
    %v6421 = vunpack.c.l.b16 %v6349
    %v6422 = vunpack.c.h.b16 %v6349
    %v6423 = vunpack.c.l.b16 %v6350
    %v6424 = vunpack.c.l.b16 %v6351
    %v6425 = vunpack.c.h.b16 %v6351
    %v6426 = vunpack.c.l.b16 %v6352
    %v6427 = vunpack.c.l.b16 %v6353
    %v6428 = vunpack.c.h.b16 %v6353
    %v6429 = vunpack.c.l.b16 %v6354
    %v6430 = vunpack.c.l.b16 %v6355
    %v6431 = vunpack.c.h.b16 %v6355
    %v6432 = vunpack.c.l.b16 %v6356
    %v6433 = vunpack.c.l.b16 %v6357
    %v6434 = vunpack.c.h.b16 %v6357
    %v6435 = vunpack.c.l.b16 %v6358
    %v6436 = vunpack.c.l.b16 %v6359
    %v6437 = vunpack.c.h.b16 %v6359
    %v6438 = vunpack.c.l.b16 %v6360
    %v6439 = vunpack.c.l.b16 %v6361
    %v6440 = vunpack.c.h.b16 %v6361
    %v6441 = vunpack.c.l.b16 %v6362
    %v6442 = vunpack.c.l.b16 %v6363
    %v6443 = vunpack.c.h.b16 %v6363
    %v6444 = vunpack.c.l.b16 %v6364
    %v6445 = vpack.c.b16 %v6400, %v6397
    %v6446 = vpack.c.b16 %v6401, %v6398
    %v6447 = vpack.c.b16 %v6402, %v6399
    %v6448 = vpack.c.b16 %v6406, %v6403
    %v6449 = vpack.c.b16 %v6407, %v6404
    %v6450 = vpack.c.b16 %v6408, %v6405
    %v6451 = vpack.c.b16 %v6412, %v6409
    %v6452 = vpack.c.b16 %v6413, %v6410
    %v6453 = vpack.c.b16 %v6414, %v6411
    %v6454 = vpack.c.b16 %v6418, %v6415
    %v6455 = vpack.c.b16 %v6419, %v6416
    %v6456 = vpack.c.b16 %v6420, %v6417
    %v6457 = vpack.c.b16 %v6424, %v6421
    %v6458 = vpack.c.b16 %v6425, %v6422
    %v6459 = vpack.c.b16 %v6426, %v6423
    %v6460 = vpack.c.b16 %v6430, %v6427
    %v6461 = vpack.c.b16 %v6431, %v6428
    %v6462 = vpack.c.b16 %v6432, %v6429
    %v6463 = vpack.c.b16 %v6436, %v6433
    %v6464 = vpack.c.b16 %v6437, %v6434
    %v6465 = vpack.c.b16 %v6438, %v6435
    %v6466 = vpack.c.b16 %v6442, %v6439
    %v6467 = vpack.c.b16 %v6443, %v6440
    %v6468 = vpack.c.b16 %v6444, %v6441
    %6493 = vmatprep.subr.bf16.mxu0 %v6446
    %6494 = vmatpush1.bf16.msra.mxu0 %v6445
    %6495 = vmatprep.subr.bf16.mxu0 %v6449
    %6496 = vmatpush1.bf16.msra.mxu0 %v6448
    %6497 = vmatprep.subr.bf16.mxu0 %v6452
    %6498 = vmatpush1.bf16.msra.mxu0 %v6451
    %6499 = vmatprep.subr.bf16.mxu0 %v6455
    %6500 = vmatpush1.bf16.msra.mxu0 %v6454
    %6501 = vmatprep.subr.bf16.mxu0 %v6458
    %6502 = vmatpush1.bf16.msra.mxu0 %v6457
    %6503 = vmatprep.subr.bf16.mxu0 %v6461
    %6504 = vmatpush1.bf16.msra.mxu0 %v6460
    %6505 = vmatprep.subr.bf16.mxu0 %v6464
    %6506 = vmatpush1.bf16.msra.mxu0 %v6463
    %6507 = vmatprep.subr.bf16.mxu0 %v6467
    %6508 = vmatpush1.bf16.msra.mxu0 %v6466
    %6509 = vmatprep.subr.bf16.mxu0 0
    %6510 = vmatpush1.bf16.msra.mxu0 0
    %6511 = vmatprep.subr.bf16.mxu0 0
    %6512 = vmatpush1.bf16.msra.mxu0 0
    %6513 = vmatprep.subr.bf16.mxu0 0
    %6514 = vmatpush1.bf16.msra.mxu0 0
    %6515 = vmatprep.subr.bf16.mxu0 0
    %6516 = vmatpush1.bf16.msra.mxu0 0
    %6517 = vmatprep.subr.bf16.mxu0 0
    %6518 = vmatpush1.bf16.msra.mxu0 0
    %6519 = vmatprep.subr.bf16.mxu0 0
    %6520 = vmatpush1.bf16.msra.mxu0 0
    %6521 = vmatprep.subr.bf16.mxu0 0
    %6522 = vmatpush1.bf16.msra.mxu0 0
    %6523 = vmatprep.subr.bf16.mxu0 0
    %6524 = vmatpush1.bf16.msra.mxu0 0
    %6525 = vmatprep.mubr.bf16.mxu0 0
    %6526 = vmatmul.mubr.bf16.gmra.mrb[0].mxu0 %v6332
    %v6527 = vpop.f32.mrb[0].mxu0
    %v6528 = vadd.f32 %v537, %v6527
    %v6529 = vpop.f32.mrb[0].mxu0
    %v6530 = vadd.f32 %v541, %v6529
    %v6531 = vpop.f32.mrb[0].mxu0
    %v6532 = vpop.f32.mrb[0].mxu0
    %6533 = vdwg.mxu0
    %6534 = vmatprep.subr.bf16.mxu0 0
    %6535 = vmatpush1.bf16.msra.mxu0 %v6447
    %6536 = vmatprep.subr.bf16.mxu0 0
    %6537 = vmatpush1.bf16.msra.mxu0 %v6450
    %6538 = vmatprep.subr.bf16.mxu0 0
    %6539 = vmatpush1.bf16.msra.mxu0 %v6453
    %6540 = vmatprep.subr.bf16.mxu0 0
    %6541 = vmatpush1.bf16.msra.mxu0 %v6456
    %6542 = vmatprep.subr.bf16.mxu0 0
    %6543 = vmatpush1.bf16.msra.mxu0 %v6459
    %6544 = vmatprep.subr.bf16.mxu0 0
    %6545 = vmatpush1.bf16.msra.mxu0 %v6462
    %6546 = vmatprep.subr.bf16.mxu0 0
    %6547 = vmatpush1.bf16.msra.mxu0 %v6465
    %6548 = vmatprep.subr.bf16.mxu0 0
    %6549 = vmatpush1.bf16.msra.mxu0 %v6468
    %6550 = vmatprep.subr.bf16.mxu0 0
    %6551 = vmatpush1.bf16.msra.mxu0 0
    %6552 = vmatprep.subr.bf16.mxu0 0
    %6553 = vmatpush1.bf16.msra.mxu0 0
    %6554 = vmatprep.subr.bf16.mxu0 0
    %6555 = vmatpush1.bf16.msra.mxu0 0
    %6556 = vmatprep.subr.bf16.mxu0 0
    %6557 = vmatpush1.bf16.msra.mxu0 0
    %6558 = vmatprep.subr.bf16.mxu0 0
    %6559 = vmatpush1.bf16.msra.mxu0 0
    %6560 = vmatprep.subr.bf16.mxu0 0
    %6561 = vmatpush1.bf16.msra.mxu0 0
    %6562 = vmatprep.subr.bf16.mxu0 0
    %6563 = vmatpush1.bf16.msra.mxu0 0
    %6564 = vmatprep.subr.bf16.mxu0 0
    %6565 = vmatpush1.bf16.msra.mxu0 0
    %6566 = vmatprep.mubr.bf16.mxu0 0
    %6567 = vmatmul.mubr.bf16.gmra.mrb[0].mxu0 %v6332
    %v6568 = vpop.f32.mrb[0].mxu0
    %v6569 = vadd.f32 %v545, %v6568
    %v6570 = vpop.f32.mrb[0].mxu0
    %v6571 = vpop.f32.mrb[0].mxu0
    %v6572 = vpop.f32.mrb[0].mxu0
    %6573 = vdwg.mxu0
    %v6574 = vpack.c.bf16 %v6051, %v6051
    %v6575 = vld [vmem:[%s1073] sm:$0xff]
    %v6576 = vld [vmem:[%s1073 + $0x8] sm:$0xf]
    %v6577 = vld [vmem:[%s1073 + $0xc] sm:$0xff]
    %v6578 = vld [vmem:[%s1073 + $0x14] sm:$0xf]
    %v6579 = vld [vmem:[%s1073 + $0x18] sm:$0xff]
    %v6580 = vld [vmem:[%s1073 + $0x20] sm:$0xf]
    %v6581 = vld [vmem:[%s1073 + $0x24] sm:$0xff]
    %v6582 = vld [vmem:[%s1073 + $0x2c] sm:$0xf]
    %v6583 = vld [vmem:[%s1073 + $0x30] sm:$0xff]
    %v6584 = vld [vmem:[%s1073 + $0x38] sm:$0xf]
    %v6585 = vld [vmem:[%s1073 + $0x3c] sm:$0xff]
    %v6586 = vld [vmem:[%s1073 + $0x44] sm:$0xf]
    %v6587 = vld [vmem:[%s1073 + $0x48] sm:$0xff]
    %v6588 = vld [vmem:[%s1073 + $0x50] sm:$0xf]
    %v6589 = vld [vmem:[%s1073 + $0x54] sm:$0xff]
    %v6590 = vld [vmem:[%s1073 + $0x5c] sm:$0xf]
    %v6591 = vld [vmem:[%s1073 + $0x60] sm:$0xff]
    %v6592 = vld [vmem:[%s1073 + $0x68] sm:$0xf]
    %v6593 = vld [vmem:[%s1073 + $0x6c] sm:$0xff]
    %v6594 = vld [vmem:[%s1073 + $0x74] sm:$0xf]
    %v6595 = vld [vmem:[%s1073 + $0x78] sm:$0xff]
    %v6596 = vld [vmem:[%s1073 + $0x80] sm:$0xf]
    %v6597 = vld [vmem:[%s1073 + $0x84] sm:$0xff]
    %v6598 = vld [vmem:[%s1073 + $0x8c] sm:$0xf]
    %v6599 = vld [vmem:[%s1073 + $0x90] sm:$0xff]
    %v6600 = vld [vmem:[%s1073 + $0x98] sm:$0xf]
    %v6601 = vld [vmem:[%s1073 + $0x9c] sm:$0xff]
    %v6602 = vld [vmem:[%s1073 + $0xa4] sm:$0xf]
    %v6603 = vld [vmem:[%s1073 + $0xa8] sm:$0xff]
    %v6604 = vld [vmem:[%s1073 + $0xb0] sm:$0xf]
    %v6605 = vld [vmem:[%s1073 + $0xb4] sm:$0xff]
    %v6606 = vld [vmem:[%s1073 + $0xbc] sm:$0xf]
    %v6639 = vunpack.c.l.b16 %v6575
    %v6640 = vunpack.c.h.b16 %v6575
    %v6641 = vunpack.c.l.b16 %v6576
    %v6642 = vunpack.c.l.b16 %v6577
    %v6643 = vunpack.c.h.b16 %v6577
    %v6644 = vunpack.c.l.b16 %v6578
    %v6645 = vunpack.c.l.b16 %v6579
    %v6646 = vunpack.c.h.b16 %v6579
    %v6647 = vunpack.c.l.b16 %v6580
    %v6648 = vunpack.c.l.b16 %v6581
    %v6649 = vunpack.c.h.b16 %v6581
    %v6650 = vunpack.c.l.b16 %v6582
    %v6651 = vunpack.c.l.b16 %v6583
    %v6652 = vunpack.c.h.b16 %v6583
    %v6653 = vunpack.c.l.b16 %v6584
    %v6654 = vunpack.c.l.b16 %v6585
    %v6655 = vunpack.c.h.b16 %v6585
    %v6656 = vunpack.c.l.b16 %v6586
    %v6657 = vunpack.c.l.b16 %v6587
    %v6658 = vunpack.c.h.b16 %v6587
    %v6659 = vunpack.c.l.b16 %v6588
    %v6660 = vunpack.c.l.b16 %v6589
    %v6661 = vunpack.c.h.b16 %v6589
    %v6662 = vunpack.c.l.b16 %v6590
    %v6663 = vunpack.c.l.b16 %v6591
    %v6664 = vunpack.c.h.b16 %v6591
    %v6665 = vunpack.c.l.b16 %v6592
    %v6666 = vunpack.c.l.b16 %v6593
    %v6667 = vunpack.c.h.b16 %v6593
    %v6668 = vunpack.c.l.b16 %v6594
    %v6669 = vunpack.c.l.b16 %v6595
    %v6670 = vunpack.c.h.b16 %v6595
    %v6671 = vunpack.c.l.b16 %v6596
    %v6672 = vunpack.c.l.b16 %v6597
    %v6673 = vunpack.c.h.b16 %v6597
    %v6674 = vunpack.c.l.b16 %v6598
    %v6675 = vunpack.c.l.b16 %v6599
    %v6676 = vunpack.c.h.b16 %v6599
    %v6677 = vunpack.c.l.b16 %v6600
    %v6678 = vunpack.c.l.b16 %v6601
    %v6679 = vunpack.c.h.b16 %v6601
    %v6680 = vunpack.c.l.b16 %v6602
    %v6681 = vunpack.c.l.b16 %v6603
    %v6682 = vunpack.c.h.b16 %v6603
    %v6683 = vunpack.c.l.b16 %v6604
    %v6684 = vunpack.c.l.b16 %v6605
    %v6685 = vunpack.c.h.b16 %v6605
    %v6686 = vunpack.c.l.b16 %v6606
    %v6687 = vpack.c.b16 %v6642, %v6639
    %v6688 = vpack.c.b16 %v6643, %v6640
    %v6689 = vpack.c.b16 %v6644, %v6641
    %v6690 = vpack.c.b16 %v6648, %v6645
    %v6691 = vpack.c.b16 %v6649, %v6646
    %v6692 = vpack.c.b16 %v6650, %v6647
    %v6693 = vpack.c.b16 %v6654, %v6651
    %v6694 = vpack.c.b16 %v6655, %v6652
    %v6695 = vpack.c.b16 %v6656, %v6653
    %v6696 = vpack.c.b16 %v6660, %v6657
    %v6697 = vpack.c.b16 %v6661, %v6658
    %v6698 = vpack.c.b16 %v6662, %v6659
    %v6699 = vpack.c.b16 %v6666, %v6663
    %v6700 = vpack.c.b16 %v6667, %v6664
    %v6701 = vpack.c.b16 %v6668, %v6665
    %v6702 = vpack.c.b16 %v6672, %v6669
    %v6703 = vpack.c.b16 %v6673, %v6670
    %v6704 = vpack.c.b16 %v6674, %v6671
    %v6705 = vpack.c.b16 %v6678, %v6675
    %v6706 = vpack.c.b16 %v6679, %v6676
    %v6707 = vpack.c.b16 %v6680, %v6677
    %v6708 = vpack.c.b16 %v6684, %v6681
    %v6709 = vpack.c.b16 %v6685, %v6682
    %v6710 = vpack.c.b16 %v6686, %v6683
    %6735 = vmatprep.subr.bf16.mxu0 %v6688
    %6736 = vmatpush1.bf16.msra.mxu0 %v6687
    %6737 = vmatprep.subr.bf16.mxu0 %v6691
    %6738 = vmatpush1.bf16.msra.mxu0 %v6690
    %6739 = vmatprep.subr.bf16.mxu0 %v6694
    %6740 = vmatpush1.bf16.msra.mxu0 %v6693
    %6741 = vmatprep.subr.bf16.mxu0 %v6697
    %6742 = vmatpush1.bf16.msra.mxu0 %v6696
    %6743 = vmatprep.subr.bf16.mxu0 %v6700
    %6744 = vmatpush1.bf16.msra.mxu0 %v6699
    %6745 = vmatprep.subr.bf16.mxu0 %v6703
    %6746 = vmatpush1.bf16.msra.mxu0 %v6702
    %6747 = vmatprep.subr.bf16.mxu0 %v6706
    %6748 = vmatpush1.bf16.msra.mxu0 %v6705
    %6749 = vmatprep.subr.bf16.mxu0 %v6709
    %6750 = vmatpush1.bf16.msra.mxu0 %v6708
    %6751 = vmatprep.subr.bf16.mxu0 0
    %6752 = vmatpush1.bf16.msra.mxu0 0
    %6753 = vmatprep.subr.bf16.mxu0 0
    %6754 = vmatpush1.bf16.msra.mxu0 0
    %6755 = vmatprep.subr.bf16.mxu0 0
    %6756 = vmatpush1.bf16.msra.mxu0 0
    %6757 = vmatprep.subr.bf16.mxu0 0
    %6758 = vmatpush1.bf16.msra.mxu0 0
    %6759 = vmatprep.subr.bf16.mxu0 0
    %6760 = vmatpush1.bf16.msra.mxu0 0
    %6761 = vmatprep.subr.bf16.mxu0 0
    %6762 = vmatpush1.bf16.msra.mxu0 0
    %6763 = vmatprep.subr.bf16.mxu0 0
    %6764 = vmatpush1.bf16.msra.mxu0 0
    %6765 = vmatprep.subr.bf16.mxu0 0
    %6766 = vmatpush1.bf16.msra.mxu0 0
    %6767 = vmatprep.mubr.bf16.mxu0 0
    %6768 = vmatmul.mubr.bf16.gmra.mrb[0].mxu0 %v6574
    %v6769 = vpop.f32.mrb[0].mxu0
    %v6770 = vadd.f32 %v519, %v6769
    %v6771 = vpop.f32.mrb[0].mxu0
    %v6772 = vadd.f32 %v523, %v6771
    %v6773 = vpop.f32.mrb[0].mxu0
    %v6774 = vpop.f32.mrb[0].mxu0
    %6775 = vdwg.mxu0
    %6776 = vmatprep.subr.bf16.mxu0 0
    %6777 = vmatpush1.bf16.msra.mxu0 %v6689
    %6778 = vmatprep.subr.bf16.mxu0 0
    %6779 = vmatpush1.bf16.msra.mxu0 %v6692
    %6780 = vmatprep.subr.bf16.mxu0 0
    %6781 = vmatpush1.bf16.msra.mxu0 %v6695
    %6782 = vmatprep.subr.bf16.mxu0 0
    %6783 = vmatpush1.bf16.msra.mxu0 %v6698
    %6784 = vmatprep.subr.bf16.mxu0 0
    %6785 = vmatpush1.bf16.msra.mxu0 %v6701
    %6786 = vmatprep.subr.bf16.mxu0 0
    %6787 = vmatpush1.bf16.msra.mxu0 %v6704
    %6788 = vmatprep.subr.bf16.mxu0 0
    %6789 = vmatpush1.bf16.msra.mxu0 %v6707
    %6790 = vmatprep.subr.bf16.mxu0 0
    %6791 = vmatpush1.bf16.msra.mxu0 %v6710
    %6792 = vmatprep.subr.bf16.mxu0 0
    %6793 = vmatpush1.bf16.msra.mxu0 0
    %6794 = vmatprep.subr.bf16.mxu0 0
    %6795 = vmatpush1.bf16.msra.mxu0 0
    %6796 = vmatprep.subr.bf16.mxu0 0
    %6797 = vmatpush1.bf16.msra.mxu0 0
    %6798 = vmatprep.subr.bf16.mxu0 0
    %6799 = vmatpush1.bf16.msra.mxu0 0
    %6800 = vmatprep.subr.bf16.mxu0 0
    %6801 = vmatpush1.bf16.msra.mxu0 0
    %6802 = vmatprep.subr.bf16.mxu0 0
    %6803 = vmatpush1.bf16.msra.mxu0 0
    %6804 = vmatprep.subr.bf16.mxu0 0
    %6805 = vmatpush1.bf16.msra.mxu0 0
    %6806 = vmatprep.subr.bf16.mxu0 0
    %6807 = vmatpush1.bf16.msra.mxu0 0
    %6808 = vmatprep.mubr.bf16.mxu0 0
    %6809 = vmatmul.mubr.bf16.gmra.mrb[0].mxu0 %v6574
    %v6810 = vpop.f32.mrb[0].mxu0
    %v6811 = vadd.f32 %v527, %v6810
    %v6812 = vpop.f32.mrb[0].mxu0
    %v6813 = vpop.f32.mrb[0].mxu0
    %v6814 = vpop.f32.mrb[0].mxu0
    %6815 = vdwg.mxu0
    %v6816 = vadd.f32 %v6528, %v6770
    %v6817 = vxor.u32 %v6816, 2147483648
    %v6818 = vmul.f32 %v6817, 1.442695
    %v6819 = vpow.pop %v6818
    %v6820 = vadd.f32 %v6819, 1.0
    %v6821 = vrcp.pop %v6820
    %v6822 = vmul.f32 1.0, %v6821
    %v6823 = vadd.f32 %v6530, %v6772
    %v6824 = vxor.u32 %v6823, 2147483648
    %v6825 = vmul.f32 %v6824, 1.442695
    %v6826 = vpow.pop %v6825
    %v6827 = vadd.f32 %v6826, 1.0
    %v6828 = vrcp.pop %v6827
    %v6829 = vmul.f32 1.0, %v6828
    %v6830 = vmul.f32 %v6822, %v6811
    %v6831 = vadd.f32 %v6569, %v6830
    %v6832 = vtanh.pop %v6831
    %v6833 = vsub.f32 1.0, %v6829
    %v6834 = vmul.f32 %v6833, %v6832
    %v6835 = vmul.f32 %v6829, %v6051
    %v6836 = vadd.f32 %v6834, %v6835
    %v6837 = vsel %vm6329, %v6836, %v6051
    %v6838 = vsel %vm6329, %v6836, 0.0
    %s6839 = scalar_lea.vmem [#allocation15], 56
    %6840 = vst [vmem:[%s6839] sm:$0xff] %v6838
    %6841 = vst [vmem:[#allocation16] sm:$0xff] %v6330
    %s6842 = scalar_lea.vmem [#allocation16], 8
    %6843 = vst [vmem:[%s6842] sm:$0xff] %v6837
    // Predicated region
    $region58: #{dr_model_forward.1} parent=1 // pred_check
      _
    $region59: #{dr_model_forward.1} parent=1 // pred_check_branch
      %6845 = sbr.rel (0) target = $region61
    $region60: #{dr_model_forward.1} parent=1 // pred_region
      %s6847 = ssub.s32 1024, 1024
      %6848 = vsyncadd [#allocation5], %s6847
      %s6849 = sshll.u32 [#allocation15], 4
      %s6850 = int_to_ptr.vmem [resolvable:$true] %s6849
      %6855 = dma.vmem_to_hbm [thread:$0]  %s6850, 1024, %s7, [#allocation5], 128, 128, 8
    $region61: #{dr_model_forward.1} parent=1 // pred_fallthru
      _
    // Predicated region
    $region62: #{dr_model_forward.1} parent=1 // pred_check
      _
    $region63: #{dr_model_forward.1} parent=1 // pred_check_branch
      %6857 = sbr.rel (0) target = $region65
    $region64: #{dr_model_forward.1} parent=1 // pred_region
      %s6859 = ssub.s32 256, 256
      %6860 = vsyncadd [#allocation17], %s6859
      %s6861 = sshll.u32 [#allocation16], 4
      %s6862 = int_to_ptr.vmem [resolvable:$true] %s6861
      %6867 = dma.vmem_to_hbm [thread:$0]  %s6862, 256, %s8, [#allocation17], 128, 128, 8
    $region65: #{dr_model_forward.1} parent=1 // pred_fallthru
      _
    // Predicated region
    $region66: #{dr_model_forward.1} parent=1 // pred_check
      _
    $region67: #{dr_model_forward.1} parent=1 // pred_check_branch
      %6869 = sbr.rel (0) target = $region69
    $region68: #{dr_model_forward.1} parent=1 // pred_region
      %6870 = dma.done [#allocation5], 1024
    $region69: #{dr_model_forward.1} parent=1 // pred_fallthru
      _
    // Predicated region
    $region70: #{dr_model_forward.1} parent=1 // pred_check
      _
    $region71: #{dr_model_forward.1} parent=1 // pred_check_branch
      %6872 = sbr.rel (0) target = $region73
    $region72: #{dr_model_forward.1} parent=1 // pred_region
      %6873 = dma.done [#allocation17], 256
    $region73: #{dr_model_forward.1} parent=1 // pred_fallthru
      _
    %6874 = vsyncpa [#allocation4], 1
    %6875 = vsyncpa [#allocation7], 1
    %6876 = vsyncpa [#allocation10], 1
    %6877 = vsyncpa [#allocation13], 1
    %6878 = vsyncpa [#allocation5], 1
    %6879 = vsyncpa [#allocation17], 1

</llo_original>
